<compile_context>
chip_gen: v6e
topology: v6e:2x2x1
jax: 0.10.0
libtpu: 0.0.40
codegen_flags: <defaults>
</compile_context>

<pallas_src>
import functools

import jax
import jax.numpy as jnp
from jax import lax
from jax.experimental import pallas as pl
from jax.experimental.pallas import tpu as pltpu


def _pick_vmem_limit():
    # v5e/v6e: 128 MiB physical VMEM -> allow 64 MiB scoped; v7x: 64 MiB -> 32 MiB.
    try:
        cap = int(pltpu.get_tpu_info().vmem_capacity_bytes)
        return max(16 * 1024 * 1024, min(64 * 1024 * 1024, cap // 2))
    except Exception:
        return 32 * 1024 * 1024


# ---------------------------------------------------------------------------
# Kernel 1: fused QKV projection
#   depthwise 3x3 conv (+ eval-BN, folded) + 1x1 projection for q, k, v.
#   One batch per grid step.  The 9 masked, shifted (L, C) windows of the
#   in-kernel zero-padded input are packed into an im2col slab (L, 9C) in VMEM,
#   then:
#     Q  = Mq  (O, 9C)  @ slab^T  -> (O, L)   (lane-dense, scale & bias folded)
#     KV = slab (L, 9C) @ Mkv     -> (L, 2O)  (channels on lanes)
#   stride_kv is applied with sublane-strided ref reads of the (L, 2O) scratch.
# ---------------------------------------------------------------------------
def _fused_qkv_proj_kernel(x_ref, mq_ref, mkv_ref, bq_ref, bkv_ref,
                           q_ref, k_ref, v_ref,
                           xpad_ref, xcat_ref, kv_ref,
                           *, height, width, stride_kv):
    num_pix = height * width
    dim_out = q_ref.shape[1]
    cin = x_ref.shape[2]
    pad = width + 1
    ho = (height - 1) // stride_kv + 1
    wo = (width - 1) // stride_kv + 1

    # In-kernel zero padding: only the halo rows are zeroed (body overwritten by x).
    zero_halo = jnp.zeros((pad, cin), xpad_ref.dtype)
    xpad_ref[0:pad, :] = zero_halo
    xpad_ref[pad + num_pix:pad + num_pix + pad, :] = zero_halo
    xpad_ref[pad:pad + num_pix, :] = x_ref[0]

    # Horizontal-border masks along the flattened-spatial (sublane) axis.
    col = lax.broadcasted_iota(jnp.int32, (num_pix, 1), 0) % width
    not_left = col >= 1
    not_right = col <= width - 2

    # im2col: 9 masked shifted windows written side by side -> (L, 9C) bf16 slab.
    tap = 0
    for oy in (-1, 0, 1):
        for ox in (-1, 0, 1):
            start = pad + oy * width + ox
            xs = xpad_ref[start:start + num_pix, :]          # (L, C) shifted window
            if ox == 1:                                      # right-border cols invalid
                xs = jnp.where(not_right, xs, 0.0)
            elif ox == -1:                                   # left-border cols invalid
                xs = jnp.where(not_left, xs, 0.0)
            xcat_ref[:, tap * cin:(tap + 1) * cin] = xs.astype(xcat_ref.dtype)
            tap += 1
    xcat = xcat_ref[...]                                     # (L, 9C) bf16

    # Q branch: one deep-contraction MXU matmul; softmax scale and bias pre-folded.
    acc_q = lax.dot_general(mq_ref[...], xcat, (((1,), (1,)), ((), ())),
                            preferred_element_type=jnp.float32)        # (O, L)
    q_ref[0] = (acc_q + bq_ref[...]).astype(q_ref.dtype)

    # K/V branches: one matmul -> (L, 2O) with channels on lanes so the stride_kv
    # subsample below is a cheap sublane-strided read.
    acc_kv = lax.dot_general(xcat, mkv_ref[...], (((1,), (0,)), ((), ())),
                             preferred_element_type=jnp.float32)       # (L, 2O)
    kv_ref[...] = acc_kv + bkv_ref[...]

    # stride_kv subsample via strided ref reads (replaces the one-hot sel matmul).
    for i in range(ho):
        if stride_kv == 1:
            row_idx = pl.ds(i * width, wo)
        else:
            row_idx = pl.ds(i * stride_kv * width, wo, stride_kv)
        rows = kv_ref[row_idx, :]                            # (wo, 2O) f32
        k_ref[0, i * wo:(i + 1) * wo, :] = rows[:, :dim_out].astype(k_ref.dtype)
        v_ref[0, i * wo:(i + 1) * wo, :] = rows[:, dim_out:].astype(v_ref.dtype)


# ---------------------------------------------------------------------------
# Kernel 2: multi-head attention fused with the final 1x1 conv_proj.
#   One (batch, q-tile) block per grid step; all heads handled in-kernel.
#   Per-head outputs land in a (dim_out, TQ) scratch; the conv_proj is then a
#   single full-depth (dim_out, dim_out) matmul into the lane-dense output tile.
# ---------------------------------------------------------------------------
def _attn_proj_kernel(q_ref, k_ref, v_ref, pwt_ref, pb_ref, o_ref, heads_ref,
                      *, num_heads):
    dim_out = q_ref.shape[1]
    d_head = dim_out // num_heads

    for hd in range(num_heads):
        lo = hd * d_head
        qh = q_ref[0, lo:lo + d_head, :]          # (d, TQ)  bf16, scale pre-folded
        kh = k_ref[0, :, lo:lo + d_head]          # (Lkv, d) bf16
        vh = v_ref[0, :, lo:lo + d_head]          # (Lkv, d) bf16

        # scores (Lkv, TQ): contract the head dim, no transposes
        s = lax.dot_general(kh, qh, (((1,), (0,)), ((), ())),
                            preferred_element_type=jnp.float32)
        s = s - jnp.max(s, axis=0, keepdims=True)
        p = jnp.exp(s)
        p = p * pl.reciprocal(jnp.sum(p, axis=0, keepdims=True), approx=True)

        # per-head output (d, TQ) = V_h^T @ P  (contract Lkv); probs fed as bf16
        heads_ref[lo:lo + d_head, :] = lax.dot_general(
            vh, p.astype(jnp.bfloat16), (((0,), (0,)), ((), ())),
            preferred_element_type=jnp.float32)

    # fused conv_proj: one matmul with full dim_out contraction depth
    out = lax.dot_general(pwt_ref[...], heads_ref[...].astype(jnp.bfloat16),
                          (((1,), (0,)), ((), ())),
                          preferred_element_type=jnp.float32)          # (O, TQ)
    o_ref[0] = (out + pb_ref[...]).astype(o_ref.dtype)


# ---------------------------------------------------------------------------
# Full AttentionDW forward (Pallas kernels + free reshapes only)
# ---------------------------------------------------------------------------
def attention_dw_forward(x_nchw, params, *, num_heads, stride_q, stride_kv):
    b, cin, h, w = x_nchw.shape
    if stride_q != 1:
        # the module's 'b h (x y) d -> b (h d) x y' rearrange requires stride_q == 1
        raise NotImplementedError("stride_q must be 1 for AttentionDW")
    dim_out = params["q_pw_w"].shape[1]
    assert dim_out % num_heads == 0
    num_pix = h * w
    ho = (h - 1) // stride_kv + 1
    wo = (w - 1) // stride_kv + 1
    lkv = ho * wo
    scale = float(dim_out) ** (-0.5)

    # Single layout pass: NCHW -> flattened-spatial channels-last (B, L, C).
    x_lc = jnp.transpose(x_nchw, (0, 2, 3, 1)).reshape(b, num_pix, cin)

    # Fold BN affine + 1x1 projection into per-tap fused weights and a bias.
    def branch_weights(prefix):
        dw = params[prefix + "_dw_w"].reshape(9, cin)                              # (9, C)
        pw_s = params[prefix + "_pw_w"] * params[prefix + "_bn_scale"][:, None]    # (C, O)
        m = dw[:, None, :] * jnp.transpose(pw_s)[None, :, :]                       # (9, O, C)
        bias = params[prefix + "_bn_shift"] @ params[prefix + "_pw_w"]             # (O,)
        return m, bias

    mq, bq = branch_weights("q")
    mk, bk = branch_weights("k")
    mv, bv = branch_weights("v")
    # softmax scale folded into the Q branch (q is linear in its weights/bias)
    mq = mq * scale
    bq = bq * scale

    # im2col-ordered fused weights, as bf16 MXU operands
    mq_cat = jnp.transpose(mq, (1, 0, 2)).reshape(dim_out, 9 * cin).astype(jnp.bfloat16)
    mkv = jnp.concatenate([mk, mv], axis=1)                                        # (9, 2O, C)
    mkv_cat = jnp.transpose(mkv, (0, 2, 1)).reshape(9 * cin, 2 * dim_out).astype(jnp.bfloat16)
    bq_col = bq.reshape(dim_out, 1).astype(jnp.float32)
    bkv_row = jnp.concatenate([bk, bv]).reshape(1, 2 * dim_out).astype(jnp.float32)

    vmem_limit = _pick_vmem_limit()

    conv_kernel = functools.partial(_fused_qkv_proj_kernel,
                                    height=h, width=w, stride_kv=stride_kv)
    q, k, v = pl.pallas_call(
        conv_kernel,
        out_shape=(
            jax.ShapeDtypeStruct((b, dim_out, num_pix), jnp.bfloat16),   # Q: (B, O, L)
            jax.ShapeDtypeStruct((b, lkv, dim_out), jnp.bfloat16),       # K: (B, Lkv, O)
            jax.ShapeDtypeStruct((b, lkv, dim_out), jnp.bfloat16),       # V: (B, Lkv, O)
        ),
        grid=(b,),
        in_specs=[
            pl.BlockSpec((1, num_pix, cin), lambda i: (i, 0, 0)),
            pl.BlockSpec((dim_out, 9 * cin), lambda i: (0, 0)),
            pl.BlockSpec((9 * cin, 2 * dim_out), lambda i: (0, 0)),
            pl.BlockSpec((dim_out, 1), lambda i: (0, 0)),
            pl.BlockSpec((1, 2 * dim_out), lambda i: (0, 0)),
        ],
        out_specs=(
            pl.BlockSpec((1, dim_out, num_pix), lambda i: (i, 0, 0)),
            pl.BlockSpec((1, lkv, dim_out), lambda i: (i, 0, 0)),
            pl.BlockSpec((1, lkv, dim_out), lambda i: (i, 0, 0)),
        ),
        scratch_shapes=[
            pltpu.VMEM((num_pix + 2 * (w + 1), cin), jnp.float32),       # zero-padded x
            pltpu.VMEM((num_pix, 9 * cin), jnp.bfloat16),                # im2col slab
            pltpu.VMEM((num_pix, 2 * dim_out), jnp.float32),             # full-res K/V
        ],
        compiler_params=pltpu.CompilerParams(
            dimension_semantics=("parallel",),
            vmem_limit_bytes=vmem_limit),
    )(x_lc, mq_cat, mkv_cat, bq_col, bkv_row)

    # Attention (all heads per block) fused with the final 1x1 conv_proj.
    tq = 128 if num_pix >= 128 else num_pix
    n_qt = pl.cdiv(num_pix, tq)
    # conv_proj weight transposed so out[o, l] = sum_c pwt[o, c] * heads[c, l]
    pwt = jnp.transpose(params["proj_w"]).astype(jnp.bfloat16)                     # (O, O)
    proj_b = params["proj_b"].reshape(dim_out, 1).astype(jnp.float32)              # (O, 1)

    attn_kernel = functools.partial(_attn_proj_kernel, num_heads=num_heads)
    out = pl.pallas_call(
        attn_kernel,
        out_shape=jax.ShapeDtypeStruct((b, dim_out, num_pix), x_nchw.dtype),
        grid=(b, n_qt),
        in_specs=[
            pl.BlockSpec((1, dim_out, tq), lambda i, j: (i, 0, j)),
            pl.BlockSpec((1, lkv, dim_out), lambda i, j: (i, 0, 0)),
            pl.BlockSpec((1, lkv, dim_out), lambda i, j: (i, 0, 0)),
            pl.BlockSpec((dim_out, dim_out), lambda i, j: (0, 0)),
            pl.BlockSpec((dim_out, 1), lambda i, j: (0, 0)),
        ],
        out_specs=pl.BlockSpec((1, dim_out, tq), lambda i, j: (i, 0, j)),
        scratch_shapes=[pltpu.VMEM((dim_out, tq), jnp.float32)],
        compiler_params=pltpu.CompilerParams(
            dimension_semantics=("parallel", "parallel"),
            vmem_limit_bytes=vmem_limit),
    )(q, k, v, pwt, proj_b)

    # (B, dim_out, L) -> NCHW is a free reshape (no transpose pass).
    return out.reshape(b, dim_out, h, w)


# ---------------------------------------------------------------------------
# Pure-JAX reference (independent code path, NCHW like PyTorch) for checking
# ---------------------------------------------------------------------------
def reference_forward(x_nchw, params, *, num_heads, stride_q, stride_kv):
    b, cin, h, w = x_nchw.shape

    def conv_projection(prefix, stride):
        dw_hwc = params[prefix + "_dw_w"]                      # (3, 3, C)
        w_oihw = jnp.transpose(dw_hwc, (2, 0, 1))[:, None]     # (C, 1, 3, 3)
        y = lax.conv_general_dilated(
            x_nchw, w_oihw, window_strides=(stride, stride),
            padding=((1, 1), (1, 1)), feature_group_count=cin,
            dimension_numbers=("NCHW", "OIHW", "NCHW"))
        sc = params[prefix + "_bn_scale"][None, :, None, None]
        sh = params[prefix + "_bn_shift"][None, :, None, None]
        y = y * sc + sh
        return jnp.einsum("bchw,co->bohw", y, params[prefix + "_pw_w"])

    q = conv_projection("q", stride_q)
    k = conv_projection("k", stride_kv)
    v = conv_projection("v", stride_kv)
    dim_out = q.shape[1]
    d = dim_out // num_heads
    scale = float(dim_out) ** (-0.5)

    def to_heads(t):
        bb, c, hh, ww = t.shape
        t = t.transpose(0, 2, 3, 1).reshape(bb, hh * ww, c)
        return t.reshape(bb, hh * ww, num_heads, d).transpose(0, 2, 1, 3)

    qh, kh, vh = to_heads(q), to_heads(k), to_heads(v)
    attn = jax.nn.softmax(jnp.einsum("bhld,bhtd->bhlt", qh, kh) * scale, axis=-1)
    out = jnp.einsum("bhlt,bhtd->bhld", attn, vh)
    out = out.transpose(0, 1, 3, 2).reshape(b, dim_out, h, w)
    out = jnp.einsum("bchw,co->bohw", out, params["proj_w"])
    out = out + params["proj_b"][None, :, None, None]
    return out


# ---------------------------------------------------------------------------
# Deterministic parameter initialization (shapes follow AttentionDW.__init__)
# ---------------------------------------------------------------------------
def make_params(key, dim_in, dim_out):
    def normal(k, shape, s=0.1):
        return s * jax.random.normal(k, shape, jnp.float32)

    params = {}
    keys = jax.random.split(key, 4)
    eps = 1e-5
    for prefix, kk in zip(("q", "k", "v"), keys[:3]):
        k1, k2, k3, k4, k5, k6 = jax.random.split(kk, 6)
        gamma = 1.0 + normal(k2, (dim_in,))
        beta = normal(k3, (dim_in,))
        run_mean = normal(k4, (dim_in,))
        run_var = jnp.abs(normal(k5, (dim_in,), 0.5)) + 0.5
        scale = gamma / jnp.sqrt(run_var + eps)         # folded eval-mode BN
        shift = beta - run_mean * scale
        params[prefix + "_dw_w"] = normal(k1, (3, 3, dim_in), 0.2)       # depthwise conv
        params[prefix + "_bn_scale"] = scale
        params[prefix + "_bn_shift"] = shift
        params[prefix + "_pw_w"] = normal(k6, (dim_in, dim_out), 0.2)    # 1x1 conv, no bias
    kp1, kp2 = jax.random.split(keys[3], 2)
    params["proj_w"] = normal(kp1, (dim_out, dim_out), 0.2)              # conv_proj weight
    params["proj_b"] = normal(kp2, (dim_out,), 0.1)                      # conv_proj bias
    return params


if __name__ == "__main__":
    B, DIM_IN, H, W = 2, 8, 16, 16
    DIM_OUT, NUM_HEADS = 16, 4
    STRIDE_Q, STRIDE_KV = 1, 2

    root = jax.random.PRNGKey(0)
    k_params, k_x = jax.random.split(root)
    params = make_params(k_params, DIM_IN, DIM_OUT)
    x = jax.random.normal(k_x, (B, DIM_IN, H, W), jnp.float32)

    fwd = jax.jit(functools.partial(attention_dw_forward, num_heads=NUM_HEADS,
                                    stride_q=STRIDE_Q, stride_kv=STRIDE_KV))
    out = jax.block_until_ready(fwd(x, params))

    ref = jax.block_until_ready(reference_forward(
        x, params, num_heads=NUM_HEADS, stride_q=STRIDE_Q, stride_kv=STRIDE_KV))

    assert out.shape == (B, DIM_OUT, H, W), out.shape
    max_err = float(jnp.max(jnp.abs(out - ref)))
    # 2e-2 abs tolerance: Q/K/V and all matmul operands are bf16 (per the perf review)
    # and the softmax normalisation uses the EUP approx reciprocal; reference is full f32.
    assert max_err < 2e-2, f"mismatch vs reference: max abs err = {max_err}"
    print("KERNEL_OK")
</pallas_src>

<mosaic_0001>
module attributes {stable_mosaic.version = 11 : i64} {
  func.func @_attn_proj_kernel(%arg0: i32, %arg1: i32, %arg2: memref<1x16x128xbf16, #tpu.memory_space<vmem>>, %arg3: memref<1x64x16xbf16, #tpu.memory_space<vmem>>, %arg4: memref<1x64x16xbf16, #tpu.memory_space<vmem>>, %arg5: memref<16x16xbf16, #tpu.memory_space<vmem>>, %arg6: memref<16x1xf32, #tpu.memory_space<vmem>>, %arg7: memref<1x16x128xf32, #tpu.memory_space<vmem>>, %arg8: memref<16x128xf32, #tpu.memory_space<vmem>>) attributes {dimension_semantics = [#tpu.dimension_semantics<parallel>, #tpu.dimension_semantics<parallel>], iteration_bounds = array<i64: 2, 2>, scalar_prefetch = 0 : i64, scratch_operands = 1 : i64, tpu.core_type = #tpu.core_type<tc>, window_params = [{transform_indices = @transform_0, window_bounds = array<i64: 1, 16, 128>}, {transform_indices = @transform_1, window_bounds = array<i64: 1, 64, 16>}, {transform_indices = @transform_2, window_bounds = array<i64: 1, 64, 16>}, {pipeline_mode = #tpu.pipeline_mode<synchronous>, transform_indices = @transform_3, window_bounds = array<i64: 16, 16>}, {pipeline_mode = #tpu.pipeline_mode<synchronous>, transform_indices = @transform_4, window_bounds = array<i64: 16, 1>}, {transform_indices = @transform_5, window_bounds = array<i64: 1, 16, 128>}]} {
    %c0 = arith.constant 0 : index
    %c0_0 = arith.constant 0 : index
    %c0_1 = arith.constant 0 : index
    %0 = vector.load %arg2[%c0, %c0_0, %c0_1] : memref<1x16x128xbf16, #tpu.memory_space<vmem>>, vector<1x4x128xbf16>
    %1 = vector.shape_cast %0 : vector<1x4x128xbf16> to vector<4x128xbf16>
    %c0_2 = arith.constant 0 : index
    %c0_3 = arith.constant 0 : index
    %c0_4 = arith.constant 0 : index
    %2 = vector.load %arg3[%c0_2, %c0_3, %c0_4] : memref<1x64x16xbf16, #tpu.memory_space<vmem>>, vector<1x64x4xbf16>
    %3 = vector.shape_cast %2 : vector<1x64x4xbf16> to vector<64x4xbf16>
    %c0_5 = arith.constant 0 : index
    %c0_6 = arith.constant 0 : index
    %c0_7 = arith.constant 0 : index
    %4 = vector.load %arg4[%c0_5, %c0_6, %c0_7] : memref<1x64x16xbf16, #tpu.memory_space<vmem>>, vector<1x64x4xbf16>
    %5 = vector.shape_cast %4 : vector<1x64x4xbf16> to vector<64x4xbf16>
    %cst = arith.constant dense<0.000000e+00> : vector<64x128xf32>
    %6 = tpu.matmul %3, %1, %cst {dimension_numbers = #tpu.dot_dimension_numbers<[1], [0], [0], [1], [0, 0, 1, 1], [], []>} : vector<64x4xbf16>, vector<4x128xbf16>, vector<64x128xf32> -> vector<64x128xf32>
    %cst_8 = arith.constant dense<0xFF800000> : vector<128xf32>
    %7 = vector.multi_reduction <maximumf>, %6, %cst_8 [0] : vector<64x128xf32> to vector<128xf32>
    %8 = vector.shape_cast %7 : vector<128xf32> to vector<1x128xf32>
    %9 = vector.broadcast %8 : vector<1x128xf32> to vector<64x128xf32>
    %10 = arith.subf %6, %9 : vector<64x128xf32>
    %11 = math.exp %10 : vector<64x128xf32>
    %cst_9 = arith.constant dense<0.000000e+00> : vector<128xf32>
    %12 = vector.multi_reduction <add>, %11, %cst_9 [0] : vector<64x128xf32> to vector<128xf32>
    %13 = vector.shape_cast %12 : vector<128xf32> to vector<1x128xf32>
    %14 = tpu.reciprocal %13 {approx = true} : vector<1x128xf32> -> vector<1x128xf32>
    %15 = vector.broadcast %14 : vector<1x128xf32> to vector<64x128xf32>
    %16 = arith.mulf %11, %15 : vector<64x128xf32>
    %17 = arith.truncf %16 : vector<64x128xf32> to vector<64x128xbf16>
    %cst_10 = arith.constant dense<0.000000e+00> : vector<4x128xf32>
    %18 = tpu.matmul %5, %17, %cst_10 {dimension_numbers = #tpu.dot_dimension_numbers<[0], [0], [1], [1], [0, 1, 1, 1], [], []>} : vector<64x4xbf16>, vector<64x128xbf16>, vector<4x128xf32> -> vector<4x128xf32>
    %c0_11 = arith.constant 0 : index
    %c0_12 = arith.constant 0 : index
    %19 = vector.load %arg8[%c0_11, %c0_12] : memref<16x128xf32, #tpu.memory_space<vmem>>, vector<4x128xf32>
    tpu.vector_store %arg8[%c0_11, %c0_12], %18 {strides = array<i32>} : memref<16x128xf32, #tpu.memory_space<vmem>>, vector<4x128xf32>,
    %c0_13 = arith.constant 0 : index
    %c4 = arith.constant 4 : index
    %c0_14 = arith.constant 0 : index
    %20 = vector.load %arg2[%c0_13, %c4, %c0_14] : memref<1x16x128xbf16, #tpu.memory_space<vmem>>, vector<1x4x128xbf16>
    %21 = vector.shape_cast %20 : vector<1x4x128xbf16> to vector<4x128xbf16>
    %c0_15 = arith.constant 0 : index
    %c0_16 = arith.constant 0 : index
    %c4_17 = arith.constant 4 : index
    %22 = vector.load %arg3[%c0_15, %c0_16, %c4_17] : memref<1x64x16xbf16, #tpu.memory_space<vmem>>, vector<1x64x4xbf16>
    %23 = vector.shape_cast %22 : vector<1x64x4xbf16> to vector<64x4xbf16>
    %c0_18 = arith.constant 0 : index
    %c0_19 = arith.constant 0 : index
    %c4_20 = arith.constant 4 : index
    %24 = vector.load %arg4[%c0_18, %c0_19, %c4_20] : memref<1x64x16xbf16, #tpu.memory_space<vmem>>, vector<1x64x4xbf16>
    %25 = vector.shape_cast %24 : vector<1x64x4xbf16> to vector<64x4xbf16>
    %cst_21 = arith.constant dense<0.000000e+00> : vector<64x128xf32>
    %26 = tpu.matmul %23, %21, %cst_21 {dimension_numbers = #tpu.dot_dimension_numbers<[1], [0], [0], [1], [0, 0, 1, 1], [], []>} : vector<64x4xbf16>, vector<4x128xbf16>, vector<64x128xf32> -> vector<64x128xf32>
    %cst_22 = arith.constant dense<0xFF800000> : vector<128xf32>
    %27 = vector.multi_reduction <maximumf>, %26, %cst_22 [0] : vector<64x128xf32> to vector<128xf32>
    %28 = vector.shape_cast %27 : vector<128xf32> to vector<1x128xf32>
    %29 = vector.broadcast %28 : vector<1x128xf32> to vector<64x128xf32>
    %30 = arith.subf %26, %29 : vector<64x128xf32>
    %31 = math.exp %30 : vector<64x128xf32>
    %cst_23 = arith.constant dense<0.000000e+00> : vector<128xf32>
    %32 = vector.multi_reduction <add>, %31, %cst_23 [0] : vector<64x128xf32> to vector<128xf32>
    %33 = vector.shape_cast %32 : vector<128xf32> to vector<1x128xf32>
    %34 = tpu.reciprocal %33 {approx = true} : vector<1x128xf32> -> vector<1x128xf32>
    %35 = vector.broadcast %34 : vector<1x128xf32> to vector<64x128xf32>
    %36 = arith.mulf %31, %35 : vector<64x128xf32>
    %37 = arith.truncf %36 : vector<64x128xf32> to vector<64x128xbf16>
    %cst_24 = arith.constant dense<0.000000e+00> : vector<4x128xf32>
    %38 = tpu.matmul %25, %37, %cst_24 {dimension_numbers = #tpu.dot_dimension_numbers<[0], [0], [1], [1], [0, 1, 1, 1], [], []>} : vector<64x4xbf16>, vector<64x128xbf16>, vector<4x128xf32> -> vector<4x128xf32>
    %c4_25 = arith.constant 4 : index
    %c0_26 = arith.constant 0 : index
    %39 = vector.load %arg8[%c4_25, %c0_26] : memref<16x128xf32, #tpu.memory_space<vmem>>, vector<4x128xf32>
    tpu.vector_store %arg8[%c4_25, %c0_26], %38 {strides = array<i32>} : memref<16x128xf32, #tpu.memory_space<vmem>>, vector<4x128xf32>,
    %c0_27 = arith.constant 0 : index
    %c8 = arith.constant 8 : index
    %c0_28 = arith.constant 0 : index
    %40 = vector.load %arg2[%c0_27, %c8, %c0_28] : memref<1x16x128xbf16, #tpu.memory_space<vmem>>, vector<1x4x128xbf16>
    %41 = vector.shape_cast %40 : vector<1x4x128xbf16> to vector<4x128xbf16>
    %c0_29 = arith.constant 0 : index
    %c0_30 = arith.constant 0 : index
    %c8_31 = arith.constant 8 : index
    %42 = vector.load %arg3[%c0_29, %c0_30, %c8_31] : memref<1x64x16xbf16, #tpu.memory_space<vmem>>, vector<1x64x4xbf16>
    %43 = vector.shape_cast %42 : vector<1x64x4xbf16> to vector<64x4xbf16>
    %c0_32 = arith.constant 0 : index
    %c0_33 = arith.constant 0 : index
    %c8_34 = arith.constant 8 : index
    %44 = vector.load %arg4[%c0_32, %c0_33, %c8_34] : memref<1x64x16xbf16, #tpu.memory_space<vmem>>, vector<1x64x4xbf16>
    %45 = vector.shape_cast %44 : vector<1x64x4xbf16> to vector<64x4xbf16>
    %cst_35 = arith.constant dense<0.000000e+00> : vector<64x128xf32>
    %46 = tpu.matmul %43, %41, %cst_35 {dimension_numbers = #tpu.dot_dimension_numbers<[1], [0], [0], [1], [0, 0, 1, 1], [], []>} : vector<64x4xbf16>, vector<4x128xbf16>, vector<64x128xf32> -> vector<64x128xf32>
    %cst_36 = arith.constant dense<0xFF800000> : vector<128xf32>
    %47 = vector.multi_reduction <maximumf>, %46, %cst_36 [0] : vector<64x128xf32> to vector<128xf32>
    %48 = vector.shape_cast %47 : vector<128xf32> to vector<1x128xf32>
    %49 = vector.broadcast %48 : vector<1x128xf32> to vector<64x128xf32>
    %50 = arith.subf %46, %49 : vector<64x128xf32>
    %51 = math.exp %50 : vector<64x128xf32>
    %cst_37 = arith.constant dense<0.000000e+00> : vector<128xf32>
    %52 = vector.multi_reduction <add>, %51, %cst_37 [0] : vector<64x128xf32> to vector<128xf32>
    %53 = vector.shape_cast %52 : vector<128xf32> to vector<1x128xf32>
    %54 = tpu.reciprocal %53 {approx = true} : vector<1x128xf32> -> vector<1x128xf32>
    %55 = vector.broadcast %54 : vector<1x128xf32> to vector<64x128xf32>
    %56 = arith.mulf %51, %55 : vector<64x128xf32>
    %57 = arith.truncf %56 : vector<64x128xf32> to vector<64x128xbf16>
    %cst_38 = arith.constant dense<0.000000e+00> : vector<4x128xf32>
    %58 = tpu.matmul %45, %57, %cst_38 {dimension_numbers = #tpu.dot_dimension_numbers<[0], [0], [1], [1], [0, 1, 1, 1], [], []>} : vector<64x4xbf16>, vector<64x128xbf16>, vector<4x128xf32> -> vector<4x128xf32>
    %c8_39 = arith.constant 8 : index
    %c0_40 = arith.constant 0 : index
    %59 = vector.load %arg8[%c8_39, %c0_40] : memref<16x128xf32, #tpu.memory_space<vmem>>, vector<4x128xf32>
    tpu.vector_store %arg8[%c8_39, %c0_40], %58 {strides = array<i32>} : memref<16x128xf32, #tpu.memory_space<vmem>>, vector<4x128xf32>,
    %c0_41 = arith.constant 0 : index
    %c12 = arith.constant 12 : index
    %c0_42 = arith.constant 0 : index
    %60 = vector.load %arg2[%c0_41, %c12, %c0_42] : memref<1x16x128xbf16, #tpu.memory_space<vmem>>, vector<1x4x128xbf16>
    %61 = vector.shape_cast %60 : vector<1x4x128xbf16> to vector<4x128xbf16>
    %c0_43 = arith.constant 0 : index
    %c0_44 = arith.constant 0 : index
    %c12_45 = arith.constant 12 : index
    %62 = vector.load %arg3[%c0_43, %c0_44, %c12_45] : memref<1x64x16xbf16, #tpu.memory_space<vmem>>, vector<1x64x4xbf16>
    %63 = vector.shape_cast %62 : vector<1x64x4xbf16> to vector<64x4xbf16>
    %c0_46 = arith.constant 0 : index
    %c0_47 = arith.constant 0 : index
    %c12_48 = arith.constant 12 : index
    %64 = vector.load %arg4[%c0_46, %c0_47, %c12_48] : memref<1x64x16xbf16, #tpu.memory_space<vmem>>, vector<1x64x4xbf16>
    %65 = vector.shape_cast %64 : vector<1x64x4xbf16> to vector<64x4xbf16>
    %cst_49 = arith.constant dense<0.000000e+00> : vector<64x128xf32>
    %66 = tpu.matmul %63, %61, %cst_49 {dimension_numbers = #tpu.dot_dimension_numbers<[1], [0], [0], [1], [0, 0, 1, 1], [], []>} : vector<64x4xbf16>, vector<4x128xbf16>, vector<64x128xf32> -> vector<64x128xf32>
    %cst_50 = arith.constant dense<0xFF800000> : vector<128xf32>
    %67 = vector.multi_reduction <maximumf>, %66, %cst_50 [0] : vector<64x128xf32> to vector<128xf32>
    %68 = vector.shape_cast %67 : vector<128xf32> to vector<1x128xf32>
    %69 = vector.broadcast %68 : vector<1x128xf32> to vector<64x128xf32>
    %70 = arith.subf %66, %69 : vector<64x128xf32>
    %71 = math.exp %70 : vector<64x128xf32>
    %cst_51 = arith.constant dense<0.000000e+00> : vector<128xf32>
    %72 = vector.multi_reduction <add>, %71, %cst_51 [0] : vector<64x128xf32> to vector<128xf32>
    %73 = vector.shape_cast %72 : vector<128xf32> to vector<1x128xf32>
    %74 = tpu.reciprocal %73 {approx = true} : vector<1x128xf32> -> vector<1x128xf32>
    %75 = vector.broadcast %74 : vector<1x128xf32> to vector<64x128xf32>
    %76 = arith.mulf %71, %75 : vector<64x128xf32>
    %77 = arith.truncf %76 : vector<64x128xf32> to vector<64x128xbf16>
    %cst_52 = arith.constant dense<0.000000e+00> : vector<4x128xf32>
    %78 = tpu.matmul %65, %77, %cst_52 {dimension_numbers = #tpu.dot_dimension_numbers<[0], [0], [1], [1], [0, 1, 1, 1], [], []>} : vector<64x4xbf16>, vector<64x128xbf16>, vector<4x128xf32> -> vector<4x128xf32>
    %c12_53 = arith.constant 12 : index
    %c0_54 = arith.constant 0 : index
    %79 = vector.load %arg8[%c12_53, %c0_54] : memref<16x128xf32, #tpu.memory_space<vmem>>, vector<4x128xf32>
    tpu.vector_store %arg8[%c12_53, %c0_54], %78 {strides = array<i32>} : memref<16x128xf32, #tpu.memory_space<vmem>>, vector<4x128xf32>,
    %c0_55 = arith.constant 0 : index
    %c0_56 = arith.constant 0 : index
    %80 = vector.load %arg5[%c0_55, %c0_56] : memref<16x16xbf16, #tpu.memory_space<vmem>>, vector<16x16xbf16>
    %c0_57 = arith.constant 0 : index
    %c0_58 = arith.constant 0 : index
    %81 = vector.load %arg8[%c0_57, %c0_58] : memref<16x128xf32, #tpu.memory_space<vmem>>, vector<16x128xf32>
    %82 = arith.truncf %81 : vector<16x128xf32> to vector<16x128xbf16>
    %cst_59 = arith.constant dense<0.000000e+00> : vector<16x128xf32>
    %83 = tpu.matmul %80, %82, %cst_59 {dimension_numbers = #tpu.dot_dimension_numbers<[1], [0], [0], [1], [0, 0, 1, 1], [], []>} : vector<16x16xbf16>, vector<16x128xbf16>, vector<16x128xf32> -> vector<16x128xf32>
    %c0_60 = arith.constant 0 : index
    %c0_61 = arith.constant 0 : index
    %84 = vector.load %arg6[%c0_60, %c0_61] : memref<16x1xf32, #tpu.memory_space<vmem>>, vector<16x1xf32>
    %85 = vector.broadcast %84 : vector<16x1xf32> to vector<16x128xf32>
    %86 = arith.addf %83, %85 : vector<16x128xf32>
    %c0_62 = arith.constant 0 : index
    %c0_63 = arith.constant 0 : index
    %c0_64 = arith.constant 0 : index
    %87 = vector.load %arg7[%c0_62, %c0_63, %c0_64] : memref<1x16x128xf32, #tpu.memory_space<vmem>>, vector<1x16x128xf32>
    %88 = vector.shape_cast %87 : vector<1x16x128xf32> to vector<16x128xf32>
    %89 = vector.shape_cast %86 : vector<16x128xf32> to vector<1x16x128xf32>
    tpu.vector_store %arg7[%c0_62, %c0_63, %c0_64], %89 {strides = array<i32>} : memref<1x16x128xf32, #tpu.memory_space<vmem>>, vector<1x16x128xf32>,
    return
  }
  func.func @transform_0(%arg0: i32, %arg1: i32) -> (i32, i32, i32) {
    %c0_i32 = arith.constant 0 : i32
    %c0_i32_0 = arith.constant 0 : i32
    return %arg0, %c0_i32, %arg1 : i32, i32, i32
  }
  func.func @transform_1(%arg0: i32, %arg1: i32) -> (i32, i32, i32) {
    %c0_i32 = arith.constant 0 : i32
    %c0_i32_0 = arith.constant 0 : i32
    %c0_i32_1 = arith.constant 0 : i32
    return %arg0, %c0_i32, %c0_i32_0 : i32, i32, i32
  }
  func.func @transform_2(%arg0: i32, %arg1: i32) -> (i32, i32, i32) {
    %c0_i32 = arith.constant 0 : i32
    %c0_i32_0 = arith.constant 0 : i32
    %c0_i32_1 = arith.constant 0 : i32
    return %arg0, %c0_i32, %c0_i32_0 : i32, i32, i32
  }
  func.func @transform_3(%arg0: i32, %arg1: i32) -> (i32, i32) {
    %c0_i32 = arith.constant 0 : i32
    %c0_i32_0 = arith.constant 0 : i32
    %c0_i32_1 = arith.constant 0 : i32
    return %c0_i32, %c0_i32_0 : i32, i32
  }
  func.func @transform_4(%arg0: i32, %arg1: i32) -> (i32, i32) {
    %c0_i32 = arith.constant 0 : i32
    %c0_i32_0 = arith.constant 0 : i32
    %c0_i32_1 = arith.constant 0 : i32
    return %c0_i32, %c0_i32_0 : i32, i32
  }
  func.func @transform_5(%arg0: i32, %arg1: i32) -> (i32, i32, i32) {
    %c0_i32 = arith.constant 0 : i32
    %c0_i32_0 = arith.constant 0 : i32
    return %arg0, %c0_i32, %arg1 : i32, i32, i32
  }
}

module attributes {stable_mosaic.version = 11 : i64} {
  func.func @_fused_qkv_proj_kernel(%arg0: i32, %arg1: memref<1x256x8xf32, #tpu.memory_space<vmem>>, %arg2: memref<16x72xbf16, #tpu.memory_space<vmem>>, %arg3: memref<72x32xbf16, #tpu.memory_space<vmem>>, %arg4: memref<16x1xf32, #tpu.memory_space<vmem>>, %arg5: memref<1x32xf32, #tpu.memory_space<vmem>>, %arg6: memref<1x16x256xbf16, #tpu.memory_space<vmem>>, %arg7: memref<1x64x16xbf16, #tpu.memory_space<vmem>>, %arg8: memref<1x64x16xbf16, #tpu.memory_space<vmem>>, %arg9: memref<290x8xf32, #tpu.memory_space<vmem>>, %arg10: memref<256x72xbf16, #tpu.memory_space<vmem>>, %arg11: memref<256x32xf32, #tpu.memory_space<vmem>>) attributes {dimension_semantics = [#tpu.dimension_semantics<parallel>], iteration_bounds = array<i64: 2>, scalar_prefetch = 0 : i64, scratch_operands = 3 : i64, tpu.core_type = #tpu.core_type<tc>, window_params = [{transform_indices = @transform_0, window_bounds = array<i64: 1, 256, 8>}, {pipeline_mode = #tpu.pipeline_mode<synchronous>, transform_indices = @transform_1, window_bounds = array<i64: 16, 72>}, {pipeline_mode = #tpu.pipeline_mode<synchronous>, transform_indices = @transform_2, window_bounds = array<i64: 72, 32>}, {pipeline_mode = #tpu.pipeline_mode<synchronous>, transform_indices = @transform_3, window_bounds = array<i64: 16, 1>}, {pipeline_mode = #tpu.pipeline_mode<synchronous>, transform_indices = @transform_4, window_bounds = array<i64: 1, 32>}, {transform_indices = @transform_5, window_bounds = array<i64: 1, 16, 256>}, {transform_indices = @transform_6, window_bounds = array<i64: 1, 64, 16>}, {transform_indices = @transform_7, window_bounds = array<i64: 1, 64, 16>}]} {
    %cst = arith.constant 0.000000e+00 : f32
    %0 = vector.broadcast %cst : f32 to vector<17x8xf32>
    %c0 = arith.constant 0 : index
    %c0_0 = arith.constant 0 : index
    %1 = vector.load %arg9[%c0, %c0_0] : memref<290x8xf32, #tpu.memory_space<vmem>>, vector<17x8xf32>
    tpu.vector_store %arg9[%c0, %c0_0], %0 {strides = array<i32>} : memref<290x8xf32, #tpu.memory_space<vmem>>, vector<17x8xf32>,
    %c273 = arith.constant 273 : index
    %c0_1 = arith.constant 0 : index
    %2 = vector.load %arg9[%c273, %c0_1] : memref<290x8xf32, #tpu.memory_space<vmem>>, vector<17x8xf32>
    tpu.vector_store %arg9[%c273, %c0_1], %0 {strides = array<i32>} : memref<290x8xf32, #tpu.memory_space<vmem>>, vector<17x8xf32>,
    %c0_2 = arith.constant 0 : index
    %c0_3 = arith.constant 0 : index
    %c0_4 = arith.constant 0 : index
    %3 = vector.load %arg1[%c0_2, %c0_3, %c0_4] : memref<1x256x8xf32, #tpu.memory_space<vmem>>, vector<1x256x8xf32>
    %4 = vector.shape_cast %3 : vector<1x256x8xf32> to vector<256x8xf32>
    %c17 = arith.constant 17 : index
    %c0_5 = arith.constant 0 : index
    %5 = vector.load %arg9[%c17, %c0_5] : memref<290x8xf32, #tpu.memory_space<vmem>>, vector<256x8xf32>
    tpu.vector_store %arg9[%c17, %c0_5], %4 {strides = array<i32>} : memref<290x8xf32, #tpu.memory_space<vmem>>, vector<256x8xf32>,
    %6 = tpu.iota {dimensions = array<i32: 0>} : vector<256x1xi32>
    %c16_i32 = arith.constant 16 : i32
    %c0_i32 = arith.constant 0 : i32
    %7 = arith.cmpi eq, %c16_i32, %c0_i32 : i32
    %c1_i32 = arith.constant 1 : i32
    %8 = arith.select %7, %c1_i32, %c16_i32 : i32
    %9 = vector.broadcast %8 : i32 to vector<256x1xi32>
    %10 = arith.remsi %6, %9 : vector<256x1xi32>
    %c0_i32_6 = arith.constant 0 : i32
    %11 = vector.broadcast %c0_i32_6 : i32 to vector<256x1xi32>
    %12 = arith.cmpi ne, %10, %11 : vector<256x1xi32>
    %c0_i32_7 = arith.constant 0 : i32
    %13 = vector.broadcast %c0_i32_7 : i32 to vector<256x1xi32>
    %14 = arith.cmpi slt, %10, %13 : vector<256x1xi32>
    %c0_i32_8 = arith.constant 0 : i32
    %15 = arith.cmpi slt, %8, %c0_i32_8 : i32
    %16 = vector.broadcast %15 : i1 to vector<256x1xi1>
    %17 = vector.broadcast %16 : vector<256x1xi1> to vector<256x1xi1>
    %18 = arith.xori %14, %17 : vector<256x1xi1>
    %19 = arith.andi %18, %12 : vector<256x1xi1>
    %20 = vector.broadcast %8 : i32 to vector<256x1xi32>
    %21 = arith.addi %10, %20 : vector<256x1xi32>
    %22 = arith.select %19, %21, %10 : vector<256x1xi1>, vector<256x1xi32>
    %c1_i32_9 = arith.constant 1 : i32
    %23 = vector.broadcast %c1_i32_9 : i32 to vector<256x1xi32>
    %24 = arith.cmpi sge, %22, %23 : vector<256x1xi32>
    %c14_i32 = arith.constant 14 : i32
    %25 = vector.broadcast %c14_i32 : i32 to vector<256x1xi32>
    %26 = arith.cmpi sle, %22, %25 : vector<256x1xi32>
    %c0_10 = arith.constant 0 : index
    %c0_11 = arith.constant 0 : index
    %27 = vector.load %arg9[%c0_10, %c0_11] : memref<290x8xf32, #tpu.memory_space<vmem>>, vector<256x8xf32>
    %cst_12 = arith.constant 0.000000e+00 : f32
    %28 = vector.shape_cast %24 : vector<256x1xi1> to vector<256x1xi1>
    %29 = vector.broadcast %28 : vector<256x1xi1> to vector<256x8xi1>
    %30 = vector.broadcast %cst_12 : f32 to vector<256x8xf32>
    %31 = arith.select %29, %27, %30 : vector<256x8xi1>, vector<256x8xf32>
    %32 = arith.truncf %31 : vector<256x8xf32> to vector<256x8xbf16>
    %c0_13 = arith.constant 0 : index
    %c0_14 = arith.constant 0 : index
    %33 = vector.load %arg10[%c0_13, %c0_14] : memref<256x72xbf16, #tpu.memory_space<vmem>>, vector<256x8xbf16>
    tpu.vector_store %arg10[%c0_13, %c0_14], %32 {strides = array<i32>} : memref<256x72xbf16, #tpu.memory_space<vmem>>, vector<256x8xbf16>,
    %c1 = arith.constant 1 : index
    %c0_15 = arith.constant 0 : index
    %34 = vector.load %arg9[%c1, %c0_15] : memref<290x8xf32, #tpu.memory_space<vmem>>, vector<256x8xf32>
    %35 = arith.truncf %34 : vector<256x8xf32> to vector<256x8xbf16>
    %c0_16 = arith.constant 0 : index
    %c8 = arith.constant 8 : index
    %36 = vector.load %arg10[%c0_16, %c8] : memref<256x72xbf16, #tpu.memory_space<vmem>>, vector<256x8xbf16>
    tpu.vector_store %arg10[%c0_16, %c8], %35 {strides = array<i32>} : memref<256x72xbf16, #tpu.memory_space<vmem>>, vector<256x8xbf16>,
    %c2 = arith.constant 2 : index
    %c0_17 = arith.constant 0 : index
    %37 = vector.load %arg9[%c2, %c0_17] : memref<290x8xf32, #tpu.memory_space<vmem>>, vector<256x8xf32>
    %cst_18 = arith.constant 0.000000e+00 : f32
    %38 = vector.shape_cast %26 : vector<256x1xi1> to vector<256x1xi1>
    %39 = vector.broadcast %38 : vector<256x1xi1> to vector<256x8xi1>
    %40 = vector.broadcast %cst_18 : f32 to vector<256x8xf32>
    %41 = arith.select %39, %37, %40 : vector<256x8xi1>, vector<256x8xf32>
    %42 = arith.truncf %41 : vector<256x8xf32> to vector<256x8xbf16>
    %c0_19 = arith.constant 0 : index
    %c16 = arith.constant 16 : index
    %43 = vector.load %arg10[%c0_19, %c16] : memref<256x72xbf16, #tpu.memory_space<vmem>>, vector<256x8xbf16>
    tpu.vector_store %arg10[%c0_19, %c16], %42 {strides = array<i32>} : memref<256x72xbf16, #tpu.memory_space<vmem>>, vector<256x8xbf16>,
    %c16_20 = arith.constant 16 : index
    %c0_21 = arith.constant 0 : index
    %44 = vector.load %arg9[%c16_20, %c0_21] : memref<290x8xf32, #tpu.memory_space<vmem>>, vector<256x8xf32>
    %cst_22 = arith.constant 0.000000e+00 : f32
    %45 = vector.shape_cast %24 : vector<256x1xi1> to vector<256x1xi1>
    %46 = vector.broadcast %45 : vector<256x1xi1> to vector<256x8xi1>
    %47 = vector.broadcast %cst_22 : f32 to vector<256x8xf32>
    %48 = arith.select %46, %44, %47 : vector<256x8xi1>, vector<256x8xf32>
    %49 = arith.truncf %48 : vector<256x8xf32> to vector<256x8xbf16>
    %c0_23 = arith.constant 0 : index
    %c24 = arith.constant 24 : index
    %50 = vector.load %arg10[%c0_23, %c24] : memref<256x72xbf16, #tpu.memory_space<vmem>>, vector<256x8xbf16>
    tpu.vector_store %arg10[%c0_23, %c24], %49 {strides = array<i32>} : memref<256x72xbf16, #tpu.memory_space<vmem>>, vector<256x8xbf16>,
    %c17_24 = arith.constant 17 : index
    %c0_25 = arith.constant 0 : index
    %51 = vector.load %arg9[%c17_24, %c0_25] : memref<290x8xf32, #tpu.memory_space<vmem>>, vector<256x8xf32>
    %52 = arith.truncf %51 : vector<256x8xf32> to vector<256x8xbf16>
    %c0_26 = arith.constant 0 : index
    %c32 = arith.constant 32 : index
    %53 = vector.load %arg10[%c0_26, %c32] : memref<256x72xbf16, #tpu.memory_space<vmem>>, vector<256x8xbf16>
    tpu.vector_store %arg10[%c0_26, %c32], %52 {strides = array<i32>} : memref<256x72xbf16, #tpu.memory_space<vmem>>, vector<256x8xbf16>,
    %c18 = arith.constant 18 : index
    %c0_27 = arith.constant 0 : index
    %54 = vector.load %arg9[%c18, %c0_27] : memref<290x8xf32, #tpu.memory_space<vmem>>, vector<256x8xf32>
    %cst_28 = arith.constant 0.000000e+00 : f32
    %55 = vector.shape_cast %26 : vector<256x1xi1> to vector<256x1xi1>
    %56 = vector.broadcast %55 : vector<256x1xi1> to vector<256x8xi1>
    %57 = vector.broadcast %cst_28 : f32 to vector<256x8xf32>
    %58 = arith.select %56, %54, %57 : vector<256x8xi1>, vector<256x8xf32>
    %59 = arith.truncf %58 : vector<256x8xf32> to vector<256x8xbf16>
    %c0_29 = arith.constant 0 : index
    %c40 = arith.constant 40 : index
    %60 = vector.load %arg10[%c0_29, %c40] : memref<256x72xbf16, #tpu.memory_space<vmem>>, vector<256x8xbf16>
    tpu.vector_store %arg10[%c0_29, %c40], %59 {strides = array<i32>} : memref<256x72xbf16, #tpu.memory_space<vmem>>, vector<256x8xbf16>,
    %c32_30 = arith.constant 32 : index
    %c0_31 = arith.constant 0 : index
    %61 = vector.load %arg9[%c32_30, %c0_31] : memref<290x8xf32, #tpu.memory_space<vmem>>, vector<256x8xf32>
    %cst_32 = arith.constant 0.000000e+00 : f32
    %62 = vector.shape_cast %24 : vector<256x1xi1> to vector<256x1xi1>
    %63 = vector.broadcast %62 : vector<256x1xi1> to vector<256x8xi1>
    %64 = vector.broadcast %cst_32 : f32 to vector<256x8xf32>
    %65 = arith.select %63, %61, %64 : vector<256x8xi1>, vector<256x8xf32>
    %66 = arith.truncf %65 : vector<256x8xf32> to vector<256x8xbf16>
    %c0_33 = arith.constant 0 : index
    %c48 = arith.constant 48 : index
    %67 = vector.load %arg10[%c0_33, %c48] : memref<256x72xbf16, #tpu.memory_space<vmem>>, vector<256x8xbf16>
    tpu.vector_store %arg10[%c0_33, %c48], %66 {strides = array<i32>} : memref<256x72xbf16, #tpu.memory_space<vmem>>, vector<256x8xbf16>,
    %c33 = arith.constant 33 : index
    %c0_34 = arith.constant 0 : index
    %68 = vector.load %arg9[%c33, %c0_34] : memref<290x8xf32, #tpu.memory_space<vmem>>, vector<256x8xf32>
    %69 = arith.truncf %68 : vector<256x8xf32> to vector<256x8xbf16>
    %c0_35 = arith.constant 0 : index
    %c56 = arith.constant 56 : index
    %70 = vector.load %arg10[%c0_35, %c56] : memref<256x72xbf16, #tpu.memory_space<vmem>>, vector<256x8xbf16>
    tpu.vector_store %arg10[%c0_35, %c56], %69 {strides = array<i32>} : memref<256x72xbf16, #tpu.memory_space<vmem>>, vector<256x8xbf16>,
    %c34 = arith.constant 34 : index
    %c0_36 = arith.constant 0 : index
    %71 = vector.load %arg9[%c34, %c0_36] : memref<290x8xf32, #tpu.memory_space<vmem>>, vector<256x8xf32>
    %cst_37 = arith.constant 0.000000e+00 : f32
    %72 = vector.shape_cast %26 : vector<256x1xi1> to vector<256x1xi1>
    %73 = vector.broadcast %72 : vector<256x1xi1> to vector<256x8xi1>
    %74 = vector.broadcast %cst_37 : f32 to vector<256x8xf32>
    %75 = arith.select %73, %71, %74 : vector<256x8xi1>, vector<256x8xf32>
    %76 = arith.truncf %75 : vector<256x8xf32> to vector<256x8xbf16>
    %c0_38 = arith.constant 0 : index
    %c64 = arith.constant 64 : index
    %77 = vector.load %arg10[%c0_38, %c64] : memref<256x72xbf16, #tpu.memory_space<vmem>>, vector<256x8xbf16>
    tpu.vector_store %arg10[%c0_38, %c64], %76 {strides = array<i32>} : memref<256x72xbf16, #tpu.memory_space<vmem>>, vector<256x8xbf16>,
    %c0_39 = arith.constant 0 : index
    %c0_40 = arith.constant 0 : index
    %78 = vector.load %arg10[%c0_39, %c0_40] : memref<256x72xbf16, #tpu.memory_space<vmem>>, vector<256x72xbf16>
    %c0_41 = arith.constant 0 : index
    %c0_42 = arith.constant 0 : index
    %79 = vector.load %arg2[%c0_41, %c0_42] : memref<16x72xbf16, #tpu.memory_space<vmem>>, vector<16x72xbf16>
    %cst_43 = arith.constant dense<0.000000e+00> : vector<16x256xf32>
    %80 = tpu.matmul %79, %78, %cst_43 {dimension_numbers = #tpu.dot_dimension_numbers<[1], [1], [0], [0], [0, 0, 1, 0], [], []>} : vector<16x72xbf16>, vector<256x72xbf16>, vector<16x256xf32> -> vector<16x256xf32>
    %c0_44 = arith.constant 0 : index
    %c0_45 = arith.constant 0 : index
    %81 = vector.load %arg4[%c0_44, %c0_45] : memref<16x1xf32, #tpu.memory_space<vmem>>, vector<16x1xf32>
    %82 = vector.broadcast %81 : vector<16x1xf32> to vector<16x256xf32>
    %83 = arith.addf %80, %82 : vector<16x256xf32>
    %84 = arith.truncf %83 : vector<16x256xf32> to vector<16x256xbf16>
    %c0_46 = arith.constant 0 : index
    %c0_47 = arith.constant 0 : index
    %c0_48 = arith.constant 0 : index
    %85 = vector.load %arg6[%c0_46, %c0_47, %c0_48] : memref<1x16x256xbf16, #tpu.memory_space<vmem>>, vector<1x16x256xbf16>
    %86 = vector.shape_cast %85 : vector<1x16x256xbf16> to vector<16x256xbf16>
    %87 = vector.shape_cast %84 : vector<16x256xbf16> to vector<1x16x256xbf16>
    tpu.vector_store %arg6[%c0_46, %c0_47, %c0_48], %87 {strides = array<i32>} : memref<1x16x256xbf16, #tpu.memory_space<vmem>>, vector<1x16x256xbf16>,
    %c0_49 = arith.constant 0 : index
    %c0_50 = arith.constant 0 : index
    %88 = vector.load %arg3[%c0_49, %c0_50] : memref<72x32xbf16, #tpu.memory_space<vmem>>, vector<72x32xbf16>
    %cst_51 = arith.constant dense<0.000000e+00> : vector<256x32xf32>
    %89 = tpu.matmul %78, %88, %cst_51 {dimension_numbers = #tpu.dot_dimension_numbers<[1], [0], [0], [1], [0, 0, 1, 1], [], []>} : vector<256x72xbf16>, vector<72x32xbf16>, vector<256x32xf32> -> vector<256x32xf32>
    %c0_52 = arith.constant 0 : index
    %c0_53 = arith.constant 0 : index
    %90 = vector.load %arg5[%c0_52, %c0_53] : memref<1x32xf32, #tpu.memory_space<vmem>>, vector<1x32xf32>
    %91 = vector.broadcast %90 : vector<1x32xf32> to vector<256x32xf32>
    %92 = arith.addf %89, %91 : vector<256x32xf32>
    %c0_54 = arith.constant 0 : index
    %c0_55 = arith.constant 0 : index
    %93 = vector.load %arg11[%c0_54, %c0_55] : memref<256x32xf32, #tpu.memory_space<vmem>>, vector<256x32xf32>
    tpu.vector_store %arg11[%c0_54, %c0_55], %92 {strides = array<i32>} : memref<256x32xf32, #tpu.memory_space<vmem>>, vector<256x32xf32>,
    %c0_56 = arith.constant 0 : index
    %c0_57 = arith.constant 0 : index
    %94 = tpu.strided_load %arg11[%c0_56, %c0_57] {strides = array<i32: 2, 1>} : memref<256x32xf32, #tpu.memory_space<vmem>>, vector<8x32xf32>
    %95 = vector.extract_strided_slice %94 {offsets = [0, 0], sizes = [8, 16], strides = [1, 1]} : vector<8x32xf32> to vector<8x16xf32>
    %96 = arith.truncf %95 : vector<8x16xf32> to vector<8x16xbf16>
    %c0_58 = arith.constant 0 : index
    %c0_59 = arith.constant 0 : index
    %c0_60 = arith.constant 0 : index
    %97 = vector.load %arg7[%c0_58, %c0_59, %c0_60] : memref<1x64x16xbf16, #tpu.memory_space<vmem>>, vector<1x8x16xbf16>
    %98 = vector.shape_cast %97 : vector<1x8x16xbf16> to vector<8x16xbf16>
    %99 = vector.shape_cast %96 : vector<8x16xbf16> to vector<1x8x16xbf16>
    tpu.vector_store %arg7[%c0_58, %c0_59, %c0_60], %99 {strides = array<i32>} : memref<1x64x16xbf16, #tpu.memory_space<vmem>>, vector<1x8x16xbf16>,
    %100 = vector.extract_strided_slice %94 {offsets = [0, 16], sizes = [8, 16], strides = [1, 1]} : vector<8x32xf32> to vector<8x16xf32>
    %101 = arith.truncf %100 : vector<8x16xf32> to vector<8x16xbf16>
    %c0_61 = arith.constant 0 : index
    %c0_62 = arith.constant 0 : index
    %c0_63 = arith.constant 0 : index
    %102 = vector.load %arg8[%c0_61, %c0_62, %c0_63] : memref<1x64x16xbf16, #tpu.memory_space<vmem>>, vector<1x8x16xbf16>
    %103 = vector.shape_cast %102 : vector<1x8x16xbf16> to vector<8x16xbf16>
    %104 = vector.shape_cast %101 : vector<8x16xbf16> to vector<1x8x16xbf16>
    tpu.vector_store %arg8[%c0_61, %c0_62, %c0_63], %104 {strides = array<i32>} : memref<1x64x16xbf16, #tpu.memory_space<vmem>>, vector<1x8x16xbf16>,
    %c32_64 = arith.constant 32 : index
    %c0_65 = arith.constant 0 : index
    %105 = tpu.strided_load %arg11[%c32_64, %c0_65] {strides = array<i32: 2, 1>} : memref<256x32xf32, #tpu.memory_space<vmem>>, vector<8x32xf32>
    %106 = vector.extract_strided_slice %105 {offsets = [0, 0], sizes = [8, 16], strides = [1, 1]} : vector<8x32xf32> to vector<8x16xf32>
    %107 = arith.truncf %106 : vector<8x16xf32> to vector<8x16xbf16>
    %c0_66 = arith.constant 0 : index
    %c8_67 = arith.constant 8 : index
    %c0_68 = arith.constant 0 : index
    %108 = vector.load %arg7[%c0_66, %c8_67, %c0_68] : memref<1x64x16xbf16, #tpu.memory_space<vmem>>, vector<1x8x16xbf16>
    %109 = vector.shape_cast %108 : vector<1x8x16xbf16> to vector<8x16xbf16>
    %110 = vector.shape_cast %107 : vector<8x16xbf16> to vector<1x8x16xbf16>
    tpu.vector_store %arg7[%c0_66, %c8_67, %c0_68], %110 {strides = array<i32>} : memref<1x64x16xbf16, #tpu.memory_space<vmem>>, vector<1x8x16xbf16>,
    %111 = vector.extract_strided_slice %105 {offsets = [0, 16], sizes = [8, 16], strides = [1, 1]} : vector<8x32xf32> to vector<8x16xf32>
    %112 = arith.truncf %111 : vector<8x16xf32> to vector<8x16xbf16>
    %c0_69 = arith.constant 0 : index
    %c8_70 = arith.constant 8 : index
    %c0_71 = arith.constant 0 : index
    %113 = vector.load %arg8[%c0_69, %c8_70, %c0_71] : memref<1x64x16xbf16, #tpu.memory_space<vmem>>, vector<1x8x16xbf16>
    %114 = vector.shape_cast %113 : vector<1x8x16xbf16> to vector<8x16xbf16>
    %115 = vector.shape_cast %112 : vector<8x16xbf16> to vector<1x8x16xbf16>
    tpu.vector_store %arg8[%c0_69, %c8_70, %c0_71], %115 {strides = array<i32>} : memref<1x64x16xbf16, #tpu.memory_space<vmem>>, vector<1x8x16xbf16>,
    %c64_72 = arith.constant 64 : index
    %c0_73 = arith.constant 0 : index
    %116 = tpu.strided_load %arg11[%c64_72, %c0_73] {strides = array<i32: 2, 1>} : memref<256x32xf32, #tpu.memory_space<vmem>>, vector<8x32xf32>
    %117 = vector.extract_strided_slice %116 {offsets = [0, 0], sizes = [8, 16], strides = [1, 1]} : vector<8x32xf32> to vector<8x16xf32>
    %118 = arith.truncf %117 : vector<8x16xf32> to vector<8x16xbf16>
    %c0_74 = arith.constant 0 : index
    %c16_75 = arith.constant 16 : index
    %c0_76 = arith.constant 0 : index
    %119 = vector.load %arg7[%c0_74, %c16_75, %c0_76] : memref<1x64x16xbf16, #tpu.memory_space<vmem>>, vector<1x8x16xbf16>
    %120 = vector.shape_cast %119 : vector<1x8x16xbf16> to vector<8x16xbf16>
    %121 = vector.shape_cast %118 : vector<8x16xbf16> to vector<1x8x16xbf16>
    tpu.vector_store %arg7[%c0_74, %c16_75, %c0_76], %121 {strides = array<i32>} : memref<1x64x16xbf16, #tpu.memory_space<vmem>>, vector<1x8x16xbf16>,
    %122 = vector.extract_strided_slice %116 {offsets = [0, 16], sizes = [8, 16], strides = [1, 1]} : vector<8x32xf32> to vector<8x16xf32>
    %123 = arith.truncf %122 : vector<8x16xf32> to vector<8x16xbf16>
    %c0_77 = arith.constant 0 : index
    %c16_78 = arith.constant 16 : index
    %c0_79 = arith.constant 0 : index
    %124 = vector.load %arg8[%c0_77, %c16_78, %c0_79] : memref<1x64x16xbf16, #tpu.memory_space<vmem>>, vector<1x8x16xbf16>
    %125 = vector.shape_cast %124 : vector<1x8x16xbf16> to vector<8x16xbf16>
    %126 = vector.shape_cast %123 : vector<8x16xbf16> to vector<1x8x16xbf16>
    tpu.vector_store %arg8[%c0_77, %c16_78, %c0_79], %126 {strides = array<i32>} : memref<1x64x16xbf16, #tpu.memory_space<vmem>>, vector<1x8x16xbf16>,
    %c96 = arith.constant 96 : index
    %c0_80 = arith.constant 0 : index
    %127 = tpu.strided_load %arg11[%c96, %c0_80] {strides = array<i32: 2, 1>} : memref<256x32xf32, #tpu.memory_space<vmem>>, vector<8x32xf32>
    %128 = vector.extract_strided_slice %127 {offsets = [0, 0], sizes = [8, 16], strides = [1, 1]} : vector<8x32xf32> to vector<8x16xf32>
    %129 = arith.truncf %128 : vector<8x16xf32> to vector<8x16xbf16>
    %c0_81 = arith.constant 0 : index
    %c24_82 = arith.constant 24 : index
    %c0_83 = arith.constant 0 : index
    %130 = vector.load %arg7[%c0_81, %c24_82, %c0_83] : memref<1x64x16xbf16, #tpu.memory_space<vmem>>, vector<1x8x16xbf16>
    %131 = vector.shape_cast %130 : vector<1x8x16xbf16> to vector<8x16xbf16>
    %132 = vector.shape_cast %129 : vector<8x16xbf16> to vector<1x8x16xbf16>
    tpu.vector_store %arg7[%c0_81, %c24_82, %c0_83], %132 {strides = array<i32>} : memref<1x64x16xbf16, #tpu.memory_space<vmem>>, vector<1x8x16xbf16>,
    %133 = vector.extract_strided_slice %127 {offsets = [0, 16], sizes = [8, 16], strides = [1, 1]} : vector<8x32xf32> to vector<8x16xf32>
    %134 = arith.truncf %133 : vector<8x16xf32> to vector<8x16xbf16>
    %c0_84 = arith.constant 0 : index
    %c24_85 = arith.constant 24 : index
    %c0_86 = arith.constant 0 : index
    %135 = vector.load %arg8[%c0_84, %c24_85, %c0_86] : memref<1x64x16xbf16, #tpu.memory_space<vmem>>, vector<1x8x16xbf16>
    %136 = vector.shape_cast %135 : vector<1x8x16xbf16> to vector<8x16xbf16>
    %137 = vector.shape_cast %134 : vector<8x16xbf16> to vector<1x8x16xbf16>
    tpu.vector_store %arg8[%c0_84, %c24_85, %c0_86], %137 {strides = array<i32>} : memref<1x64x16xbf16, #tpu.memory_space<vmem>>, vector<1x8x16xbf16>,
    %c128 = arith.constant 128 : index
    %c0_87 = arith.constant 0 : index
    %138 = tpu.strided_load %arg11[%c128, %c0_87] {strides = array<i32: 2, 1>} : memref<256x32xf32, #tpu.memory_space<vmem>>, vector<8x32xf32>
    %139 = vector.extract_strided_slice %138 {offsets = [0, 0], sizes = [8, 16], strides = [1, 1]} : vector<8x32xf32> to vector<8x16xf32>
    %140 = arith.truncf %139 : vector<8x16xf32> to vector<8x16xbf16>
    %c0_88 = arith.constant 0 : index
    %c32_89 = arith.constant 32 : index
    %c0_90 = arith.constant 0 : index
    %141 = vector.load %arg7[%c0_88, %c32_89, %c0_90] : memref<1x64x16xbf16, #tpu.memory_space<vmem>>, vector<1x8x16xbf16>
    %142 = vector.shape_cast %141 : vector<1x8x16xbf16> to vector<8x16xbf16>
    %143 = vector.shape_cast %140 : vector<8x16xbf16> to vector<1x8x16xbf16>
    tpu.vector_store %arg7[%c0_88, %c32_89, %c0_90], %143 {strides = array<i32>} : memref<1x64x16xbf16, #tpu.memory_space<vmem>>, vector<1x8x16xbf16>,
    %144 = vector.extract_strided_slice %138 {offsets = [0, 16], sizes = [8, 16], strides = [1, 1]} : vector<8x32xf32> to vector<8x16xf32>
    %145 = arith.truncf %144 : vector<8x16xf32> to vector<8x16xbf16>
    %c0_91 = arith.constant 0 : index
    %c32_92 = arith.constant 32 : index
    %c0_93 = arith.constant 0 : index
    %146 = vector.load %arg8[%c0_91, %c32_92, %c0_93] : memref<1x64x16xbf16, #tpu.memory_space<vmem>>, vector<1x8x16xbf16>
    %147 = vector.shape_cast %146 : vector<1x8x16xbf16> to vector<8x16xbf16>
    %148 = vector.shape_cast %145 : vector<8x16xbf16> to vector<1x8x16xbf16>
    tpu.vector_store %arg8[%c0_91, %c32_92, %c0_93], %148 {strides = array<i32>} : memref<1x64x16xbf16, #tpu.memory_space<vmem>>, vector<1x8x16xbf16>,
    %c160 = arith.constant 160 : index
    %c0_94 = arith.constant 0 : index
    %149 = tpu.strided_load %arg11[%c160, %c0_94] {strides = array<i32: 2, 1>} : memref<256x32xf32, #tpu.memory_space<vmem>>, vector<8x32xf32>
    %150 = vector.extract_strided_slice %149 {offsets = [0, 0], sizes = [8, 16], strides = [1, 1]} : vector<8x32xf32> to vector<8x16xf32>
    %151 = arith.truncf %150 : vector<8x16xf32> to vector<8x16xbf16>
    %c0_95 = arith.constant 0 : index
    %c40_96 = arith.constant 40 : index
    %c0_97 = arith.constant 0 : index
    %152 = vector.load %arg7[%c0_95, %c40_96, %c0_97] : memref<1x64x16xbf16, #tpu.memory_space<vmem>>, vector<1x8x16xbf16>
    %153 = vector.shape_cast %152 : vector<1x8x16xbf16> to vector<8x16xbf16>
    %154 = vector.shape_cast %151 : vector<8x16xbf16> to vector<1x8x16xbf16>
    tpu.vector_store %arg7[%c0_95, %c40_96, %c0_97], %154 {strides = array<i32>} : memref<1x64x16xbf16, #tpu.memory_space<vmem>>, vector<1x8x16xbf16>,
    %155 = vector.extract_strided_slice %149 {offsets = [0, 16], sizes = [8, 16], strides = [1, 1]} : vector<8x32xf32> to vector<8x16xf32>
    %156 = arith.truncf %155 : vector<8x16xf32> to vector<8x16xbf16>
    %c0_98 = arith.constant 0 : index
    %c40_99 = arith.constant 40 : index
    %c0_100 = arith.constant 0 : index
    %157 = vector.load %arg8[%c0_98, %c40_99, %c0_100] : memref<1x64x16xbf16, #tpu.memory_space<vmem>>, vector<1x8x16xbf16>
    %158 = vector.shape_cast %157 : vector<1x8x16xbf16> to vector<8x16xbf16>
    %159 = vector.shape_cast %156 : vector<8x16xbf16> to vector<1x8x16xbf16>
    tpu.vector_store %arg8[%c0_98, %c40_99, %c0_100], %159 {strides = array<i32>} : memref<1x64x16xbf16, #tpu.memory_space<vmem>>, vector<1x8x16xbf16>,
    %c192 = arith.constant 192 : index
    %c0_101 = arith.constant 0 : index
    %160 = tpu.strided_load %arg11[%c192, %c0_101] {strides = array<i32: 2, 1>} : memref<256x32xf32, #tpu.memory_space<vmem>>, vector<8x32xf32>
    %161 = vector.extract_strided_slice %160 {offsets = [0, 0], sizes = [8, 16], strides = [1, 1]} : vector<8x32xf32> to vector<8x16xf32>
    %162 = arith.truncf %161 : vector<8x16xf32> to vector<8x16xbf16>
    %c0_102 = arith.constant 0 : index
    %c48_103 = arith.constant 48 : index
    %c0_104 = arith.constant 0 : index
    %163 = vector.load %arg7[%c0_102, %c48_103, %c0_104] : memref<1x64x16xbf16, #tpu.memory_space<vmem>>, vector<1x8x16xbf16>
    %164 = vector.shape_cast %163 : vector<1x8x16xbf16> to vector<8x16xbf16>
    %165 = vector.shape_cast %162 : vector<8x16xbf16> to vector<1x8x16xbf16>
    tpu.vector_store %arg7[%c0_102, %c48_103, %c0_104], %165 {strides = array<i32>} : memref<1x64x16xbf16, #tpu.memory_space<vmem>>, vector<1x8x16xbf16>,
    %166 = vector.extract_strided_slice %160 {offsets = [0, 16], sizes = [8, 16], strides = [1, 1]} : vector<8x32xf32> to vector<8x16xf32>
    %167 = arith.truncf %166 : vector<8x16xf32> to vector<8x16xbf16>
    %c0_105 = arith.constant 0 : index
    %c48_106 = arith.constant 48 : index
    %c0_107 = arith.constant 0 : index
    %168 = vector.load %arg8[%c0_105, %c48_106, %c0_107] : memref<1x64x16xbf16, #tpu.memory_space<vmem>>, vector<1x8x16xbf16>
    %169 = vector.shape_cast %168 : vector<1x8x16xbf16> to vector<8x16xbf16>
    %170 = vector.shape_cast %167 : vector<8x16xbf16> to vector<1x8x16xbf16>
    tpu.vector_store %arg8[%c0_105, %c48_106, %c0_107], %170 {strides = array<i32>} : memref<1x64x16xbf16, #tpu.memory_space<vmem>>, vector<1x8x16xbf16>,
    %c224 = arith.constant 224 : index
    %c0_108 = arith.constant 0 : index
    %171 = tpu.strided_load %arg11[%c224, %c0_108] {strides = array<i32: 2, 1>} : memref<256x32xf32, #tpu.memory_space<vmem>>, vector<8x32xf32>
    %172 = vector.extract_strided_slice %171 {offsets = [0, 0], sizes = [8, 16], strides = [1, 1]} : vector<8x32xf32> to vector<8x16xf32>
    %173 = arith.truncf %172 : vector<8x16xf32> to vector<8x16xbf16>
    %c0_109 = arith.constant 0 : index
    %c56_110 = arith.constant 56 : index
    %c0_111 = arith.constant 0 : index
    %174 = vector.load %arg7[%c0_109, %c56_110, %c0_111] : memref<1x64x16xbf16, #tpu.memory_space<vmem>>, vector<1x8x16xbf16>
    %175 = vector.shape_cast %174 : vector<1x8x16xbf16> to vector<8x16xbf16>
    %176 = vector.shape_cast %173 : vector<8x16xbf16> to vector<1x8x16xbf16>
    tpu.vector_store %arg7[%c0_109, %c56_110, %c0_111], %176 {strides = array<i32>} : memref<1x64x16xbf16, #tpu.memory_space<vmem>>, vector<1x8x16xbf16>,
    %177 = vector.extract_strided_slice %171 {offsets = [0, 16], sizes = [8, 16], strides = [1, 1]} : vector<8x32xf32> to vector<8x16xf32>
    %178 = arith.truncf %177 : vector<8x16xf32> to vector<8x16xbf16>
    %c0_112 = arith.constant 0 : index
    %c56_113 = arith.constant 56 : index
    %c0_114 = arith.constant 0 : index
    %179 = vector.load %arg8[%c0_112, %c56_113, %c0_114] : memref<1x64x16xbf16, #tpu.memory_space<vmem>>, vector<1x8x16xbf16>
    %180 = vector.shape_cast %179 : vector<1x8x16xbf16> to vector<8x16xbf16>
    %181 = vector.shape_cast %178 : vector<8x16xbf16> to vector<1x8x16xbf16>
    tpu.vector_store %arg8[%c0_112, %c56_113, %c0_114], %181 {strides = array<i32>} : memref<1x64x16xbf16, #tpu.memory_space<vmem>>, vector<1x8x16xbf16>,
    return
  }
  func.func @transform_0(%arg0: i32) -> (i32, i32, i32) {
    %c0_i32 = arith.constant 0 : i32
    %c0_i32_0 = arith.constant 0 : i32
    %c0_i32_1 = arith.constant 0 : i32
    return %arg0, %c0_i32, %c0_i32_0 : i32, i32, i32
  }
  func.func @transform_1(%arg0: i32) -> (i32, i32) {
    %c0_i32 = arith.constant 0 : i32
    %c0_i32_0 = arith.constant 0 : i32
    %c0_i32_1 = arith.constant 0 : i32
    return %c0_i32, %c0_i32_0 : i32, i32
  }
  func.func @transform_2(%arg0: i32) -> (i32, i32) {
    %c0_i32 = arith.constant 0 : i32
    %c0_i32_0 = arith.constant 0 : i32
    %c0_i32_1 = arith.constant 0 : i32
    return %c0_i32, %c0_i32_0 : i32, i32
  }
  func.func @transform_3(%arg0: i32) -> (i32, i32) {
    %c0_i32 = arith.constant 0 : i32
    %c0_i32_0 = arith.constant 0 : i32
    %c0_i32_1 = arith.constant 0 : i32
    return %c0_i32, %c0_i32_0 : i32, i32
  }
  func.func @transform_4(%arg0: i32) -> (i32, i32) {
    %c0_i32 = arith.constant 0 : i32
    %c0_i32_0 = arith.constant 0 : i32
    %c0_i32_1 = arith.constant 0 : i32
    return %c0_i32, %c0_i32_0 : i32, i32
  }
  func.func @transform_5(%arg0: i32) -> (i32, i32, i32) {
    %c0_i32 = arith.constant 0 : i32
    %c0_i32_0 = arith.constant 0 : i32
    %c0_i32_1 = arith.constant 0 : i32
    return %arg0, %c0_i32, %c0_i32_0 : i32, i32, i32
  }
  func.func @transform_6(%arg0: i32) -> (i32, i32, i32) {
    %c0_i32 = arith.constant 0 : i32
    %c0_i32_0 = arith.constant 0 : i32
    %c0_i32_1 = arith.constant 0 : i32
    return %arg0, %c0_i32, %c0_i32_0 : i32, i32, i32
  }
  func.func @transform_7(%arg0: i32) -> (i32, i32, i32) {
    %c0_i32 = arith.constant 0 : i32
    %c0_i32_0 = arith.constant 0 : i32
    %c0_i32_1 = arith.constant 0 : i32
    return %arg0, %c0_i32, %c0_i32_0 : i32, i32, i32
  }
}

</mosaic_0001>

<llo_original>
// kernel: mul.53
$region0: #{mul.53}
  %s0 = inlined_call_operand.vmem [shape: f32[3,3,8], index: 0, kind: input, shape index: {}]
  %s1 = inlined_call_operand.vmem [shape: f32[9,8], index: 1, kind: output, shape index: {}]
  $region1: #{mul.53} parent=0
    #allocation0 [shape = 'u8[12288]{0}', space=vmem, size = 0x3000, scoped, tag = 'scoped mem for input reshape']
    %s3 = sshll.u32 1, 4
    %s4 = ssub.s32 %s3, 1
    %s5 = smul.addr 4, 2
    %s6 = scalar_lea.vmem %s0, %s5
    %v7 = vld [vmem:[%s6] sm:%s4]
    %s8 = scalar_lea.vmem [#allocation0], 16
    %9 = vst [vmem:[%s8] sm:%s4] %v7
    %s10 = scalar_lea.vmem %s0, 4
    %v11 = vld [vmem:[%s10] sm:%s4]
    %s12 = scalar_lea.vmem [#allocation0], 8
    %13 = vst [vmem:[%s12] sm:%s4] %v11
    %v14 = vld [vmem:[%s0] sm:%s4]
    %15 = vst [vmem:[#allocation0] sm:%s4] %v14
    %v16 = vld [vmem:[#allocation0] sm:$0x7]
    %vm17 = vcmask 64512
    %18 = vst.msk [vmem:[%s1] sm:$0x7] %vm17, %v16
    %s19 = scalar_lea.vmem [#allocation0], 8
    %v20 = vld [vmem:[%s19] sm:$0x7]
    %vm21 = vcmask 64512
    %s22 = scalar_lea.vmem %s1, 3
    %23 = vst.msk [vmem:[%s22] sm:$0x7] %vm21, %v20
    %s24 = scalar_lea.vmem [#allocation0], 16
    %v25 = vld [vmem:[%s24] sm:$0x7]
    %vm26 = vcmask 64512
    %s27 = scalar_lea.vmem %s1, 6
    %28 = vst.msk [vmem:[%s27] sm:$0x7] %vm26, %v25

// kernel: attention_dw_forward.3
$region0: #{attention_dw_forward.3}
  #allocation0 [shape = 'u32[]', space=smem, size = 0x4, offset = 0x4, fixed_abs, tag = 'smem constant byte address 0x4 - core index']
  #allocation1 [shape = 'u32[144,128]{1,0:T(1,128)}', space=vmem, size = 0x12000, scoped, tag = 'internal scratch']
  #allocation2 [shape = 'f32[16,128]{1,0:T(8,128)}', space=vmem, size = 0x2000, scoped, tag = 'scratch operand']
  %s0 = inlined_call_operand.vmem [shape: bf16[2,16,256], index: 0, kind: input, shape index: {}]
  %s1 = inlined_call_operand.vmem [shape: bf16[2,64,16], index: 1, kind: input, shape index: {}]
  %s2 = inlined_call_operand.vmem [shape: bf16[2,64,16], index: 2, kind: input, shape index: {}]
  %s3 = inlined_call_operand.vmem [shape: bf16[16,16], index: 3, kind: input, shape index: {}]
  %s4 = inlined_call_operand.vmem [shape: f32[16,1], index: 4, kind: input, shape index: {}]
  %s5 = inlined_call_operand.vmem [shape: f32[2,16,256], index: 5, kind: output, shape index: {}]
  %s6 = sld [smem:[#allocation0]]
  $region128: #{attention_dw_forward.3} parent=0
    _
  %s8 = ssub.s32 1, %s6
  %s9 = scalar_select 0, %s8, %s6
  $region1: #{attention_dw_forward.3} parent=0
    #allocation3 [shape = 'u8[8192]{0}', space=vmem, size = 0x2000, scoped, tag = 'input window, operand 0']
    #allocation4 [shape = 'u8[16384]{0}', space=vmem, size = 0x4000, scoped, tag = 'output window, operand 0']
    loop: start=0, step=1, limit=6
    $region2: #{attention_dw_forward.3} parent=1 // loop_pre_header
      _
    $region3: #{attention_dw_forward.3} parent=1 // loop_header
      %s11 = sphi 0, %s15
      %p12 = scmp.ge.s32.totalorder %s11, 6
      %s18 = sphi 0, %s30
      %s19 = sphi 0, %s26
      %s20 = sphi 0, %s18
      %s21 = sphi 0, %s19
      %s22 = sphi 0, %s20
      %s23 = sphi 0, %s21
      %s35 = sphi 0, %s37
      %s38 = sphi 0, %s35
      %s39 = sphi 0, %s38
      %s55 = sphi 0, %s39
      %s61 = sphi 0, %s63
      %s64 = sphi 0, %s61
      %s65 = sphi 0, %s64
      %s81 = sphi 0, %s65
      %s87 = sphi 0, %s89
      %s90 = sphi 0, %s87
      %s91 = sphi 0, %s90
      %s107 = sphi 0, %s91
      %s111 = sphi 0, %s111
      %s113 = sphi 0, %s111
      %s114 = sphi 0, %s113
      %s128 = sphi 0, %s114
      %s132 = sphi 0, %s132
      %s134 = sphi 0, %s132
      %s135 = sphi 0, %s134
      %s149 = sphi 0, %s135
      %s157 = sphi 0, %s159
      %s160 = sphi 0, %s157
      %s161 = sphi 0, %s160
      %s177 = sphi 0, %s161
    $region4: #{attention_dw_forward.3} parent=1 // loop_header_branch
      %14 = sbr.rel (%p12) target = $region8
    $region5: #{attention_dw_forward.3} parent=1 // loop_body
      %s16 = ssub.s32 %s11, 1
      %s17 = ssub.s32 %s11, 2
      %s24 = sadd.s32 1, %s19
      %p25 = scmp.ge.s32.totalorder %s24, 2
      %s26 = scalar_select %p25, 0, %s24
      %s27 = sadd.s32 1, %s18
      %s28 = scalar_select %p25, %s27, %s18
      %p29 = scmp.ge.s32.totalorder %s28, 2
      %s30 = scalar_select %p29, 0, %s28
      %s31 = ssub.s32 %s18, %s30
      %s32 = ssub.s32 %s19, %s26
      %s33 = sor.u32 %s31, %s32
      %p34 = scmp.eq.s32.totalorder %s33, 0
      %s36 = sadd.s32 %s35, 1
      %s37 = scalar_select %p34, %s35, %s36
      %p40 = pneg %p34
      %p41 = scmp.eq.s32.totalorder %s11, 3
      %p42 = por %p40, %p41
      %p43 = scmp.ne.s32.totalorder %s35, %s38
      %p44 = scmp.eq.s32.totalorder %s11, 0
      %p45 = por %p43, %p44
      %p46 = scmp.ne.s32.totalorder %s35, %s38
      %p47 = scmp.eq.s32.totalorder %s16, 3
      %p48 = por %p46, %p47
      %p49 = scmp.ne.s32.totalorder %s38, %s39
      %p50 = scmp.eq.s32.totalorder %s16, 0
      %p51 = por %p49, %p50
      %p52 = scmp.ne.s32.totalorder %s38, %s39
      %p53 = scmp.eq.s32.totalorder %s17, 3
      %p54 = por %p52, %p53
      %p56 = scmp.ne.s32.totalorder %s39, %s55
      %p57 = scmp.eq.s32.totalorder %s17, 0
      %p58 = por %p56, %p57
      %s59 = ssub.s32 %s18, %s30
      %p60 = scmp.eq.s32.totalorder %s59, 0
      %s62 = sadd.s32 %s61, 1
      %s63 = scalar_select %p60, %s61, %s62
      %p66 = pneg %p60
      %p67 = scmp.eq.s32.totalorder %s11, 3
      %p68 = por %p66, %p67
      %p69 = scmp.ne.s32.totalorder %s61, %s64
      %p70 = scmp.eq.s32.totalorder %s11, 0
      %p71 = por %p69, %p70
      %p72 = scmp.ne.s32.totalorder %s61, %s64
      %p73 = scmp.eq.s32.totalorder %s16, 3
      %p74 = por %p72, %p73
      %p75 = scmp.ne.s32.totalorder %s64, %s65
      %p76 = scmp.eq.s32.totalorder %s16, 0
      %p77 = por %p75, %p76
      %p78 = scmp.ne.s32.totalorder %s64, %s65
      %p79 = scmp.eq.s32.totalorder %s17, 3
      %p80 = por %p78, %p79
      %p82 = scmp.ne.s32.totalorder %s65, %s81
      %p83 = scmp.eq.s32.totalorder %s17, 0
      %p84 = por %p82, %p83
      %s85 = ssub.s32 %s18, %s30
      %p86 = scmp.eq.s32.totalorder %s85, 0
      %s88 = sadd.s32 %s87, 1
      %s89 = scalar_select %p86, %s87, %s88
      %p92 = pneg %p86
      %p93 = scmp.eq.s32.totalorder %s11, 3
      %p94 = por %p92, %p93
      %p95 = scmp.ne.s32.totalorder %s87, %s90
      %p96 = scmp.eq.s32.totalorder %s11, 0
      %p97 = por %p95, %p96
      %p98 = scmp.ne.s32.totalorder %s87, %s90
      %p99 = scmp.eq.s32.totalorder %s16, 3
      %p100 = por %p98, %p99
      %p101 = scmp.ne.s32.totalorder %s90, %s91
      %p102 = scmp.eq.s32.totalorder %s16, 0
      %p103 = por %p101, %p102
      %p104 = scmp.ne.s32.totalorder %s90, %s91
      %p105 = scmp.eq.s32.totalorder %s17, 3
      %p106 = por %p104, %p105
      %p108 = scmp.ne.s32.totalorder %s91, %s107
      %p109 = scmp.eq.s32.totalorder %s17, 0
      %p110 = por %p108, %p109
      %s112 = sadd.s32 %s111, 1
      %p115 = scmp.eq.s32.totalorder %s11, 3
      %p116 = scmp.ne.s32.totalorder %s111, %s113
      %p117 = scmp.eq.s32.totalorder %s11, 0
      %p118 = por %p116, %p117
      %p119 = scmp.ne.s32.totalorder %s111, %s113
      %p120 = scmp.eq.s32.totalorder %s16, 3
      %p121 = por %p119, %p120
      %p122 = scmp.ne.s32.totalorder %s113, %s114
      %p123 = scmp.eq.s32.totalorder %s16, 0
      %p124 = por %p122, %p123
      %p125 = scmp.ne.s32.totalorder %s113, %s114
      %p126 = scmp.eq.s32.totalorder %s17, 3
      %p127 = por %p125, %p126
      %p129 = scmp.ne.s32.totalorder %s114, %s128
      %p130 = scmp.eq.s32.totalorder %s17, 0
      %p131 = por %p129, %p130
      %s133 = sadd.s32 %s132, 1
      %p136 = scmp.eq.s32.totalorder %s11, 3
      %p137 = scmp.ne.s32.totalorder %s132, %s134
      %p138 = scmp.eq.s32.totalorder %s11, 0
      %p139 = por %p137, %p138
      %p140 = scmp.ne.s32.totalorder %s132, %s134
      %p141 = scmp.eq.s32.totalorder %s16, 3
      %p142 = por %p140, %p141
      %p143 = scmp.ne.s32.totalorder %s134, %s135
      %p144 = scmp.eq.s32.totalorder %s16, 0
      %p145 = por %p143, %p144
      %p146 = scmp.ne.s32.totalorder %s134, %s135
      %p147 = scmp.eq.s32.totalorder %s17, 3
      %p148 = por %p146, %p147
      %p150 = scmp.ne.s32.totalorder %s135, %s149
      %p151 = scmp.eq.s32.totalorder %s17, 0
      %p152 = por %p150, %p151
      %s153 = ssub.s32 %s18, %s30
      %s154 = ssub.s32 %s19, %s26
      %s155 = sor.u32 %s153, %s154
      %p156 = scmp.eq.s32.totalorder %s155, 0
      %s158 = sadd.s32 %s157, 1
      %s159 = scalar_select %p156, %s157, %s158
      %p162 = pneg %p156
      %p163 = scmp.eq.s32.totalorder %s11, 3
      %p164 = por %p162, %p163
      %p165 = scmp.ne.s32.totalorder %s157, %s160
      %p166 = scmp.eq.s32.totalorder %s11, 0
      %p167 = por %p165, %p166
      %p168 = scmp.ne.s32.totalorder %s157, %s160
      %p169 = scmp.eq.s32.totalorder %s16, 3
      %p170 = por %p168, %p169
      %p171 = scmp.ne.s32.totalorder %s160, %s161
      %p172 = scmp.eq.s32.totalorder %s16, 0
      %p173 = por %p171, %p172
      %p174 = scmp.ne.s32.totalorder %s160, %s161
      %p175 = scmp.eq.s32.totalorder %s17, 3
      %p176 = por %p174, %p175
      %p178 = scmp.ne.s32.totalorder %s161, %s177
      %p179 = scmp.eq.s32.totalorder %s17, 0
      %p180 = por %p178, %p179
      %p181 = scmp.le.s32.totalorder 1, %s11
      %p182 = scmp.lt.s32.totalorder %s11, 5
      %p183 = pnand %p181, %p182
      %p184 = pneg %p183
      // Predicated region
      $region9: #{attention_dw_forward.3} parent=5 // pred_check
        _
      $region10: #{attention_dw_forward.3} parent=5 // pred_check_branch
        %186 = sbr.rel (%p183) target = $region12
      $region11: #{attention_dw_forward.3} parent=5 // pred_region
        %s187 = ssub.s32 %s11, 1
        // Predicated region
        $region13: #{attention_dw_forward.3} parent=11 // pred_check
          %p188 = pneg %p124
        $region14: #{attention_dw_forward.3} parent=11 // pred_check_branch
          %190 = sbr.rel (%p188) target = $region16
        $region15: #{attention_dw_forward.3} parent=11 // pred_region
          _
        $region16: #{attention_dw_forward.3} parent=11 // pred_fallthru
          _
        // Predicated region
        $region17: #{attention_dw_forward.3} parent=11 // pred_check
          %p191 = pneg %p145
        $region18: #{attention_dw_forward.3} parent=11 // pred_check_branch
          %193 = sbr.rel (%p191) target = $region20
        $region19: #{attention_dw_forward.3} parent=11 // pred_region
          _
        $region20: #{attention_dw_forward.3} parent=11 // pred_fallthru
          _
      $region12: #{attention_dw_forward.3} parent=5 // pred_fallthru
        _
      %p194 = scmp.lt.s32.totalorder %s11, 4
      // Predicated region
      $region21: #{attention_dw_forward.3} parent=5 // pred_check
        %p195 = pneg %p194
      $region22: #{attention_dw_forward.3} parent=5 // pred_check_branch
        %197 = sbr.rel (%p195) target = $region24
      $region23: #{attention_dw_forward.3} parent=5 // pred_region
        // Predicated region
        $region25: #{attention_dw_forward.3} parent=23 // pred_check
          %p198 = pneg %p45
        $region26: #{attention_dw_forward.3} parent=23 // pred_check_branch
          %200 = sbr.rel (%p198) target = $region28
        $region27: #{attention_dw_forward.3} parent=23 // pred_region
          %s201 = sand.u32 %s35, 1
          %s202 = sand.u32 %s35, 1
          %s203 = smul.addr %s202, 8
          %s204 = scalar_lea.vmem [#allocation3], %s203
          %s205 = smul.addr %s18, 4
          %s206 = sadd.s32 %s19, %s205
          %s207 = smul.addr %s206, 4
          %s208 = scalar_lea.vmem %s0, %s207
          // Predicated region
          $region29: #{attention_dw_forward.3} parent=27 // pred_check
            _
          $region30: #{attention_dw_forward.3} parent=27 // pred_check_branch
            %210 = sbr.rel (0) target = $region32
          $region31: #{attention_dw_forward.3} parent=27 // pred_region
            // Predicated region
            $region33: #{attention_dw_forward.3} parent=31 // pred_check
              _
            $region34: #{attention_dw_forward.3} parent=31 // pred_check_branch
              %212 = sbr.rel target = $region36
            $region35: #{attention_dw_forward.3} parent=31 // pred_region
              // Predicated region
              $region48: #{attention_dw_forward.3} parent=35 // pred_check
                _
              $region49: #{attention_dw_forward.3} parent=35 // pred_check_branch
                %230 = sbr.rel (0) target = $region51
              $region50: #{attention_dw_forward.3} parent=35 // pred_region
                loop: start=0, step=1, limit=1
                $region52: #{attention_dw_forward.3} parent=50 // loop_pre_header
                  _
                $region53: #{attention_dw_forward.3} parent=50 // loop_header
                  %s232 = sphi 0, %s236
                  %p233 = scmp.ge.s32.totalorder %s232, 1
                  %s237 = sphi %s208, %s208
                  %s238 = sphi %s204, %s204
                $region54: #{attention_dw_forward.3} parent=50 // loop_header_branch
                  %235 = sbr.rel (%p233) target = $region58
                $region55: #{attention_dw_forward.3} parent=50 // loop_body
                  _
                $region56: #{attention_dw_forward.3} parent=50 // loop_footer
                  %s236 = sadd.s32 1, %s232
                $region57: #{attention_dw_forward.3} parent=50 // loop_footer_branch
                  %231 = sbr.rel target = $region53
                $region58: #{attention_dw_forward.3} parent=50 // loop_exit
                  _
                %s240 = ssub.s32 16, 1
                loop: start=0, step=1, limit=1
                $region59: #{attention_dw_forward.3} parent=50 // loop_pre_header
                  _
                $region60: #{attention_dw_forward.3} parent=50 // loop_header
                  %s242 = sphi 0, %s246
                  %p243 = scmp.ge.s32.totalorder %s242, 1
                  %s247 = sphi %s208, %s208
                  %s248 = sphi %s204, %s204
                $region61: #{attention_dw_forward.3} parent=50 // loop_header_branch
                  %245 = sbr.rel (%p243) target = $region65
                $region62: #{attention_dw_forward.3} parent=50 // loop_body
                  %v249 = vld [vmem:[%s247] sm:%s240]
                  %250 = vst [vmem:[%s248] sm:%s240] %v249
                  %v251 = vld [vmem:[%s247 + $0x8] sm:%s240]
                  %252 = vst [vmem:[%s248 + $0x4] sm:%s240] %v251
                $region63: #{attention_dw_forward.3} parent=50 // loop_footer
                  %s246 = sadd.s32 1, %s242
                $region64: #{attention_dw_forward.3} parent=50 // loop_footer_branch
                  %241 = sbr.rel target = $region60
                $region65: #{attention_dw_forward.3} parent=50 // loop_exit
                  _
              $region51: #{attention_dw_forward.3} parent=35 // pred_fallthru
                _
            $region36: #{attention_dw_forward.3} parent=31 // pred_fallthru
              _
            // Predicated region
            $region37: #{attention_dw_forward.3} parent=31 // pred_check
              _
            $region38: #{attention_dw_forward.3} parent=31 // pred_check_branch
              %214 = sbr.rel (0) target = $region40
            $region39: #{attention_dw_forward.3} parent=31 // pred_region
              %s216 = ssub.s32 16, 1
              loop: start=0, step=1, limit=1
              $region41: #{attention_dw_forward.3} parent=39 // loop_pre_header
                _
              $region42: #{attention_dw_forward.3} parent=39 // loop_header
                %s218 = sphi 0, %s222
                %p219 = scmp.ge.s32.totalorder %s218, 1
                %s223 = sphi %s208, %s208
                %s224 = sphi %s204, %s204
              $region43: #{attention_dw_forward.3} parent=39 // loop_header_branch
                %221 = sbr.rel (%p219) target = $region47
              $region44: #{attention_dw_forward.3} parent=39 // loop_body
                %v225 = vld [vmem:[%s223] sm:%s216]
                %226 = vst [vmem:[%s224] sm:%s216] %v225
                %v227 = vld [vmem:[%s223 + $0x8] sm:%s216]
                %228 = vst [vmem:[%s224 + $0x4] sm:%s216] %v227
              $region45: #{attention_dw_forward.3} parent=39 // loop_footer
                %s222 = sadd.s32 1, %s218
              $region46: #{attention_dw_forward.3} parent=39 // loop_footer_branch
                %217 = sbr.rel target = $region42
              $region47: #{attention_dw_forward.3} parent=39 // loop_exit
                _
            $region40: #{attention_dw_forward.3} parent=31 // pred_fallthru
              _
          $region32: #{attention_dw_forward.3} parent=27 // pred_fallthru
            _
          %253 = vnop
        $region28: #{attention_dw_forward.3} parent=23 // pred_fallthru
          _
        // Predicated region
        $region66: #{attention_dw_forward.3} parent=23 // pred_check
          %p254 = pneg %p71
        $region67: #{attention_dw_forward.3} parent=23 // pred_check_branch
          %256 = sbr.rel (%p254) target = $region69
        $region68: #{attention_dw_forward.3} parent=23 // pred_region
          %p257 = scmp.lt.s32.totalorder %s18, 1
          %s258 = scalar_select %p257, %s18, 1
          %s259 = smul.addr %s258, 8
          %s260 = smul.addr %s259, 4
          %s261 = scalar_lea.vmem %s1, %s260
        $region69: #{attention_dw_forward.3} parent=23 // pred_fallthru
          _
        // Predicated region
        $region70: #{attention_dw_forward.3} parent=23 // pred_check
          %p262 = pneg %p97
        $region71: #{attention_dw_forward.3} parent=23 // pred_check_branch
          %264 = sbr.rel (%p262) target = $region73
        $region72: #{attention_dw_forward.3} parent=23 // pred_region
          %p265 = scmp.lt.s32.totalorder %s18, 1
          %s266 = scalar_select %p265, %s18, 1
          %s267 = smul.addr %s266, 8
          %s268 = smul.addr %s267, 4
          %s269 = scalar_lea.vmem %s2, %s268
        $region73: #{attention_dw_forward.3} parent=23 // pred_fallthru
          _
      $region24: #{attention_dw_forward.3} parent=5 // pred_fallthru
        _
      %p270 = scmp.le.s32.totalorder 1, %s11
      %p271 = scmp.lt.s32.totalorder %s11, 5
      %p272 = pnand %p270, %p271
      %p273 = pneg %p272
      // Predicated region
      $region74: #{attention_dw_forward.3} parent=5 // pred_check
        _
      $region75: #{attention_dw_forward.3} parent=5 // pred_check_branch
        %275 = sbr.rel (%p272) target = $region77
      $region76: #{attention_dw_forward.3} parent=5 // pred_region
        %s276 = ssub.s32 %s11, 1
        %s277 = sand.u32 %s38, 1
        %s278 = sand.u32 %s38, 1
        %s279 = smul.addr %s278, 8
        %s280 = scalar_lea.vmem [#allocation3], %s279
        // Predicated region
        $region78: #{attention_dw_forward.3} parent=76 // pred_check
          %p281 = pneg %p51
        $region79: #{attention_dw_forward.3} parent=76 // pred_check_branch
          %283 = sbr.rel (%p281) target = $region81
        $region80: #{attention_dw_forward.3} parent=76 // pred_region
          _
        $region81: #{attention_dw_forward.3} parent=76 // pred_fallthru
          _
        %s284 = sand.u32 %s38, 1
        %s285 = sand.u32 %s38, 1
        %s286 = smul.addr %s285, 8
        %s287 = scalar_lea.vmem [#allocation3], %s286
        %p288 = pneg %p51
        %p289 = pneg %p48
        %p290 = scmp.lt.s32.totalorder %s20, 1
        %s291 = scalar_select %p290, %s20, 1
        %s292 = smul.addr %s291, 8
        %s293 = smul.addr %s292, 4
        %s294 = scalar_lea.vmem %s1, %s293
        %p295 = pneg %p77
        %p296 = pneg %p74
        %p297 = scmp.lt.s32.totalorder %s20, 1
        %s298 = scalar_select %p297, %s20, 1
        %s299 = smul.addr %s298, 8
        %s300 = smul.addr %s299, 4
        %s301 = scalar_lea.vmem %s2, %s300
        %p302 = pneg %p103
        %p303 = pneg %p100
        %p304 = pneg %p124
        %p305 = pneg %p121
        %p306 = pneg %p145
        %p307 = pneg %p142
        %p308 = pneg %p173
        %p309 = pneg %p170
        %s310 = sand.u32 %s160, 1
        %s311 = sand.u32 %s160, 1
        %s312 = smul.addr %s311, 16
        %s313 = scalar_lea.vmem [#allocation4], %s312
        %p314 = scmp.lt.s32.totalorder %s20, 1
        %s315 = scalar_select %p314, %s20, 1
        %s316 = smul.addr %s315, 8
        %s317 = smul.addr %s316, 4
        %s318 = scalar_lea.vmem %s1, %s317
        %p319 = scmp.lt.s32.totalorder %s20, 1
        %s320 = scalar_select %p319, %s20, 1
        %s321 = smul.addr %s320, 8
        %s322 = smul.addr %s321, 4
        %s323 = scalar_lea.vmem %s2, %s322
        %v325 = vld [vmem:[%s280] sm:$0x3]
        %v326 = vld [vmem:[%s318] sm:$0xf]
        %v327 = vld [vmem:[%s318 + $0x4] sm:$0xf]
        %v328 = vld [vmem:[%s318 + $0x8] sm:$0xf]
        %v329 = vld [vmem:[%s318 + $0xc] sm:$0xf]
        %v330 = vld [vmem:[%s318 + $0x10] sm:$0xf]
        %v331 = vld [vmem:[%s318 + $0x14] sm:$0xf]
        %v332 = vld [vmem:[%s318 + $0x18] sm:$0xf]
        %v333 = vld [vmem:[%s318 + $0x1c] sm:$0xf]
        %v334 = vld [vmem:[%s323] sm:$0xf]
        %v335 = vld [vmem:[%s323 + $0x4] sm:$0xf]
        %v336 = vld [vmem:[%s323 + $0x8] sm:$0xf]
        %v337 = vld [vmem:[%s323 + $0xc] sm:$0xf]
        %v338 = vld [vmem:[%s323 + $0x10] sm:$0xf]
        %v339 = vld [vmem:[%s323 + $0x14] sm:$0xf]
        %v340 = vld [vmem:[%s323 + $0x18] sm:$0xf]
        %v341 = vld [vmem:[%s323 + $0x1c] sm:$0xf]
        %v350 = vunpack.c.l.b16 %v326
        %v351 = vunpack.c.l.b16 %v327
        %v352 = vunpack.c.l.b16 %v328
        %v353 = vunpack.c.l.b16 %v329
        %v354 = vunpack.c.l.b16 %v330
        %v355 = vunpack.c.l.b16 %v331
        %v356 = vunpack.c.l.b16 %v332
        %v357 = vunpack.c.l.b16 %v333
        %v358 = vpack.c.b16 %v351, %v350
        %v359 = vpack.c.b16 %v353, %v352
        %v360 = vpack.c.b16 %v355, %v354
        %v361 = vpack.c.b16 %v357, %v356
        %vm362 = vcmask 31744
        %v364 = vsel %vm362, %v358, 0
        %v367 = vsel %vm362, %v359, 0
        %v370 = vsel %vm362, %v360, 0
        %v373 = vsel %vm362, %v361, 0
        %vm375 = vcmask 1041408
        %v377 = vsel %vm375, %v325, 0
        %379 = vmatprep.subr.bf16.mxu0 0
        %380 = vmatpush1.bf16.msra.mxu0 0
        %381 = vmatprep.subr.bf16.mxu0 0
        %382 = vmatpush1.bf16.msra.mxu0 0
        %383 = vmatprep.subr.bf16.mxu0 0
        %384 = vmatpush1.bf16.msra.mxu0 0
        %385 = vmatprep.subr.bf16.mxu0 0
        %386 = vmatpush1.bf16.msra.mxu0 0
        %387 = vmatprep.subr.bf16.mxu0 0
        %388 = vmatpush1.bf16.msra.mxu0 0
        %389 = vmatprep.subr.bf16.mxu0 0
        %390 = vmatpush1.bf16.msra.mxu0 0
        %391 = vmatprep.subr.bf16.mxu0 0
        %392 = vmatpush1.bf16.msra.mxu0 0
        %393 = vmatprep.subr.bf16.mxu0 0
        %394 = vmatpush1.bf16.msra.mxu0 %v377
        %395 = vmatprep.subr.bf16.mxu0 0
        %396 = vmatpush2.bf16.msra.mxu0 0
        %397 = vmatprep.subr.bf16.mxu0 0
        %398 = vmatpush2.bf16.msra.mxu0 0
        %399 = vmatprep.subr.bf16.mxu0 0
        %400 = vmatpush2.bf16.msra.mxu0 0
        %401 = vmatprep.subr.bf16.mxu0 0
        %402 = vmatpush2.bf16.msra.mxu0 0
        %403 = vmatprep.subr.bf16.mxu0 0
        %404 = vmatpush2.bf16.msra.mxu0 0
        %405 = vmatprep.subr.bf16.mxu0 0
        %406 = vmatpush2.bf16.msra.mxu0 0
        %407 = vmatprep.subr.bf16.mxu0 0
        %408 = vmatpush2.bf16.msra.mxu0 0
        %409 = vmatprep.subr.bf16.mxu0 0
        %410 = vmatpush2.bf16.msra.mxu0 0
        %411 = vmatprep.mubr.bf16.mxu0 0
        %412 = vmatmul.mubr.bf16.gmra.mxu0 %v364
        %v413 = vpop.f32.mrf.mxu0
        %v414 = vadd.f32 0.0, %v413
        %v415 = vpop.f32.mrf.mxu0
        %v416 = vpop.f32.mrf.mxu0
        %v417 = vadd.f32 0.0, %v416
        %v418 = vpop.f32.mrf.mxu0
        %419 = vmatprep.mubr.bf16.mxu0 0
        %420 = vmatmul.mubr.bf16.gmra.mxu0 %v367
        %v421 = vpop.f32.mrf.mxu0
        %v422 = vadd.f32 0.0, %v421
        %v423 = vpop.f32.mrf.mxu0
        %v424 = vpop.f32.mrf.mxu0
        %v425 = vadd.f32 0.0, %v424
        %v426 = vpop.f32.mrf.mxu0
        %427 = vmatprep.mubr.bf16.mxu0 0
        %428 = vmatmul.mubr.bf16.gmra.mxu0 %v370
        %v429 = vpop.f32.mrf.mxu0
        %v430 = vadd.f32 0.0, %v429
        %v431 = vpop.f32.mrf.mxu0
        %v432 = vpop.f32.mrf.mxu0
        %v433 = vadd.f32 0.0, %v432
        %v434 = vpop.f32.mrf.mxu0
        %435 = vmatprep.mubr.bf16.mxu0 0
        %436 = vmatmul.mubr.bf16.gmra.mxu0 %v373
        %v437 = vpop.f32.mrf.mxu0
        %v438 = vadd.f32 0.0, %v437
        %v439 = vpop.f32.mrf.mxu0
        %v440 = vpop.f32.mrf.mxu0
        %v441 = vadd.f32 0.0, %v440
        %v442 = vpop.f32.mrf.mxu0
        %443 = vdwg.mxu0
        %v444 = vmax.f32 %v414, %v430
        %v445 = vmax.f32 %v417, %v433
        %v446 = vmax.f32 %v422, %v438
        %v447 = vmax.f32 %v425, %v441
        %v448 = vmax.f32 %v444, %v445
        %v449 = vmax.f32 %v446, %v447
        %v450 = vmax.f32 %v448, %v449
        %v451 = vrot.slane %v450, 4
        %v452 = vmax.f32 %v450, %v451
        %v453 = vrot.slane %v452, 2
        %v454 = vmax.f32 %v452, %v453
        %v455 = vrot.slane %v454, 1
        %v456 = vmax.f32 %v454, %v455
        %v457 = vsub.f32 %v414, %v456
        %v458 = vsub.f32 %v417, %v456
        %v459 = vsub.f32 %v422, %v456
        %v460 = vsub.f32 %v425, %v456
        %v461 = vsub.f32 %v430, %v456
        %v462 = vsub.f32 %v433, %v456
        %v463 = vsub.f32 %v438, %v456
        %v464 = vsub.f32 %v441, %v456
        %v465 = vmul.f32 %v457, 1.442695
        %v466 = vpow.pop %v465
        %v467 = vmul.f32 %v458, 1.442695
        %v468 = vpow.pop %v467
        %v469 = vmul.f32 %v459, 1.442695
        %v470 = vpow.pop %v469
        %v471 = vmul.f32 %v460, 1.442695
        %v472 = vpow.pop %v471
        %v473 = vmul.f32 %v461, 1.442695
        %v474 = vpow.pop %v473
        %v475 = vmul.f32 %v462, 1.442695
        %v476 = vpow.pop %v475
        %v477 = vmul.f32 %v463, 1.442695
        %v478 = vpow.pop %v477
        %v479 = vmul.f32 %v464, 1.442695
        %v480 = vpow.pop %v479
        %v481 = vadd.f32 %v466, %v468
        %v482 = vadd.f32 %v481, %v470
        %v483 = vadd.f32 %v482, %v472
        %v484 = vadd.f32 %v483, %v474
        %v485 = vadd.f32 %v484, %v476
        %v486 = vadd.f32 %v485, %v478
        %v487 = vadd.f32 %v486, %v480
        %v488 = vrot.slane %v487, 4
        %v489 = vadd.f32 %v487, %v488
        %v490 = vrot.slane %v489, 2
        %v491 = vadd.f32 %v489, %v490
        %v492 = vrot.slane %v491, 1
        %v493 = vadd.f32 %v491, %v492
        %v494 = vrcp.pop %v493
        %v495 = vmul.f32 %v466, %v494
        %v496 = vmul.f32 %v468, %v494
        %v497 = vmul.f32 %v470, %v494
        %v498 = vmul.f32 %v472, %v494
        %v499 = vmul.f32 %v474, %v494
        %v500 = vmul.f32 %v476, %v494
        %v501 = vmul.f32 %v478, %v494
        %v502 = vmul.f32 %v480, %v494
        %v503 = vpack.c.bf16 %v496, %v495
        %v504 = vpack.c.bf16 %v498, %v497
        %v505 = vpack.c.bf16 %v500, %v499
        %v506 = vpack.c.bf16 %v502, %v501
        %v515 = vunpack.c.l.b16 %v334
        %v516 = vunpack.c.l.b16 %v335
        %v517 = vunpack.c.l.b16 %v336
        %v518 = vunpack.c.l.b16 %v337
        %v519 = vunpack.c.l.b16 %v338
        %v520 = vunpack.c.l.b16 %v339
        %v521 = vunpack.c.l.b16 %v340
        %v522 = vunpack.c.l.b16 %v341
        %v523 = vpack.c.b16 %v516, %v515
        %v524 = vpack.c.b16 %v518, %v517
        %v525 = vpack.c.b16 %v520, %v519
        %v526 = vpack.c.b16 %v522, %v521
        %531 = vxpose.xlu0.c.b16.start [1/8] %v523, 128
        %532 = vxpose.xlu0.c.b16.cont [2/8] %v524, 128
        %533 = vxpose.xlu0.c.b16.cont [3/8] %v525, 128
        %534 = vxpose.xlu0.c.b16.cont [4/8] %v526, 128
        %535 = vxpose.xlu0.c.b16.cont [5/8] 0, 128
        %536 = vxpose.xlu0.c.b16.cont [6/8] 0, 128
        %537 = vxpose.xlu0.c.b16.cont [7/8] 0, 128
        %538 = vxpose.xlu0.c.b16.end [8/8] 0, 128
        %v539 = vpop.trf.xlu0
        %v540 = vpop.trf.xlu0
        %v541 = vpop.trf.xlu0
        %v542 = vpop.trf.xlu0
        %v543 = vpop.trf.xlu0
        %v544 = vpop.trf.xlu0
        %v545 = vpop.trf.xlu0
        %v546 = vpop.trf.xlu0
        %vm547 = vcmask 523264
        %v549 = vsel %vm547, %v539, 0
        %551 = vmatprep.subr.bf16.mxu0 0
        %552 = vmatpush1.bf16.msra.mxu0 0
        %553 = vmatprep.subr.bf16.mxu0 0
        %554 = vmatpush1.bf16.msra.mxu0 0
        %555 = vmatprep.subr.bf16.mxu0 0
        %556 = vmatpush1.bf16.msra.mxu0 0
        %557 = vmatprep.subr.bf16.mxu0 0
        %558 = vmatpush1.bf16.msra.mxu0 0
        %559 = vmatprep.subr.bf16.mxu0 0
        %560 = vmatpush1.bf16.msra.mxu0 %v506
        %561 = vmatprep.subr.bf16.mxu0 0
        %562 = vmatpush1.bf16.msra.mxu0 %v505
        %563 = vmatprep.subr.bf16.mxu0 0
        %564 = vmatpush1.bf16.msra.mxu0 %v504
        %565 = vmatprep.subr.bf16.mxu0 0
        %566 = vmatpush1.bf16.msra.mxu0 %v503
        %567 = vmatprep.subr.bf16.mxu0 0
        %568 = vmatpush2.bf16.msra.mxu0 0
        %569 = vmatprep.subr.bf16.mxu0 0
        %570 = vmatpush2.bf16.msra.mxu0 0
        %571 = vmatprep.subr.bf16.mxu0 0
        %572 = vmatpush2.bf16.msra.mxu0 0
        %573 = vmatprep.subr.bf16.mxu0 0
        %574 = vmatpush2.bf16.msra.mxu0 0
        %575 = vmatprep.subr.bf16.mxu0 0
        %576 = vmatpush2.bf16.msra.mxu0 0
        %577 = vmatprep.subr.bf16.mxu0 0
        %578 = vmatpush2.bf16.msra.mxu0 0
        %579 = vmatprep.subr.bf16.mxu0 0
        %580 = vmatpush2.bf16.msra.mxu0 0
        %581 = vmatprep.subr.bf16.mxu0 0
        %582 = vmatpush2.bf16.msra.mxu0 0
        %583 = vmatprep.mubr.bf16.mxu0 0
        %584 = vmatmul.mubr.bf16.gmra.mxu0 %v549
        %v585 = vpop.f32.mrf.mxu0
        %v586 = vadd.f32 0.0, %v585
        %v587 = vpop.f32.mrf.mxu0
        %v588 = vpop.f32.mrf.mxu0
        %v589 = vpop.f32.mrf.mxu0
        %590 = vdwg.mxu0
        %591 = vst [vmem:[#allocation2] sm:$0xf] %v586
        %v592 = vld [vmem:[%s280] sm:$0xc]
        %v593 = vld [vmem:[%s318] sm:$0xf]
        %v594 = vld [vmem:[%s318 + $0x4] sm:$0xf]
        %v595 = vld [vmem:[%s318 + $0x8] sm:$0xf]
        %v596 = vld [vmem:[%s318 + $0xc] sm:$0xf]
        %v597 = vld [vmem:[%s318 + $0x10] sm:$0xf]
        %v598 = vld [vmem:[%s318 + $0x14] sm:$0xf]
        %v599 = vld [vmem:[%s318 + $0x18] sm:$0xf]
        %v600 = vld [vmem:[%s318 + $0x1c] sm:$0xf]
        %v601 = vld [vmem:[%s323] sm:$0xf]
        %v602 = vld [vmem:[%s323 + $0x4] sm:$0xf]
        %v603 = vld [vmem:[%s323 + $0x8] sm:$0xf]
        %v604 = vld [vmem:[%s323 + $0xc] sm:$0xf]
        %v605 = vld [vmem:[%s323 + $0x10] sm:$0xf]
        %v606 = vld [vmem:[%s323 + $0x14] sm:$0xf]
        %v607 = vld [vmem:[%s323 + $0x18] sm:$0xf]
        %v608 = vld [vmem:[%s323 + $0x1c] sm:$0xf]
        %v617 = vunpack.c.l.b16 %v593
        %v618 = vunpack.c.l.b16 %v594
        %v619 = vunpack.c.l.b16 %v595
        %v620 = vunpack.c.l.b16 %v596
        %v621 = vunpack.c.l.b16 %v597
        %v622 = vunpack.c.l.b16 %v598
        %v623 = vunpack.c.l.b16 %v599
        %v624 = vunpack.c.l.b16 %v600
        %v625 = vpack.c.b16 %v618, %v617
        %v626 = vpack.c.b16 %v620, %v619
        %v627 = vpack.c.b16 %v622, %v621
        %v628 = vpack.c.b16 %v624, %v623
        %629 = vrot.lane.b32.xlu0 %v625, 124
        %v630 = vpop.permute.xlu0 %629
        %631 = vrot.lane.b32.xlu0 %v626, 124
        %v632 = vpop.permute.xlu0 %631
        %633 = vrot.lane.b32.xlu0 %v627, 124
        %v634 = vpop.permute.xlu0 %633
        %635 = vrot.lane.b32.xlu0 %v628, 124
        %v636 = vpop.permute.xlu0 %635
        %v638 = vunpack.c.l.b16 %v592
        %v639 = vpack.c.b16 %v638, %v638
        %v640 = vrot.slane %v639, 2
        %v642 = vsel %vm362, %v630, 0
        %v645 = vsel %vm362, %v632, 0
        %v648 = vsel %vm362, %v634, 0
        %v651 = vsel %vm362, %v636, 0
        %v654 = vsel %vm375, %v640, 0
        %656 = vmatprep.subr.bf16.mxu0 0
        %657 = vmatpush1.bf16.msra.mxu0 0
        %658 = vmatprep.subr.bf16.mxu0 0
        %659 = vmatpush1.bf16.msra.mxu0 0
        %660 = vmatprep.subr.bf16.mxu0 0
        %661 = vmatpush1.bf16.msra.mxu0 0
        %662 = vmatprep.subr.bf16.mxu0 0
        %663 = vmatpush1.bf16.msra.mxu0 0
        %664 = vmatprep.subr.bf16.mxu0 0
        %665 = vmatpush1.bf16.msra.mxu0 0
        %666 = vmatprep.subr.bf16.mxu0 0
        %667 = vmatpush1.bf16.msra.mxu0 0
        %668 = vmatprep.subr.bf16.mxu0 0
        %669 = vmatpush1.bf16.msra.mxu0 0
        %670 = vmatprep.subr.bf16.mxu0 0
        %671 = vmatpush1.bf16.msra.mxu0 %v654
        %672 = vmatprep.subr.bf16.mxu0 0
        %673 = vmatpush2.bf16.msra.mxu0 0
        %674 = vmatprep.subr.bf16.mxu0 0
        %675 = vmatpush2.bf16.msra.mxu0 0
        %676 = vmatprep.subr.bf16.mxu0 0
        %677 = vmatpush2.bf16.msra.mxu0 0
        %678 = vmatprep.subr.bf16.mxu0 0
        %679 = vmatpush2.bf16.msra.mxu0 0
        %680 = vmatprep.subr.bf16.mxu0 0
        %681 = vmatpush2.bf16.msra.mxu0 0
        %682 = vmatprep.subr.bf16.mxu0 0
        %683 = vmatpush2.bf16.msra.mxu0 0
        %684 = vmatprep.subr.bf16.mxu0 0
        %685 = vmatpush2.bf16.msra.mxu0 0
        %686 = vmatprep.subr.bf16.mxu0 0
        %687 = vmatpush2.bf16.msra.mxu0 0
        %688 = vmatprep.mubr.bf16.mxu0 0
        %689 = vmatmul.mubr.bf16.gmra.mxu0 %v642
        %v690 = vpop.f32.mrf.mxu0
        %v691 = vadd.f32 0.0, %v690
        %v692 = vpop.f32.mrf.mxu0
        %v693 = vpop.f32.mrf.mxu0
        %v694 = vadd.f32 0.0, %v693
        %v695 = vpop.f32.mrf.mxu0
        %696 = vmatprep.mubr.bf16.mxu0 0
        %697 = vmatmul.mubr.bf16.gmra.mxu0 %v645
        %v698 = vpop.f32.mrf.mxu0
        %v699 = vadd.f32 0.0, %v698
        %v700 = vpop.f32.mrf.mxu0
        %v701 = vpop.f32.mrf.mxu0
        %v702 = vadd.f32 0.0, %v701
        %v703 = vpop.f32.mrf.mxu0
        %704 = vmatprep.mubr.bf16.mxu0 0
        %705 = vmatmul.mubr.bf16.gmra.mxu0 %v648
        %v706 = vpop.f32.mrf.mxu0
        %v707 = vadd.f32 0.0, %v706
        %v708 = vpop.f32.mrf.mxu0
        %v709 = vpop.f32.mrf.mxu0
        %v710 = vadd.f32 0.0, %v709
        %v711 = vpop.f32.mrf.mxu0
        %712 = vmatprep.mubr.bf16.mxu0 0
        %713 = vmatmul.mubr.bf16.gmra.mxu0 %v651
        %v714 = vpop.f32.mrf.mxu0
        %v715 = vadd.f32 0.0, %v714
        %v716 = vpop.f32.mrf.mxu0
        %v717 = vpop.f32.mrf.mxu0
        %v718 = vadd.f32 0.0, %v717
        %v719 = vpop.f32.mrf.mxu0
        %720 = vdwg.mxu0
        %v721 = vmax.f32 %v691, %v707
        %v722 = vmax.f32 %v694, %v710
        %v723 = vmax.f32 %v699, %v715
        %v724 = vmax.f32 %v702, %v718
        %v725 = vmax.f32 %v721, %v722
        %v726 = vmax.f32 %v723, %v724
        %v727 = vmax.f32 %v725, %v726
        %v728 = vrot.slane %v727, 4
        %v729 = vmax.f32 %v727, %v728
        %v730 = vrot.slane %v729, 2
        %v731 = vmax.f32 %v729, %v730
        %v732 = vrot.slane %v731, 1
        %v733 = vmax.f32 %v731, %v732
        %v734 = vsub.f32 %v691, %v733
        %v735 = vsub.f32 %v694, %v733
        %v736 = vsub.f32 %v699, %v733
        %v737 = vsub.f32 %v702, %v733
        %v738 = vsub.f32 %v707, %v733
        %v739 = vsub.f32 %v710, %v733
        %v740 = vsub.f32 %v715, %v733
        %v741 = vsub.f32 %v718, %v733
        %v742 = vmul.f32 %v734, 1.442695
        %v743 = vpow.pop %v742
        %v744 = vmul.f32 %v735, 1.442695
        %v745 = vpow.pop %v744
        %v746 = vmul.f32 %v736, 1.442695
        %v747 = vpow.pop %v746
        %v748 = vmul.f32 %v737, 1.442695
        %v749 = vpow.pop %v748
        %v750 = vmul.f32 %v738, 1.442695
        %v751 = vpow.pop %v750
        %v752 = vmul.f32 %v739, 1.442695
        %v753 = vpow.pop %v752
        %v754 = vmul.f32 %v740, 1.442695
        %v755 = vpow.pop %v754
        %v756 = vmul.f32 %v741, 1.442695
        %v757 = vpow.pop %v756
        %v758 = vadd.f32 %v743, %v745
        %v759 = vadd.f32 %v758, %v747
        %v760 = vadd.f32 %v759, %v749
        %v761 = vadd.f32 %v760, %v751
        %v762 = vadd.f32 %v761, %v753
        %v763 = vadd.f32 %v762, %v755
        %v764 = vadd.f32 %v763, %v757
        %v765 = vrot.slane %v764, 4
        %v766 = vadd.f32 %v764, %v765
        %v767 = vrot.slane %v766, 2
        %v768 = vadd.f32 %v766, %v767
        %v769 = vrot.slane %v768, 1
        %v770 = vadd.f32 %v768, %v769
        %v771 = vrcp.pop %v770
        %v772 = vmul.f32 %v743, %v771
        %v773 = vmul.f32 %v745, %v771
        %v774 = vmul.f32 %v747, %v771
        %v775 = vmul.f32 %v749, %v771
        %v776 = vmul.f32 %v751, %v771
        %v777 = vmul.f32 %v753, %v771
        %v778 = vmul.f32 %v755, %v771
        %v779 = vmul.f32 %v757, %v771
        %v780 = vpack.c.bf16 %v773, %v772
        %v781 = vpack.c.bf16 %v775, %v774
        %v782 = vpack.c.bf16 %v777, %v776
        %v783 = vpack.c.bf16 %v779, %v778
        %v792 = vunpack.c.l.b16 %v601
        %v793 = vunpack.c.l.b16 %v602
        %v794 = vunpack.c.l.b16 %v603
        %v795 = vunpack.c.l.b16 %v604
        %v796 = vunpack.c.l.b16 %v605
        %v797 = vunpack.c.l.b16 %v606
        %v798 = vunpack.c.l.b16 %v607
        %v799 = vunpack.c.l.b16 %v608
        %v800 = vpack.c.b16 %v793, %v792
        %v801 = vpack.c.b16 %v795, %v794
        %v802 = vpack.c.b16 %v797, %v796
        %v803 = vpack.c.b16 %v799, %v798
        %804 = vrot.lane.b32.xlu0 %v800, 124
        %v805 = vpop.permute.xlu0 %804
        %806 = vrot.lane.b32.xlu0 %v801, 124
        %v807 = vpop.permute.xlu0 %806
        %808 = vrot.lane.b32.xlu0 %v802, 124
        %v809 = vpop.permute.xlu0 %808
        %810 = vrot.lane.b32.xlu0 %v803, 124
        %v811 = vpop.permute.xlu0 %810
        %816 = vxpose.xlu0.c.b16.start [1/8] %v805, 128
        %817 = vxpose.xlu0.c.b16.cont [2/8] %v807, 128
        %818 = vxpose.xlu0.c.b16.cont [3/8] %v809, 128
        %819 = vxpose.xlu0.c.b16.cont [4/8] %v811, 128
        %820 = vxpose.xlu0.c.b16.cont [5/8] 0, 128
        %821 = vxpose.xlu0.c.b16.cont [6/8] 0, 128
        %822 = vxpose.xlu0.c.b16.cont [7/8] 0, 128
        %823 = vxpose.xlu0.c.b16.end [8/8] 0, 128
        %v824 = vpop.trf.xlu0
        %v825 = vpop.trf.xlu0
        %v826 = vpop.trf.xlu0
        %v827 = vpop.trf.xlu0
        %v828 = vpop.trf.xlu0
        %v829 = vpop.trf.xlu0
        %v830 = vpop.trf.xlu0
        %v831 = vpop.trf.xlu0
        %v833 = vsel %vm547, %v824, 0
        %835 = vmatprep.subr.bf16.mxu0 0
        %836 = vmatpush1.bf16.msra.mxu0 0
        %837 = vmatprep.subr.bf16.mxu0 0
        %838 = vmatpush1.bf16.msra.mxu0 0
        %839 = vmatprep.subr.bf16.mxu0 0
        %840 = vmatpush1.bf16.msra.mxu0 0
        %841 = vmatprep.subr.bf16.mxu0 0
        %842 = vmatpush1.bf16.msra.mxu0 0
        %843 = vmatprep.subr.bf16.mxu0 0
        %844 = vmatpush1.bf16.msra.mxu0 %v783
        %845 = vmatprep.subr.bf16.mxu0 0
        %846 = vmatpush1.bf16.msra.mxu0 %v782
        %847 = vmatprep.subr.bf16.mxu0 0
        %848 = vmatpush1.bf16.msra.mxu0 %v781
        %849 = vmatprep.subr.bf16.mxu0 0
        %850 = vmatpush1.bf16.msra.mxu0 %v780
        %851 = vmatprep.subr.bf16.mxu0 0
        %852 = vmatpush2.bf16.msra.mxu0 0
        %853 = vmatprep.subr.bf16.mxu0 0
        %854 = vmatpush2.bf16.msra.mxu0 0
        %855 = vmatprep.subr.bf16.mxu0 0
        %856 = vmatpush2.bf16.msra.mxu0 0
        %857 = vmatprep.subr.bf16.mxu0 0
        %858 = vmatpush2.bf16.msra.mxu0 0
        %859 = vmatprep.subr.bf16.mxu0 0
        %860 = vmatpush2.bf16.msra.mxu0 0
        %861 = vmatprep.subr.bf16.mxu0 0
        %862 = vmatpush2.bf16.msra.mxu0 0
        %863 = vmatprep.subr.bf16.mxu0 0
        %864 = vmatpush2.bf16.msra.mxu0 0
        %865 = vmatprep.subr.bf16.mxu0 0
        %866 = vmatpush2.bf16.msra.mxu0 0
        %867 = vmatprep.mubr.bf16.mxu0 0
        %868 = vmatmul.mubr.bf16.gmra.mxu0 %v833
        %v869 = vpop.f32.mrf.mxu0
        %v870 = vadd.f32 0.0, %v869
        %v871 = vpop.f32.mrf.mxu0
        %v872 = vpop.f32.mrf.mxu0
        %v873 = vpop.f32.mrf.mxu0
        %874 = vdwg.mxu0
        %875 = vst [vmem:[#allocation2 + $0x4] sm:$0xf] %v870
        %v876 = vld [vmem:[%s280 + $0x4] sm:$0x3]
        %v877 = vld [vmem:[%s318] sm:$0xf]
        %v878 = vld [vmem:[%s318 + $0x4] sm:$0xf]
        %v879 = vld [vmem:[%s318 + $0x8] sm:$0xf]
        %v880 = vld [vmem:[%s318 + $0xc] sm:$0xf]
        %v881 = vld [vmem:[%s318 + $0x10] sm:$0xf]
        %v882 = vld [vmem:[%s318 + $0x14] sm:$0xf]
        %v883 = vld [vmem:[%s318 + $0x18] sm:$0xf]
        %v884 = vld [vmem:[%s318 + $0x1c] sm:$0xf]
        %v885 = vld [vmem:[%s323] sm:$0xf]
        %v886 = vld [vmem:[%s323 + $0x4] sm:$0xf]
        %v887 = vld [vmem:[%s323 + $0x8] sm:$0xf]
        %v888 = vld [vmem:[%s323 + $0xc] sm:$0xf]
        %v889 = vld [vmem:[%s323 + $0x10] sm:$0xf]
        %v890 = vld [vmem:[%s323 + $0x14] sm:$0xf]
        %v891 = vld [vmem:[%s323 + $0x18] sm:$0xf]
        %v892 = vld [vmem:[%s323 + $0x1c] sm:$0xf]
        %v901 = vunpack.c.l.b16 %v877
        %v902 = vunpack.c.l.b16 %v878
        %v903 = vunpack.c.l.b16 %v879
        %v904 = vunpack.c.l.b16 %v880
        %v905 = vunpack.c.l.b16 %v881
        %v906 = vunpack.c.l.b16 %v882
        %v907 = vunpack.c.l.b16 %v883
        %v908 = vunpack.c.l.b16 %v884
        %v909 = vpack.c.b16 %v902, %v901
        %v910 = vpack.c.b16 %v904, %v903
        %v911 = vpack.c.b16 %v906, %v905
        %v912 = vpack.c.b16 %v908, %v907
        %913 = vrot.lane.b32.xlu0 %v909, 120
        %v914 = vpop.permute.xlu0 %913
        %915 = vrot.lane.b32.xlu0 %v910, 120
        %v916 = vpop.permute.xlu0 %915
        %917 = vrot.lane.b32.xlu0 %v911, 120
        %v918 = vpop.permute.xlu0 %917
        %919 = vrot.lane.b32.xlu0 %v912, 120
        %v920 = vpop.permute.xlu0 %919
        %v922 = vsel %vm362, %v914, 0
        %v925 = vsel %vm362, %v916, 0
        %v928 = vsel %vm362, %v918, 0
        %v931 = vsel %vm362, %v920, 0
        %v934 = vsel %vm375, %v876, 0
        %936 = vmatprep.subr.bf16.mxu0 0
        %937 = vmatpush1.bf16.msra.mxu0 0
        %938 = vmatprep.subr.bf16.mxu0 0
        %939 = vmatpush1.bf16.msra.mxu0 0
        %940 = vmatprep.subr.bf16.mxu0 0
        %941 = vmatpush1.bf16.msra.mxu0 0
        %942 = vmatprep.subr.bf16.mxu0 0
        %943 = vmatpush1.bf16.msra.mxu0 0
        %944 = vmatprep.subr.bf16.mxu0 0
        %945 = vmatpush1.bf16.msra.mxu0 0
        %946 = vmatprep.subr.bf16.mxu0 0
        %947 = vmatpush1.bf16.msra.mxu0 0
        %948 = vmatprep.subr.bf16.mxu0 0
        %949 = vmatpush1.bf16.msra.mxu0 0
        %950 = vmatprep.subr.bf16.mxu0 0
        %951 = vmatpush1.bf16.msra.mxu0 %v934
        %952 = vmatprep.subr.bf16.mxu0 0
        %953 = vmatpush2.bf16.msra.mxu0 0
        %954 = vmatprep.subr.bf16.mxu0 0
        %955 = vmatpush2.bf16.msra.mxu0 0
        %956 = vmatprep.subr.bf16.mxu0 0
        %957 = vmatpush2.bf16.msra.mxu0 0
        %958 = vmatprep.subr.bf16.mxu0 0
        %959 = vmatpush2.bf16.msra.mxu0 0
        %960 = vmatprep.subr.bf16.mxu0 0
        %961 = vmatpush2.bf16.msra.mxu0 0
        %962 = vmatprep.subr.bf16.mxu0 0
        %963 = vmatpush2.bf16.msra.mxu0 0
        %964 = vmatprep.subr.bf16.mxu0 0
        %965 = vmatpush2.bf16.msra.mxu0 0
        %966 = vmatprep.subr.bf16.mxu0 0
        %967 = vmatpush2.bf16.msra.mxu0 0
        %968 = vmatprep.mubr.bf16.mxu0 0
        %969 = vmatmul.mubr.bf16.gmra.mxu0 %v922
        %v970 = vpop.f32.mrf.mxu0
        %v971 = vadd.f32 0.0, %v970
        %v972 = vpop.f32.mrf.mxu0
        %v973 = vpop.f32.mrf.mxu0
        %v974 = vadd.f32 0.0, %v973
        %v975 = vpop.f32.mrf.mxu0
        %976 = vmatprep.mubr.bf16.mxu0 0
        %977 = vmatmul.mubr.bf16.gmra.mxu0 %v925
        %v978 = vpop.f32.mrf.mxu0
        %v979 = vadd.f32 0.0, %v978
        %v980 = vpop.f32.mrf.mxu0
        %v981 = vpop.f32.mrf.mxu0
        %v982 = vadd.f32 0.0, %v981
        %v983 = vpop.f32.mrf.mxu0
        %984 = vmatprep.mubr.bf16.mxu0 0
        %985 = vmatmul.mubr.bf16.gmra.mxu0 %v928
        %v986 = vpop.f32.mrf.mxu0
        %v987 = vadd.f32 0.0, %v986
        %v988 = vpop.f32.mrf.mxu0
        %v989 = vpop.f32.mrf.mxu0
        %v990 = vadd.f32 0.0, %v989
        %v991 = vpop.f32.mrf.mxu0
        %992 = vmatprep.mubr.bf16.mxu0 0
        %993 = vmatmul.mubr.bf16.gmra.mxu0 %v931
        %v994 = vpop.f32.mrf.mxu0
        %v995 = vadd.f32 0.0, %v994
        %v996 = vpop.f32.mrf.mxu0
        %v997 = vpop.f32.mrf.mxu0
        %v998 = vadd.f32 0.0, %v997
        %v999 = vpop.f32.mrf.mxu0
        %1000 = vdwg.mxu0
        %v1001 = vmax.f32 %v971, %v987
        %v1002 = vmax.f32 %v974, %v990
        %v1003 = vmax.f32 %v979, %v995
        %v1004 = vmax.f32 %v982, %v998
        %v1005 = vmax.f32 %v1001, %v1002
        %v1006 = vmax.f32 %v1003, %v1004
        %v1007 = vmax.f32 %v1005, %v1006
        %v1008 = vrot.slane %v1007, 4
        %v1009 = vmax.f32 %v1007, %v1008
        %v1010 = vrot.slane %v1009, 2
        %v1011 = vmax.f32 %v1009, %v1010
        %v1012 = vrot.slane %v1011, 1
        %v1013 = vmax.f32 %v1011, %v1012
        %v1014 = vsub.f32 %v971, %v1013
        %v1015 = vsub.f32 %v974, %v1013
        %v1016 = vsub.f32 %v979, %v1013
        %v1017 = vsub.f32 %v982, %v1013
        %v1018 = vsub.f32 %v987, %v1013
        %v1019 = vsub.f32 %v990, %v1013
        %v1020 = vsub.f32 %v995, %v1013
        %v1021 = vsub.f32 %v998, %v1013
        %v1022 = vmul.f32 %v1014, 1.442695
        %v1023 = vpow.pop %v1022
        %v1024 = vmul.f32 %v1015, 1.442695
        %v1025 = vpow.pop %v1024
        %v1026 = vmul.f32 %v1016, 1.442695
        %v1027 = vpow.pop %v1026
        %v1028 = vmul.f32 %v1017, 1.442695
        %v1029 = vpow.pop %v1028
        %v1030 = vmul.f32 %v1018, 1.442695
        %v1031 = vpow.pop %v1030
        %v1032 = vmul.f32 %v1019, 1.442695
        %v1033 = vpow.pop %v1032
        %v1034 = vmul.f32 %v1020, 1.442695
        %v1035 = vpow.pop %v1034
        %v1036 = vmul.f32 %v1021, 1.442695
        %v1037 = vpow.pop %v1036
        %v1038 = vadd.f32 %v1023, %v1025
        %v1039 = vadd.f32 %v1038, %v1027
        %v1040 = vadd.f32 %v1039, %v1029
        %v1041 = vadd.f32 %v1040, %v1031
        %v1042 = vadd.f32 %v1041, %v1033
        %v1043 = vadd.f32 %v1042, %v1035
        %v1044 = vadd.f32 %v1043, %v1037
        %v1045 = vrot.slane %v1044, 4
        %v1046 = vadd.f32 %v1044, %v1045
        %v1047 = vrot.slane %v1046, 2
        %v1048 = vadd.f32 %v1046, %v1047
        %v1049 = vrot.slane %v1048, 1
        %v1050 = vadd.f32 %v1048, %v1049
        %v1051 = vrcp.pop %v1050
        %v1052 = vmul.f32 %v1023, %v1051
        %v1053 = vmul.f32 %v1025, %v1051
        %v1054 = vmul.f32 %v1027, %v1051
        %v1055 = vmul.f32 %v1029, %v1051
        %v1056 = vmul.f32 %v1031, %v1051
        %v1057 = vmul.f32 %v1033, %v1051
        %v1058 = vmul.f32 %v1035, %v1051
        %v1059 = vmul.f32 %v1037, %v1051
        %v1060 = vpack.c.bf16 %v1053, %v1052
        %v1061 = vpack.c.bf16 %v1055, %v1054
        %v1062 = vpack.c.bf16 %v1057, %v1056
        %v1063 = vpack.c.bf16 %v1059, %v1058
        %v1072 = vunpack.c.l.b16 %v885
        %v1073 = vunpack.c.l.b16 %v886
        %v1074 = vunpack.c.l.b16 %v887
        %v1075 = vunpack.c.l.b16 %v888
        %v1076 = vunpack.c.l.b16 %v889
        %v1077 = vunpack.c.l.b16 %v890
        %v1078 = vunpack.c.l.b16 %v891
        %v1079 = vunpack.c.l.b16 %v892
        %v1080 = vpack.c.b16 %v1073, %v1072
        %v1081 = vpack.c.b16 %v1075, %v1074
        %v1082 = vpack.c.b16 %v1077, %v1076
        %v1083 = vpack.c.b16 %v1079, %v1078
        %1084 = vrot.lane.b32.xlu0 %v1080, 120
        %v1085 = vpop.permute.xlu0 %1084
        %1086 = vrot.lane.b32.xlu0 %v1081, 120
        %v1087 = vpop.permute.xlu0 %1086
        %1088 = vrot.lane.b32.xlu0 %v1082, 120
        %v1089 = vpop.permute.xlu0 %1088
        %1090 = vrot.lane.b32.xlu0 %v1083, 120
        %v1091 = vpop.permute.xlu0 %1090
        %1096 = vxpose.xlu0.c.b16.start [1/8] %v1085, 128
        %1097 = vxpose.xlu0.c.b16.cont [2/8] %v1087, 128
        %1098 = vxpose.xlu0.c.b16.cont [3/8] %v1089, 128
        %1099 = vxpose.xlu0.c.b16.cont [4/8] %v1091, 128
        %1100 = vxpose.xlu0.c.b16.cont [5/8] 0, 128
        %1101 = vxpose.xlu0.c.b16.cont [6/8] 0, 128
        %1102 = vxpose.xlu0.c.b16.cont [7/8] 0, 128
        %1103 = vxpose.xlu0.c.b16.end [8/8] 0, 128
        %v1104 = vpop.trf.xlu0
        %v1105 = vpop.trf.xlu0
        %v1106 = vpop.trf.xlu0
        %v1107 = vpop.trf.xlu0
        %v1108 = vpop.trf.xlu0
        %v1109 = vpop.trf.xlu0
        %v1110 = vpop.trf.xlu0
        %v1111 = vpop.trf.xlu0
        %v1113 = vsel %vm547, %v1104, 0
        %1115 = vmatprep.subr.bf16.mxu0 0
        %1116 = vmatpush1.bf16.msra.mxu0 0
        %1117 = vmatprep.subr.bf16.mxu0 0
        %1118 = vmatpush1.bf16.msra.mxu0 0
        %1119 = vmatprep.subr.bf16.mxu0 0
        %1120 = vmatpush1.bf16.msra.mxu0 0
        %1121 = vmatprep.subr.bf16.mxu0 0
        %1122 = vmatpush1.bf16.msra.mxu0 0
        %1123 = vmatprep.subr.bf16.mxu0 0
        %1124 = vmatpush1.bf16.msra.mxu0 %v1063
        %1125 = vmatprep.subr.bf16.mxu0 0
        %1126 = vmatpush1.bf16.msra.mxu0 %v1062
        %1127 = vmatprep.subr.bf16.mxu0 0
        %1128 = vmatpush1.bf16.msra.mxu0 %v1061
        %1129 = vmatprep.subr.bf16.mxu0 0
        %1130 = vmatpush1.bf16.msra.mxu0 %v1060
        %1131 = vmatprep.subr.bf16.mxu0 0
        %1132 = vmatpush2.bf16.msra.mxu0 0
        %1133 = vmatprep.subr.bf16.mxu0 0
        %1134 = vmatpush2.bf16.msra.mxu0 0
        %1135 = vmatprep.subr.bf16.mxu0 0
        %1136 = vmatpush2.bf16.msra.mxu0 0
        %1137 = vmatprep.subr.bf16.mxu0 0
        %1138 = vmatpush2.bf16.msra.mxu0 0
        %1139 = vmatprep.subr.bf16.mxu0 0
        %1140 = vmatpush2.bf16.msra.mxu0 0
        %1141 = vmatprep.subr.bf16.mxu0 0
        %1142 = vmatpush2.bf16.msra.mxu0 0
        %1143 = vmatprep.subr.bf16.mxu0 0
        %1144 = vmatpush2.bf16.msra.mxu0 0
        %1145 = vmatprep.subr.bf16.mxu0 0
        %1146 = vmatpush2.bf16.msra.mxu0 0
        %1147 = vmatprep.mubr.bf16.mxu0 0
        %1148 = vmatmul.mubr.bf16.gmra.mxu0 %v1113
        %v1149 = vpop.f32.mrf.mxu0
        %v1150 = vadd.f32 0.0, %v1149
        %v1151 = vpop.f32.mrf.mxu0
        %v1152 = vpop.f32.mrf.mxu0
        %v1153 = vpop.f32.mrf.mxu0
        %1154 = vdwg.mxu0
        %1155 = vst [vmem:[#allocation2 + $0x8] sm:$0xf] %v1150
        %v1156 = vld [vmem:[%s280 + $0x4] sm:$0xc]
        %v1157 = vld [vmem:[%s318] sm:$0xf]
        %v1158 = vld [vmem:[%s318 + $0x4] sm:$0xf]
        %v1159 = vld [vmem:[%s318 + $0x8] sm:$0xf]
        %v1160 = vld [vmem:[%s318 + $0xc] sm:$0xf]
        %v1161 = vld [vmem:[%s318 + $0x10] sm:$0xf]
        %v1162 = vld [vmem:[%s318 + $0x14] sm:$0xf]
        %v1163 = vld [vmem:[%s318 + $0x18] sm:$0xf]
        %v1164 = vld [vmem:[%s318 + $0x1c] sm:$0xf]
        %v1165 = vld [vmem:[%s323] sm:$0xf]
        %v1166 = vld [vmem:[%s323 + $0x4] sm:$0xf]
        %v1167 = vld [vmem:[%s323 + $0x8] sm:$0xf]
        %v1168 = vld [vmem:[%s323 + $0xc] sm:$0xf]
        %v1169 = vld [vmem:[%s323 + $0x10] sm:$0xf]
        %v1170 = vld [vmem:[%s323 + $0x14] sm:$0xf]
        %v1171 = vld [vmem:[%s323 + $0x18] sm:$0xf]
        %v1172 = vld [vmem:[%s323 + $0x1c] sm:$0xf]
        %v1181 = vunpack.c.l.b16 %v1157
        %v1182 = vunpack.c.l.b16 %v1158
        %v1183 = vunpack.c.l.b16 %v1159
        %v1184 = vunpack.c.l.b16 %v1160
        %v1185 = vunpack.c.l.b16 %v1161
        %v1186 = vunpack.c.l.b16 %v1162
        %v1187 = vunpack.c.l.b16 %v1163
        %v1188 = vunpack.c.l.b16 %v1164
        %v1189 = vpack.c.b16 %v1182, %v1181
        %v1190 = vpack.c.b16 %v1184, %v1183
        %v1191 = vpack.c.b16 %v1186, %v1185
        %v1192 = vpack.c.b16 %v1188, %v1187
        %1193 = vrot.lane.b32.xlu0 %v1189, 116
        %v1194 = vpop.permute.xlu0 %1193
        %1195 = vrot.lane.b32.xlu0 %v1190, 116
        %v1196 = vpop.permute.xlu0 %1195
        %1197 = vrot.lane.b32.xlu0 %v1191, 116
        %v1198 = vpop.permute.xlu0 %1197
        %1199 = vrot.lane.b32.xlu0 %v1192, 116
        %v1200 = vpop.permute.xlu0 %1199
        %v1202 = vunpack.c.l.b16 %v1156
        %v1203 = vpack.c.b16 %v1202, %v1202
        %v1204 = vrot.slane %v1203, 2
        %v1206 = vsel %vm362, %v1194, 0
        %v1209 = vsel %vm362, %v1196, 0
        %v1212 = vsel %vm362, %v1198, 0
        %v1215 = vsel %vm362, %v1200, 0
        %v1218 = vsel %vm375, %v1204, 0
        %1220 = vmatprep.subr.bf16.mxu0 0
        %1221 = vmatpush1.bf16.msra.mxu0 0
        %1222 = vmatprep.subr.bf16.mxu0 0
        %1223 = vmatpush1.bf16.msra.mxu0 0
        %1224 = vmatprep.subr.bf16.mxu0 0
        %1225 = vmatpush1.bf16.msra.mxu0 0
        %1226 = vmatprep.subr.bf16.mxu0 0
        %1227 = vmatpush1.bf16.msra.mxu0 0
        %1228 = vmatprep.subr.bf16.mxu0 0
        %1229 = vmatpush1.bf16.msra.mxu0 0
        %1230 = vmatprep.subr.bf16.mxu0 0
        %1231 = vmatpush1.bf16.msra.mxu0 0
        %1232 = vmatprep.subr.bf16.mxu0 0
        %1233 = vmatpush1.bf16.msra.mxu0 0
        %1234 = vmatprep.subr.bf16.mxu0 0
        %1235 = vmatpush1.bf16.msra.mxu0 %v1218
        %1236 = vmatprep.subr.bf16.mxu0 0
        %1237 = vmatpush2.bf16.msra.mxu0 0
        %1238 = vmatprep.subr.bf16.mxu0 0
        %1239 = vmatpush2.bf16.msra.mxu0 0
        %1240 = vmatprep.subr.bf16.mxu0 0
        %1241 = vmatpush2.bf16.msra.mxu0 0
        %1242 = vmatprep.subr.bf16.mxu0 0
        %1243 = vmatpush2.bf16.msra.mxu0 0
        %1244 = vmatprep.subr.bf16.mxu0 0
        %1245 = vmatpush2.bf16.msra.mxu0 0
        %1246 = vmatprep.subr.bf16.mxu0 0
        %1247 = vmatpush2.bf16.msra.mxu0 0
        %1248 = vmatprep.subr.bf16.mxu0 0
        %1249 = vmatpush2.bf16.msra.mxu0 0
        %1250 = vmatprep.subr.bf16.mxu0 0
        %1251 = vmatpush2.bf16.msra.mxu0 0
        %1252 = vmatprep.mubr.bf16.mxu0 0
        %1253 = vmatmul.mubr.bf16.gmra.mxu0 %v1206
        %v1254 = vpop.f32.mrf.mxu0
        %v1255 = vadd.f32 0.0, %v1254
        %v1256 = vpop.f32.mrf.mxu0
        %v1257 = vpop.f32.mrf.mxu0
        %v1258 = vadd.f32 0.0, %v1257
        %v1259 = vpop.f32.mrf.mxu0
        %1260 = vmatprep.mubr.bf16.mxu0 0
        %1261 = vmatmul.mubr.bf16.gmra.mxu0 %v1209
        %v1262 = vpop.f32.mrf.mxu0
        %v1263 = vadd.f32 0.0, %v1262
        %v1264 = vpop.f32.mrf.mxu0
        %v1265 = vpop.f32.mrf.mxu0
        %v1266 = vadd.f32 0.0, %v1265
        %v1267 = vpop.f32.mrf.mxu0
        %1268 = vmatprep.mubr.bf16.mxu0 0
        %1269 = vmatmul.mubr.bf16.gmra.mxu0 %v1212
        %v1270 = vpop.f32.mrf.mxu0
        %v1271 = vadd.f32 0.0, %v1270
        %v1272 = vpop.f32.mrf.mxu0
        %v1273 = vpop.f32.mrf.mxu0
        %v1274 = vadd.f32 0.0, %v1273
        %v1275 = vpop.f32.mrf.mxu0
        %1276 = vmatprep.mubr.bf16.mxu0 0
        %1277 = vmatmul.mubr.bf16.gmra.mxu0 %v1215
        %v1278 = vpop.f32.mrf.mxu0
        %v1279 = vadd.f32 0.0, %v1278
        %v1280 = vpop.f32.mrf.mxu0
        %v1281 = vpop.f32.mrf.mxu0
        %v1282 = vadd.f32 0.0, %v1281
        %v1283 = vpop.f32.mrf.mxu0
        %1284 = vdwg.mxu0
        %v1285 = vmax.f32 %v1255, %v1271
        %v1286 = vmax.f32 %v1258, %v1274
        %v1287 = vmax.f32 %v1263, %v1279
        %v1288 = vmax.f32 %v1266, %v1282
        %v1289 = vmax.f32 %v1285, %v1286
        %v1290 = vmax.f32 %v1287, %v1288
        %v1291 = vmax.f32 %v1289, %v1290
        %v1292 = vrot.slane %v1291, 4
        %v1293 = vmax.f32 %v1291, %v1292
        %v1294 = vrot.slane %v1293, 2
        %v1295 = vmax.f32 %v1293, %v1294
        %v1296 = vrot.slane %v1295, 1
        %v1297 = vmax.f32 %v1295, %v1296
        %v1298 = vsub.f32 %v1255, %v1297
        %v1299 = vsub.f32 %v1258, %v1297
        %v1300 = vsub.f32 %v1263, %v1297
        %v1301 = vsub.f32 %v1266, %v1297
        %v1302 = vsub.f32 %v1271, %v1297
        %v1303 = vsub.f32 %v1274, %v1297
        %v1304 = vsub.f32 %v1279, %v1297
        %v1305 = vsub.f32 %v1282, %v1297
        %v1306 = vmul.f32 %v1298, 1.442695
        %v1307 = vpow.pop %v1306
        %v1308 = vmul.f32 %v1299, 1.442695
        %v1309 = vpow.pop %v1308
        %v1310 = vmul.f32 %v1300, 1.442695
        %v1311 = vpow.pop %v1310
        %v1312 = vmul.f32 %v1301, 1.442695
        %v1313 = vpow.pop %v1312
        %v1314 = vmul.f32 %v1302, 1.442695
        %v1315 = vpow.pop %v1314
        %v1316 = vmul.f32 %v1303, 1.442695
        %v1317 = vpow.pop %v1316
        %v1318 = vmul.f32 %v1304, 1.442695
        %v1319 = vpow.pop %v1318
        %v1320 = vmul.f32 %v1305, 1.442695
        %v1321 = vpow.pop %v1320
        %v1322 = vadd.f32 %v1307, %v1309
        %v1323 = vadd.f32 %v1322, %v1311
        %v1324 = vadd.f32 %v1323, %v1313
        %v1325 = vadd.f32 %v1324, %v1315
        %v1326 = vadd.f32 %v1325, %v1317
        %v1327 = vadd.f32 %v1326, %v1319
        %v1328 = vadd.f32 %v1327, %v1321
        %v1329 = vrot.slane %v1328, 4
        %v1330 = vadd.f32 %v1328, %v1329
        %v1331 = vrot.slane %v1330, 2
        %v1332 = vadd.f32 %v1330, %v1331
        %v1333 = vrot.slane %v1332, 1
        %v1334 = vadd.f32 %v1332, %v1333
        %v1335 = vrcp.pop %v1334
        %v1336 = vmul.f32 %v1307, %v1335
        %v1337 = vmul.f32 %v1309, %v1335
        %v1338 = vmul.f32 %v1311, %v1335
        %v1339 = vmul.f32 %v1313, %v1335
        %v1340 = vmul.f32 %v1315, %v1335
        %v1341 = vmul.f32 %v1317, %v1335
        %v1342 = vmul.f32 %v1319, %v1335
        %v1343 = vmul.f32 %v1321, %v1335
        %v1344 = vpack.c.bf16 %v1337, %v1336
        %v1345 = vpack.c.bf16 %v1339, %v1338
        %v1346 = vpack.c.bf16 %v1341, %v1340
        %v1347 = vpack.c.bf16 %v1343, %v1342
        %v1356 = vunpack.c.l.b16 %v1165
        %v1357 = vunpack.c.l.b16 %v1166
        %v1358 = vunpack.c.l.b16 %v1167
        %v1359 = vunpack.c.l.b16 %v1168
        %v1360 = vunpack.c.l.b16 %v1169
        %v1361 = vunpack.c.l.b16 %v1170
        %v1362 = vunpack.c.l.b16 %v1171
        %v1363 = vunpack.c.l.b16 %v1172
        %v1364 = vpack.c.b16 %v1357, %v1356
        %v1365 = vpack.c.b16 %v1359, %v1358
        %v1366 = vpack.c.b16 %v1361, %v1360
        %v1367 = vpack.c.b16 %v1363, %v1362
        %1368 = vrot.lane.b32.xlu0 %v1364, 116
        %v1369 = vpop.permute.xlu0 %1368
        %1370 = vrot.lane.b32.xlu0 %v1365, 116
        %v1371 = vpop.permute.xlu0 %1370
        %1372 = vrot.lane.b32.xlu0 %v1366, 116
        %v1373 = vpop.permute.xlu0 %1372
        %1374 = vrot.lane.b32.xlu0 %v1367, 116
        %v1375 = vpop.permute.xlu0 %1374
        %1380 = vxpose.xlu0.c.b16.start [1/8] %v1369, 128
        %1381 = vxpose.xlu0.c.b16.cont [2/8] %v1371, 128
        %1382 = vxpose.xlu0.c.b16.cont [3/8] %v1373, 128
        %1383 = vxpose.xlu0.c.b16.cont [4/8] %v1375, 128
        %1384 = vxpose.xlu0.c.b16.cont [5/8] 0, 128
        %1385 = vxpose.xlu0.c.b16.cont [6/8] 0, 128
        %1386 = vxpose.xlu0.c.b16.cont [7/8] 0, 128
        %1387 = vxpose.xlu0.c.b16.end [8/8] 0, 128
        %v1388 = vpop.trf.xlu0
        %v1389 = vpop.trf.xlu0
        %v1390 = vpop.trf.xlu0
        %v1391 = vpop.trf.xlu0
        %v1392 = vpop.trf.xlu0
        %v1393 = vpop.trf.xlu0
        %v1394 = vpop.trf.xlu0
        %v1395 = vpop.trf.xlu0
        %v1397 = vsel %vm547, %v1388, 0
        %1399 = vmatprep.subr.bf16.mxu0 0
        %1400 = vmatpush1.bf16.msra.mxu0 0
        %1401 = vmatprep.subr.bf16.mxu0 0
        %1402 = vmatpush1.bf16.msra.mxu0 0
        %1403 = vmatprep.subr.bf16.mxu0 0
        %1404 = vmatpush1.bf16.msra.mxu0 0
        %1405 = vmatprep.subr.bf16.mxu0 0
        %1406 = vmatpush1.bf16.msra.mxu0 0
        %1407 = vmatprep.subr.bf16.mxu0 0
        %1408 = vmatpush1.bf16.msra.mxu0 %v1347
        %1409 = vmatprep.subr.bf16.mxu0 0
        %1410 = vmatpush1.bf16.msra.mxu0 %v1346
        %1411 = vmatprep.subr.bf16.mxu0 0
        %1412 = vmatpush1.bf16.msra.mxu0 %v1345
        %1413 = vmatprep.subr.bf16.mxu0 0
        %1414 = vmatpush1.bf16.msra.mxu0 %v1344
        %1415 = vmatprep.subr.bf16.mxu0 0
        %1416 = vmatpush2.bf16.msra.mxu0 0
        %1417 = vmatprep.subr.bf16.mxu0 0
        %1418 = vmatpush2.bf16.msra.mxu0 0
        %1419 = vmatprep.subr.bf16.mxu0 0
        %1420 = vmatpush2.bf16.msra.mxu0 0
        %1421 = vmatprep.subr.bf16.mxu0 0
        %1422 = vmatpush2.bf16.msra.mxu0 0
        %1423 = vmatprep.subr.bf16.mxu0 0
        %1424 = vmatpush2.bf16.msra.mxu0 0
        %1425 = vmatprep.subr.bf16.mxu0 0
        %1426 = vmatpush2.bf16.msra.mxu0 0
        %1427 = vmatprep.subr.bf16.mxu0 0
        %1428 = vmatpush2.bf16.msra.mxu0 0
        %1429 = vmatprep.subr.bf16.mxu0 0
        %1430 = vmatpush2.bf16.msra.mxu0 0
        %1431 = vmatprep.mubr.bf16.mxu0 0
        %1432 = vmatmul.mubr.bf16.gmra.mxu0 %v1397
        %v1433 = vpop.f32.mrf.mxu0
        %v1434 = vadd.f32 0.0, %v1433
        %v1435 = vpop.f32.mrf.mxu0
        %v1436 = vpop.f32.mrf.mxu0
        %v1437 = vpop.f32.mrf.mxu0
        %1438 = vdwg.mxu0
        %1439 = vst [vmem:[#allocation2 + $0xc] sm:$0xf] %v1434
        %v1440 = vld [vmem:[%s3] sm:$0xf]
        %v1441 = vld [vmem:[%s3 + $0x4] sm:$0xf]
        %v1442 = vld [vmem:[#allocation2] sm:$0xff]
        %v1443 = vld [vmem:[#allocation2 + $0x8] sm:$0xff]
        %v1444 = vpack.c.bf16 %v1443, %v1442
        %v1445 = vld [vmem:[%s4] sm:$0xff]
        %v1446 = vld [vmem:[%s4 + $0x8] sm:$0xff]
        %1448 = vset.pattern.permute.xlu0 0
        %1449 = vperm.xlu0 %1448, %v1445
        %v1450 = vpop.permute.xlu0 %1449
        %1453 = vset.pattern.permute.xlu0 0
        %1454 = vperm.xlu0 %1453, %v1446
        %v1455 = vpop.permute.xlu0 %1454
        %v1459 = vunpack.c.l.b16 %v1440
        %v1460 = vunpack.c.l.b16 %v1441
        %v1461 = vpack.c.b16 %v1460, %v1459
        %vm1462 = vcmask 130048
        %v1464 = vsel %vm1462, %v1461, 0
        %1466 = vmatprep.subr.bf16.mxu0 0
        %1467 = vmatpush1.bf16.msra.mxu0 0
        %1468 = vmatprep.subr.bf16.mxu0 0
        %1469 = vmatpush1.bf16.msra.mxu0 0
        %1470 = vmatprep.subr.bf16.mxu0 0
        %1471 = vmatpush1.bf16.msra.mxu0 0
        %1472 = vmatprep.subr.bf16.mxu0 0
        %1473 = vmatpush1.bf16.msra.mxu0 0
        %1474 = vmatprep.subr.bf16.mxu0 0
        %1475 = vmatpush1.bf16.msra.mxu0 0
        %1476 = vmatprep.subr.bf16.mxu0 0
        %1477 = vmatpush1.bf16.msra.mxu0 0
        %1478 = vmatprep.subr.bf16.mxu0 0
        %1479 = vmatpush1.bf16.msra.mxu0 0
        %1480 = vmatprep.subr.bf16.mxu0 0
        %1481 = vmatpush1.bf16.msra.mxu0 %v1444
        %1482 = vmatprep.subr.bf16.mxu0 0
        %1483 = vmatpush2.bf16.msra.mxu0 0
        %1484 = vmatprep.subr.bf16.mxu0 0
        %1485 = vmatpush2.bf16.msra.mxu0 0
        %1486 = vmatprep.subr.bf16.mxu0 0
        %1487 = vmatpush2.bf16.msra.mxu0 0
        %1488 = vmatprep.subr.bf16.mxu0 0
        %1489 = vmatpush2.bf16.msra.mxu0 0
        %1490 = vmatprep.subr.bf16.mxu0 0
        %1491 = vmatpush2.bf16.msra.mxu0 0
        %1492 = vmatprep.subr.bf16.mxu0 0
        %1493 = vmatpush2.bf16.msra.mxu0 0
        %1494 = vmatprep.subr.bf16.mxu0 0
        %1495 = vmatpush2.bf16.msra.mxu0 0
        %1496 = vmatprep.subr.bf16.mxu0 0
        %1497 = vmatpush2.bf16.msra.mxu0 0
        %1498 = vmatprep.mubr.bf16.mxu0 0
        %1499 = vmatmul.mubr.bf16.gmra.mxu0 %v1464
        %v1500 = vpop.f32.mrf.mxu0
        %v1501 = vadd.f32 %v1450, %v1500
        %v1502 = vpop.f32.mrf.mxu0
        %v1503 = vpop.f32.mrf.mxu0
        %v1504 = vadd.f32 %v1455, %v1503
        %v1505 = vpop.f32.mrf.mxu0
        %1506 = vdwg.mxu0
        %1507 = vst [vmem:[%s313] sm:$0xff] %v1501
        %1508 = vst [vmem:[%s313 + $0x8] sm:$0xff] %v1504
        %s1509 = sand.u32 %s160, 1
        %s1510 = sand.u32 %s160, 1
        %s1511 = smul.addr %s1510, 16
        %s1512 = scalar_lea.vmem [#allocation4], %s1511
        // Predicated region
        $region82: #{attention_dw_forward.3} parent=76 // pred_check
          %p1513 = pneg %p170
        $region83: #{attention_dw_forward.3} parent=76 // pred_check_branch
          %1515 = sbr.rel (%p1513) target = $region85
        $region84: #{attention_dw_forward.3} parent=76 // pred_region
          %s1516 = smul.addr %s20, 4
          %s1517 = sadd.s32 %s21, %s1516
          %s1518 = smul.addr %s1517, 8
          %s1519 = scalar_lea.vmem %s5, %s1518
          // Predicated region
          $region86: #{attention_dw_forward.3} parent=84 // pred_check
            _
          $region87: #{attention_dw_forward.3} parent=84 // pred_check_branch
            %1521 = sbr.rel (0) target = $region89
          $region88: #{attention_dw_forward.3} parent=84 // pred_region
            // Predicated region
            $region90: #{attention_dw_forward.3} parent=88 // pred_check
              _
            $region91: #{attention_dw_forward.3} parent=88 // pred_check_branch
              %1523 = sbr.rel (0) target = $region93
            $region92: #{attention_dw_forward.3} parent=88 // pred_region
              // Predicated region
              $region105: #{attention_dw_forward.3} parent=92 // pred_check
                _
              $region106: #{attention_dw_forward.3} parent=92 // pred_check_branch
                %1541 = sbr.rel (0) target = $region108
              $region107: #{attention_dw_forward.3} parent=92 // pred_region
                loop: start=0, step=1, limit=1
                $region109: #{attention_dw_forward.3} parent=107 // loop_pre_header
                  _
                $region110: #{attention_dw_forward.3} parent=107 // loop_header
                  %s1543 = sphi 0, %s1547
                  %p1544 = scmp.ge.s32.totalorder %s1543, 1
                  %s1548 = sphi %s1512, %s1512
                  %s1549 = sphi %s1519, %s1519
                $region111: #{attention_dw_forward.3} parent=107 // loop_header_branch
                  %1546 = sbr.rel (%p1544) target = $region115
                $region112: #{attention_dw_forward.3} parent=107 // loop_body
                  %v1550 = vld [vmem:[%s1548] sm:$0xff]
                  %1551 = vst [vmem:[%s1549] sm:$0xff] %v1550
                  %v1552 = vld [vmem:[%s1548 + $0x8] sm:$0xff]
                  %1553 = vst [vmem:[%s1549 + $0x10] sm:$0xff] %v1552
                $region113: #{attention_dw_forward.3} parent=107 // loop_footer
                  %s1547 = sadd.s32 1, %s1543
                $region114: #{attention_dw_forward.3} parent=107 // loop_footer_branch
                  %1542 = sbr.rel target = $region110
                $region115: #{attention_dw_forward.3} parent=107 // loop_exit
                  _
              $region108: #{attention_dw_forward.3} parent=92 // pred_fallthru
                _
              // Predicated region
              $region116: #{attention_dw_forward.3} parent=92 // pred_check
                _
              $region117: #{attention_dw_forward.3} parent=92 // pred_check_branch
                %1555 = sbr.rel target = $region119
              $region118: #{attention_dw_forward.3} parent=92 // pred_region
                _
              $region119: #{attention_dw_forward.3} parent=92 // pred_fallthru
                _
            $region93: #{attention_dw_forward.3} parent=88 // pred_fallthru
              _
            // Predicated region
            $region94: #{attention_dw_forward.3} parent=88 // pred_check
              _
            $region95: #{attention_dw_forward.3} parent=88 // pred_check_branch
              %1525 = sbr.rel target = $region97
            $region96: #{attention_dw_forward.3} parent=88 // pred_region
              %s1527 = ssub.s32 256, 1
              loop: start=0, step=1, limit=1
              $region98: #{attention_dw_forward.3} parent=96 // loop_pre_header
                _
              $region99: #{attention_dw_forward.3} parent=96 // loop_header
                %s1529 = sphi 0, %s1533
                %p1530 = scmp.ge.s32.totalorder %s1529, 1
                %s1534 = sphi %s1512, %s1512
                %s1535 = sphi %s1519, %s1519
              $region100: #{attention_dw_forward.3} parent=96 // loop_header_branch
                %1532 = sbr.rel (%p1530) target = $region104
              $region101: #{attention_dw_forward.3} parent=96 // loop_body
                %v1536 = vld [vmem:[%s1534] sm:%s1527]
                %1537 = vst [vmem:[%s1535] sm:%s1527] %v1536
                %v1538 = vld [vmem:[%s1534 + $0x8] sm:%s1527]
                %1539 = vst [vmem:[%s1535 + $0x10] sm:%s1527] %v1538
              $region102: #{attention_dw_forward.3} parent=96 // loop_footer
                %s1533 = sadd.s32 1, %s1529
              $region103: #{attention_dw_forward.3} parent=96 // loop_footer_branch
                %1528 = sbr.rel target = $region99
              $region104: #{attention_dw_forward.3} parent=96 // loop_exit
                _
            $region97: #{attention_dw_forward.3} parent=88 // pred_fallthru
              _
          $region89: #{attention_dw_forward.3} parent=84 // pred_fallthru
            _
          %1556 = vnop
        $region85: #{attention_dw_forward.3} parent=76 // pred_fallthru
          _
      $region77: #{attention_dw_forward.3} parent=5 // pred_fallthru
        _
      %p1557 = scmp.le.s32.totalorder 2, %s11
      // Predicated region
      $region120: #{attention_dw_forward.3} parent=5 // pred_check
        %p1558 = pneg %p1557
      $region121: #{attention_dw_forward.3} parent=5 // pred_check_branch
        %1560 = sbr.rel (%p1558) target = $region123
      $region122: #{attention_dw_forward.3} parent=5 // pred_region
        %s1561 = ssub.s32 %s11, 2
        // Predicated region
        $region124: #{attention_dw_forward.3} parent=122 // pred_check
          %p1562 = pneg %p176
        $region125: #{attention_dw_forward.3} parent=122 // pred_check_branch
          %1564 = sbr.rel (%p1562) target = $region127
        $region126: #{attention_dw_forward.3} parent=122 // pred_region
          %s1565 = sand.u32 %s161, 1
          %s1566 = sand.u32 %s161, 1
          %s1567 = smul.addr %s1566, 16
          %s1568 = scalar_lea.vmem [#allocation4], %s1567
        $region127: #{attention_dw_forward.3} parent=122 // pred_fallthru
          _
      $region123: #{attention_dw_forward.3} parent=5 // pred_fallthru
        _
    $region6: #{attention_dw_forward.3} parent=1 // loop_footer
      %s15 = sadd.s32 1, %s11
    $region7: #{attention_dw_forward.3} parent=1 // loop_footer_branch
      %10 = sbr.rel target = $region3
    $region8: #{attention_dw_forward.3} parent=1 // loop_exit
      _

// kernel: attention_dw_forward.2
$region0: #{attention_dw_forward.2}
  #allocation0 [shape = 'u32[]', space=smem, size = 0x4, offset = 0x4, fixed_abs, tag = 'smem constant byte address 0x4 - core index']
  #allocation1 [shape = 'u32[144,128]{1,0:T(1,128)}', space=vmem, size = 0x12000, scoped, tag = 'internal scratch']
  #allocation2 [shape = 'f32[290,8]{1,0:T(8,128)}', space=vmem, size = 0x25000, scoped, tag = 'scratch operand']
  #allocation3 [shape = 'bf16[256,72]{1,0:T(8,128)(2,1)}', space=vmem, size = 0x10000, scoped, tag = 'scratch operand']
  #allocation4 [shape = 'f32[256,32]{1,0:T(8,128)}', space=vmem, size = 0x20000, scoped, tag = 'scratch operand']
  %s0 = inlined_call_operand.vmem [shape: f32[2,256,8], index: 0, kind: input, shape index: {}]
  %s1 = inlined_call_operand.vmem [shape: bf16[16,72], index: 1, kind: input, shape index: {}]
  %s2 = inlined_call_operand.vmem [shape: bf16[72,32], index: 2, kind: input, shape index: {}]
  %s3 = inlined_call_operand.vmem [shape: f32[16,1], index: 3, kind: input, shape index: {}]
  %s4 = inlined_call_operand.vmem [shape: f32[1,32], index: 4, kind: input, shape index: {}]
  %s5 = inlined_call_operand.vmem [shape: bf16[2,16,256], index: 5, kind: output, shape index: {0}]
  %s6 = inlined_call_operand.vmem [shape: bf16[2,64,16], index: 6, kind: output, shape index: {1}]
  %s7 = inlined_call_operand.vmem [shape: bf16[2,64,16], index: 7, kind: output, shape index: {2}]
  %8 = xla_tuple %s5, %s6, %s7
  %s9 = sld [smem:[#allocation0]]
  $region69: #{attention_dw_forward.2} parent=0
    _
  %s11 = ssub.s32 1, %s9
  %s12 = scalar_select 0, %s11, %s9
  loop: start=0, step=1, limit=4
  $region2: #{attention_dw_forward.2} parent=0 // loop_pre_header
    _
  $region3: #{attention_dw_forward.2} parent=0 // loop_header
    %s14 = sphi 0, %s18
    %p15 = scmp.ge.s32.totalorder %s14, 4
    %s24 = sphi 0, %s26
    %s27 = sphi 0, %s24
    %s28 = sphi 0, %s27
    %s44 = sphi 0, %s28
    %s48 = sphi 0, %s48
    %s50 = sphi 0, %s48
    %s51 = sphi 0, %s50
    %s65 = sphi 0, %s51
    %s69 = sphi 0, %s69
    %s71 = sphi 0, %s69
    %s72 = sphi 0, %s71
    %s86 = sphi 0, %s72
    %s90 = sphi 0, %s90
    %s92 = sphi 0, %s90
    %s93 = sphi 0, %s92
    %s107 = sphi 0, %s93
    %s111 = sphi 0, %s111
    %s113 = sphi 0, %s111
    %s114 = sphi 0, %s113
    %s128 = sphi 0, %s114
    %s134 = sphi 0, %s136
    %s137 = sphi 0, %s134
    %s138 = sphi 0, %s137
    %s154 = sphi 0, %s138
    %s160 = sphi 0, %s162
    %s163 = sphi 0, %s160
    %s164 = sphi 0, %s163
    %s180 = sphi 0, %s164
    %s186 = sphi 0, %s188
    %s189 = sphi 0, %s186
    %s190 = sphi 0, %s189
    %s206 = sphi 0, %s190
  $region4: #{attention_dw_forward.2} parent=0 // loop_header_branch
    %17 = sbr.rel (%p15) target = $region8
  $region5: #{attention_dw_forward.2} parent=0 // loop_body
    %s19 = ssub.s32 %s14, 1
    %s20 = ssub.s32 %s14, 2
    %s21 = sadd.s32 %s14, 1
    %s22 = ssub.s32 %s14, %s21
    %p23 = scmp.eq.s32.totalorder %s22, 0
    %s25 = sadd.s32 %s24, 1
    %s26 = scalar_select %p23, %s24, %s25
    %p29 = pneg %p23
    %p30 = scmp.eq.s32.totalorder %s14, 1
    %p31 = por %p29, %p30
    %p32 = scmp.ne.s32.totalorder %s24, %s27
    %p33 = scmp.eq.s32.totalorder %s14, 0
    %p34 = por %p32, %p33
    %p35 = scmp.ne.s32.totalorder %s24, %s27
    %p36 = scmp.eq.s32.totalorder %s19, 1
    %p37 = por %p35, %p36
    %p38 = scmp.ne.s32.totalorder %s27, %s28
    %p39 = scmp.eq.s32.totalorder %s19, 0
    %p40 = por %p38, %p39
    %p41 = scmp.ne.s32.totalorder %s27, %s28
    %p42 = scmp.eq.s32.totalorder %s20, 1
    %p43 = por %p41, %p42
    %p45 = scmp.ne.s32.totalorder %s28, %s44
    %p46 = scmp.eq.s32.totalorder %s20, 0
    %p47 = por %p45, %p46
    %s49 = sadd.s32 %s48, 1
    %p52 = scmp.eq.s32.totalorder %s14, 1
    %p53 = scmp.ne.s32.totalorder %s48, %s50
    %p54 = scmp.eq.s32.totalorder %s14, 0
    %p55 = por %p53, %p54
    %p56 = scmp.ne.s32.totalorder %s48, %s50
    %p57 = scmp.eq.s32.totalorder %s19, 1
    %p58 = por %p56, %p57
    %p59 = scmp.ne.s32.totalorder %s50, %s51
    %p60 = scmp.eq.s32.totalorder %s19, 0
    %p61 = por %p59, %p60
    %p62 = scmp.ne.s32.totalorder %s50, %s51
    %p63 = scmp.eq.s32.totalorder %s20, 1
    %p64 = por %p62, %p63
    %p66 = scmp.ne.s32.totalorder %s51, %s65
    %p67 = scmp.eq.s32.totalorder %s20, 0
    %p68 = por %p66, %p67
    %s70 = sadd.s32 %s69, 1
    %p73 = scmp.eq.s32.totalorder %s14, 1
    %p74 = scmp.ne.s32.totalorder %s69, %s71
    %p75 = scmp.eq.s32.totalorder %s14, 0
    %p76 = por %p74, %p75
    %p77 = scmp.ne.s32.totalorder %s69, %s71
    %p78 = scmp.eq.s32.totalorder %s19, 1
    %p79 = por %p77, %p78
    %p80 = scmp.ne.s32.totalorder %s71, %s72
    %p81 = scmp.eq.s32.totalorder %s19, 0
    %p82 = por %p80, %p81
    %p83 = scmp.ne.s32.totalorder %s71, %s72
    %p84 = scmp.eq.s32.totalorder %s20, 1
    %p85 = por %p83, %p84
    %p87 = scmp.ne.s32.totalorder %s72, %s86
    %p88 = scmp.eq.s32.totalorder %s20, 0
    %p89 = por %p87, %p88
    %s91 = sadd.s32 %s90, 1
    %p94 = scmp.eq.s32.totalorder %s14, 1
    %p95 = scmp.ne.s32.totalorder %s90, %s92
    %p96 = scmp.eq.s32.totalorder %s14, 0
    %p97 = por %p95, %p96
    %p98 = scmp.ne.s32.totalorder %s90, %s92
    %p99 = scmp.eq.s32.totalorder %s19, 1
    %p100 = por %p98, %p99
    %p101 = scmp.ne.s32.totalorder %s92, %s93
    %p102 = scmp.eq.s32.totalorder %s19, 0
    %p103 = por %p101, %p102
    %p104 = scmp.ne.s32.totalorder %s92, %s93
    %p105 = scmp.eq.s32.totalorder %s20, 1
    %p106 = por %p104, %p105
    %p108 = scmp.ne.s32.totalorder %s93, %s107
    %p109 = scmp.eq.s32.totalorder %s20, 0
    %p110 = por %p108, %p109
    %s112 = sadd.s32 %s111, 1
    %p115 = scmp.eq.s32.totalorder %s14, 1
    %p116 = scmp.ne.s32.totalorder %s111, %s113
    %p117 = scmp.eq.s32.totalorder %s14, 0
    %p118 = por %p116, %p117
    %p119 = scmp.ne.s32.totalorder %s111, %s113
    %p120 = scmp.eq.s32.totalorder %s19, 1
    %p121 = por %p119, %p120
    %p122 = scmp.ne.s32.totalorder %s113, %s114
    %p123 = scmp.eq.s32.totalorder %s19, 0
    %p124 = por %p122, %p123
    %p125 = scmp.ne.s32.totalorder %s113, %s114
    %p126 = scmp.eq.s32.totalorder %s20, 1
    %p127 = por %p125, %p126
    %p129 = scmp.ne.s32.totalorder %s114, %s128
    %p130 = scmp.eq.s32.totalorder %s20, 0
    %p131 = por %p129, %p130
    %s132 = ssub.s32 %s14, %s21
    %p133 = scmp.eq.s32.totalorder %s132, 0
    %s135 = sadd.s32 %s134, 1
    %s136 = scalar_select %p133, %s134, %s135
    %p139 = pneg %p133
    %p140 = scmp.eq.s32.totalorder %s14, 1
    %p141 = por %p139, %p140
    %p142 = scmp.ne.s32.totalorder %s134, %s137
    %p143 = scmp.eq.s32.totalorder %s14, 0
    %p144 = por %p142, %p143
    %p145 = scmp.ne.s32.totalorder %s134, %s137
    %p146 = scmp.eq.s32.totalorder %s19, 1
    %p147 = por %p145, %p146
    %p148 = scmp.ne.s32.totalorder %s137, %s138
    %p149 = scmp.eq.s32.totalorder %s19, 0
    %p150 = por %p148, %p149
    %p151 = scmp.ne.s32.totalorder %s137, %s138
    %p152 = scmp.eq.s32.totalorder %s20, 1
    %p153 = por %p151, %p152
    %p155 = scmp.ne.s32.totalorder %s138, %s154
    %p156 = scmp.eq.s32.totalorder %s20, 0
    %p157 = por %p155, %p156
    %s158 = ssub.s32 %s14, %s21
    %p159 = scmp.eq.s32.totalorder %s158, 0
    %s161 = sadd.s32 %s160, 1
    %s162 = scalar_select %p159, %s160, %s161
    %p165 = pneg %p159
    %p166 = scmp.eq.s32.totalorder %s14, 1
    %p167 = por %p165, %p166
    %p168 = scmp.ne.s32.totalorder %s160, %s163
    %p169 = scmp.eq.s32.totalorder %s14, 0
    %p170 = por %p168, %p169
    %p171 = scmp.ne.s32.totalorder %s160, %s163
    %p172 = scmp.eq.s32.totalorder %s19, 1
    %p173 = por %p171, %p172
    %p174 = scmp.ne.s32.totalorder %s163, %s164
    %p175 = scmp.eq.s32.totalorder %s19, 0
    %p176 = por %p174, %p175
    %p177 = scmp.ne.s32.totalorder %s163, %s164
    %p178 = scmp.eq.s32.totalorder %s20, 1
    %p179 = por %p177, %p178
    %p181 = scmp.ne.s32.totalorder %s164, %s180
    %p182 = scmp.eq.s32.totalorder %s20, 0
    %p183 = por %p181, %p182
    %s184 = ssub.s32 %s14, %s21
    %p185 = scmp.eq.s32.totalorder %s184, 0
    %s187 = sadd.s32 %s186, 1
    %s188 = scalar_select %p185, %s186, %s187
    %p191 = pneg %p185
    %p192 = scmp.eq.s32.totalorder %s14, 1
    %p193 = por %p191, %p192
    %p194 = scmp.ne.s32.totalorder %s186, %s189
    %p195 = scmp.eq.s32.totalorder %s14, 0
    %p196 = por %p194, %p195
    %p197 = scmp.ne.s32.totalorder %s186, %s189
    %p198 = scmp.eq.s32.totalorder %s19, 1
    %p199 = por %p197, %p198
    %p200 = scmp.ne.s32.totalorder %s189, %s190
    %p201 = scmp.eq.s32.totalorder %s19, 0
    %p202 = por %p200, %p201
    %p203 = scmp.ne.s32.totalorder %s189, %s190
    %p204 = scmp.eq.s32.totalorder %s20, 1
    %p205 = por %p203, %p204
    %p207 = scmp.ne.s32.totalorder %s190, %s206
    %p208 = scmp.eq.s32.totalorder %s20, 0
    %p209 = por %p207, %p208
    %p210 = scmp.le.s32.totalorder 1, %s14
    %p211 = scmp.lt.s32.totalorder %s14, 3
    %p212 = pnand %p210, %p211
    %p213 = pneg %p212
    // Predicated region
    $region9: #{attention_dw_forward.2} parent=5 // pred_check
      _
    $region10: #{attention_dw_forward.2} parent=5 // pred_check_branch
      %215 = sbr.rel (%p212) target = $region12
    $region11: #{attention_dw_forward.2} parent=5 // pred_region
      %s216 = ssub.s32 %s14, 1
      // Predicated region
      $region13: #{attention_dw_forward.2} parent=11 // pred_check
        %p217 = pneg %p61
      $region14: #{attention_dw_forward.2} parent=11 // pred_check_branch
        %219 = sbr.rel (%p217) target = $region16
      $region15: #{attention_dw_forward.2} parent=11 // pred_region
        _
      $region16: #{attention_dw_forward.2} parent=11 // pred_fallthru
        _
      // Predicated region
      $region17: #{attention_dw_forward.2} parent=11 // pred_check
        %p220 = pneg %p82
      $region18: #{attention_dw_forward.2} parent=11 // pred_check_branch
        %222 = sbr.rel (%p220) target = $region20
      $region19: #{attention_dw_forward.2} parent=11 // pred_region
        _
      $region20: #{attention_dw_forward.2} parent=11 // pred_fallthru
        _
      // Predicated region
      $region21: #{attention_dw_forward.2} parent=11 // pred_check
        %p223 = pneg %p103
      $region22: #{attention_dw_forward.2} parent=11 // pred_check_branch
        %225 = sbr.rel (%p223) target = $region24
      $region23: #{attention_dw_forward.2} parent=11 // pred_region
        _
      $region24: #{attention_dw_forward.2} parent=11 // pred_fallthru
        _
      // Predicated region
      $region25: #{attention_dw_forward.2} parent=11 // pred_check
        %p226 = pneg %p124
      $region26: #{attention_dw_forward.2} parent=11 // pred_check_branch
        %228 = sbr.rel (%p226) target = $region28
      $region27: #{attention_dw_forward.2} parent=11 // pred_region
        _
      $region28: #{attention_dw_forward.2} parent=11 // pred_fallthru
        _
    $region12: #{attention_dw_forward.2} parent=5 // pred_fallthru
      _
    %p229 = scmp.lt.s32.totalorder %s14, 2
    // Predicated region
    $region29: #{attention_dw_forward.2} parent=5 // pred_check
      %p230 = pneg %p229
    $region30: #{attention_dw_forward.2} parent=5 // pred_check_branch
      %232 = sbr.rel (%p230) target = $region32
    $region31: #{attention_dw_forward.2} parent=5 // pred_region
      // Predicated region
      $region33: #{attention_dw_forward.2} parent=31 // pred_check
        %p233 = pneg %p34
      $region34: #{attention_dw_forward.2} parent=31 // pred_check_branch
        %235 = sbr.rel (%p233) target = $region36
      $region35: #{attention_dw_forward.2} parent=31 // pred_region
        %p236 = scmp.lt.s32.totalorder %s14, 1
        %s237 = scalar_select %p236, %s14, 1
        %s238 = smul.addr %s237, 32
        %s239 = smul.addr %s238, 8
        %s240 = scalar_lea.vmem %s0, %s239
      $region36: #{attention_dw_forward.2} parent=31 // pred_fallthru
        _
    $region32: #{attention_dw_forward.2} parent=5 // pred_fallthru
      _
    %p241 = scmp.le.s32.totalorder 1, %s14
    %p242 = scmp.lt.s32.totalorder %s14, 3
    %p243 = pnand %p241, %p242
    %p244 = pneg %p243
    // Predicated region
    $region37: #{attention_dw_forward.2} parent=5 // pred_check
      _
    $region38: #{attention_dw_forward.2} parent=5 // pred_check_branch
      %246 = sbr.rel (%p243) target = $region40
    $region39: #{attention_dw_forward.2} parent=5 // pred_region
      %s247 = ssub.s32 %s14, 1
      %p248 = scmp.lt.s32.totalorder %s19, 1
      %s249 = scalar_select %p248, %s19, 1
      %s250 = smul.addr %s249, 32
      %s251 = smul.addr %s250, 8
      %s252 = scalar_lea.vmem %s0, %s251
      %p253 = pneg %p40
      %p254 = pneg %p37
      %p255 = pneg %p61
      %p256 = pneg %p58
      %p257 = pneg %p82
      %p258 = pneg %p79
      %p259 = pneg %p103
      %p260 = pneg %p100
      %p261 = pneg %p124
      %p262 = pneg %p121
      %p263 = pneg %p150
      %p264 = pneg %p147
      %p265 = scmp.lt.s32.totalorder %s19, 1
      %s266 = scalar_select %p265, %s19, 1
      %s267 = smul.addr %s266, 4
      %s268 = smul.addr %s267, 4
      %s269 = scalar_lea.vmem %s5, %s268
      %p270 = pneg %p176
      %p271 = pneg %p173
      %p272 = scmp.lt.s32.totalorder %s19, 1
      %s273 = scalar_select %p272, %s19, 1
      %s274 = smul.addr %s273, 8
      %s275 = smul.addr %s274, 4
      %s276 = scalar_lea.vmem %s6, %s275
      %p277 = pneg %p202
      %p278 = pneg %p199
      %p279 = scmp.lt.s32.totalorder %s19, 1
      %s280 = scalar_select %p279, %s19, 1
      %s281 = smul.addr %s280, 8
      %s282 = smul.addr %s281, 4
      %s283 = scalar_lea.vmem %s7, %s282
      %p284 = scmp.lt.s32.totalorder %s19, 1
      %s285 = scalar_select %p284, %s19, 1
      %s286 = smul.addr %s285, 32
      %s287 = smul.addr %s286, 8
      %s288 = scalar_lea.vmem %s0, %s287
      %p289 = scmp.lt.s32.totalorder %s19, 1
      %s290 = scalar_select %p289, %s19, 1
      %s291 = smul.addr %s290, 4
      %s292 = smul.addr %s291, 4
      %s293 = scalar_lea.vmem %s5, %s292
      %p294 = scmp.lt.s32.totalorder %s19, 1
      %s295 = scalar_select %p294, %s19, 1
      %s296 = smul.addr %s295, 8
      %s297 = smul.addr %s296, 4
      %s298 = scalar_lea.vmem %s6, %s297
      %p299 = scmp.lt.s32.totalorder %s19, 1
      %s300 = scalar_select %p299, %s19, 1
      %s301 = smul.addr %s300, 8
      %s302 = smul.addr %s301, 4
      %s303 = scalar_lea.vmem %s7, %s302
      %vm305 = vcmask 64512
      %306 = vst.msk [vmem:[#allocation2] sm:$0xff] %vm305, 0.0
      %307 = vst.msk [vmem:[#allocation2 + $0x8] sm:$0xff] %vm305, 0.0
      %vm308 = vcmask 57344
      %309 = vst.msk [vmem:[#allocation2 + $0x10] sm:$0x1] %vm308, 0.0
      %310 = vst.msk [vmem:[#allocation2 + $0x111] sm:$0xff] %vm305, 0.0
      %311 = vst.msk [vmem:[#allocation2 + $0x119] sm:$0xff] %vm305, 0.0
      %312 = vst.msk [vmem:[#allocation2 + $0x121] sm:$0x1] %vm308, 0.0
      %v313 = vld [vmem:[%s288] sm:$0xff]
      %v314 = vld [vmem:[%s288 + $0x8] sm:$0xff]
      %v315 = vld [vmem:[%s288 + $0x10] sm:$0xff]
      %v316 = vld [vmem:[%s288 + $0x18] sm:$0xff]
      %v317 = vld [vmem:[%s288 + $0x20] sm:$0xff]
      %v318 = vld [vmem:[%s288 + $0x28] sm:$0xff]
      %v319 = vld [vmem:[%s288 + $0x30] sm:$0xff]
      %v320 = vld [vmem:[%s288 + $0x38] sm:$0xff]
      %v321 = vld [vmem:[%s288 + $0x40] sm:$0xff]
      %v322 = vld [vmem:[%s288 + $0x48] sm:$0xff]
      %v323 = vld [vmem:[%s288 + $0x50] sm:$0xff]
      %v324 = vld [vmem:[%s288 + $0x58] sm:$0xff]
      %v325 = vld [vmem:[%s288 + $0x60] sm:$0xff]
      %v326 = vld [vmem:[%s288 + $0x68] sm:$0xff]
      %v327 = vld [vmem:[%s288 + $0x70] sm:$0xff]
      %v328 = vld [vmem:[%s288 + $0x78] sm:$0xff]
      %v329 = vld [vmem:[%s288 + $0x80] sm:$0xff]
      %v330 = vld [vmem:[%s288 + $0x88] sm:$0xff]
      %v331 = vld [vmem:[%s288 + $0x90] sm:$0xff]
      %v332 = vld [vmem:[%s288 + $0x98] sm:$0xff]
      %v333 = vld [vmem:[%s288 + $0xa0] sm:$0xff]
      %v334 = vld [vmem:[%s288 + $0xa8] sm:$0xff]
      %v335 = vld [vmem:[%s288 + $0xb0] sm:$0xff]
      %v336 = vld [vmem:[%s288 + $0xb8] sm:$0xff]
      %v337 = vld [vmem:[%s288 + $0xc0] sm:$0xff]
      %v338 = vld [vmem:[%s288 + $0xc8] sm:$0xff]
      %v339 = vld [vmem:[%s288 + $0xd0] sm:$0xff]
      %v340 = vld [vmem:[%s288 + $0xd8] sm:$0xff]
      %v341 = vld [vmem:[%s288 + $0xe0] sm:$0xff]
      %v342 = vld [vmem:[%s288 + $0xe8] sm:$0xff]
      %v343 = vld [vmem:[%s288 + $0xf0] sm:$0xff]
      %v344 = vld [vmem:[%s288 + $0xf8] sm:$0xff]
      %345 = vst.msk [vmem:[#allocation2 + $0x11] sm:$0xff] %vm305, %v313
      %346 = vst.msk [vmem:[#allocation2 + $0x19] sm:$0xff] %vm305, %v314
      %347 = vst.msk [vmem:[#allocation2 + $0x21] sm:$0xff] %vm305, %v315
      %348 = vst.msk [vmem:[#allocation2 + $0x29] sm:$0xff] %vm305, %v316
      %349 = vst.msk [vmem:[#allocation2 + $0x31] sm:$0xff] %vm305, %v317
      %350 = vst.msk [vmem:[#allocation2 + $0x39] sm:$0xff] %vm305, %v318
      %351 = vst.msk [vmem:[#allocation2 + $0x41] sm:$0xff] %vm305, %v319
      %352 = vst.msk [vmem:[#allocation2 + $0x49] sm:$0xff] %vm305, %v320
      %353 = vst.msk [vmem:[#allocation2 + $0x51] sm:$0xff] %vm305, %v321
      %354 = vst.msk [vmem:[#allocation2 + $0x59] sm:$0xff] %vm305, %v322
      %355 = vst.msk [vmem:[#allocation2 + $0x61] sm:$0xff] %vm305, %v323
      %356 = vst.msk [vmem:[#allocation2 + $0x69] sm:$0xff] %vm305, %v324
      %357 = vst.msk [vmem:[#allocation2 + $0x71] sm:$0xff] %vm305, %v325
      %358 = vst.msk [vmem:[#allocation2 + $0x79] sm:$0xff] %vm305, %v326
      %359 = vst.msk [vmem:[#allocation2 + $0x81] sm:$0xff] %vm305, %v327
      %360 = vst.msk [vmem:[#allocation2 + $0x89] sm:$0xff] %vm305, %v328
      %361 = vst.msk [vmem:[#allocation2 + $0x91] sm:$0xff] %vm305, %v329
      %362 = vst.msk [vmem:[#allocation2 + $0x99] sm:$0xff] %vm305, %v330
      %363 = vst.msk [vmem:[#allocation2 + $0xa1] sm:$0xff] %vm305, %v331
      %364 = vst.msk [vmem:[#allocation2 + $0xa9] sm:$0xff] %vm305, %v332
      %365 = vst.msk [vmem:[#allocation2 + $0xb1] sm:$0xff] %vm305, %v333
      %366 = vst.msk [vmem:[#allocation2 + $0xb9] sm:$0xff] %vm305, %v334
      %367 = vst.msk [vmem:[#allocation2 + $0xc1] sm:$0xff] %vm305, %v335
      %368 = vst.msk [vmem:[#allocation2 + $0xc9] sm:$0xff] %vm305, %v336
      %369 = vst.msk [vmem:[#allocation2 + $0xd1] sm:$0xff] %vm305, %v337
      %370 = vst.msk [vmem:[#allocation2 + $0xd9] sm:$0xff] %vm305, %v338
      %371 = vst.msk [vmem:[#allocation2 + $0xe1] sm:$0xff] %vm305, %v339
      %372 = vst.msk [vmem:[#allocation2 + $0xe9] sm:$0xff] %vm305, %v340
      %373 = vst.msk [vmem:[#allocation2 + $0xf1] sm:$0xff] %vm305, %v341
      %374 = vst.msk [vmem:[#allocation2 + $0xf9] sm:$0xff] %vm305, %v342
      %375 = vst.msk [vmem:[#allocation2 + $0x101] sm:$0xff] %vm305, %v343
      %376 = vst.msk [vmem:[#allocation2 + $0x109] sm:$0xff] %vm305, %v344
      %v377 = vlaneseq
      %v378 = vshrl.u32 %v377, 7
      %v379 = vadd.s32 %v378, 8
      %v380 = vadd.s32 %v378, 16
      %v381 = vadd.s32 %v378, 24
      %v382 = vadd.s32 %v378, 32
      %v383 = vadd.s32 %v378, 40
      %v384 = vadd.s32 %v378, 48
      %v385 = vadd.s32 %v378, 56
      %v386 = vadd.s32 %v378, 64
      %v387 = vadd.s32 %v378, 72
      %v388 = vadd.s32 %v378, 80
      %v389 = vadd.s32 %v378, 88
      %v390 = vadd.s32 %v378, 96
      %v391 = vadd.s32 %v378, 104
      %v392 = vadd.s32 %v378, 112
      %v393 = vadd.s32 %v378, 120
      %v394 = vadd.s32 %v378, 128
      %v395 = vadd.s32 %v378, 136
      %v396 = vadd.s32 %v378, 144
      %v397 = vadd.s32 %v378, 152
      %v398 = vadd.s32 %v378, 160
      %v399 = vadd.s32 %v378, 168
      %v400 = vadd.s32 %v378, 176
      %v401 = vadd.s32 %v378, 184
      %v402 = vadd.s32 %v378, 192
      %v403 = vadd.s32 %v378, 200
      %v404 = vadd.s32 %v378, 208
      %v405 = vadd.s32 %v378, 216
      %v406 = vadd.s32 %v378, 224
      %v407 = vadd.s32 %v378, 232
      %v408 = vadd.s32 %v378, 240
      %v409 = vadd.s32 %v378, 248
      %vm410 = vcmp.lt.s32.totalorder %v378, 0
      %v411 = vsub.s32 0, %v378
      %v412 = vsel %vm410, %v411, %v378
      %v413 = vshrl.u32 %v412, 4
      %v414 = vand.u32 %v412, 15
      %v415 = vsub.s32 0, %v414
      %v416 = vsel %vm410, %v415, %v414
      %vm417 = vcmp.lt.s32.totalorder %v379, 0
      %v418 = vsub.s32 0, %v379
      %v419 = vsel %vm417, %v418, %v379
      %v420 = vshrl.u32 %v419, 4
      %v421 = vand.u32 %v419, 15
      %v422 = vsub.s32 0, %v421
      %v423 = vsel %vm417, %v422, %v421
      %vm424 = vcmp.lt.s32.totalorder %v380, 0
      %v425 = vsub.s32 0, %v380
      %v426 = vsel %vm424, %v425, %v380
      %v427 = vshrl.u32 %v426, 4
      %v428 = vand.u32 %v426, 15
      %v429 = vsub.s32 0, %v428
      %v430 = vsel %vm424, %v429, %v428
      %vm431 = vcmp.lt.s32.totalorder %v381, 0
      %v432 = vsub.s32 0, %v381
      %v433 = vsel %vm431, %v432, %v381
      %v434 = vshrl.u32 %v433, 4
      %v435 = vand.u32 %v433, 15
      %v436 = vsub.s32 0, %v435
      %v437 = vsel %vm431, %v436, %v435
      %vm438 = vcmp.lt.s32.totalorder %v382, 0
      %v439 = vsub.s32 0, %v382
      %v440 = vsel %vm438, %v439, %v382
      %v441 = vshrl.u32 %v440, 4
      %v442 = vand.u32 %v440, 15
      %v443 = vsub.s32 0, %v442
      %v444 = vsel %vm438, %v443, %v442
      %vm445 = vcmp.lt.s32.totalorder %v383, 0
      %v446 = vsub.s32 0, %v383
      %v447 = vsel %vm445, %v446, %v383
      %v448 = vshrl.u32 %v447, 4
      %v449 = vand.u32 %v447, 15
      %v450 = vsub.s32 0, %v449
      %v451 = vsel %vm445, %v450, %v449
      %vm452 = vcmp.lt.s32.totalorder %v384, 0
      %v453 = vsub.s32 0, %v384
      %v454 = vsel %vm452, %v453, %v384
      %v455 = vshrl.u32 %v454, 4
      %v456 = vand.u32 %v454, 15
      %v457 = vsub.s32 0, %v456
      %v458 = vsel %vm452, %v457, %v456
      %vm459 = vcmp.lt.s32.totalorder %v385, 0
      %v460 = vsub.s32 0, %v385
      %v461 = vsel %vm459, %v460, %v385
      %v462 = vshrl.u32 %v461, 4
      %v463 = vand.u32 %v461, 15
      %v464 = vsub.s32 0, %v463
      %v465 = vsel %vm459, %v464, %v463
      %vm466 = vcmp.lt.s32.totalorder %v386, 0
      %v467 = vsub.s32 0, %v386
      %v468 = vsel %vm466, %v467, %v386
      %v469 = vshrl.u32 %v468, 4
      %v470 = vand.u32 %v468, 15
      %v471 = vsub.s32 0, %v470
      %v472 = vsel %vm466, %v471, %v470
      %vm473 = vcmp.lt.s32.totalorder %v387, 0
      %v474 = vsub.s32 0, %v387
      %v475 = vsel %vm473, %v474, %v387
      %v476 = vshrl.u32 %v475, 4
      %v477 = vand.u32 %v475, 15
      %v478 = vsub.s32 0, %v477
      %v479 = vsel %vm473, %v478, %v477
      %vm480 = vcmp.lt.s32.totalorder %v388, 0
      %v481 = vsub.s32 0, %v388
      %v482 = vsel %vm480, %v481, %v388
      %v483 = vshrl.u32 %v482, 4
      %v484 = vand.u32 %v482, 15
      %v485 = vsub.s32 0, %v484
      %v486 = vsel %vm480, %v485, %v484
      %vm487 = vcmp.lt.s32.totalorder %v389, 0
      %v488 = vsub.s32 0, %v389
      %v489 = vsel %vm487, %v488, %v389
      %v490 = vshrl.u32 %v489, 4
      %v491 = vand.u32 %v489, 15
      %v492 = vsub.s32 0, %v491
      %v493 = vsel %vm487, %v492, %v491
      %vm494 = vcmp.lt.s32.totalorder %v390, 0
      %v495 = vsub.s32 0, %v390
      %v496 = vsel %vm494, %v495, %v390
      %v497 = vshrl.u32 %v496, 4
      %v498 = vand.u32 %v496, 15
      %v499 = vsub.s32 0, %v498
      %v500 = vsel %vm494, %v499, %v498
      %vm501 = vcmp.lt.s32.totalorder %v391, 0
      %v502 = vsub.s32 0, %v391
      %v503 = vsel %vm501, %v502, %v391
      %v504 = vshrl.u32 %v503, 4
      %v505 = vand.u32 %v503, 15
      %v506 = vsub.s32 0, %v505
      %v507 = vsel %vm501, %v506, %v505
      %vm508 = vcmp.lt.s32.totalorder %v392, 0
      %v509 = vsub.s32 0, %v392
      %v510 = vsel %vm508, %v509, %v392
      %v511 = vshrl.u32 %v510, 4
      %v512 = vand.u32 %v510, 15
      %v513 = vsub.s32 0, %v512
      %v514 = vsel %vm508, %v513, %v512
      %vm515 = vcmp.lt.s32.totalorder %v393, 0
      %v516 = vsub.s32 0, %v393
      %v517 = vsel %vm515, %v516, %v393
      %v518 = vshrl.u32 %v517, 4
      %v519 = vand.u32 %v517, 15
      %v520 = vsub.s32 0, %v519
      %v521 = vsel %vm515, %v520, %v519
      %vm522 = vcmp.lt.s32.totalorder %v394, 0
      %v523 = vsub.s32 0, %v394
      %v524 = vsel %vm522, %v523, %v394
      %v525 = vshrl.u32 %v524, 4
      %v526 = vand.u32 %v524, 15
      %v527 = vsub.s32 0, %v526
      %v528 = vsel %vm522, %v527, %v526
      %vm529 = vcmp.lt.s32.totalorder %v395, 0
      %v530 = vsub.s32 0, %v395
      %v531 = vsel %vm529, %v530, %v395
      %v532 = vshrl.u32 %v531, 4
      %v533 = vand.u32 %v531, 15
      %v534 = vsub.s32 0, %v533
      %v535 = vsel %vm529, %v534, %v533
      %vm536 = vcmp.lt.s32.totalorder %v396, 0
      %v537 = vsub.s32 0, %v396
      %v538 = vsel %vm536, %v537, %v396
      %v539 = vshrl.u32 %v538, 4
      %v540 = vand.u32 %v538, 15
      %v541 = vsub.s32 0, %v540
      %v542 = vsel %vm536, %v541, %v540
      %vm543 = vcmp.lt.s32.totalorder %v397, 0
      %v544 = vsub.s32 0, %v397
      %v545 = vsel %vm543, %v544, %v397
      %v546 = vshrl.u32 %v545, 4
      %v547 = vand.u32 %v545, 15
      %v548 = vsub.s32 0, %v547
      %v549 = vsel %vm543, %v548, %v547
      %vm550 = vcmp.lt.s32.totalorder %v398, 0
      %v551 = vsub.s32 0, %v398
      %v552 = vsel %vm550, %v551, %v398
      %v553 = vshrl.u32 %v552, 4
      %v554 = vand.u32 %v552, 15
      %v555 = vsub.s32 0, %v554
      %v556 = vsel %vm550, %v555, %v554
      %vm557 = vcmp.lt.s32.totalorder %v399, 0
      %v558 = vsub.s32 0, %v399
      %v559 = vsel %vm557, %v558, %v399
      %v560 = vshrl.u32 %v559, 4
      %v561 = vand.u32 %v559, 15
      %v562 = vsub.s32 0, %v561
      %v563 = vsel %vm557, %v562, %v561
      %vm564 = vcmp.lt.s32.totalorder %v400, 0
      %v565 = vsub.s32 0, %v400
      %v566 = vsel %vm564, %v565, %v400
      %v567 = vshrl.u32 %v566, 4
      %v568 = vand.u32 %v566, 15
      %v569 = vsub.s32 0, %v568
      %v570 = vsel %vm564, %v569, %v568
      %vm571 = vcmp.lt.s32.totalorder %v401, 0
      %v572 = vsub.s32 0, %v401
      %v573 = vsel %vm571, %v572, %v401
      %v574 = vshrl.u32 %v573, 4
      %v575 = vand.u32 %v573, 15
      %v576 = vsub.s32 0, %v575
      %v577 = vsel %vm571, %v576, %v575
      %vm578 = vcmp.lt.s32.totalorder %v402, 0
      %v579 = vsub.s32 0, %v402
      %v580 = vsel %vm578, %v579, %v402
      %v581 = vshrl.u32 %v580, 4
      %v582 = vand.u32 %v580, 15
      %v583 = vsub.s32 0, %v582
      %v584 = vsel %vm578, %v583, %v582
      %vm585 = vcmp.lt.s32.totalorder %v403, 0
      %v586 = vsub.s32 0, %v403
      %v587 = vsel %vm585, %v586, %v403
      %v588 = vshrl.u32 %v587, 4
      %v589 = vand.u32 %v587, 15
      %v590 = vsub.s32 0, %v589
      %v591 = vsel %vm585, %v590, %v589
      %vm592 = vcmp.lt.s32.totalorder %v404, 0
      %v593 = vsub.s32 0, %v404
      %v594 = vsel %vm592, %v593, %v404
      %v595 = vshrl.u32 %v594, 4
      %v596 = vand.u32 %v594, 15
      %v597 = vsub.s32 0, %v596
      %v598 = vsel %vm592, %v597, %v596
      %vm599 = vcmp.lt.s32.totalorder %v405, 0
      %v600 = vsub.s32 0, %v405
      %v601 = vsel %vm599, %v600, %v405
      %v602 = vshrl.u32 %v601, 4
      %v603 = vand.u32 %v601, 15
      %v604 = vsub.s32 0, %v603
      %v605 = vsel %vm599, %v604, %v603
      %vm606 = vcmp.lt.s32.totalorder %v406, 0
      %v607 = vsub.s32 0, %v406
      %v608 = vsel %vm606, %v607, %v406
      %v609 = vshrl.u32 %v608, 4
      %v610 = vand.u32 %v608, 15
      %v611 = vsub.s32 0, %v610
      %v612 = vsel %vm606, %v611, %v610
      %vm613 = vcmp.lt.s32.totalorder %v407, 0
      %v614 = vsub.s32 0, %v407
      %v615 = vsel %vm613, %v614, %v407
      %v616 = vshrl.u32 %v615, 4
      %v617 = vand.u32 %v615, 15
      %v618 = vsub.s32 0, %v617
      %v619 = vsel %vm613, %v618, %v617
      %vm620 = vcmp.lt.s32.totalorder %v408, 0
      %v621 = vsub.s32 0, %v408
      %v622 = vsel %vm620, %v621, %v408
      %v623 = vshrl.u32 %v622, 4
      %v624 = vand.u32 %v622, 15
      %v625 = vsub.s32 0, %v624
      %v626 = vsel %vm620, %v625, %v624
      %vm627 = vcmp.lt.s32.totalorder %v409, 0
      %v628 = vsub.s32 0, %v409
      %v629 = vsel %vm627, %v628, %v409
      %v630 = vshrl.u32 %v629, 4
      %v631 = vand.u32 %v629, 15
      %v632 = vsub.s32 0, %v631
      %v633 = vsel %vm627, %v632, %v631
      %vm634 = vcmp.ne.s32.totalorder %v416, 0
      %vm635 = vcmp.ne.s32.totalorder %v423, 0
      %vm636 = vcmp.ne.s32.totalorder %v430, 0
      %vm637 = vcmp.ne.s32.totalorder %v437, 0
      %vm638 = vcmp.ne.s32.totalorder %v444, 0
      %vm639 = vcmp.ne.s32.totalorder %v451, 0
      %vm640 = vcmp.ne.s32.totalorder %v458, 0
      %vm641 = vcmp.ne.s32.totalorder %v465, 0
      %vm642 = vcmp.ne.s32.totalorder %v472, 0
      %vm643 = vcmp.ne.s32.totalorder %v479, 0
      %vm644 = vcmp.ne.s32.totalorder %v486, 0
      %vm645 = vcmp.ne.s32.totalorder %v493, 0
      %vm646 = vcmp.ne.s32.totalorder %v500, 0
      %vm647 = vcmp.ne.s32.totalorder %v507, 0
      %vm648 = vcmp.ne.s32.totalorder %v514, 0
      %vm649 = vcmp.ne.s32.totalorder %v521, 0
      %vm650 = vcmp.ne.s32.totalorder %v528, 0
      %vm651 = vcmp.ne.s32.totalorder %v535, 0
      %vm652 = vcmp.ne.s32.totalorder %v542, 0
      %vm653 = vcmp.ne.s32.totalorder %v549, 0
      %vm654 = vcmp.ne.s32.totalorder %v556, 0
      %vm655 = vcmp.ne.s32.totalorder %v563, 0
      %vm656 = vcmp.ne.s32.totalorder %v570, 0
      %vm657 = vcmp.ne.s32.totalorder %v577, 0
      %vm658 = vcmp.ne.s32.totalorder %v584, 0
      %vm659 = vcmp.ne.s32.totalorder %v591, 0
      %vm660 = vcmp.ne.s32.totalorder %v598, 0
      %vm661 = vcmp.ne.s32.totalorder %v605, 0
      %vm662 = vcmp.ne.s32.totalorder %v612, 0
      %vm663 = vcmp.ne.s32.totalorder %v619, 0
      %vm664 = vcmp.ne.s32.totalorder %v626, 0
      %vm665 = vcmp.ne.s32.totalorder %v633, 0
      %vm666 = vcmp.lt.s32.totalorder %v416, 0
      %vm667 = vcmp.lt.s32.totalorder %v423, 0
      %vm668 = vcmp.lt.s32.totalorder %v430, 0
      %vm669 = vcmp.lt.s32.totalorder %v437, 0
      %vm670 = vcmp.lt.s32.totalorder %v444, 0
      %vm671 = vcmp.lt.s32.totalorder %v451, 0
      %vm672 = vcmp.lt.s32.totalorder %v458, 0
      %vm673 = vcmp.lt.s32.totalorder %v465, 0
      %vm674 = vcmp.lt.s32.totalorder %v472, 0
      %vm675 = vcmp.lt.s32.totalorder %v479, 0
      %vm676 = vcmp.lt.s32.totalorder %v486, 0
      %vm677 = vcmp.lt.s32.totalorder %v493, 0
      %vm678 = vcmp.lt.s32.totalorder %v500, 0
      %vm679 = vcmp.lt.s32.totalorder %v507, 0
      %vm680 = vcmp.lt.s32.totalorder %v514, 0
      %vm681 = vcmp.lt.s32.totalorder %v521, 0
      %vm682 = vcmp.lt.s32.totalorder %v528, 0
      %vm683 = vcmp.lt.s32.totalorder %v535, 0
      %vm684 = vcmp.lt.s32.totalorder %v542, 0
      %vm685 = vcmp.lt.s32.totalorder %v549, 0
      %vm686 = vcmp.lt.s32.totalorder %v556, 0
      %vm687 = vcmp.lt.s32.totalorder %v563, 0
      %vm688 = vcmp.lt.s32.totalorder %v570, 0
      %vm689 = vcmp.lt.s32.totalorder %v577, 0
      %vm690 = vcmp.lt.s32.totalorder %v584, 0
      %vm691 = vcmp.lt.s32.totalorder %v591, 0
      %vm692 = vcmp.lt.s32.totalorder %v598, 0
      %vm693 = vcmp.lt.s32.totalorder %v605, 0
      %vm694 = vcmp.lt.s32.totalorder %v612, 0
      %vm695 = vcmp.lt.s32.totalorder %v619, 0
      %vm696 = vcmp.lt.s32.totalorder %v626, 0
      %vm697 = vcmp.lt.s32.totalorder %v633, 0
      %vm698 = vmand %vm666, %vm634
      %vm699 = vmand %vm667, %vm635
      %vm700 = vmand %vm668, %vm636
      %vm701 = vmand %vm669, %vm637
      %vm702 = vmand %vm670, %vm638
      %vm703 = vmand %vm671, %vm639
      %vm704 = vmand %vm672, %vm640
      %vm705 = vmand %vm673, %vm641
      %vm706 = vmand %vm674, %vm642
      %vm707 = vmand %vm675, %vm643
      %vm708 = vmand %vm676, %vm644
      %vm709 = vmand %vm677, %vm645
      %vm710 = vmand %vm678, %vm646
      %vm711 = vmand %vm679, %vm647
      %vm712 = vmand %vm680, %vm648
      %vm713 = vmand %vm681, %vm649
      %vm714 = vmand %vm682, %vm650
      %vm715 = vmand %vm683, %vm651
      %vm716 = vmand %vm684, %vm652
      %vm717 = vmand %vm685, %vm653
      %vm718 = vmand %vm686, %vm654
      %vm719 = vmand %vm687, %vm655
      %vm720 = vmand %vm688, %vm656
      %vm721 = vmand %vm689, %vm657
      %vm722 = vmand %vm690, %vm658
      %vm723 = vmand %vm691, %vm659
      %vm724 = vmand %vm692, %vm660
      %vm725 = vmand %vm693, %vm661
      %vm726 = vmand %vm694, %vm662
      %vm727 = vmand %vm695, %vm663
      %vm728 = vmand %vm696, %vm664
      %vm729 = vmand %vm697, %vm665
      %v730 = vadd.s32 %v416, 16
      %v731 = vadd.s32 %v423, 16
      %v732 = vadd.s32 %v430, 16
      %v733 = vadd.s32 %v437, 16
      %v734 = vadd.s32 %v444, 16
      %v735 = vadd.s32 %v451, 16
      %v736 = vadd.s32 %v458, 16
      %v737 = vadd.s32 %v465, 16
      %v738 = vadd.s32 %v472, 16
      %v739 = vadd.s32 %v479, 16
      %v740 = vadd.s32 %v486, 16
      %v741 = vadd.s32 %v493, 16
      %v742 = vadd.s32 %v500, 16
      %v743 = vadd.s32 %v507, 16
      %v744 = vadd.s32 %v514, 16
      %v745 = vadd.s32 %v521, 16
      %v746 = vadd.s32 %v528, 16
      %v747 = vadd.s32 %v535, 16
      %v748 = vadd.s32 %v542, 16
      %v749 = vadd.s32 %v549, 16
      %v750 = vadd.s32 %v556, 16
      %v751 = vadd.s32 %v563, 16
      %v752 = vadd.s32 %v570, 16
      %v753 = vadd.s32 %v577, 16
      %v754 = vadd.s32 %v584, 16
      %v755 = vadd.s32 %v591, 16
      %v756 = vadd.s32 %v598, 16
      %v757 = vadd.s32 %v605, 16
      %v758 = vadd.s32 %v612, 16
      %v759 = vadd.s32 %v619, 16
      %v760 = vadd.s32 %v626, 16
      %v761 = vadd.s32 %v633, 16
      %v762 = vsel %vm698, %v730, %v416
      %v763 = vsel %vm699, %v731, %v423
      %v764 = vsel %vm700, %v732, %v430
      %v765 = vsel %vm701, %v733, %v437
      %v766 = vsel %vm702, %v734, %v444
      %v767 = vsel %vm703, %v735, %v451
      %v768 = vsel %vm704, %v736, %v458
      %v769 = vsel %vm705, %v737, %v465
      %v770 = vsel %vm706, %v738, %v472
      %v771 = vsel %vm707, %v739, %v479
      %v772 = vsel %vm708, %v740, %v486
      %v773 = vsel %vm709, %v741, %v493
      %v774 = vsel %vm710, %v742, %v500
      %v775 = vsel %vm711, %v743, %v507
      %v776 = vsel %vm712, %v744, %v514
      %v777 = vsel %vm713, %v745, %v521
      %v778 = vsel %vm714, %v746, %v528
      %v779 = vsel %vm715, %v747, %v535
      %v780 = vsel %vm716, %v748, %v542
      %v781 = vsel %vm717, %v749, %v549
      %v782 = vsel %vm718, %v750, %v556
      %v783 = vsel %vm719, %v751, %v563
      %v784 = vsel %vm720, %v752, %v570
      %v785 = vsel %vm721, %v753, %v577
      %v786 = vsel %vm722, %v754, %v584
      %v787 = vsel %vm723, %v755, %v591
      %v788 = vsel %vm724, %v756, %v598
      %v789 = vsel %vm725, %v757, %v605
      %v790 = vsel %vm726, %v758, %v612
      %v791 = vsel %vm727, %v759, %v619
      %v792 = vsel %vm728, %v760, %v626
      %v793 = vsel %vm729, %v761, %v633
      %vm794 = vcmp.ge.s32.totalorder %v762, 1
      %vm795 = vcmp.ge.s32.totalorder %v763, 1
      %vm796 = vcmp.ge.s32.totalorder %v764, 1
      %vm797 = vcmp.ge.s32.totalorder %v765, 1
      %vm798 = vcmp.ge.s32.totalorder %v766, 1
      %vm799 = vcmp.ge.s32.totalorder %v767, 1
      %vm800 = vcmp.ge.s32.totalorder %v768, 1
      %vm801 = vcmp.ge.s32.totalorder %v769, 1
      %vm802 = vcmp.ge.s32.totalorder %v770, 1
      %vm803 = vcmp.ge.s32.totalorder %v771, 1
      %vm804 = vcmp.ge.s32.totalorder %v772, 1
      %vm805 = vcmp.ge.s32.totalorder %v773, 1
      %vm806 = vcmp.ge.s32.totalorder %v774, 1
      %vm807 = vcmp.ge.s32.totalorder %v775, 1
      %vm808 = vcmp.ge.s32.totalorder %v776, 1
      %vm809 = vcmp.ge.s32.totalorder %v777, 1
      %vm810 = vcmp.ge.s32.totalorder %v778, 1
      %vm811 = vcmp.ge.s32.totalorder %v779, 1
      %vm812 = vcmp.ge.s32.totalorder %v780, 1
      %vm813 = vcmp.ge.s32.totalorder %v781, 1
      %vm814 = vcmp.ge.s32.totalorder %v782, 1
      %vm815 = vcmp.ge.s32.totalorder %v783, 1
      %vm816 = vcmp.ge.s32.totalorder %v784, 1
      %vm817 = vcmp.ge.s32.totalorder %v785, 1
      %vm818 = vcmp.ge.s32.totalorder %v786, 1
      %vm819 = vcmp.ge.s32.totalorder %v787, 1
      %vm820 = vcmp.ge.s32.totalorder %v788, 1
      %vm821 = vcmp.ge.s32.totalorder %v789, 1
      %vm822 = vcmp.ge.s32.totalorder %v790, 1
      %vm823 = vcmp.ge.s32.totalorder %v791, 1
      %vm824 = vcmp.ge.s32.totalorder %v792, 1
      %vm825 = vcmp.ge.s32.totalorder %v793, 1
      %vm826 = vcmp.le.s32.totalorder %v762, 14
      %vm827 = vcmp.le.s32.totalorder %v763, 14
      %vm828 = vcmp.le.s32.totalorder %v764, 14
      %vm829 = vcmp.le.s32.totalorder %v765, 14
      %vm830 = vcmp.le.s32.totalorder %v766, 14
      %vm831 = vcmp.le.s32.totalorder %v767, 14
      %vm832 = vcmp.le.s32.totalorder %v768, 14
      %vm833 = vcmp.le.s32.totalorder %v769, 14
      %vm834 = vcmp.le.s32.totalorder %v770, 14
      %vm835 = vcmp.le.s32.totalorder %v771, 14
      %vm836 = vcmp.le.s32.totalorder %v772, 14
      %vm837 = vcmp.le.s32.totalorder %v773, 14
      %vm838 = vcmp.le.s32.totalorder %v774, 14
      %vm839 = vcmp.le.s32.totalorder %v775, 14
      %vm840 = vcmp.le.s32.totalorder %v776, 14
      %vm841 = vcmp.le.s32.totalorder %v777, 14
      %vm842 = vcmp.le.s32.totalorder %v778, 14
      %vm843 = vcmp.le.s32.totalorder %v779, 14
      %vm844 = vcmp.le.s32.totalorder %v780, 14
      %vm845 = vcmp.le.s32.totalorder %v781, 14
      %vm846 = vcmp.le.s32.totalorder %v782, 14
      %vm847 = vcmp.le.s32.totalorder %v783, 14
      %vm848 = vcmp.le.s32.totalorder %v784, 14
      %vm849 = vcmp.le.s32.totalorder %v785, 14
      %vm850 = vcmp.le.s32.totalorder %v786, 14
      %vm851 = vcmp.le.s32.totalorder %v787, 14
      %vm852 = vcmp.le.s32.totalorder %v788, 14
      %vm853 = vcmp.le.s32.totalorder %v789, 14
      %vm854 = vcmp.le.s32.totalorder %v790, 14
      %vm855 = vcmp.le.s32.totalorder %v791, 14
      %vm856 = vcmp.le.s32.totalorder %v792, 14
      %vm857 = vcmp.le.s32.totalorder %v793, 14
      %v858 = vld [vmem:[#allocation2] sm:$0xff]
      %v859 = vld [vmem:[#allocation2 + $0x8] sm:$0xff]
      %v860 = vld [vmem:[#allocation2 + $0x10] sm:$0xff]
      %v861 = vld [vmem:[#allocation2 + $0x18] sm:$0xff]
      %v862 = vld [vmem:[#allocation2 + $0x20] sm:$0xff]
      %v863 = vld [vmem:[#allocation2 + $0x28] sm:$0xff]
      %v864 = vld [vmem:[#allocation2 + $0x30] sm:$0xff]
      %v865 = vld [vmem:[#allocation2 + $0x38] sm:$0xff]
      %v866 = vld [vmem:[#allocation2 + $0x40] sm:$0xff]
      %v867 = vld [vmem:[#allocation2 + $0x48] sm:$0xff]
      %v868 = vld [vmem:[#allocation2 + $0x50] sm:$0xff]
      %v869 = vld [vmem:[#allocation2 + $0x58] sm:$0xff]
      %v870 = vld [vmem:[#allocation2 + $0x60] sm:$0xff]
      %v871 = vld [vmem:[#allocation2 + $0x68] sm:$0xff]
      %v872 = vld [vmem:[#allocation2 + $0x70] sm:$0xff]
      %v873 = vld [vmem:[#allocation2 + $0x78] sm:$0xff]
      %v874 = vld [vmem:[#allocation2 + $0x80] sm:$0xff]
      %v875 = vld [vmem:[#allocation2 + $0x88] sm:$0xff]
      %v876 = vld [vmem:[#allocation2 + $0x90] sm:$0xff]
      %v877 = vld [vmem:[#allocation2 + $0x98] sm:$0xff]
      %v878 = vld [vmem:[#allocation2 + $0xa0] sm:$0xff]
      %v879 = vld [vmem:[#allocation2 + $0xa8] sm:$0xff]
      %v880 = vld [vmem:[#allocation2 + $0xb0] sm:$0xff]
      %v881 = vld [vmem:[#allocation2 + $0xb8] sm:$0xff]
      %v882 = vld [vmem:[#allocation2 + $0xc0] sm:$0xff]
      %v883 = vld [vmem:[#allocation2 + $0xc8] sm:$0xff]
      %v884 = vld [vmem:[#allocation2 + $0xd0] sm:$0xff]
      %v885 = vld [vmem:[#allocation2 + $0xd8] sm:$0xff]
      %v886 = vld [vmem:[#allocation2 + $0xe0] sm:$0xff]
      %v887 = vld [vmem:[#allocation2 + $0xe8] sm:$0xff]
      %v888 = vld [vmem:[#allocation2 + $0xf0] sm:$0xff]
      %v889 = vld [vmem:[#allocation2 + $0xf8] sm:$0xff]
      %v890 = vsel %vm794, 1, 0
      %v891 = vsel %vm795, 1, 0
      %v892 = vsel %vm796, 1, 0
      %v893 = vsel %vm797, 1, 0
      %v894 = vsel %vm798, 1, 0
      %v895 = vsel %vm799, 1, 0
      %v896 = vsel %vm800, 1, 0
      %v897 = vsel %vm801, 1, 0
      %v898 = vsel %vm802, 1, 0
      %v899 = vsel %vm803, 1, 0
      %v900 = vsel %vm804, 1, 0
      %v901 = vsel %vm805, 1, 0
      %v902 = vsel %vm806, 1, 0
      %v903 = vsel %vm807, 1, 0
      %v904 = vsel %vm808, 1, 0
      %v905 = vsel %vm809, 1, 0
      %v906 = vsel %vm810, 1, 0
      %v907 = vsel %vm811, 1, 0
      %v908 = vsel %vm812, 1, 0
      %v909 = vsel %vm813, 1, 0
      %v910 = vsel %vm814, 1, 0
      %v911 = vsel %vm815, 1, 0
      %v912 = vsel %vm816, 1, 0
      %v913 = vsel %vm817, 1, 0
      %v914 = vsel %vm818, 1, 0
      %v915 = vsel %vm819, 1, 0
      %v916 = vsel %vm820, 1, 0
      %v917 = vsel %vm821, 1, 0
      %v918 = vsel %vm822, 1, 0
      %v919 = vsel %vm823, 1, 0
      %v920 = vsel %vm824, 1, 0
      %v921 = vsel %vm825, 1, 0
      %vm922 = vcmp.eq.s32.totalorder %v890, 1
      %vm923 = vcmp.eq.s32.totalorder %v891, 1
      %vm924 = vcmp.eq.s32.totalorder %v892, 1
      %vm925 = vcmp.eq.s32.totalorder %v893, 1
      %vm926 = vcmp.eq.s32.totalorder %v894, 1
      %vm927 = vcmp.eq.s32.totalorder %v895, 1
      %vm928 = vcmp.eq.s32.totalorder %v896, 1
      %vm929 = vcmp.eq.s32.totalorder %v897, 1
      %vm930 = vcmp.eq.s32.totalorder %v898, 1
      %vm931 = vcmp.eq.s32.totalorder %v899, 1
      %vm932 = vcmp.eq.s32.totalorder %v900, 1
      %vm933 = vcmp.eq.s32.totalorder %v901, 1
      %vm934 = vcmp.eq.s32.totalorder %v902, 1
      %vm935 = vcmp.eq.s32.totalorder %v903, 1
      %vm936 = vcmp.eq.s32.totalorder %v904, 1
      %vm937 = vcmp.eq.s32.totalorder %v905, 1
      %vm938 = vcmp.eq.s32.totalorder %v906, 1
      %vm939 = vcmp.eq.s32.totalorder %v907, 1
      %vm940 = vcmp.eq.s32.totalorder %v908, 1
      %vm941 = vcmp.eq.s32.totalorder %v909, 1
      %vm942 = vcmp.eq.s32.totalorder %v910, 1
      %vm943 = vcmp.eq.s32.totalorder %v911, 1
      %vm944 = vcmp.eq.s32.totalorder %v912, 1
      %vm945 = vcmp.eq.s32.totalorder %v913, 1
      %vm946 = vcmp.eq.s32.totalorder %v914, 1
      %vm947 = vcmp.eq.s32.totalorder %v915, 1
      %vm948 = vcmp.eq.s32.totalorder %v916, 1
      %vm949 = vcmp.eq.s32.totalorder %v917, 1
      %vm950 = vcmp.eq.s32.totalorder %v918, 1
      %vm951 = vcmp.eq.s32.totalorder %v919, 1
      %vm952 = vcmp.eq.s32.totalorder %v920, 1
      %vm953 = vcmp.eq.s32.totalorder %v921, 1
      %v954 = vsel %vm922, %v858, 0.0
      %v955 = vsel %vm923, %v859, 0.0
      %v956 = vsel %vm924, %v860, 0.0
      %v957 = vsel %vm925, %v861, 0.0
      %v958 = vsel %vm926, %v862, 0.0
      %v959 = vsel %vm927, %v863, 0.0
      %v960 = vsel %vm928, %v864, 0.0
      %v961 = vsel %vm929, %v865, 0.0
      %v962 = vsel %vm930, %v866, 0.0
      %v963 = vsel %vm931, %v867, 0.0
      %v964 = vsel %vm932, %v868, 0.0
      %v965 = vsel %vm933, %v869, 0.0
      %v966 = vsel %vm934, %v870, 0.0
      %v967 = vsel %vm935, %v871, 0.0
      %v968 = vsel %vm936, %v872, 0.0
      %v969 = vsel %vm937, %v873, 0.0
      %v970 = vsel %vm938, %v874, 0.0
      %v971 = vsel %vm939, %v875, 0.0
      %v972 = vsel %vm940, %v876, 0.0
      %v973 = vsel %vm941, %v877, 0.0
      %v974 = vsel %vm942, %v878, 0.0
      %v975 = vsel %vm943, %v879, 0.0
      %v976 = vsel %vm944, %v880, 0.0
      %v977 = vsel %vm945, %v881, 0.0
      %v978 = vsel %vm946, %v882, 0.0
      %v979 = vsel %vm947, %v883, 0.0
      %v980 = vsel %vm948, %v884, 0.0
      %v981 = vsel %vm949, %v885, 0.0
      %v982 = vsel %vm950, %v886, 0.0
      %v983 = vsel %vm951, %v887, 0.0
      %v984 = vsel %vm952, %v888, 0.0
      %v985 = vsel %vm953, %v889, 0.0
      %v986 = vpack.c.bf16 %v955, %v954
      %v987 = vpack.c.bf16 %v957, %v956
      %v988 = vpack.c.bf16 %v959, %v958
      %v989 = vpack.c.bf16 %v961, %v960
      %v990 = vpack.c.bf16 %v963, %v962
      %v991 = vpack.c.bf16 %v965, %v964
      %v992 = vpack.c.bf16 %v967, %v966
      %v993 = vpack.c.bf16 %v969, %v968
      %v994 = vpack.c.bf16 %v971, %v970
      %v995 = vpack.c.bf16 %v973, %v972
      %v996 = vpack.c.bf16 %v975, %v974
      %v997 = vpack.c.bf16 %v977, %v976
      %v998 = vpack.c.bf16 %v979, %v978
      %v999 = vpack.c.bf16 %v981, %v980
      %v1000 = vpack.c.bf16 %v983, %v982
      %v1001 = vpack.c.bf16 %v985, %v984
      %v1018 = vunpack.c.l.b16 %v986
      %v1019 = vunpack.c.h.b16 %v986
      %v1020 = vunpack.c.l.b16 %v987
      %v1021 = vunpack.c.h.b16 %v987
      %v1022 = vunpack.c.l.b16 %v988
      %v1023 = vunpack.c.h.b16 %v988
      %v1024 = vunpack.c.l.b16 %v989
      %v1025 = vunpack.c.h.b16 %v989
      %v1026 = vunpack.c.l.b16 %v990
      %v1027 = vunpack.c.h.b16 %v990
      %v1028 = vunpack.c.l.b16 %v991
      %v1029 = vunpack.c.h.b16 %v991
      %v1030 = vunpack.c.l.b16 %v992
      %v1031 = vunpack.c.h.b16 %v992
      %v1032 = vunpack.c.l.b16 %v993
      %v1033 = vunpack.c.h.b16 %v993
      %v1034 = vunpack.c.l.b16 %v994
      %v1035 = vunpack.c.h.b16 %v994
      %v1036 = vunpack.c.l.b16 %v995
      %v1037 = vunpack.c.h.b16 %v995
      %v1038 = vunpack.c.l.b16 %v996
      %v1039 = vunpack.c.h.b16 %v996
      %v1040 = vunpack.c.l.b16 %v997
      %v1041 = vunpack.c.h.b16 %v997
      %v1042 = vunpack.c.l.b16 %v998
      %v1043 = vunpack.c.h.b16 %v998
      %v1044 = vunpack.c.l.b16 %v999
      %v1045 = vunpack.c.h.b16 %v999
      %v1046 = vunpack.c.l.b16 %v1000
      %v1047 = vunpack.c.h.b16 %v1000
      %v1048 = vunpack.c.l.b16 %v1001
      %v1049 = vunpack.c.h.b16 %v1001
      %v1050 = vpack.c.b16 %v1018, %v1018
      %v1051 = vpack.c.b16 %v1019, %v1019
      %v1052 = vpack.c.b16 %v1020, %v1020
      %v1053 = vpack.c.b16 %v1021, %v1021
      %v1054 = vpack.c.b16 %v1022, %v1022
      %v1055 = vpack.c.b16 %v1023, %v1023
      %v1056 = vpack.c.b16 %v1024, %v1024
      %v1057 = vpack.c.b16 %v1025, %v1025
      %v1058 = vpack.c.b16 %v1026, %v1026
      %v1059 = vpack.c.b16 %v1027, %v1027
      %v1060 = vpack.c.b16 %v1028, %v1028
      %v1061 = vpack.c.b16 %v1029, %v1029
      %v1062 = vpack.c.b16 %v1030, %v1030
      %v1063 = vpack.c.b16 %v1031, %v1031
      %v1064 = vpack.c.b16 %v1032, %v1032
      %v1065 = vpack.c.b16 %v1033, %v1033
      %v1066 = vpack.c.b16 %v1034, %v1034
      %v1067 = vpack.c.b16 %v1035, %v1035
      %v1068 = vpack.c.b16 %v1036, %v1036
      %v1069 = vpack.c.b16 %v1037, %v1037
      %v1070 = vpack.c.b16 %v1038, %v1038
      %v1071 = vpack.c.b16 %v1039, %v1039
      %v1072 = vpack.c.b16 %v1040, %v1040
      %v1073 = vpack.c.b16 %v1041, %v1041
      %v1074 = vpack.c.b16 %v1042, %v1042
      %v1075 = vpack.c.b16 %v1043, %v1043
      %v1076 = vpack.c.b16 %v1044, %v1044
      %v1077 = vpack.c.b16 %v1045, %v1045
      %v1078 = vpack.c.b16 %v1046, %v1046
      %v1079 = vpack.c.b16 %v1047, %v1047
      %v1080 = vpack.c.b16 %v1048, %v1048
      %v1081 = vpack.c.b16 %v1049, %v1049
      %vm1114 = vcmask 60416
      %1115 = vst.msk [vmem:[#allocation3] sm:$0xf] %vm1114, %v1050
      %1116 = vst.msk [vmem:[#allocation3 + $0x4] sm:$0xf] %vm1114, %v1051
      %1117 = vst.msk [vmem:[#allocation3 + $0x8] sm:$0xf] %vm1114, %v1052
      %1118 = vst.msk [vmem:[#allocation3 + $0xc] sm:$0xf] %vm1114, %v1053
      %1119 = vst.msk [vmem:[#allocation3 + $0x10] sm:$0xf] %vm1114, %v1054
      %1120 = vst.msk [vmem:[#allocation3 + $0x14] sm:$0xf] %vm1114, %v1055
      %1121 = vst.msk [vmem:[#allocation3 + $0x18] sm:$0xf] %vm1114, %v1056
      %1122 = vst.msk [vmem:[#allocation3 + $0x1c] sm:$0xf] %vm1114, %v1057
      %1123 = vst.msk [vmem:[#allocation3 + $0x20] sm:$0xf] %vm1114, %v1058
      %1124 = vst.msk [vmem:[#allocation3 + $0x24] sm:$0xf] %vm1114, %v1059
      %1125 = vst.msk [vmem:[#allocation3 + $0x28] sm:$0xf] %vm1114, %v1060
      %1126 = vst.msk [vmem:[#allocation3 + $0x2c] sm:$0xf] %vm1114, %v1061
      %1127 = vst.msk [vmem:[#allocation3 + $0x30] sm:$0xf] %vm1114, %v1062
      %1128 = vst.msk [vmem:[#allocation3 + $0x34] sm:$0xf] %vm1114, %v1063
      %1129 = vst.msk [vmem:[#allocation3 + $0x38] sm:$0xf] %vm1114, %v1064
      %1130 = vst.msk [vmem:[#allocation3 + $0x3c] sm:$0xf] %vm1114, %v1065
      %1131 = vst.msk [vmem:[#allocation3 + $0x40] sm:$0xf] %vm1114, %v1066
      %1132 = vst.msk [vmem:[#allocation3 + $0x44] sm:$0xf] %vm1114, %v1067
      %1133 = vst.msk [vmem:[#allocation3 + $0x48] sm:$0xf] %vm1114, %v1068
      %1134 = vst.msk [vmem:[#allocation3 + $0x4c] sm:$0xf] %vm1114, %v1069
      %1135 = vst.msk [vmem:[#allocation3 + $0x50] sm:$0xf] %vm1114, %v1070
      %1136 = vst.msk [vmem:[#allocation3 + $0x54] sm:$0xf] %vm1114, %v1071
      %1137 = vst.msk [vmem:[#allocation3 + $0x58] sm:$0xf] %vm1114, %v1072
      %1138 = vst.msk [vmem:[#allocation3 + $0x5c] sm:$0xf] %vm1114, %v1073
      %1139 = vst.msk [vmem:[#allocation3 + $0x60] sm:$0xf] %vm1114, %v1074
      %1140 = vst.msk [vmem:[#allocation3 + $0x64] sm:$0xf] %vm1114, %v1075
      %1141 = vst.msk [vmem:[#allocation3 + $0x68] sm:$0xf] %vm1114, %v1076
      %1142 = vst.msk [vmem:[#allocation3 + $0x6c] sm:$0xf] %vm1114, %v1077
      %1143 = vst.msk [vmem:[#allocation3 + $0x70] sm:$0xf] %vm1114, %v1078
      %1144 = vst.msk [vmem:[#allocation3 + $0x74] sm:$0xf] %vm1114, %v1079
      %1145 = vst.msk [vmem:[#allocation3 + $0x78] sm:$0xf] %vm1114, %v1080
      %1146 = vst.msk [vmem:[#allocation3 + $0x7c] sm:$0xf] %vm1114, %v1081
      %v1147 = vld [vmem:[#allocation2 + $0x1] sm:$0xff]
      %v1148 = vld [vmem:[#allocation2 + $0x9] sm:$0xff]
      %v1149 = vld [vmem:[#allocation2 + $0x11] sm:$0xff]
      %v1150 = vld [vmem:[#allocation2 + $0x19] sm:$0xff]
      %v1151 = vld [vmem:[#allocation2 + $0x21] sm:$0xff]
      %v1152 = vld [vmem:[#allocation2 + $0x29] sm:$0xff]
      %v1153 = vld [vmem:[#allocation2 + $0x31] sm:$0xff]
      %v1154 = vld [vmem:[#allocation2 + $0x39] sm:$0xff]
      %v1155 = vld [vmem:[#allocation2 + $0x41] sm:$0xff]
      %v1156 = vld [vmem:[#allocation2 + $0x49] sm:$0xff]
      %v1157 = vld [vmem:[#allocation2 + $0x51] sm:$0xff]
      %v1158 = vld [vmem:[#allocation2 + $0x59] sm:$0xff]
      %v1159 = vld [vmem:[#allocation2 + $0x61] sm:$0xff]
      %v1160 = vld [vmem:[#allocation2 + $0x69] sm:$0xff]
      %v1161 = vld [vmem:[#allocation2 + $0x71] sm:$0xff]
      %v1162 = vld [vmem:[#allocation2 + $0x79] sm:$0xff]
      %v1163 = vld [vmem:[#allocation2 + $0x81] sm:$0xff]
      %v1164 = vld [vmem:[#allocation2 + $0x89] sm:$0xff]
      %v1165 = vld [vmem:[#allocation2 + $0x91] sm:$0xff]
      %v1166 = vld [vmem:[#allocation2 + $0x99] sm:$0xff]
      %v1167 = vld [vmem:[#allocation2 + $0xa1] sm:$0xff]
      %v1168 = vld [vmem:[#allocation2 + $0xa9] sm:$0xff]
      %v1169 = vld [vmem:[#allocation2 + $0xb1] sm:$0xff]
      %v1170 = vld [vmem:[#allocation2 + $0xb9] sm:$0xff]
      %v1171 = vld [vmem:[#allocation2 + $0xc1] sm:$0xff]
      %v1172 = vld [vmem:[#allocation2 + $0xc9] sm:$0xff]
      %v1173 = vld [vmem:[#allocation2 + $0xd1] sm:$0xff]
      %v1174 = vld [vmem:[#allocation2 + $0xd9] sm:$0xff]
      %v1175 = vld [vmem:[#allocation2 + $0xe1] sm:$0xff]
      %v1176 = vld [vmem:[#allocation2 + $0xe9] sm:$0xff]
      %v1177 = vld [vmem:[#allocation2 + $0xf1] sm:$0xff]
      %v1178 = vld [vmem:[#allocation2 + $0xf9] sm:$0xff]
      %v1179 = vpack.c.bf16 %v1148, %v1147
      %v1180 = vpack.c.bf16 %v1150, %v1149
      %v1181 = vpack.c.bf16 %v1152, %v1151
      %v1182 = vpack.c.bf16 %v1154, %v1153
      %v1183 = vpack.c.bf16 %v1156, %v1155
      %v1184 = vpack.c.bf16 %v1158, %v1157
      %v1185 = vpack.c.bf16 %v1160, %v1159
      %v1186 = vpack.c.bf16 %v1162, %v1161
      %v1187 = vpack.c.bf16 %v1164, %v1163
      %v1188 = vpack.c.bf16 %v1166, %v1165
      %v1189 = vpack.c.bf16 %v1168, %v1167
      %v1190 = vpack.c.bf16 %v1170, %v1169
      %v1191 = vpack.c.bf16 %v1172, %v1171
      %v1192 = vpack.c.bf16 %v1174, %v1173
      %v1193 = vpack.c.bf16 %v1176, %v1175
      %v1194 = vpack.c.bf16 %v1178, %v1177
      %v1211 = vunpack.c.l.b16 %v1179
      %v1212 = vunpack.c.h.b16 %v1179
      %v1213 = vunpack.c.l.b16 %v1180
      %v1214 = vunpack.c.h.b16 %v1180
      %v1215 = vunpack.c.l.b16 %v1181
      %v1216 = vunpack.c.h.b16 %v1181
      %v1217 = vunpack.c.l.b16 %v1182
      %v1218 = vunpack.c.h.b16 %v1182
      %v1219 = vunpack.c.l.b16 %v1183
      %v1220 = vunpack.c.h.b16 %v1183
      %v1221 = vunpack.c.l.b16 %v1184
      %v1222 = vunpack.c.h.b16 %v1184
      %v1223 = vunpack.c.l.b16 %v1185
      %v1224 = vunpack.c.h.b16 %v1185
      %v1225 = vunpack.c.l.b16 %v1186
      %v1226 = vunpack.c.h.b16 %v1186
      %v1227 = vunpack.c.l.b16 %v1187
      %v1228 = vunpack.c.h.b16 %v1187
      %v1229 = vunpack.c.l.b16 %v1188
      %v1230 = vunpack.c.h.b16 %v1188
      %v1231 = vunpack.c.l.b16 %v1189
      %v1232 = vunpack.c.h.b16 %v1189
      %v1233 = vunpack.c.l.b16 %v1190
      %v1234 = vunpack.c.h.b16 %v1190
      %v1235 = vunpack.c.l.b16 %v1191
      %v1236 = vunpack.c.h.b16 %v1191
      %v1237 = vunpack.c.l.b16 %v1192
      %v1238 = vunpack.c.h.b16 %v1192
      %v1239 = vunpack.c.l.b16 %v1193
      %v1240 = vunpack.c.h.b16 %v1193
      %v1241 = vunpack.c.l.b16 %v1194
      %v1242 = vunpack.c.h.b16 %v1194
      %v1243 = vpack.c.b16 %v1211, %v1211
      %v1244 = vpack.c.b16 %v1212, %v1212
      %v1245 = vpack.c.b16 %v1213, %v1213
      %v1246 = vpack.c.b16 %v1214, %v1214
      %v1247 = vpack.c.b16 %v1215, %v1215
      %v1248 = vpack.c.b16 %v1216, %v1216
      %v1249 = vpack.c.b16 %v1217, %v1217
      %v1250 = vpack.c.b16 %v1218, %v1218
      %v1251 = vpack.c.b16 %v1219, %v1219
      %v1252 = vpack.c.b16 %v1220, %v1220
      %v1253 = vpack.c.b16 %v1221, %v1221
      %v1254 = vpack.c.b16 %v1222, %v1222
      %v1255 = vpack.c.b16 %v1223, %v1223
      %v1256 = vpack.c.b16 %v1224, %v1224
      %v1257 = vpack.c.b16 %v1225, %v1225
      %v1258 = vpack.c.b16 %v1226, %v1226
      %v1259 = vpack.c.b16 %v1227, %v1227
      %v1260 = vpack.c.b16 %v1228, %v1228
      %v1261 = vpack.c.b16 %v1229, %v1229
      %v1262 = vpack.c.b16 %v1230, %v1230
      %v1263 = vpack.c.b16 %v1231, %v1231
      %v1264 = vpack.c.b16 %v1232, %v1232
      %v1265 = vpack.c.b16 %v1233, %v1233
      %v1266 = vpack.c.b16 %v1234, %v1234
      %v1267 = vpack.c.b16 %v1235, %v1235
      %v1268 = vpack.c.b16 %v1236, %v1236
      %v1269 = vpack.c.b16 %v1237, %v1237
      %v1270 = vpack.c.b16 %v1238, %v1238
      %v1271 = vpack.c.b16 %v1239, %v1239
      %v1272 = vpack.c.b16 %v1240, %v1240
      %v1273 = vpack.c.b16 %v1241, %v1241
      %v1274 = vpack.c.b16 %v1242, %v1242
      %1275 = vrot.lane.b32.xlu0 %v1243, 8
      %v1276 = vpop.permute.xlu0 %1275
      %1277 = vrot.lane.b32.xlu0 %v1244, 8
      %v1278 = vpop.permute.xlu0 %1277
      %1279 = vrot.lane.b32.xlu0 %v1245, 8
      %v1280 = vpop.permute.xlu0 %1279
      %1281 = vrot.lane.b32.xlu0 %v1246, 8
      %v1282 = vpop.permute.xlu0 %1281
      %1283 = vrot.lane.b32.xlu0 %v1247, 8
      %v1284 = vpop.permute.xlu0 %1283
      %1285 = vrot.lane.b32.xlu0 %v1248, 8
      %v1286 = vpop.permute.xlu0 %1285
      %1287 = vrot.lane.b32.xlu0 %v1249, 8
      %v1288 = vpop.permute.xlu0 %1287
      %1289 = vrot.lane.b32.xlu0 %v1250, 8
      %v1290 = vpop.permute.xlu0 %1289
      %1291 = vrot.lane.b32.xlu0 %v1251, 8
      %v1292 = vpop.permute.xlu0 %1291
      %1293 = vrot.lane.b32.xlu0 %v1252, 8
      %v1294 = vpop.permute.xlu0 %1293
      %1295 = vrot.lane.b32.xlu0 %v1253, 8
      %v1296 = vpop.permute.xlu0 %1295
      %1297 = vrot.lane.b32.xlu0 %v1254, 8
      %v1298 = vpop.permute.xlu0 %1297
      %1299 = vrot.lane.b32.xlu0 %v1255, 8
      %v1300 = vpop.permute.xlu0 %1299
      %1301 = vrot.lane.b32.xlu0 %v1256, 8
      %v1302 = vpop.permute.xlu0 %1301
      %1303 = vrot.lane.b32.xlu0 %v1257, 8
      %v1304 = vpop.permute.xlu0 %1303
      %1305 = vrot.lane.b32.xlu0 %v1258, 8
      %v1306 = vpop.permute.xlu0 %1305
      %1307 = vrot.lane.b32.xlu0 %v1259, 8
      %v1308 = vpop.permute.xlu0 %1307
      %1309 = vrot.lane.b32.xlu0 %v1260, 8
      %v1310 = vpop.permute.xlu0 %1309
      %1311 = vrot.lane.b32.xlu0 %v1261, 8
      %v1312 = vpop.permute.xlu0 %1311
      %1313 = vrot.lane.b32.xlu0 %v1262, 8
      %v1314 = vpop.permute.xlu0 %1313
      %1315 = vrot.lane.b32.xlu0 %v1263, 8
      %v1316 = vpop.permute.xlu0 %1315
      %1317 = vrot.lane.b32.xlu0 %v1264, 8
      %v1318 = vpop.permute.xlu0 %1317
      %1319 = vrot.lane.b32.xlu0 %v1265, 8
      %v1320 = vpop.permute.xlu0 %1319
      %1321 = vrot.lane.b32.xlu0 %v1266, 8
      %v1322 = vpop.permute.xlu0 %1321
      %1323 = vrot.lane.b32.xlu0 %v1267, 8
      %v1324 = vpop.permute.xlu0 %1323
      %1325 = vrot.lane.b32.xlu0 %v1268, 8
      %v1326 = vpop.permute.xlu0 %1325
      %1327 = vrot.lane.b32.xlu0 %v1269, 8
      %v1328 = vpop.permute.xlu0 %1327
      %1329 = vrot.lane.b32.xlu0 %v1270, 8
      %v1330 = vpop.permute.xlu0 %1329
      %1331 = vrot.lane.b32.xlu0 %v1271, 8
      %v1332 = vpop.permute.xlu0 %1331
      %1333 = vrot.lane.b32.xlu0 %v1272, 8
      %v1334 = vpop.permute.xlu0 %1333
      %1335 = vrot.lane.b32.xlu0 %v1273, 8
      %v1336 = vpop.permute.xlu0 %1335
      %1337 = vrot.lane.b32.xlu0 %v1274, 8
      %v1338 = vpop.permute.xlu0 %1337
      %vm1371 = vcmask 126016
      %1372 = vst.msk [vmem:[#allocation3] sm:$0xf] %vm1371, %v1276
      %1373 = vst.msk [vmem:[#allocation3 + $0x4] sm:$0xf] %vm1371, %v1278
      %1374 = vst.msk [vmem:[#allocation3 + $0x8] sm:$0xf] %vm1371, %v1280
      %1375 = vst.msk [vmem:[#allocation3 + $0xc] sm:$0xf] %vm1371, %v1282
      %1376 = vst.msk [vmem:[#allocation3 + $0x10] sm:$0xf] %vm1371, %v1284
      %1377 = vst.msk [vmem:[#allocation3 + $0x14] sm:$0xf] %vm1371, %v1286
      %1378 = vst.msk [vmem:[#allocation3 + $0x18] sm:$0xf] %vm1371, %v1288
      %1379 = vst.msk [vmem:[#allocation3 + $0x1c] sm:$0xf] %vm1371, %v1290
      %1380 = vst.msk [vmem:[#allocation3 + $0x20] sm:$0xf] %vm1371, %v1292
      %1381 = vst.msk [vmem:[#allocation3 + $0x24] sm:$0xf] %vm1371, %v1294
      %1382 = vst.msk [vmem:[#allocation3 + $0x28] sm:$0xf] %vm1371, %v1296
      %1383 = vst.msk [vmem:[#allocation3 + $0x2c] sm:$0xf] %vm1371, %v1298
      %1384 = vst.msk [vmem:[#allocation3 + $0x30] sm:$0xf] %vm1371, %v1300
      %1385 = vst.msk [vmem:[#allocation3 + $0x34] sm:$0xf] %vm1371, %v1302
      %1386 = vst.msk [vmem:[#allocation3 + $0x38] sm:$0xf] %vm1371, %v1304
      %1387 = vst.msk [vmem:[#allocation3 + $0x3c] sm:$0xf] %vm1371, %v1306
      %1388 = vst.msk [vmem:[#allocation3 + $0x40] sm:$0xf] %vm1371, %v1308
      %1389 = vst.msk [vmem:[#allocation3 + $0x44] sm:$0xf] %vm1371, %v1310
      %1390 = vst.msk [vmem:[#allocation3 + $0x48] sm:$0xf] %vm1371, %v1312
      %1391 = vst.msk [vmem:[#allocation3 + $0x4c] sm:$0xf] %vm1371, %v1314
      %1392 = vst.msk [vmem:[#allocation3 + $0x50] sm:$0xf] %vm1371, %v1316
      %1393 = vst.msk [vmem:[#allocation3 + $0x54] sm:$0xf] %vm1371, %v1318
      %1394 = vst.msk [vmem:[#allocation3 + $0x58] sm:$0xf] %vm1371, %v1320
      %1395 = vst.msk [vmem:[#allocation3 + $0x5c] sm:$0xf] %vm1371, %v1322
      %1396 = vst.msk [vmem:[#allocation3 + $0x60] sm:$0xf] %vm1371, %v1324
      %1397 = vst.msk [vmem:[#allocation3 + $0x64] sm:$0xf] %vm1371, %v1326
      %1398 = vst.msk [vmem:[#allocation3 + $0x68] sm:$0xf] %vm1371, %v1328
      %1399 = vst.msk [vmem:[#allocation3 + $0x6c] sm:$0xf] %vm1371, %v1330
      %1400 = vst.msk [vmem:[#allocation3 + $0x70] sm:$0xf] %vm1371, %v1332
      %1401 = vst.msk [vmem:[#allocation3 + $0x74] sm:$0xf] %vm1371, %v1334
      %1402 = vst.msk [vmem:[#allocation3 + $0x78] sm:$0xf] %vm1371, %v1336
      %1403 = vst.msk [vmem:[#allocation3 + $0x7c] sm:$0xf] %vm1371, %v1338
      %v1404 = vld [vmem:[#allocation2 + $0x2] sm:$0xff]
      %v1405 = vld [vmem:[#allocation2 + $0xa] sm:$0xff]
      %v1406 = vld [vmem:[#allocation2 + $0x12] sm:$0xff]
      %v1407 = vld [vmem:[#allocation2 + $0x1a] sm:$0xff]
      %v1408 = vld [vmem:[#allocation2 + $0x22] sm:$0xff]
      %v1409 = vld [vmem:[#allocation2 + $0x2a] sm:$0xff]
      %v1410 = vld [vmem:[#allocation2 + $0x32] sm:$0xff]
      %v1411 = vld [vmem:[#allocation2 + $0x3a] sm:$0xff]
      %v1412 = vld [vmem:[#allocation2 + $0x42] sm:$0xff]
      %v1413 = vld [vmem:[#allocation2 + $0x4a] sm:$0xff]
      %v1414 = vld [vmem:[#allocation2 + $0x52] sm:$0xff]
      %v1415 = vld [vmem:[#allocation2 + $0x5a] sm:$0xff]
      %v1416 = vld [vmem:[#allocation2 + $0x62] sm:$0xff]
      %v1417 = vld [vmem:[#allocation2 + $0x6a] sm:$0xff]
      %v1418 = vld [vmem:[#allocation2 + $0x72] sm:$0xff]
      %v1419 = vld [vmem:[#allocation2 + $0x7a] sm:$0xff]
      %v1420 = vld [vmem:[#allocation2 + $0x82] sm:$0xff]
      %v1421 = vld [vmem:[#allocation2 + $0x8a] sm:$0xff]
      %v1422 = vld [vmem:[#allocation2 + $0x92] sm:$0xff]
      %v1423 = vld [vmem:[#allocation2 + $0x9a] sm:$0xff]
      %v1424 = vld [vmem:[#allocation2 + $0xa2] sm:$0xff]
      %v1425 = vld [vmem:[#allocation2 + $0xaa] sm:$0xff]
      %v1426 = vld [vmem:[#allocation2 + $0xb2] sm:$0xff]
      %v1427 = vld [vmem:[#allocation2 + $0xba] sm:$0xff]
      %v1428 = vld [vmem:[#allocation2 + $0xc2] sm:$0xff]
      %v1429 = vld [vmem:[#allocation2 + $0xca] sm:$0xff]
      %v1430 = vld [vmem:[#allocation2 + $0xd2] sm:$0xff]
      %v1431 = vld [vmem:[#allocation2 + $0xda] sm:$0xff]
      %v1432 = vld [vmem:[#allocation2 + $0xe2] sm:$0xff]
      %v1433 = vld [vmem:[#allocation2 + $0xea] sm:$0xff]
      %v1434 = vld [vmem:[#allocation2 + $0xf2] sm:$0xff]
      %v1435 = vld [vmem:[#allocation2 + $0xfa] sm:$0xff]
      %v1436 = vsel %vm826, 1, 0
      %v1437 = vsel %vm827, 1, 0
      %v1438 = vsel %vm828, 1, 0
      %v1439 = vsel %vm829, 1, 0
      %v1440 = vsel %vm830, 1, 0
      %v1441 = vsel %vm831, 1, 0
      %v1442 = vsel %vm832, 1, 0
      %v1443 = vsel %vm833, 1, 0
      %v1444 = vsel %vm834, 1, 0
      %v1445 = vsel %vm835, 1, 0
      %v1446 = vsel %vm836, 1, 0
      %v1447 = vsel %vm837, 1, 0
      %v1448 = vsel %vm838, 1, 0
      %v1449 = vsel %vm839, 1, 0
      %v1450 = vsel %vm840, 1, 0
      %v1451 = vsel %vm841, 1, 0
      %v1452 = vsel %vm842, 1, 0
      %v1453 = vsel %vm843, 1, 0
      %v1454 = vsel %vm844, 1, 0
      %v1455 = vsel %vm845, 1, 0
      %v1456 = vsel %vm846, 1, 0
      %v1457 = vsel %vm847, 1, 0
      %v1458 = vsel %vm848, 1, 0
      %v1459 = vsel %vm849, 1, 0
      %v1460 = vsel %vm850, 1, 0
      %v1461 = vsel %vm851, 1, 0
      %v1462 = vsel %vm852, 1, 0
      %v1463 = vsel %vm853, 1, 0
      %v1464 = vsel %vm854, 1, 0
      %v1465 = vsel %vm855, 1, 0
      %v1466 = vsel %vm856, 1, 0
      %v1467 = vsel %vm857, 1, 0
      %vm1468 = vcmp.eq.s32.totalorder %v1436, 1
      %vm1469 = vcmp.eq.s32.totalorder %v1437, 1
      %vm1470 = vcmp.eq.s32.totalorder %v1438, 1
      %vm1471 = vcmp.eq.s32.totalorder %v1439, 1
      %vm1472 = vcmp.eq.s32.totalorder %v1440, 1
      %vm1473 = vcmp.eq.s32.totalorder %v1441, 1
      %vm1474 = vcmp.eq.s32.totalorder %v1442, 1
      %vm1475 = vcmp.eq.s32.totalorder %v1443, 1
      %vm1476 = vcmp.eq.s32.totalorder %v1444, 1
      %vm1477 = vcmp.eq.s32.totalorder %v1445, 1
      %vm1478 = vcmp.eq.s32.totalorder %v1446, 1
      %vm1479 = vcmp.eq.s32.totalorder %v1447, 1
      %vm1480 = vcmp.eq.s32.totalorder %v1448, 1
      %vm1481 = vcmp.eq.s32.totalorder %v1449, 1
      %vm1482 = vcmp.eq.s32.totalorder %v1450, 1
      %vm1483 = vcmp.eq.s32.totalorder %v1451, 1
      %vm1484 = vcmp.eq.s32.totalorder %v1452, 1
      %vm1485 = vcmp.eq.s32.totalorder %v1453, 1
      %vm1486 = vcmp.eq.s32.totalorder %v1454, 1
      %vm1487 = vcmp.eq.s32.totalorder %v1455, 1
      %vm1488 = vcmp.eq.s32.totalorder %v1456, 1
      %vm1489 = vcmp.eq.s32.totalorder %v1457, 1
      %vm1490 = vcmp.eq.s32.totalorder %v1458, 1
      %vm1491 = vcmp.eq.s32.totalorder %v1459, 1
      %vm1492 = vcmp.eq.s32.totalorder %v1460, 1
      %vm1493 = vcmp.eq.s32.totalorder %v1461, 1
      %vm1494 = vcmp.eq.s32.totalorder %v1462, 1
      %vm1495 = vcmp.eq.s32.totalorder %v1463, 1
      %vm1496 = vcmp.eq.s32.totalorder %v1464, 1
      %vm1497 = vcmp.eq.s32.totalorder %v1465, 1
      %vm1498 = vcmp.eq.s32.totalorder %v1466, 1
      %vm1499 = vcmp.eq.s32.totalorder %v1467, 1
      %v1500 = vsel %vm1468, %v1404, 0.0
      %v1501 = vsel %vm1469, %v1405, 0.0
      %v1502 = vsel %vm1470, %v1406, 0.0
      %v1503 = vsel %vm1471, %v1407, 0.0
      %v1504 = vsel %vm1472, %v1408, 0.0
      %v1505 = vsel %vm1473, %v1409, 0.0
      %v1506 = vsel %vm1474, %v1410, 0.0
      %v1507 = vsel %vm1475, %v1411, 0.0
      %v1508 = vsel %vm1476, %v1412, 0.0
      %v1509 = vsel %vm1477, %v1413, 0.0
      %v1510 = vsel %vm1478, %v1414, 0.0
      %v1511 = vsel %vm1479, %v1415, 0.0
      %v1512 = vsel %vm1480, %v1416, 0.0
      %v1513 = vsel %vm1481, %v1417, 0.0
      %v1514 = vsel %vm1482, %v1418, 0.0
      %v1515 = vsel %vm1483, %v1419, 0.0
      %v1516 = vsel %vm1484, %v1420, 0.0
      %v1517 = vsel %vm1485, %v1421, 0.0
      %v1518 = vsel %vm1486, %v1422, 0.0
      %v1519 = vsel %vm1487, %v1423, 0.0
      %v1520 = vsel %vm1488, %v1424, 0.0
      %v1521 = vsel %vm1489, %v1425, 0.0
      %v1522 = vsel %vm1490, %v1426, 0.0
      %v1523 = vsel %vm1491, %v1427, 0.0
      %v1524 = vsel %vm1492, %v1428, 0.0
      %v1525 = vsel %vm1493, %v1429, 0.0
      %v1526 = vsel %vm1494, %v1430, 0.0
      %v1527 = vsel %vm1495, %v1431, 0.0
      %v1528 = vsel %vm1496, %v1432, 0.0
      %v1529 = vsel %vm1497, %v1433, 0.0
      %v1530 = vsel %vm1498, %v1434, 0.0
      %v1531 = vsel %vm1499, %v1435, 0.0
      %v1532 = vpack.c.bf16 %v1501, %v1500
      %v1533 = vpack.c.bf16 %v1503, %v1502
      %v1534 = vpack.c.bf16 %v1505, %v1504
      %v1535 = vpack.c.bf16 %v1507, %v1506
      %v1536 = vpack.c.bf16 %v1509, %v1508
      %v1537 = vpack.c.bf16 %v1511, %v1510
      %v1538 = vpack.c.bf16 %v1513, %v1512
      %v1539 = vpack.c.bf16 %v1515, %v1514
      %v1540 = vpack.c.bf16 %v1517, %v1516
      %v1541 = vpack.c.bf16 %v1519, %v1518
      %v1542 = vpack.c.bf16 %v1521, %v1520
      %v1543 = vpack.c.bf16 %v1523, %v1522
      %v1544 = vpack.c.bf16 %v1525, %v1524
      %v1545 = vpack.c.bf16 %v1527, %v1526
      %v1546 = vpack.c.bf16 %v1529, %v1528
      %v1547 = vpack.c.bf16 %v1531, %v1530
      %v1564 = vunpack.c.l.b16 %v1532
      %v1565 = vunpack.c.h.b16 %v1532
      %v1566 = vunpack.c.l.b16 %v1533
      %v1567 = vunpack.c.h.b16 %v1533
      %v1568 = vunpack.c.l.b16 %v1534
      %v1569 = vunpack.c.h.b16 %v1534
      %v1570 = vunpack.c.l.b16 %v1535
      %v1571 = vunpack.c.h.b16 %v1535
      %v1572 = vunpack.c.l.b16 %v1536
      %v1573 = vunpack.c.h.b16 %v1536
      %v1574 = vunpack.c.l.b16 %v1537
      %v1575 = vunpack.c.h.b16 %v1537
      %v1576 = vunpack.c.l.b16 %v1538
      %v1577 = vunpack.c.h.b16 %v1538
      %v1578 = vunpack.c.l.b16 %v1539
      %v1579 = vunpack.c.h.b16 %v1539
      %v1580 = vunpack.c.l.b16 %v1540
      %v1581 = vunpack.c.h.b16 %v1540
      %v1582 = vunpack.c.l.b16 %v1541
      %v1583 = vunpack.c.h.b16 %v1541
      %v1584 = vunpack.c.l.b16 %v1542
      %v1585 = vunpack.c.h.b16 %v1542
      %v1586 = vunpack.c.l.b16 %v1543
      %v1587 = vunpack.c.h.b16 %v1543
      %v1588 = vunpack.c.l.b16 %v1544
      %v1589 = vunpack.c.h.b16 %v1544
      %v1590 = vunpack.c.l.b16 %v1545
      %v1591 = vunpack.c.h.b16 %v1545
      %v1592 = vunpack.c.l.b16 %v1546
      %v1593 = vunpack.c.h.b16 %v1546
      %v1594 = vunpack.c.l.b16 %v1547
      %v1595 = vunpack.c.h.b16 %v1547
      %v1596 = vpack.c.b16 %v1564, %v1564
      %v1597 = vpack.c.b16 %v1565, %v1565
      %v1598 = vpack.c.b16 %v1566, %v1566
      %v1599 = vpack.c.b16 %v1567, %v1567
      %v1600 = vpack.c.b16 %v1568, %v1568
      %v1601 = vpack.c.b16 %v1569, %v1569
      %v1602 = vpack.c.b16 %v1570, %v1570
      %v1603 = vpack.c.b16 %v1571, %v1571
      %v1604 = vpack.c.b16 %v1572, %v1572
      %v1605 = vpack.c.b16 %v1573, %v1573
      %v1606 = vpack.c.b16 %v1574, %v1574
      %v1607 = vpack.c.b16 %v1575, %v1575
      %v1608 = vpack.c.b16 %v1576, %v1576
      %v1609 = vpack.c.b16 %v1577, %v1577
      %v1610 = vpack.c.b16 %v1578, %v1578
      %v1611 = vpack.c.b16 %v1579, %v1579
      %v1612 = vpack.c.b16 %v1580, %v1580
      %v1613 = vpack.c.b16 %v1581, %v1581
      %v1614 = vpack.c.b16 %v1582, %v1582
      %v1615 = vpack.c.b16 %v1583, %v1583
      %v1616 = vpack.c.b16 %v1584, %v1584
      %v1617 = vpack.c.b16 %v1585, %v1585
      %v1618 = vpack.c.b16 %v1586, %v1586
      %v1619 = vpack.c.b16 %v1587, %v1587
      %v1620 = vpack.c.b16 %v1588, %v1588
      %v1621 = vpack.c.b16 %v1589, %v1589
      %v1622 = vpack.c.b16 %v1590, %v1590
      %v1623 = vpack.c.b16 %v1591, %v1591
      %v1624 = vpack.c.b16 %v1592, %v1592
      %v1625 = vpack.c.b16 %v1593, %v1593
      %v1626 = vpack.c.b16 %v1594, %v1594
      %v1627 = vpack.c.b16 %v1595, %v1595
      %1628 = vrot.lane.b32.xlu0 %v1596, 16
      %v1629 = vpop.permute.xlu0 %1628
      %1630 = vrot.lane.b32.xlu0 %v1597, 16
      %v1631 = vpop.permute.xlu0 %1630
      %1632 = vrot.lane.b32.xlu0 %v1598, 16
      %v1633 = vpop.permute.xlu0 %1632
      %1634 = vrot.lane.b32.xlu0 %v1599, 16
      %v1635 = vpop.permute.xlu0 %1634
      %1636 = vrot.lane.b32.xlu0 %v1600, 16
      %v1637 = vpop.permute.xlu0 %1636
      %1638 = vrot.lane.b32.xlu0 %v1601, 16
      %v1639 = vpop.permute.xlu0 %1638
      %1640 = vrot.lane.b32.xlu0 %v1602, 16
      %v1641 = vpop.permute.xlu0 %1640
      %1642 = vrot.lane.b32.xlu0 %v1603, 16
      %v1643 = vpop.permute.xlu0 %1642
      %1644 = vrot.lane.b32.xlu0 %v1604, 16
      %v1645 = vpop.permute.xlu0 %1644
      %1646 = vrot.lane.b32.xlu0 %v1605, 16
      %v1647 = vpop.permute.xlu0 %1646
      %1648 = vrot.lane.b32.xlu0 %v1606, 16
      %v1649 = vpop.permute.xlu0 %1648
      %1650 = vrot.lane.b32.xlu0 %v1607, 16
      %v1651 = vpop.permute.xlu0 %1650
      %1652 = vrot.lane.b32.xlu0 %v1608, 16
      %v1653 = vpop.permute.xlu0 %1652
      %1654 = vrot.lane.b32.xlu0 %v1609, 16
      %v1655 = vpop.permute.xlu0 %1654
      %1656 = vrot.lane.b32.xlu0 %v1610, 16
      %v1657 = vpop.permute.xlu0 %1656
      %1658 = vrot.lane.b32.xlu0 %v1611, 16
      %v1659 = vpop.permute.xlu0 %1658
      %1660 = vrot.lane.b32.xlu0 %v1612, 16
      %v1661 = vpop.permute.xlu0 %1660
      %1662 = vrot.lane.b32.xlu0 %v1613, 16
      %v1663 = vpop.permute.xlu0 %1662
      %1664 = vrot.lane.b32.xlu0 %v1614, 16
      %v1665 = vpop.permute.xlu0 %1664
      %1666 = vrot.lane.b32.xlu0 %v1615, 16
      %v1667 = vpop.permute.xlu0 %1666
      %1668 = vrot.lane.b32.xlu0 %v1616, 16
      %v1669 = vpop.permute.xlu0 %1668
      %1670 = vrot.lane.b32.xlu0 %v1617, 16
      %v1671 = vpop.permute.xlu0 %1670
      %1672 = vrot.lane.b32.xlu0 %v1618, 16
      %v1673 = vpop.permute.xlu0 %1672
      %1674 = vrot.lane.b32.xlu0 %v1619, 16
      %v1675 = vpop.permute.xlu0 %1674
      %1676 = vrot.lane.b32.xlu0 %v1620, 16
      %v1677 = vpop.permute.xlu0 %1676
      %1678 = vrot.lane.b32.xlu0 %v1621, 16
      %v1679 = vpop.permute.xlu0 %1678
      %1680 = vrot.lane.b32.xlu0 %v1622, 16
      %v1681 = vpop.permute.xlu0 %1680
      %1682 = vrot.lane.b32.xlu0 %v1623, 16
      %v1683 = vpop.permute.xlu0 %1682
      %1684 = vrot.lane.b32.xlu0 %v1624, 16
      %v1685 = vpop.permute.xlu0 %1684
      %1686 = vrot.lane.b32.xlu0 %v1625, 16
      %v1687 = vpop.permute.xlu0 %1686
      %1688 = vrot.lane.b32.xlu0 %v1626, 16
      %v1689 = vpop.permute.xlu0 %1688
      %1690 = vrot.lane.b32.xlu0 %v1627, 16
      %v1691 = vpop.permute.xlu0 %1690
      %vm1724 = vcmask 191616
      %1725 = vst.msk [vmem:[#allocation3] sm:$0xf] %vm1724, %v1629
      %1726 = vst.msk [vmem:[#allocation3 + $0x4] sm:$0xf] %vm1724, %v1631
      %1727 = vst.msk [vmem:[#allocation3 + $0x8] sm:$0xf] %vm1724, %v1633
      %1728 = vst.msk [vmem:[#allocation3 + $0xc] sm:$0xf] %vm1724, %v1635
      %1729 = vst.msk [vmem:[#allocation3 + $0x10] sm:$0xf] %vm1724, %v1637
      %1730 = vst.msk [vmem:[#allocation3 + $0x14] sm:$0xf] %vm1724, %v1639
      %1731 = vst.msk [vmem:[#allocation3 + $0x18] sm:$0xf] %vm1724, %v1641
      %1732 = vst.msk [vmem:[#allocation3 + $0x1c] sm:$0xf] %vm1724, %v1643
      %1733 = vst.msk [vmem:[#allocation3 + $0x20] sm:$0xf] %vm1724, %v1645
      %1734 = vst.msk [vmem:[#allocation3 + $0x24] sm:$0xf] %vm1724, %v1647
      %1735 = vst.msk [vmem:[#allocation3 + $0x28] sm:$0xf] %vm1724, %v1649
      %1736 = vst.msk [vmem:[#allocation3 + $0x2c] sm:$0xf] %vm1724, %v1651
      %1737 = vst.msk [vmem:[#allocation3 + $0x30] sm:$0xf] %vm1724, %v1653
      %1738 = vst.msk [vmem:[#allocation3 + $0x34] sm:$0xf] %vm1724, %v1655
      %1739 = vst.msk [vmem:[#allocation3 + $0x38] sm:$0xf] %vm1724, %v1657
      %1740 = vst.msk [vmem:[#allocation3 + $0x3c] sm:$0xf] %vm1724, %v1659
      %1741 = vst.msk [vmem:[#allocation3 + $0x40] sm:$0xf] %vm1724, %v1661
      %1742 = vst.msk [vmem:[#allocation3 + $0x44] sm:$0xf] %vm1724, %v1663
      %1743 = vst.msk [vmem:[#allocation3 + $0x48] sm:$0xf] %vm1724, %v1665
      %1744 = vst.msk [vmem:[#allocation3 + $0x4c] sm:$0xf] %vm1724, %v1667
      %1745 = vst.msk [vmem:[#allocation3 + $0x50] sm:$0xf] %vm1724, %v1669
      %1746 = vst.msk [vmem:[#allocation3 + $0x54] sm:$0xf] %vm1724, %v1671
      %1747 = vst.msk [vmem:[#allocation3 + $0x58] sm:$0xf] %vm1724, %v1673
      %1748 = vst.msk [vmem:[#allocation3 + $0x5c] sm:$0xf] %vm1724, %v1675
      %1749 = vst.msk [vmem:[#allocation3 + $0x60] sm:$0xf] %vm1724, %v1677
      %1750 = vst.msk [vmem:[#allocation3 + $0x64] sm:$0xf] %vm1724, %v1679
      %1751 = vst.msk [vmem:[#allocation3 + $0x68] sm:$0xf] %vm1724, %v1681
      %1752 = vst.msk [vmem:[#allocation3 + $0x6c] sm:$0xf] %vm1724, %v1683
      %1753 = vst.msk [vmem:[#allocation3 + $0x70] sm:$0xf] %vm1724, %v1685
      %1754 = vst.msk [vmem:[#allocation3 + $0x74] sm:$0xf] %vm1724, %v1687
      %1755 = vst.msk [vmem:[#allocation3 + $0x78] sm:$0xf] %vm1724, %v1689
      %1756 = vst.msk [vmem:[#allocation3 + $0x7c] sm:$0xf] %vm1724, %v1691
      %v1757 = vld [vmem:[#allocation2 + $0x10] sm:$0xff]
      %v1758 = vld [vmem:[#allocation2 + $0x18] sm:$0xff]
      %v1759 = vld [vmem:[#allocation2 + $0x20] sm:$0xff]
      %v1760 = vld [vmem:[#allocation2 + $0x28] sm:$0xff]
      %v1761 = vld [vmem:[#allocation2 + $0x30] sm:$0xff]
      %v1762 = vld [vmem:[#allocation2 + $0x38] sm:$0xff]
      %v1763 = vld [vmem:[#allocation2 + $0x40] sm:$0xff]
      %v1764 = vld [vmem:[#allocation2 + $0x48] sm:$0xff]
      %v1765 = vld [vmem:[#allocation2 + $0x50] sm:$0xff]
      %v1766 = vld [vmem:[#allocation2 + $0x58] sm:$0xff]
      %v1767 = vld [vmem:[#allocation2 + $0x60] sm:$0xff]
      %v1768 = vld [vmem:[#allocation2 + $0x68] sm:$0xff]
      %v1769 = vld [vmem:[#allocation2 + $0x70] sm:$0xff]
      %v1770 = vld [vmem:[#allocation2 + $0x78] sm:$0xff]
      %v1771 = vld [vmem:[#allocation2 + $0x80] sm:$0xff]
      %v1772 = vld [vmem:[#allocation2 + $0x88] sm:$0xff]
      %v1773 = vld [vmem:[#allocation2 + $0x90] sm:$0xff]
      %v1774 = vld [vmem:[#allocation2 + $0x98] sm:$0xff]
      %v1775 = vld [vmem:[#allocation2 + $0xa0] sm:$0xff]
      %v1776 = vld [vmem:[#allocation2 + $0xa8] sm:$0xff]
      %v1777 = vld [vmem:[#allocation2 + $0xb0] sm:$0xff]
      %v1778 = vld [vmem:[#allocation2 + $0xb8] sm:$0xff]
      %v1779 = vld [vmem:[#allocation2 + $0xc0] sm:$0xff]
      %v1780 = vld [vmem:[#allocation2 + $0xc8] sm:$0xff]
      %v1781 = vld [vmem:[#allocation2 + $0xd0] sm:$0xff]
      %v1782 = vld [vmem:[#allocation2 + $0xd8] sm:$0xff]
      %v1783 = vld [vmem:[#allocation2 + $0xe0] sm:$0xff]
      %v1784 = vld [vmem:[#allocation2 + $0xe8] sm:$0xff]
      %v1785 = vld [vmem:[#allocation2 + $0xf0] sm:$0xff]
      %v1786 = vld [vmem:[#allocation2 + $0xf8] sm:$0xff]
      %v1787 = vld [vmem:[#allocation2 + $0x100] sm:$0xff]
      %v1788 = vld [vmem:[#allocation2 + $0x108] sm:$0xff]
      %v1789 = vsel %vm922, %v1757, 0.0
      %v1790 = vsel %vm923, %v1758, 0.0
      %v1791 = vsel %vm924, %v1759, 0.0
      %v1792 = vsel %vm925, %v1760, 0.0
      %v1793 = vsel %vm926, %v1761, 0.0
      %v1794 = vsel %vm927, %v1762, 0.0
      %v1795 = vsel %vm928, %v1763, 0.0
      %v1796 = vsel %vm929, %v1764, 0.0
      %v1797 = vsel %vm930, %v1765, 0.0
      %v1798 = vsel %vm931, %v1766, 0.0
      %v1799 = vsel %vm932, %v1767, 0.0
      %v1800 = vsel %vm933, %v1768, 0.0
      %v1801 = vsel %vm934, %v1769, 0.0
      %v1802 = vsel %vm935, %v1770, 0.0
      %v1803 = vsel %vm936, %v1771, 0.0
      %v1804 = vsel %vm937, %v1772, 0.0
      %v1805 = vsel %vm938, %v1773, 0.0
      %v1806 = vsel %vm939, %v1774, 0.0
      %v1807 = vsel %vm940, %v1775, 0.0
      %v1808 = vsel %vm941, %v1776, 0.0
      %v1809 = vsel %vm942, %v1777, 0.0
      %v1810 = vsel %vm943, %v1778, 0.0
      %v1811 = vsel %vm944, %v1779, 0.0
      %v1812 = vsel %vm945, %v1780, 0.0
      %v1813 = vsel %vm946, %v1781, 0.0
      %v1814 = vsel %vm947, %v1782, 0.0
      %v1815 = vsel %vm948, %v1783, 0.0
      %v1816 = vsel %vm949, %v1784, 0.0
      %v1817 = vsel %vm950, %v1785, 0.0
      %v1818 = vsel %vm951, %v1786, 0.0
      %v1819 = vsel %vm952, %v1787, 0.0
      %v1820 = vsel %vm953, %v1788, 0.0
      %v1821 = vpack.c.bf16 %v1790, %v1789
      %v1822 = vpack.c.bf16 %v1792, %v1791
      %v1823 = vpack.c.bf16 %v1794, %v1793
      %v1824 = vpack.c.bf16 %v1796, %v1795
      %v1825 = vpack.c.bf16 %v1798, %v1797
      %v1826 = vpack.c.bf16 %v1800, %v1799
      %v1827 = vpack.c.bf16 %v1802, %v1801
      %v1828 = vpack.c.bf16 %v1804, %v1803
      %v1829 = vpack.c.bf16 %v1806, %v1805
      %v1830 = vpack.c.bf16 %v1808, %v1807
      %v1831 = vpack.c.bf16 %v1810, %v1809
      %v1832 = vpack.c.bf16 %v1812, %v1811
      %v1833 = vpack.c.bf16 %v1814, %v1813
      %v1834 = vpack.c.bf16 %v1816, %v1815
      %v1835 = vpack.c.bf16 %v1818, %v1817
      %v1836 = vpack.c.bf16 %v1820, %v1819
      %v1853 = vunpack.c.l.b16 %v1821
      %v1854 = vunpack.c.h.b16 %v1821
      %v1855 = vunpack.c.l.b16 %v1822
      %v1856 = vunpack.c.h.b16 %v1822
      %v1857 = vunpack.c.l.b16 %v1823
      %v1858 = vunpack.c.h.b16 %v1823
      %v1859 = vunpack.c.l.b16 %v1824
      %v1860 = vunpack.c.h.b16 %v1824
      %v1861 = vunpack.c.l.b16 %v1825
      %v1862 = vunpack.c.h.b16 %v1825
      %v1863 = vunpack.c.l.b16 %v1826
      %v1864 = vunpack.c.h.b16 %v1826
      %v1865 = vunpack.c.l.b16 %v1827
      %v1866 = vunpack.c.h.b16 %v1827
      %v1867 = vunpack.c.l.b16 %v1828
      %v1868 = vunpack.c.h.b16 %v1828
      %v1869 = vunpack.c.l.b16 %v1829
      %v1870 = vunpack.c.h.b16 %v1829
      %v1871 = vunpack.c.l.b16 %v1830
      %v1872 = vunpack.c.h.b16 %v1830
      %v1873 = vunpack.c.l.b16 %v1831
      %v1874 = vunpack.c.h.b16 %v1831
      %v1875 = vunpack.c.l.b16 %v1832
      %v1876 = vunpack.c.h.b16 %v1832
      %v1877 = vunpack.c.l.b16 %v1833
      %v1878 = vunpack.c.h.b16 %v1833
      %v1879 = vunpack.c.l.b16 %v1834
      %v1880 = vunpack.c.h.b16 %v1834
      %v1881 = vunpack.c.l.b16 %v1835
      %v1882 = vunpack.c.h.b16 %v1835
      %v1883 = vunpack.c.l.b16 %v1836
      %v1884 = vunpack.c.h.b16 %v1836
      %v1885 = vpack.c.b16 %v1853, %v1853
      %v1886 = vpack.c.b16 %v1854, %v1854
      %v1887 = vpack.c.b16 %v1855, %v1855
      %v1888 = vpack.c.b16 %v1856, %v1856
      %v1889 = vpack.c.b16 %v1857, %v1857
      %v1890 = vpack.c.b16 %v1858, %v1858
      %v1891 = vpack.c.b16 %v1859, %v1859
      %v1892 = vpack.c.b16 %v1860, %v1860
      %v1893 = vpack.c.b16 %v1861, %v1861
      %v1894 = vpack.c.b16 %v1862, %v1862
      %v1895 = vpack.c.b16 %v1863, %v1863
      %v1896 = vpack.c.b16 %v1864, %v1864
      %v1897 = vpack.c.b16 %v1865, %v1865
      %v1898 = vpack.c.b16 %v1866, %v1866
      %v1899 = vpack.c.b16 %v1867, %v1867
      %v1900 = vpack.c.b16 %v1868, %v1868
      %v1901 = vpack.c.b16 %v1869, %v1869
      %v1902 = vpack.c.b16 %v1870, %v1870
      %v1903 = vpack.c.b16 %v1871, %v1871
      %v1904 = vpack.c.b16 %v1872, %v1872
      %v1905 = vpack.c.b16 %v1873, %v1873
      %v1906 = vpack.c.b16 %v1874, %v1874
      %v1907 = vpack.c.b16 %v1875, %v1875
      %v1908 = vpack.c.b16 %v1876, %v1876
      %v1909 = vpack.c.b16 %v1877, %v1877
      %v1910 = vpack.c.b16 %v1878, %v1878
      %v1911 = vpack.c.b16 %v1879, %v1879
      %v1912 = vpack.c.b16 %v1880, %v1880
      %v1913 = vpack.c.b16 %v1881, %v1881
      %v1914 = vpack.c.b16 %v1882, %v1882
      %v1915 = vpack.c.b16 %v1883, %v1883
      %v1916 = vpack.c.b16 %v1884, %v1884
      %1917 = vrot.lane.b32.xlu0 %v1885, 24
      %v1918 = vpop.permute.xlu0 %1917
      %1919 = vrot.lane.b32.xlu0 %v1886, 24
      %v1920 = vpop.permute.xlu0 %1919
      %1921 = vrot.lane.b32.xlu0 %v1887, 24
      %v1922 = vpop.permute.xlu0 %1921
      %1923 = vrot.lane.b32.xlu0 %v1888, 24
      %v1924 = vpop.permute.xlu0 %1923
      %1925 = vrot.lane.b32.xlu0 %v1889, 24
      %v1926 = vpop.permute.xlu0 %1925
      %1927 = vrot.lane.b32.xlu0 %v1890, 24
      %v1928 = vpop.permute.xlu0 %1927
      %1929 = vrot.lane.b32.xlu0 %v1891, 24
      %v1930 = vpop.permute.xlu0 %1929
      %1931 = vrot.lane.b32.xlu0 %v1892, 24
      %v1932 = vpop.permute.xlu0 %1931
      %1933 = vrot.lane.b32.xlu0 %v1893, 24
      %v1934 = vpop.permute.xlu0 %1933
      %1935 = vrot.lane.b32.xlu0 %v1894, 24
      %v1936 = vpop.permute.xlu0 %1935
      %1937 = vrot.lane.b32.xlu0 %v1895, 24
      %v1938 = vpop.permute.xlu0 %1937
      %1939 = vrot.lane.b32.xlu0 %v1896, 24
      %v1940 = vpop.permute.xlu0 %1939
      %1941 = vrot.lane.b32.xlu0 %v1897, 24
      %v1942 = vpop.permute.xlu0 %1941
      %1943 = vrot.lane.b32.xlu0 %v1898, 24
      %v1944 = vpop.permute.xlu0 %1943
      %1945 = vrot.lane.b32.xlu0 %v1899, 24
      %v1946 = vpop.permute.xlu0 %1945
      %1947 = vrot.lane.b32.xlu0 %v1900, 24
      %v1948 = vpop.permute.xlu0 %1947
      %1949 = vrot.lane.b32.xlu0 %v1901, 24
      %v1950 = vpop.permute.xlu0 %1949
      %1951 = vrot.lane.b32.xlu0 %v1902, 24
      %v1952 = vpop.permute.xlu0 %1951
      %1953 = vrot.lane.b32.xlu0 %v1903, 24
      %v1954 = vpop.permute.xlu0 %1953
      %1955 = vrot.lane.b32.xlu0 %v1904, 24
      %v1956 = vpop.permute.xlu0 %1955
      %1957 = vrot.lane.b32.xlu0 %v1905, 24
      %v1958 = vpop.permute.xlu0 %1957
      %1959 = vrot.lane.b32.xlu0 %v1906, 24
      %v1960 = vpop.permute.xlu0 %1959
      %1961 = vrot.lane.b32.xlu0 %v1907, 24
      %v1962 = vpop.permute.xlu0 %1961
      %1963 = vrot.lane.b32.xlu0 %v1908, 24
      %v1964 = vpop.permute.xlu0 %1963
      %1965 = vrot.lane.b32.xlu0 %v1909, 24
      %v1966 = vpop.permute.xlu0 %1965
      %1967 = vrot.lane.b32.xlu0 %v1910, 24
      %v1968 = vpop.permute.xlu0 %1967
      %1969 = vrot.lane.b32.xlu0 %v1911, 24
      %v1970 = vpop.permute.xlu0 %1969
      %1971 = vrot.lane.b32.xlu0 %v1912, 24
      %v1972 = vpop.permute.xlu0 %1971
      %1973 = vrot.lane.b32.xlu0 %v1913, 24
      %v1974 = vpop.permute.xlu0 %1973
      %1975 = vrot.lane.b32.xlu0 %v1914, 24
      %v1976 = vpop.permute.xlu0 %1975
      %1977 = vrot.lane.b32.xlu0 %v1915, 24
      %v1978 = vpop.permute.xlu0 %1977
      %1979 = vrot.lane.b32.xlu0 %v1916, 24
      %v1980 = vpop.permute.xlu0 %1979
      %vm2013 = vcmask 257216
      %2014 = vst.msk [vmem:[#allocation3] sm:$0xf] %vm2013, %v1918
      %2015 = vst.msk [vmem:[#allocation3 + $0x4] sm:$0xf] %vm2013, %v1920
      %2016 = vst.msk [vmem:[#allocation3 + $0x8] sm:$0xf] %vm2013, %v1922
      %2017 = vst.msk [vmem:[#allocation3 + $0xc] sm:$0xf] %vm2013, %v1924
      %2018 = vst.msk [vmem:[#allocation3 + $0x10] sm:$0xf] %vm2013, %v1926
      %2019 = vst.msk [vmem:[#allocation3 + $0x14] sm:$0xf] %vm2013, %v1928
      %2020 = vst.msk [vmem:[#allocation3 + $0x18] sm:$0xf] %vm2013, %v1930
      %2021 = vst.msk [vmem:[#allocation3 + $0x1c] sm:$0xf] %vm2013, %v1932
      %2022 = vst.msk [vmem:[#allocation3 + $0x20] sm:$0xf] %vm2013, %v1934
      %2023 = vst.msk [vmem:[#allocation3 + $0x24] sm:$0xf] %vm2013, %v1936
      %2024 = vst.msk [vmem:[#allocation3 + $0x28] sm:$0xf] %vm2013, %v1938
      %2025 = vst.msk [vmem:[#allocation3 + $0x2c] sm:$0xf] %vm2013, %v1940
      %2026 = vst.msk [vmem:[#allocation3 + $0x30] sm:$0xf] %vm2013, %v1942
      %2027 = vst.msk [vmem:[#allocation3 + $0x34] sm:$0xf] %vm2013, %v1944
      %2028 = vst.msk [vmem:[#allocation3 + $0x38] sm:$0xf] %vm2013, %v1946
      %2029 = vst.msk [vmem:[#allocation3 + $0x3c] sm:$0xf] %vm2013, %v1948
      %2030 = vst.msk [vmem:[#allocation3 + $0x40] sm:$0xf] %vm2013, %v1950
      %2031 = vst.msk [vmem:[#allocation3 + $0x44] sm:$0xf] %vm2013, %v1952
      %2032 = vst.msk [vmem:[#allocation3 + $0x48] sm:$0xf] %vm2013, %v1954
      %2033 = vst.msk [vmem:[#allocation3 + $0x4c] sm:$0xf] %vm2013, %v1956
      %2034 = vst.msk [vmem:[#allocation3 + $0x50] sm:$0xf] %vm2013, %v1958
      %2035 = vst.msk [vmem:[#allocation3 + $0x54] sm:$0xf] %vm2013, %v1960
      %2036 = vst.msk [vmem:[#allocation3 + $0x58] sm:$0xf] %vm2013, %v1962
      %2037 = vst.msk [vmem:[#allocation3 + $0x5c] sm:$0xf] %vm2013, %v1964
      %2038 = vst.msk [vmem:[#allocation3 + $0x60] sm:$0xf] %vm2013, %v1966
      %2039 = vst.msk [vmem:[#allocation3 + $0x64] sm:$0xf] %vm2013, %v1968
      %2040 = vst.msk [vmem:[#allocation3 + $0x68] sm:$0xf] %vm2013, %v1970
      %2041 = vst.msk [vmem:[#allocation3 + $0x6c] sm:$0xf] %vm2013, %v1972
      %2042 = vst.msk [vmem:[#allocation3 + $0x70] sm:$0xf] %vm2013, %v1974
      %2043 = vst.msk [vmem:[#allocation3 + $0x74] sm:$0xf] %vm2013, %v1976
      %2044 = vst.msk [vmem:[#allocation3 + $0x78] sm:$0xf] %vm2013, %v1978
      %2045 = vst.msk [vmem:[#allocation3 + $0x7c] sm:$0xf] %vm2013, %v1980
      %v2046 = vld [vmem:[#allocation2 + $0x11] sm:$0xff]
      %v2047 = vld [vmem:[#allocation2 + $0x19] sm:$0xff]
      %v2048 = vld [vmem:[#allocation2 + $0x21] sm:$0xff]
      %v2049 = vld [vmem:[#allocation2 + $0x29] sm:$0xff]
      %v2050 = vld [vmem:[#allocation2 + $0x31] sm:$0xff]
      %v2051 = vld [vmem:[#allocation2 + $0x39] sm:$0xff]
      %v2052 = vld [vmem:[#allocation2 + $0x41] sm:$0xff]
      %v2053 = vld [vmem:[#allocation2 + $0x49] sm:$0xff]
      %v2054 = vld [vmem:[#allocation2 + $0x51] sm:$0xff]
      %v2055 = vld [vmem:[#allocation2 + $0x59] sm:$0xff]
      %v2056 = vld [vmem:[#allocation2 + $0x61] sm:$0xff]
      %v2057 = vld [vmem:[#allocation2 + $0x69] sm:$0xff]
      %v2058 = vld [vmem:[#allocation2 + $0x71] sm:$0xff]
      %v2059 = vld [vmem:[#allocation2 + $0x79] sm:$0xff]
      %v2060 = vld [vmem:[#allocation2 + $0x81] sm:$0xff]
      %v2061 = vld [vmem:[#allocation2 + $0x89] sm:$0xff]
      %v2062 = vld [vmem:[#allocation2 + $0x91] sm:$0xff]
      %v2063 = vld [vmem:[#allocation2 + $0x99] sm:$0xff]
      %v2064 = vld [vmem:[#allocation2 + $0xa1] sm:$0xff]
      %v2065 = vld [vmem:[#allocation2 + $0xa9] sm:$0xff]
      %v2066 = vld [vmem:[#allocation2 + $0xb1] sm:$0xff]
      %v2067 = vld [vmem:[#allocation2 + $0xb9] sm:$0xff]
      %v2068 = vld [vmem:[#allocation2 + $0xc1] sm:$0xff]
      %v2069 = vld [vmem:[#allocation2 + $0xc9] sm:$0xff]
      %v2070 = vld [vmem:[#allocation2 + $0xd1] sm:$0xff]
      %v2071 = vld [vmem:[#allocation2 + $0xd9] sm:$0xff]
      %v2072 = vld [vmem:[#allocation2 + $0xe1] sm:$0xff]
      %v2073 = vld [vmem:[#allocation2 + $0xe9] sm:$0xff]
      %v2074 = vld [vmem:[#allocation2 + $0xf1] sm:$0xff]
      %v2075 = vld [vmem:[#allocation2 + $0xf9] sm:$0xff]
      %v2076 = vld [vmem:[#allocation2 + $0x101] sm:$0xff]
      %v2077 = vld [vmem:[#allocation2 + $0x109] sm:$0xff]
      %v2078 = vpack.c.bf16 %v2047, %v2046
      %v2079 = vpack.c.bf16 %v2049, %v2048
      %v2080 = vpack.c.bf16 %v2051, %v2050
      %v2081 = vpack.c.bf16 %v2053, %v2052
      %v2082 = vpack.c.bf16 %v2055, %v2054
      %v2083 = vpack.c.bf16 %v2057, %v2056
      %v2084 = vpack.c.bf16 %v2059, %v2058
      %v2085 = vpack.c.bf16 %v2061, %v2060
      %v2086 = vpack.c.bf16 %v2063, %v2062
      %v2087 = vpack.c.bf16 %v2065, %v2064
      %v2088 = vpack.c.bf16 %v2067, %v2066
      %v2089 = vpack.c.bf16 %v2069, %v2068
      %v2090 = vpack.c.bf16 %v2071, %v2070
      %v2091 = vpack.c.bf16 %v2073, %v2072
      %v2092 = vpack.c.bf16 %v2075, %v2074
      %v2093 = vpack.c.bf16 %v2077, %v2076
      %v2110 = vunpack.c.l.b16 %v2078
      %v2111 = vunpack.c.h.b16 %v2078
      %v2112 = vunpack.c.l.b16 %v2079
      %v2113 = vunpack.c.h.b16 %v2079
      %v2114 = vunpack.c.l.b16 %v2080
      %v2115 = vunpack.c.h.b16 %v2080
      %v2116 = vunpack.c.l.b16 %v2081
      %v2117 = vunpack.c.h.b16 %v2081
      %v2118 = vunpack.c.l.b16 %v2082
      %v2119 = vunpack.c.h.b16 %v2082
      %v2120 = vunpack.c.l.b16 %v2083
      %v2121 = vunpack.c.h.b16 %v2083
      %v2122 = vunpack.c.l.b16 %v2084
      %v2123 = vunpack.c.h.b16 %v2084
      %v2124 = vunpack.c.l.b16 %v2085
      %v2125 = vunpack.c.h.b16 %v2085
      %v2126 = vunpack.c.l.b16 %v2086
      %v2127 = vunpack.c.h.b16 %v2086
      %v2128 = vunpack.c.l.b16 %v2087
      %v2129 = vunpack.c.h.b16 %v2087
      %v2130 = vunpack.c.l.b16 %v2088
      %v2131 = vunpack.c.h.b16 %v2088
      %v2132 = vunpack.c.l.b16 %v2089
      %v2133 = vunpack.c.h.b16 %v2089
      %v2134 = vunpack.c.l.b16 %v2090
      %v2135 = vunpack.c.h.b16 %v2090
      %v2136 = vunpack.c.l.b16 %v2091
      %v2137 = vunpack.c.h.b16 %v2091
      %v2138 = vunpack.c.l.b16 %v2092
      %v2139 = vunpack.c.h.b16 %v2092
      %v2140 = vunpack.c.l.b16 %v2093
      %v2141 = vunpack.c.h.b16 %v2093
      %v2142 = vpack.c.b16 %v2110, %v2110
      %v2143 = vpack.c.b16 %v2111, %v2111
      %v2144 = vpack.c.b16 %v2112, %v2112
      %v2145 = vpack.c.b16 %v2113, %v2113
      %v2146 = vpack.c.b16 %v2114, %v2114
      %v2147 = vpack.c.b16 %v2115, %v2115
      %v2148 = vpack.c.b16 %v2116, %v2116
      %v2149 = vpack.c.b16 %v2117, %v2117
      %v2150 = vpack.c.b16 %v2118, %v2118
      %v2151 = vpack.c.b16 %v2119, %v2119
      %v2152 = vpack.c.b16 %v2120, %v2120
      %v2153 = vpack.c.b16 %v2121, %v2121
      %v2154 = vpack.c.b16 %v2122, %v2122
      %v2155 = vpack.c.b16 %v2123, %v2123
      %v2156 = vpack.c.b16 %v2124, %v2124
      %v2157 = vpack.c.b16 %v2125, %v2125
      %v2158 = vpack.c.b16 %v2126, %v2126
      %v2159 = vpack.c.b16 %v2127, %v2127
      %v2160 = vpack.c.b16 %v2128, %v2128
      %v2161 = vpack.c.b16 %v2129, %v2129
      %v2162 = vpack.c.b16 %v2130, %v2130
      %v2163 = vpack.c.b16 %v2131, %v2131
      %v2164 = vpack.c.b16 %v2132, %v2132
      %v2165 = vpack.c.b16 %v2133, %v2133
      %v2166 = vpack.c.b16 %v2134, %v2134
      %v2167 = vpack.c.b16 %v2135, %v2135
      %v2168 = vpack.c.b16 %v2136, %v2136
      %v2169 = vpack.c.b16 %v2137, %v2137
      %v2170 = vpack.c.b16 %v2138, %v2138
      %v2171 = vpack.c.b16 %v2139, %v2139
      %v2172 = vpack.c.b16 %v2140, %v2140
      %v2173 = vpack.c.b16 %v2141, %v2141
      %2174 = vrot.lane.b32.xlu0 %v2142, 32
      %v2175 = vpop.permute.xlu0 %2174
      %2176 = vrot.lane.b32.xlu0 %v2143, 32
      %v2177 = vpop.permute.xlu0 %2176
      %2178 = vrot.lane.b32.xlu0 %v2144, 32
      %v2179 = vpop.permute.xlu0 %2178
      %2180 = vrot.lane.b32.xlu0 %v2145, 32
      %v2181 = vpop.permute.xlu0 %2180
      %2182 = vrot.lane.b32.xlu0 %v2146, 32
      %v2183 = vpop.permute.xlu0 %2182
      %2184 = vrot.lane.b32.xlu0 %v2147, 32
      %v2185 = vpop.permute.xlu0 %2184
      %2186 = vrot.lane.b32.xlu0 %v2148, 32
      %v2187 = vpop.permute.xlu0 %2186
      %2188 = vrot.lane.b32.xlu0 %v2149, 32
      %v2189 = vpop.permute.xlu0 %2188
      %2190 = vrot.lane.b32.xlu0 %v2150, 32
      %v2191 = vpop.permute.xlu0 %2190
      %2192 = vrot.lane.b32.xlu0 %v2151, 32
      %v2193 = vpop.permute.xlu0 %2192
      %2194 = vrot.lane.b32.xlu0 %v2152, 32
      %v2195 = vpop.permute.xlu0 %2194
      %2196 = vrot.lane.b32.xlu0 %v2153, 32
      %v2197 = vpop.permute.xlu0 %2196
      %2198 = vrot.lane.b32.xlu0 %v2154, 32
      %v2199 = vpop.permute.xlu0 %2198
      %2200 = vrot.lane.b32.xlu0 %v2155, 32
      %v2201 = vpop.permute.xlu0 %2200
      %2202 = vrot.lane.b32.xlu0 %v2156, 32
      %v2203 = vpop.permute.xlu0 %2202
      %2204 = vrot.lane.b32.xlu0 %v2157, 32
      %v2205 = vpop.permute.xlu0 %2204
      %2206 = vrot.lane.b32.xlu0 %v2158, 32
      %v2207 = vpop.permute.xlu0 %2206
      %2208 = vrot.lane.b32.xlu0 %v2159, 32
      %v2209 = vpop.permute.xlu0 %2208
      %2210 = vrot.lane.b32.xlu0 %v2160, 32
      %v2211 = vpop.permute.xlu0 %2210
      %2212 = vrot.lane.b32.xlu0 %v2161, 32
      %v2213 = vpop.permute.xlu0 %2212
      %2214 = vrot.lane.b32.xlu0 %v2162, 32
      %v2215 = vpop.permute.xlu0 %2214
      %2216 = vrot.lane.b32.xlu0 %v2163, 32
      %v2217 = vpop.permute.xlu0 %2216
      %2218 = vrot.lane.b32.xlu0 %v2164, 32
      %v2219 = vpop.permute.xlu0 %2218
      %2220 = vrot.lane.b32.xlu0 %v2165, 32
      %v2221 = vpop.permute.xlu0 %2220
      %2222 = vrot.lane.b32.xlu0 %v2166, 32
      %v2223 = vpop.permute.xlu0 %2222
      %2224 = vrot.lane.b32.xlu0 %v2167, 32
      %v2225 = vpop.permute.xlu0 %2224
      %2226 = vrot.lane.b32.xlu0 %v2168, 32
      %v2227 = vpop.permute.xlu0 %2226
      %2228 = vrot.lane.b32.xlu0 %v2169, 32
      %v2229 = vpop.permute.xlu0 %2228
      %2230 = vrot.lane.b32.xlu0 %v2170, 32
      %v2231 = vpop.permute.xlu0 %2230
      %2232 = vrot.lane.b32.xlu0 %v2171, 32
      %v2233 = vpop.permute.xlu0 %2232
      %2234 = vrot.lane.b32.xlu0 %v2172, 32
      %v2235 = vpop.permute.xlu0 %2234
      %2236 = vrot.lane.b32.xlu0 %v2173, 32
      %v2237 = vpop.permute.xlu0 %2236
      %vm2270 = vcmask 322816
      %2271 = vst.msk [vmem:[#allocation3] sm:$0xf] %vm2270, %v2175
      %2272 = vst.msk [vmem:[#allocation3 + $0x4] sm:$0xf] %vm2270, %v2177
      %2273 = vst.msk [vmem:[#allocation3 + $0x8] sm:$0xf] %vm2270, %v2179
      %2274 = vst.msk [vmem:[#allocation3 + $0xc] sm:$0xf] %vm2270, %v2181
      %2275 = vst.msk [vmem:[#allocation3 + $0x10] sm:$0xf] %vm2270, %v2183
      %2276 = vst.msk [vmem:[#allocation3 + $0x14] sm:$0xf] %vm2270, %v2185
      %2277 = vst.msk [vmem:[#allocation3 + $0x18] sm:$0xf] %vm2270, %v2187
      %2278 = vst.msk [vmem:[#allocation3 + $0x1c] sm:$0xf] %vm2270, %v2189
      %2279 = vst.msk [vmem:[#allocation3 + $0x20] sm:$0xf] %vm2270, %v2191
      %2280 = vst.msk [vmem:[#allocation3 + $0x24] sm:$0xf] %vm2270, %v2193
      %2281 = vst.msk [vmem:[#allocation3 + $0x28] sm:$0xf] %vm2270, %v2195
      %2282 = vst.msk [vmem:[#allocation3 + $0x2c] sm:$0xf] %vm2270, %v2197
      %2283 = vst.msk [vmem:[#allocation3 + $0x30] sm:$0xf] %vm2270, %v2199
      %2284 = vst.msk [vmem:[#allocation3 + $0x34] sm:$0xf] %vm2270, %v2201
      %2285 = vst.msk [vmem:[#allocation3 + $0x38] sm:$0xf] %vm2270, %v2203
      %2286 = vst.msk [vmem:[#allocation3 + $0x3c] sm:$0xf] %vm2270, %v2205
      %2287 = vst.msk [vmem:[#allocation3 + $0x40] sm:$0xf] %vm2270, %v2207
      %2288 = vst.msk [vmem:[#allocation3 + $0x44] sm:$0xf] %vm2270, %v2209
      %2289 = vst.msk [vmem:[#allocation3 + $0x48] sm:$0xf] %vm2270, %v2211
      %2290 = vst.msk [vmem:[#allocation3 + $0x4c] sm:$0xf] %vm2270, %v2213
      %2291 = vst.msk [vmem:[#allocation3 + $0x50] sm:$0xf] %vm2270, %v2215
      %2292 = vst.msk [vmem:[#allocation3 + $0x54] sm:$0xf] %vm2270, %v2217
      %2293 = vst.msk [vmem:[#allocation3 + $0x58] sm:$0xf] %vm2270, %v2219
      %2294 = vst.msk [vmem:[#allocation3 + $0x5c] sm:$0xf] %vm2270, %v2221
      %2295 = vst.msk [vmem:[#allocation3 + $0x60] sm:$0xf] %vm2270, %v2223
      %2296 = vst.msk [vmem:[#allocation3 + $0x64] sm:$0xf] %vm2270, %v2225
      %2297 = vst.msk [vmem:[#allocation3 + $0x68] sm:$0xf] %vm2270, %v2227
      %2298 = vst.msk [vmem:[#allocation3 + $0x6c] sm:$0xf] %vm2270, %v2229
      %2299 = vst.msk [vmem:[#allocation3 + $0x70] sm:$0xf] %vm2270, %v2231
      %2300 = vst.msk [vmem:[#allocation3 + $0x74] sm:$0xf] %vm2270, %v2233
      %2301 = vst.msk [vmem:[#allocation3 + $0x78] sm:$0xf] %vm2270, %v2235
      %2302 = vst.msk [vmem:[#allocation3 + $0x7c] sm:$0xf] %vm2270, %v2237
      %v2303 = vld [vmem:[#allocation2 + $0x12] sm:$0xff]
      %v2304 = vld [vmem:[#allocation2 + $0x1a] sm:$0xff]
      %v2305 = vld [vmem:[#allocation2 + $0x22] sm:$0xff]
      %v2306 = vld [vmem:[#allocation2 + $0x2a] sm:$0xff]
      %v2307 = vld [vmem:[#allocation2 + $0x32] sm:$0xff]
      %v2308 = vld [vmem:[#allocation2 + $0x3a] sm:$0xff]
      %v2309 = vld [vmem:[#allocation2 + $0x42] sm:$0xff]
      %v2310 = vld [vmem:[#allocation2 + $0x4a] sm:$0xff]
      %v2311 = vld [vmem:[#allocation2 + $0x52] sm:$0xff]
      %v2312 = vld [vmem:[#allocation2 + $0x5a] sm:$0xff]
      %v2313 = vld [vmem:[#allocation2 + $0x62] sm:$0xff]
      %v2314 = vld [vmem:[#allocation2 + $0x6a] sm:$0xff]
      %v2315 = vld [vmem:[#allocation2 + $0x72] sm:$0xff]
      %v2316 = vld [vmem:[#allocation2 + $0x7a] sm:$0xff]
      %v2317 = vld [vmem:[#allocation2 + $0x82] sm:$0xff]
      %v2318 = vld [vmem:[#allocation2 + $0x8a] sm:$0xff]
      %v2319 = vld [vmem:[#allocation2 + $0x92] sm:$0xff]
      %v2320 = vld [vmem:[#allocation2 + $0x9a] sm:$0xff]
      %v2321 = vld [vmem:[#allocation2 + $0xa2] sm:$0xff]
      %v2322 = vld [vmem:[#allocation2 + $0xaa] sm:$0xff]
      %v2323 = vld [vmem:[#allocation2 + $0xb2] sm:$0xff]
      %v2324 = vld [vmem:[#allocation2 + $0xba] sm:$0xff]
      %v2325 = vld [vmem:[#allocation2 + $0xc2] sm:$0xff]
      %v2326 = vld [vmem:[#allocation2 + $0xca] sm:$0xff]
      %v2327 = vld [vmem:[#allocation2 + $0xd2] sm:$0xff]
      %v2328 = vld [vmem:[#allocation2 + $0xda] sm:$0xff]
      %v2329 = vld [vmem:[#allocation2 + $0xe2] sm:$0xff]
      %v2330 = vld [vmem:[#allocation2 + $0xea] sm:$0xff]
      %v2331 = vld [vmem:[#allocation2 + $0xf2] sm:$0xff]
      %v2332 = vld [vmem:[#allocation2 + $0xfa] sm:$0xff]
      %v2333 = vld [vmem:[#allocation2 + $0x102] sm:$0xff]
      %v2334 = vld [vmem:[#allocation2 + $0x10a] sm:$0xff]
      %v2335 = vsel %vm1468, %v2303, 0.0
      %v2336 = vsel %vm1469, %v2304, 0.0
      %v2337 = vsel %vm1470, %v2305, 0.0
      %v2338 = vsel %vm1471, %v2306, 0.0
      %v2339 = vsel %vm1472, %v2307, 0.0
      %v2340 = vsel %vm1473, %v2308, 0.0
      %v2341 = vsel %vm1474, %v2309, 0.0
      %v2342 = vsel %vm1475, %v2310, 0.0
      %v2343 = vsel %vm1476, %v2311, 0.0
      %v2344 = vsel %vm1477, %v2312, 0.0
      %v2345 = vsel %vm1478, %v2313, 0.0
      %v2346 = vsel %vm1479, %v2314, 0.0
      %v2347 = vsel %vm1480, %v2315, 0.0
      %v2348 = vsel %vm1481, %v2316, 0.0
      %v2349 = vsel %vm1482, %v2317, 0.0
      %v2350 = vsel %vm1483, %v2318, 0.0
      %v2351 = vsel %vm1484, %v2319, 0.0
      %v2352 = vsel %vm1485, %v2320, 0.0
      %v2353 = vsel %vm1486, %v2321, 0.0
      %v2354 = vsel %vm1487, %v2322, 0.0
      %v2355 = vsel %vm1488, %v2323, 0.0
      %v2356 = vsel %vm1489, %v2324, 0.0
      %v2357 = vsel %vm1490, %v2325, 0.0
      %v2358 = vsel %vm1491, %v2326, 0.0
      %v2359 = vsel %vm1492, %v2327, 0.0
      %v2360 = vsel %vm1493, %v2328, 0.0
      %v2361 = vsel %vm1494, %v2329, 0.0
      %v2362 = vsel %vm1495, %v2330, 0.0
      %v2363 = vsel %vm1496, %v2331, 0.0
      %v2364 = vsel %vm1497, %v2332, 0.0
      %v2365 = vsel %vm1498, %v2333, 0.0
      %v2366 = vsel %vm1499, %v2334, 0.0
      %v2367 = vpack.c.bf16 %v2336, %v2335
      %v2368 = vpack.c.bf16 %v2338, %v2337
      %v2369 = vpack.c.bf16 %v2340, %v2339
      %v2370 = vpack.c.bf16 %v2342, %v2341
      %v2371 = vpack.c.bf16 %v2344, %v2343
      %v2372 = vpack.c.bf16 %v2346, %v2345
      %v2373 = vpack.c.bf16 %v2348, %v2347
      %v2374 = vpack.c.bf16 %v2350, %v2349
      %v2375 = vpack.c.bf16 %v2352, %v2351
      %v2376 = vpack.c.bf16 %v2354, %v2353
      %v2377 = vpack.c.bf16 %v2356, %v2355
      %v2378 = vpack.c.bf16 %v2358, %v2357
      %v2379 = vpack.c.bf16 %v2360, %v2359
      %v2380 = vpack.c.bf16 %v2362, %v2361
      %v2381 = vpack.c.bf16 %v2364, %v2363
      %v2382 = vpack.c.bf16 %v2366, %v2365
      %v2399 = vunpack.c.l.b16 %v2367
      %v2400 = vunpack.c.h.b16 %v2367
      %v2401 = vunpack.c.l.b16 %v2368
      %v2402 = vunpack.c.h.b16 %v2368
      %v2403 = vunpack.c.l.b16 %v2369
      %v2404 = vunpack.c.h.b16 %v2369
      %v2405 = vunpack.c.l.b16 %v2370
      %v2406 = vunpack.c.h.b16 %v2370
      %v2407 = vunpack.c.l.b16 %v2371
      %v2408 = vunpack.c.h.b16 %v2371
      %v2409 = vunpack.c.l.b16 %v2372
      %v2410 = vunpack.c.h.b16 %v2372
      %v2411 = vunpack.c.l.b16 %v2373
      %v2412 = vunpack.c.h.b16 %v2373
      %v2413 = vunpack.c.l.b16 %v2374
      %v2414 = vunpack.c.h.b16 %v2374
      %v2415 = vunpack.c.l.b16 %v2375
      %v2416 = vunpack.c.h.b16 %v2375
      %v2417 = vunpack.c.l.b16 %v2376
      %v2418 = vunpack.c.h.b16 %v2376
      %v2419 = vunpack.c.l.b16 %v2377
      %v2420 = vunpack.c.h.b16 %v2377
      %v2421 = vunpack.c.l.b16 %v2378
      %v2422 = vunpack.c.h.b16 %v2378
      %v2423 = vunpack.c.l.b16 %v2379
      %v2424 = vunpack.c.h.b16 %v2379
      %v2425 = vunpack.c.l.b16 %v2380
      %v2426 = vunpack.c.h.b16 %v2380
      %v2427 = vunpack.c.l.b16 %v2381
      %v2428 = vunpack.c.h.b16 %v2381
      %v2429 = vunpack.c.l.b16 %v2382
      %v2430 = vunpack.c.h.b16 %v2382
      %v2431 = vpack.c.b16 %v2399, %v2399
      %v2432 = vpack.c.b16 %v2400, %v2400
      %v2433 = vpack.c.b16 %v2401, %v2401
      %v2434 = vpack.c.b16 %v2402, %v2402
      %v2435 = vpack.c.b16 %v2403, %v2403
      %v2436 = vpack.c.b16 %v2404, %v2404
      %v2437 = vpack.c.b16 %v2405, %v2405
      %v2438 = vpack.c.b16 %v2406, %v2406
      %v2439 = vpack.c.b16 %v2407, %v2407
      %v2440 = vpack.c.b16 %v2408, %v2408
      %v2441 = vpack.c.b16 %v2409, %v2409
      %v2442 = vpack.c.b16 %v2410, %v2410
      %v2443 = vpack.c.b16 %v2411, %v2411
      %v2444 = vpack.c.b16 %v2412, %v2412
      %v2445 = vpack.c.b16 %v2413, %v2413
      %v2446 = vpack.c.b16 %v2414, %v2414
      %v2447 = vpack.c.b16 %v2415, %v2415
      %v2448 = vpack.c.b16 %v2416, %v2416
      %v2449 = vpack.c.b16 %v2417, %v2417
      %v2450 = vpack.c.b16 %v2418, %v2418
      %v2451 = vpack.c.b16 %v2419, %v2419
      %v2452 = vpack.c.b16 %v2420, %v2420
      %v2453 = vpack.c.b16 %v2421, %v2421
      %v2454 = vpack.c.b16 %v2422, %v2422
      %v2455 = vpack.c.b16 %v2423, %v2423
      %v2456 = vpack.c.b16 %v2424, %v2424
      %v2457 = vpack.c.b16 %v2425, %v2425
      %v2458 = vpack.c.b16 %v2426, %v2426
      %v2459 = vpack.c.b16 %v2427, %v2427
      %v2460 = vpack.c.b16 %v2428, %v2428
      %v2461 = vpack.c.b16 %v2429, %v2429
      %v2462 = vpack.c.b16 %v2430, %v2430
      %2463 = vrot.lane.b32.xlu0 %v2431, 40
      %v2464 = vpop.permute.xlu0 %2463
      %2465 = vrot.lane.b32.xlu0 %v2432, 40
      %v2466 = vpop.permute.xlu0 %2465
      %2467 = vrot.lane.b32.xlu0 %v2433, 40
      %v2468 = vpop.permute.xlu0 %2467
      %2469 = vrot.lane.b32.xlu0 %v2434, 40
      %v2470 = vpop.permute.xlu0 %2469
      %2471 = vrot.lane.b32.xlu0 %v2435, 40
      %v2472 = vpop.permute.xlu0 %2471
      %2473 = vrot.lane.b32.xlu0 %v2436, 40
      %v2474 = vpop.permute.xlu0 %2473
      %2475 = vrot.lane.b32.xlu0 %v2437, 40
      %v2476 = vpop.permute.xlu0 %2475
      %2477 = vrot.lane.b32.xlu0 %v2438, 40
      %v2478 = vpop.permute.xlu0 %2477
      %2479 = vrot.lane.b32.xlu0 %v2439, 40
      %v2480 = vpop.permute.xlu0 %2479
      %2481 = vrot.lane.b32.xlu0 %v2440, 40
      %v2482 = vpop.permute.xlu0 %2481
      %2483 = vrot.lane.b32.xlu0 %v2441, 40
      %v2484 = vpop.permute.xlu0 %2483
      %2485 = vrot.lane.b32.xlu0 %v2442, 40
      %v2486 = vpop.permute.xlu0 %2485
      %2487 = vrot.lane.b32.xlu0 %v2443, 40
      %v2488 = vpop.permute.xlu0 %2487
      %2489 = vrot.lane.b32.xlu0 %v2444, 40
      %v2490 = vpop.permute.xlu0 %2489
      %2491 = vrot.lane.b32.xlu0 %v2445, 40
      %v2492 = vpop.permute.xlu0 %2491
      %2493 = vrot.lane.b32.xlu0 %v2446, 40
      %v2494 = vpop.permute.xlu0 %2493
      %2495 = vrot.lane.b32.xlu0 %v2447, 40
      %v2496 = vpop.permute.xlu0 %2495
      %2497 = vrot.lane.b32.xlu0 %v2448, 40
      %v2498 = vpop.permute.xlu0 %2497
      %2499 = vrot.lane.b32.xlu0 %v2449, 40
      %v2500 = vpop.permute.xlu0 %2499
      %2501 = vrot.lane.b32.xlu0 %v2450, 40
      %v2502 = vpop.permute.xlu0 %2501
      %2503 = vrot.lane.b32.xlu0 %v2451, 40
      %v2504 = vpop.permute.xlu0 %2503
      %2505 = vrot.lane.b32.xlu0 %v2452, 40
      %v2506 = vpop.permute.xlu0 %2505
      %2507 = vrot.lane.b32.xlu0 %v2453, 40
      %v2508 = vpop.permute.xlu0 %2507
      %2509 = vrot.lane.b32.xlu0 %v2454, 40
      %v2510 = vpop.permute.xlu0 %2509
      %2511 = vrot.lane.b32.xlu0 %v2455, 40
      %v2512 = vpop.permute.xlu0 %2511
      %2513 = vrot.lane.b32.xlu0 %v2456, 40
      %v2514 = vpop.permute.xlu0 %2513
      %2515 = vrot.lane.b32.xlu0 %v2457, 40
      %v2516 = vpop.permute.xlu0 %2515
      %2517 = vrot.lane.b32.xlu0 %v2458, 40
      %v2518 = vpop.permute.xlu0 %2517
      %2519 = vrot.lane.b32.xlu0 %v2459, 40
      %v2520 = vpop.permute.xlu0 %2519
      %2521 = vrot.lane.b32.xlu0 %v2460, 40
      %v2522 = vpop.permute.xlu0 %2521
      %2523 = vrot.lane.b32.xlu0 %v2461, 40
      %v2524 = vpop.permute.xlu0 %2523
      %2525 = vrot.lane.b32.xlu0 %v2462, 40
      %v2526 = vpop.permute.xlu0 %2525
      %vm2559 = vcmask 388416
      %2560 = vst.msk [vmem:[#allocation3] sm:$0xf] %vm2559, %v2464
      %2561 = vst.msk [vmem:[#allocation3 + $0x4] sm:$0xf] %vm2559, %v2466
      %2562 = vst.msk [vmem:[#allocation3 + $0x8] sm:$0xf] %vm2559, %v2468
      %2563 = vst.msk [vmem:[#allocation3 + $0xc] sm:$0xf] %vm2559, %v2470
      %2564 = vst.msk [vmem:[#allocation3 + $0x10] sm:$0xf] %vm2559, %v2472
      %2565 = vst.msk [vmem:[#allocation3 + $0x14] sm:$0xf] %vm2559, %v2474
      %2566 = vst.msk [vmem:[#allocation3 + $0x18] sm:$0xf] %vm2559, %v2476
      %2567 = vst.msk [vmem:[#allocation3 + $0x1c] sm:$0xf] %vm2559, %v2478
      %2568 = vst.msk [vmem:[#allocation3 + $0x20] sm:$0xf] %vm2559, %v2480
      %2569 = vst.msk [vmem:[#allocation3 + $0x24] sm:$0xf] %vm2559, %v2482
      %2570 = vst.msk [vmem:[#allocation3 + $0x28] sm:$0xf] %vm2559, %v2484
      %2571 = vst.msk [vmem:[#allocation3 + $0x2c] sm:$0xf] %vm2559, %v2486
      %2572 = vst.msk [vmem:[#allocation3 + $0x30] sm:$0xf] %vm2559, %v2488
      %2573 = vst.msk [vmem:[#allocation3 + $0x34] sm:$0xf] %vm2559, %v2490
      %2574 = vst.msk [vmem:[#allocation3 + $0x38] sm:$0xf] %vm2559, %v2492
      %2575 = vst.msk [vmem:[#allocation3 + $0x3c] sm:$0xf] %vm2559, %v2494
      %2576 = vst.msk [vmem:[#allocation3 + $0x40] sm:$0xf] %vm2559, %v2496
      %2577 = vst.msk [vmem:[#allocation3 + $0x44] sm:$0xf] %vm2559, %v2498
      %2578 = vst.msk [vmem:[#allocation3 + $0x48] sm:$0xf] %vm2559, %v2500
      %2579 = vst.msk [vmem:[#allocation3 + $0x4c] sm:$0xf] %vm2559, %v2502
      %2580 = vst.msk [vmem:[#allocation3 + $0x50] sm:$0xf] %vm2559, %v2504
      %2581 = vst.msk [vmem:[#allocation3 + $0x54] sm:$0xf] %vm2559, %v2506
      %2582 = vst.msk [vmem:[#allocation3 + $0x58] sm:$0xf] %vm2559, %v2508
      %2583 = vst.msk [vmem:[#allocation3 + $0x5c] sm:$0xf] %vm2559, %v2510
      %2584 = vst.msk [vmem:[#allocation3 + $0x60] sm:$0xf] %vm2559, %v2512
      %2585 = vst.msk [vmem:[#allocation3 + $0x64] sm:$0xf] %vm2559, %v2514
      %2586 = vst.msk [vmem:[#allocation3 + $0x68] sm:$0xf] %vm2559, %v2516
      %2587 = vst.msk [vmem:[#allocation3 + $0x6c] sm:$0xf] %vm2559, %v2518
      %2588 = vst.msk [vmem:[#allocation3 + $0x70] sm:$0xf] %vm2559, %v2520
      %2589 = vst.msk [vmem:[#allocation3 + $0x74] sm:$0xf] %vm2559, %v2522
      %2590 = vst.msk [vmem:[#allocation3 + $0x78] sm:$0xf] %vm2559, %v2524
      %2591 = vst.msk [vmem:[#allocation3 + $0x7c] sm:$0xf] %vm2559, %v2526
      %v2592 = vld [vmem:[#allocation2 + $0x20] sm:$0xff]
      %v2593 = vld [vmem:[#allocation2 + $0x28] sm:$0xff]
      %v2594 = vld [vmem:[#allocation2 + $0x30] sm:$0xff]
      %v2595 = vld [vmem:[#allocation2 + $0x38] sm:$0xff]
      %v2596 = vld [vmem:[#allocation2 + $0x40] sm:$0xff]
      %v2597 = vld [vmem:[#allocation2 + $0x48] sm:$0xff]
      %v2598 = vld [vmem:[#allocation2 + $0x50] sm:$0xff]
      %v2599 = vld [vmem:[#allocation2 + $0x58] sm:$0xff]
      %v2600 = vld [vmem:[#allocation2 + $0x60] sm:$0xff]
      %v2601 = vld [vmem:[#allocation2 + $0x68] sm:$0xff]
      %v2602 = vld [vmem:[#allocation2 + $0x70] sm:$0xff]
      %v2603 = vld [vmem:[#allocation2 + $0x78] sm:$0xff]
      %v2604 = vld [vmem:[#allocation2 + $0x80] sm:$0xff]
      %v2605 = vld [vmem:[#allocation2 + $0x88] sm:$0xff]
      %v2606 = vld [vmem:[#allocation2 + $0x90] sm:$0xff]
      %v2607 = vld [vmem:[#allocation2 + $0x98] sm:$0xff]
      %v2608 = vld [vmem:[#allocation2 + $0xa0] sm:$0xff]
      %v2609 = vld [vmem:[#allocation2 + $0xa8] sm:$0xff]
      %v2610 = vld [vmem:[#allocation2 + $0xb0] sm:$0xff]
      %v2611 = vld [vmem:[#allocation2 + $0xb8] sm:$0xff]
      %v2612 = vld [vmem:[#allocation2 + $0xc0] sm:$0xff]
      %v2613 = vld [vmem:[#allocation2 + $0xc8] sm:$0xff]
      %v2614 = vld [vmem:[#allocation2 + $0xd0] sm:$0xff]
      %v2615 = vld [vmem:[#allocation2 + $0xd8] sm:$0xff]
      %v2616 = vld [vmem:[#allocation2 + $0xe0] sm:$0xff]
      %v2617 = vld [vmem:[#allocation2 + $0xe8] sm:$0xff]
      %v2618 = vld [vmem:[#allocation2 + $0xf0] sm:$0xff]
      %v2619 = vld [vmem:[#allocation2 + $0xf8] sm:$0xff]
      %v2620 = vld [vmem:[#allocation2 + $0x100] sm:$0xff]
      %v2621 = vld [vmem:[#allocation2 + $0x108] sm:$0xff]
      %v2622 = vld [vmem:[#allocation2 + $0x110] sm:$0xff]
      %v2623 = vld [vmem:[#allocation2 + $0x118] sm:$0xff]
      %v2624 = vsel %vm922, %v2592, 0.0
      %v2625 = vsel %vm923, %v2593, 0.0
      %v2626 = vsel %vm924, %v2594, 0.0
      %v2627 = vsel %vm925, %v2595, 0.0
      %v2628 = vsel %vm926, %v2596, 0.0
      %v2629 = vsel %vm927, %v2597, 0.0
      %v2630 = vsel %vm928, %v2598, 0.0
      %v2631 = vsel %vm929, %v2599, 0.0
      %v2632 = vsel %vm930, %v2600, 0.0
      %v2633 = vsel %vm931, %v2601, 0.0
      %v2634 = vsel %vm932, %v2602, 0.0
      %v2635 = vsel %vm933, %v2603, 0.0
      %v2636 = vsel %vm934, %v2604, 0.0
      %v2637 = vsel %vm935, %v2605, 0.0
      %v2638 = vsel %vm936, %v2606, 0.0
      %v2639 = vsel %vm937, %v2607, 0.0
      %v2640 = vsel %vm938, %v2608, 0.0
      %v2641 = vsel %vm939, %v2609, 0.0
      %v2642 = vsel %vm940, %v2610, 0.0
      %v2643 = vsel %vm941, %v2611, 0.0
      %v2644 = vsel %vm942, %v2612, 0.0
      %v2645 = vsel %vm943, %v2613, 0.0
      %v2646 = vsel %vm944, %v2614, 0.0
      %v2647 = vsel %vm945, %v2615, 0.0
      %v2648 = vsel %vm946, %v2616, 0.0
      %v2649 = vsel %vm947, %v2617, 0.0
      %v2650 = vsel %vm948, %v2618, 0.0
      %v2651 = vsel %vm949, %v2619, 0.0
      %v2652 = vsel %vm950, %v2620, 0.0
      %v2653 = vsel %vm951, %v2621, 0.0
      %v2654 = vsel %vm952, %v2622, 0.0
      %v2655 = vsel %vm953, %v2623, 0.0
      %v2656 = vpack.c.bf16 %v2625, %v2624
      %v2657 = vpack.c.bf16 %v2627, %v2626
      %v2658 = vpack.c.bf16 %v2629, %v2628
      %v2659 = vpack.c.bf16 %v2631, %v2630
      %v2660 = vpack.c.bf16 %v2633, %v2632
      %v2661 = vpack.c.bf16 %v2635, %v2634
      %v2662 = vpack.c.bf16 %v2637, %v2636
      %v2663 = vpack.c.bf16 %v2639, %v2638
      %v2664 = vpack.c.bf16 %v2641, %v2640
      %v2665 = vpack.c.bf16 %v2643, %v2642
      %v2666 = vpack.c.bf16 %v2645, %v2644
      %v2667 = vpack.c.bf16 %v2647, %v2646
      %v2668 = vpack.c.bf16 %v2649, %v2648
      %v2669 = vpack.c.bf16 %v2651, %v2650
      %v2670 = vpack.c.bf16 %v2653, %v2652
      %v2671 = vpack.c.bf16 %v2655, %v2654
      %v2688 = vunpack.c.l.b16 %v2656
      %v2689 = vunpack.c.h.b16 %v2656
      %v2690 = vunpack.c.l.b16 %v2657
      %v2691 = vunpack.c.h.b16 %v2657
      %v2692 = vunpack.c.l.b16 %v2658
      %v2693 = vunpack.c.h.b16 %v2658
      %v2694 = vunpack.c.l.b16 %v2659
      %v2695 = vunpack.c.h.b16 %v2659
      %v2696 = vunpack.c.l.b16 %v2660
      %v2697 = vunpack.c.h.b16 %v2660
      %v2698 = vunpack.c.l.b16 %v2661
      %v2699 = vunpack.c.h.b16 %v2661
      %v2700 = vunpack.c.l.b16 %v2662
      %v2701 = vunpack.c.h.b16 %v2662
      %v2702 = vunpack.c.l.b16 %v2663
      %v2703 = vunpack.c.h.b16 %v2663
      %v2704 = vunpack.c.l.b16 %v2664
      %v2705 = vunpack.c.h.b16 %v2664
      %v2706 = vunpack.c.l.b16 %v2665
      %v2707 = vunpack.c.h.b16 %v2665
      %v2708 = vunpack.c.l.b16 %v2666
      %v2709 = vunpack.c.h.b16 %v2666
      %v2710 = vunpack.c.l.b16 %v2667
      %v2711 = vunpack.c.h.b16 %v2667
      %v2712 = vunpack.c.l.b16 %v2668
      %v2713 = vunpack.c.h.b16 %v2668
      %v2714 = vunpack.c.l.b16 %v2669
      %v2715 = vunpack.c.h.b16 %v2669
      %v2716 = vunpack.c.l.b16 %v2670
      %v2717 = vunpack.c.h.b16 %v2670
      %v2718 = vunpack.c.l.b16 %v2671
      %v2719 = vunpack.c.h.b16 %v2671
      %v2720 = vpack.c.b16 %v2688, %v2688
      %v2721 = vpack.c.b16 %v2689, %v2689
      %v2722 = vpack.c.b16 %v2690, %v2690
      %v2723 = vpack.c.b16 %v2691, %v2691
      %v2724 = vpack.c.b16 %v2692, %v2692
      %v2725 = vpack.c.b16 %v2693, %v2693
      %v2726 = vpack.c.b16 %v2694, %v2694
      %v2727 = vpack.c.b16 %v2695, %v2695
      %v2728 = vpack.c.b16 %v2696, %v2696
      %v2729 = vpack.c.b16 %v2697, %v2697
      %v2730 = vpack.c.b16 %v2698, %v2698
      %v2731 = vpack.c.b16 %v2699, %v2699
      %v2732 = vpack.c.b16 %v2700, %v2700
      %v2733 = vpack.c.b16 %v2701, %v2701
      %v2734 = vpack.c.b16 %v2702, %v2702
      %v2735 = vpack.c.b16 %v2703, %v2703
      %v2736 = vpack.c.b16 %v2704, %v2704
      %v2737 = vpack.c.b16 %v2705, %v2705
      %v2738 = vpack.c.b16 %v2706, %v2706
      %v2739 = vpack.c.b16 %v2707, %v2707
      %v2740 = vpack.c.b16 %v2708, %v2708
      %v2741 = vpack.c.b16 %v2709, %v2709
      %v2742 = vpack.c.b16 %v2710, %v2710
      %v2743 = vpack.c.b16 %v2711, %v2711
      %v2744 = vpack.c.b16 %v2712, %v2712
      %v2745 = vpack.c.b16 %v2713, %v2713
      %v2746 = vpack.c.b16 %v2714, %v2714
      %v2747 = vpack.c.b16 %v2715, %v2715
      %v2748 = vpack.c.b16 %v2716, %v2716
      %v2749 = vpack.c.b16 %v2717, %v2717
      %v2750 = vpack.c.b16 %v2718, %v2718
      %v2751 = vpack.c.b16 %v2719, %v2719
      %2752 = vrot.lane.b32.xlu0 %v2720, 48
      %v2753 = vpop.permute.xlu0 %2752
      %2754 = vrot.lane.b32.xlu0 %v2721, 48
      %v2755 = vpop.permute.xlu0 %2754
      %2756 = vrot.lane.b32.xlu0 %v2722, 48
      %v2757 = vpop.permute.xlu0 %2756
      %2758 = vrot.lane.b32.xlu0 %v2723, 48
      %v2759 = vpop.permute.xlu0 %2758
      %2760 = vrot.lane.b32.xlu0 %v2724, 48
      %v2761 = vpop.permute.xlu0 %2760
      %2762 = vrot.lane.b32.xlu0 %v2725, 48
      %v2763 = vpop.permute.xlu0 %2762
      %2764 = vrot.lane.b32.xlu0 %v2726, 48
      %v2765 = vpop.permute.xlu0 %2764
      %2766 = vrot.lane.b32.xlu0 %v2727, 48
      %v2767 = vpop.permute.xlu0 %2766
      %2768 = vrot.lane.b32.xlu0 %v2728, 48
      %v2769 = vpop.permute.xlu0 %2768
      %2770 = vrot.lane.b32.xlu0 %v2729, 48
      %v2771 = vpop.permute.xlu0 %2770
      %2772 = vrot.lane.b32.xlu0 %v2730, 48
      %v2773 = vpop.permute.xlu0 %2772
      %2774 = vrot.lane.b32.xlu0 %v2731, 48
      %v2775 = vpop.permute.xlu0 %2774
      %2776 = vrot.lane.b32.xlu0 %v2732, 48
      %v2777 = vpop.permute.xlu0 %2776
      %2778 = vrot.lane.b32.xlu0 %v2733, 48
      %v2779 = vpop.permute.xlu0 %2778
      %2780 = vrot.lane.b32.xlu0 %v2734, 48
      %v2781 = vpop.permute.xlu0 %2780
      %2782 = vrot.lane.b32.xlu0 %v2735, 48
      %v2783 = vpop.permute.xlu0 %2782
      %2784 = vrot.lane.b32.xlu0 %v2736, 48
      %v2785 = vpop.permute.xlu0 %2784
      %2786 = vrot.lane.b32.xlu0 %v2737, 48
      %v2787 = vpop.permute.xlu0 %2786
      %2788 = vrot.lane.b32.xlu0 %v2738, 48
      %v2789 = vpop.permute.xlu0 %2788
      %2790 = vrot.lane.b32.xlu0 %v2739, 48
      %v2791 = vpop.permute.xlu0 %2790
      %2792 = vrot.lane.b32.xlu0 %v2740, 48
      %v2793 = vpop.permute.xlu0 %2792
      %2794 = vrot.lane.b32.xlu0 %v2741, 48
      %v2795 = vpop.permute.xlu0 %2794
      %2796 = vrot.lane.b32.xlu0 %v2742, 48
      %v2797 = vpop.permute.xlu0 %2796
      %2798 = vrot.lane.b32.xlu0 %v2743, 48
      %v2799 = vpop.permute.xlu0 %2798
      %2800 = vrot.lane.b32.xlu0 %v2744, 48
      %v2801 = vpop.permute.xlu0 %2800
      %2802 = vrot.lane.b32.xlu0 %v2745, 48
      %v2803 = vpop.permute.xlu0 %2802
      %2804 = vrot.lane.b32.xlu0 %v2746, 48
      %v2805 = vpop.permute.xlu0 %2804
      %2806 = vrot.lane.b32.xlu0 %v2747, 48
      %v2807 = vpop.permute.xlu0 %2806
      %2808 = vrot.lane.b32.xlu0 %v2748, 48
      %v2809 = vpop.permute.xlu0 %2808
      %2810 = vrot.lane.b32.xlu0 %v2749, 48
      %v2811 = vpop.permute.xlu0 %2810
      %2812 = vrot.lane.b32.xlu0 %v2750, 48
      %v2813 = vpop.permute.xlu0 %2812
      %2814 = vrot.lane.b32.xlu0 %v2751, 48
      %v2815 = vpop.permute.xlu0 %2814
      %vm2848 = vcmask 454016
      %2849 = vst.msk [vmem:[#allocation3] sm:$0xf] %vm2848, %v2753
      %2850 = vst.msk [vmem:[#allocation3 + $0x4] sm:$0xf] %vm2848, %v2755
      %2851 = vst.msk [vmem:[#allocation3 + $0x8] sm:$0xf] %vm2848, %v2757
      %2852 = vst.msk [vmem:[#allocation3 + $0xc] sm:$0xf] %vm2848, %v2759
      %2853 = vst.msk [vmem:[#allocation3 + $0x10] sm:$0xf] %vm2848, %v2761
      %2854 = vst.msk [vmem:[#allocation3 + $0x14] sm:$0xf] %vm2848, %v2763
      %2855 = vst.msk [vmem:[#allocation3 + $0x18] sm:$0xf] %vm2848, %v2765
      %2856 = vst.msk [vmem:[#allocation3 + $0x1c] sm:$0xf] %vm2848, %v2767
      %2857 = vst.msk [vmem:[#allocation3 + $0x20] sm:$0xf] %vm2848, %v2769
      %2858 = vst.msk [vmem:[#allocation3 + $0x24] sm:$0xf] %vm2848, %v2771
      %2859 = vst.msk [vmem:[#allocation3 + $0x28] sm:$0xf] %vm2848, %v2773
      %2860 = vst.msk [vmem:[#allocation3 + $0x2c] sm:$0xf] %vm2848, %v2775
      %2861 = vst.msk [vmem:[#allocation3 + $0x30] sm:$0xf] %vm2848, %v2777
      %2862 = vst.msk [vmem:[#allocation3 + $0x34] sm:$0xf] %vm2848, %v2779
      %2863 = vst.msk [vmem:[#allocation3 + $0x38] sm:$0xf] %vm2848, %v2781
      %2864 = vst.msk [vmem:[#allocation3 + $0x3c] sm:$0xf] %vm2848, %v2783
      %2865 = vst.msk [vmem:[#allocation3 + $0x40] sm:$0xf] %vm2848, %v2785
      %2866 = vst.msk [vmem:[#allocation3 + $0x44] sm:$0xf] %vm2848, %v2787
      %2867 = vst.msk [vmem:[#allocation3 + $0x48] sm:$0xf] %vm2848, %v2789
      %2868 = vst.msk [vmem:[#allocation3 + $0x4c] sm:$0xf] %vm2848, %v2791
      %2869 = vst.msk [vmem:[#allocation3 + $0x50] sm:$0xf] %vm2848, %v2793
      %2870 = vst.msk [vmem:[#allocation3 + $0x54] sm:$0xf] %vm2848, %v2795
      %2871 = vst.msk [vmem:[#allocation3 + $0x58] sm:$0xf] %vm2848, %v2797
      %2872 = vst.msk [vmem:[#allocation3 + $0x5c] sm:$0xf] %vm2848, %v2799
      %2873 = vst.msk [vmem:[#allocation3 + $0x60] sm:$0xf] %vm2848, %v2801
      %2874 = vst.msk [vmem:[#allocation3 + $0x64] sm:$0xf] %vm2848, %v2803
      %2875 = vst.msk [vmem:[#allocation3 + $0x68] sm:$0xf] %vm2848, %v2805
      %2876 = vst.msk [vmem:[#allocation3 + $0x6c] sm:$0xf] %vm2848, %v2807
      %2877 = vst.msk [vmem:[#allocation3 + $0x70] sm:$0xf] %vm2848, %v2809
      %2878 = vst.msk [vmem:[#allocation3 + $0x74] sm:$0xf] %vm2848, %v2811
      %2879 = vst.msk [vmem:[#allocation3 + $0x78] sm:$0xf] %vm2848, %v2813
      %2880 = vst.msk [vmem:[#allocation3 + $0x7c] sm:$0xf] %vm2848, %v2815
      %v2881 = vld [vmem:[#allocation2 + $0x21] sm:$0xff]
      %v2882 = vld [vmem:[#allocation2 + $0x29] sm:$0xff]
      %v2883 = vld [vmem:[#allocation2 + $0x31] sm:$0xff]
      %v2884 = vld [vmem:[#allocation2 + $0x39] sm:$0xff]
      %v2885 = vld [vmem:[#allocation2 + $0x41] sm:$0xff]
      %v2886 = vld [vmem:[#allocation2 + $0x49] sm:$0xff]
      %v2887 = vld [vmem:[#allocation2 + $0x51] sm:$0xff]
      %v2888 = vld [vmem:[#allocation2 + $0x59] sm:$0xff]
      %v2889 = vld [vmem:[#allocation2 + $0x61] sm:$0xff]
      %v2890 = vld [vmem:[#allocation2 + $0x69] sm:$0xff]
      %v2891 = vld [vmem:[#allocation2 + $0x71] sm:$0xff]
      %v2892 = vld [vmem:[#allocation2 + $0x79] sm:$0xff]
      %v2893 = vld [vmem:[#allocation2 + $0x81] sm:$0xff]
      %v2894 = vld [vmem:[#allocation2 + $0x89] sm:$0xff]
      %v2895 = vld [vmem:[#allocation2 + $0x91] sm:$0xff]
      %v2896 = vld [vmem:[#allocation2 + $0x99] sm:$0xff]
      %v2897 = vld [vmem:[#allocation2 + $0xa1] sm:$0xff]
      %v2898 = vld [vmem:[#allocation2 + $0xa9] sm:$0xff]
      %v2899 = vld [vmem:[#allocation2 + $0xb1] sm:$0xff]
      %v2900 = vld [vmem:[#allocation2 + $0xb9] sm:$0xff]
      %v2901 = vld [vmem:[#allocation2 + $0xc1] sm:$0xff]
      %v2902 = vld [vmem:[#allocation2 + $0xc9] sm:$0xff]
      %v2903 = vld [vmem:[#allocation2 + $0xd1] sm:$0xff]
      %v2904 = vld [vmem:[#allocation2 + $0xd9] sm:$0xff]
      %v2905 = vld [vmem:[#allocation2 + $0xe1] sm:$0xff]
      %v2906 = vld [vmem:[#allocation2 + $0xe9] sm:$0xff]
      %v2907 = vld [vmem:[#allocation2 + $0xf1] sm:$0xff]
      %v2908 = vld [vmem:[#allocation2 + $0xf9] sm:$0xff]
      %v2909 = vld [vmem:[#allocation2 + $0x101] sm:$0xff]
      %v2910 = vld [vmem:[#allocation2 + $0x109] sm:$0xff]
      %v2911 = vld [vmem:[#allocation2 + $0x111] sm:$0xff]
      %v2912 = vld [vmem:[#allocation2 + $0x119] sm:$0xff]
      %v2913 = vpack.c.bf16 %v2882, %v2881
      %v2914 = vpack.c.bf16 %v2884, %v2883
      %v2915 = vpack.c.bf16 %v2886, %v2885
      %v2916 = vpack.c.bf16 %v2888, %v2887
      %v2917 = vpack.c.bf16 %v2890, %v2889
      %v2918 = vpack.c.bf16 %v2892, %v2891
      %v2919 = vpack.c.bf16 %v2894, %v2893
      %v2920 = vpack.c.bf16 %v2896, %v2895
      %v2921 = vpack.c.bf16 %v2898, %v2897
      %v2922 = vpack.c.bf16 %v2900, %v2899
      %v2923 = vpack.c.bf16 %v2902, %v2901
      %v2924 = vpack.c.bf16 %v2904, %v2903
      %v2925 = vpack.c.bf16 %v2906, %v2905
      %v2926 = vpack.c.bf16 %v2908, %v2907
      %v2927 = vpack.c.bf16 %v2910, %v2909
      %v2928 = vpack.c.bf16 %v2912, %v2911
      %v2945 = vunpack.c.l.b16 %v2913
      %v2946 = vunpack.c.h.b16 %v2913
      %v2947 = vunpack.c.l.b16 %v2914
      %v2948 = vunpack.c.h.b16 %v2914
      %v2949 = vunpack.c.l.b16 %v2915
      %v2950 = vunpack.c.h.b16 %v2915
      %v2951 = vunpack.c.l.b16 %v2916
      %v2952 = vunpack.c.h.b16 %v2916
      %v2953 = vunpack.c.l.b16 %v2917
      %v2954 = vunpack.c.h.b16 %v2917
      %v2955 = vunpack.c.l.b16 %v2918
      %v2956 = vunpack.c.h.b16 %v2918
      %v2957 = vunpack.c.l.b16 %v2919
      %v2958 = vunpack.c.h.b16 %v2919
      %v2959 = vunpack.c.l.b16 %v2920
      %v2960 = vunpack.c.h.b16 %v2920
      %v2961 = vunpack.c.l.b16 %v2921
      %v2962 = vunpack.c.h.b16 %v2921
      %v2963 = vunpack.c.l.b16 %v2922
      %v2964 = vunpack.c.h.b16 %v2922
      %v2965 = vunpack.c.l.b16 %v2923
      %v2966 = vunpack.c.h.b16 %v2923
      %v2967 = vunpack.c.l.b16 %v2924
      %v2968 = vunpack.c.h.b16 %v2924
      %v2969 = vunpack.c.l.b16 %v2925
      %v2970 = vunpack.c.h.b16 %v2925
      %v2971 = vunpack.c.l.b16 %v2926
      %v2972 = vunpack.c.h.b16 %v2926
      %v2973 = vunpack.c.l.b16 %v2927
      %v2974 = vunpack.c.h.b16 %v2927
      %v2975 = vunpack.c.l.b16 %v2928
      %v2976 = vunpack.c.h.b16 %v2928
      %v2977 = vpack.c.b16 %v2945, %v2945
      %v2978 = vpack.c.b16 %v2946, %v2946
      %v2979 = vpack.c.b16 %v2947, %v2947
      %v2980 = vpack.c.b16 %v2948, %v2948
      %v2981 = vpack.c.b16 %v2949, %v2949
      %v2982 = vpack.c.b16 %v2950, %v2950
      %v2983 = vpack.c.b16 %v2951, %v2951
      %v2984 = vpack.c.b16 %v2952, %v2952
      %v2985 = vpack.c.b16 %v2953, %v2953
      %v2986 = vpack.c.b16 %v2954, %v2954
      %v2987 = vpack.c.b16 %v2955, %v2955
      %v2988 = vpack.c.b16 %v2956, %v2956
      %v2989 = vpack.c.b16 %v2957, %v2957
      %v2990 = vpack.c.b16 %v2958, %v2958
      %v2991 = vpack.c.b16 %v2959, %v2959
      %v2992 = vpack.c.b16 %v2960, %v2960
      %v2993 = vpack.c.b16 %v2961, %v2961
      %v2994 = vpack.c.b16 %v2962, %v2962
      %v2995 = vpack.c.b16 %v2963, %v2963
      %v2996 = vpack.c.b16 %v2964, %v2964
      %v2997 = vpack.c.b16 %v2965, %v2965
      %v2998 = vpack.c.b16 %v2966, %v2966
      %v2999 = vpack.c.b16 %v2967, %v2967
      %v3000 = vpack.c.b16 %v2968, %v2968
      %v3001 = vpack.c.b16 %v2969, %v2969
      %v3002 = vpack.c.b16 %v2970, %v2970
      %v3003 = vpack.c.b16 %v2971, %v2971
      %v3004 = vpack.c.b16 %v2972, %v2972
      %v3005 = vpack.c.b16 %v2973, %v2973
      %v3006 = vpack.c.b16 %v2974, %v2974
      %v3007 = vpack.c.b16 %v2975, %v2975
      %v3008 = vpack.c.b16 %v2976, %v2976
      %3009 = vrot.lane.b32.xlu0 %v2977, 56
      %v3010 = vpop.permute.xlu0 %3009
      %3011 = vrot.lane.b32.xlu0 %v2978, 56
      %v3012 = vpop.permute.xlu0 %3011
      %3013 = vrot.lane.b32.xlu0 %v2979, 56
      %v3014 = vpop.permute.xlu0 %3013
      %3015 = vrot.lane.b32.xlu0 %v2980, 56
      %v3016 = vpop.permute.xlu0 %3015
      %3017 = vrot.lane.b32.xlu0 %v2981, 56
      %v3018 = vpop.permute.xlu0 %3017
      %3019 = vrot.lane.b32.xlu0 %v2982, 56
      %v3020 = vpop.permute.xlu0 %3019
      %3021 = vrot.lane.b32.xlu0 %v2983, 56
      %v3022 = vpop.permute.xlu0 %3021
      %3023 = vrot.lane.b32.xlu0 %v2984, 56
      %v3024 = vpop.permute.xlu0 %3023
      %3025 = vrot.lane.b32.xlu0 %v2985, 56
      %v3026 = vpop.permute.xlu0 %3025
      %3027 = vrot.lane.b32.xlu0 %v2986, 56
      %v3028 = vpop.permute.xlu0 %3027
      %3029 = vrot.lane.b32.xlu0 %v2987, 56
      %v3030 = vpop.permute.xlu0 %3029
      %3031 = vrot.lane.b32.xlu0 %v2988, 56
      %v3032 = vpop.permute.xlu0 %3031
      %3033 = vrot.lane.b32.xlu0 %v2989, 56
      %v3034 = vpop.permute.xlu0 %3033
      %3035 = vrot.lane.b32.xlu0 %v2990, 56
      %v3036 = vpop.permute.xlu0 %3035
      %3037 = vrot.lane.b32.xlu0 %v2991, 56
      %v3038 = vpop.permute.xlu0 %3037
      %3039 = vrot.lane.b32.xlu0 %v2992, 56
      %v3040 = vpop.permute.xlu0 %3039
      %3041 = vrot.lane.b32.xlu0 %v2993, 56
      %v3042 = vpop.permute.xlu0 %3041
      %3043 = vrot.lane.b32.xlu0 %v2994, 56
      %v3044 = vpop.permute.xlu0 %3043
      %3045 = vrot.lane.b32.xlu0 %v2995, 56
      %v3046 = vpop.permute.xlu0 %3045
      %3047 = vrot.lane.b32.xlu0 %v2996, 56
      %v3048 = vpop.permute.xlu0 %3047
      %3049 = vrot.lane.b32.xlu0 %v2997, 56
      %v3050 = vpop.permute.xlu0 %3049
      %3051 = vrot.lane.b32.xlu0 %v2998, 56
      %v3052 = vpop.permute.xlu0 %3051
      %3053 = vrot.lane.b32.xlu0 %v2999, 56
      %v3054 = vpop.permute.xlu0 %3053
      %3055 = vrot.lane.b32.xlu0 %v3000, 56
      %v3056 = vpop.permute.xlu0 %3055
      %3057 = vrot.lane.b32.xlu0 %v3001, 56
      %v3058 = vpop.permute.xlu0 %3057
      %3059 = vrot.lane.b32.xlu0 %v3002, 56
      %v3060 = vpop.permute.xlu0 %3059
      %3061 = vrot.lane.b32.xlu0 %v3003, 56
      %v3062 = vpop.permute.xlu0 %3061
      %3063 = vrot.lane.b32.xlu0 %v3004, 56
      %v3064 = vpop.permute.xlu0 %3063
      %3065 = vrot.lane.b32.xlu0 %v3005, 56
      %v3066 = vpop.permute.xlu0 %3065
      %3067 = vrot.lane.b32.xlu0 %v3006, 56
      %v3068 = vpop.permute.xlu0 %3067
      %3069 = vrot.lane.b32.xlu0 %v3007, 56
      %v3070 = vpop.permute.xlu0 %3069
      %3071 = vrot.lane.b32.xlu0 %v3008, 56
      %v3072 = vpop.permute.xlu0 %3071
      %vm3105 = vcmask 519616
      %3106 = vst.msk [vmem:[#allocation3] sm:$0xf] %vm3105, %v3010
      %3107 = vst.msk [vmem:[#allocation3 + $0x4] sm:$0xf] %vm3105, %v3012
      %3108 = vst.msk [vmem:[#allocation3 + $0x8] sm:$0xf] %vm3105, %v3014
      %3109 = vst.msk [vmem:[#allocation3 + $0xc] sm:$0xf] %vm3105, %v3016
      %3110 = vst.msk [vmem:[#allocation3 + $0x10] sm:$0xf] %vm3105, %v3018
      %3111 = vst.msk [vmem:[#allocation3 + $0x14] sm:$0xf] %vm3105, %v3020
      %3112 = vst.msk [vmem:[#allocation3 + $0x18] sm:$0xf] %vm3105, %v3022
      %3113 = vst.msk [vmem:[#allocation3 + $0x1c] sm:$0xf] %vm3105, %v3024
      %3114 = vst.msk [vmem:[#allocation3 + $0x20] sm:$0xf] %vm3105, %v3026
      %3115 = vst.msk [vmem:[#allocation3 + $0x24] sm:$0xf] %vm3105, %v3028
      %3116 = vst.msk [vmem:[#allocation3 + $0x28] sm:$0xf] %vm3105, %v3030
      %3117 = vst.msk [vmem:[#allocation3 + $0x2c] sm:$0xf] %vm3105, %v3032
      %3118 = vst.msk [vmem:[#allocation3 + $0x30] sm:$0xf] %vm3105, %v3034
      %3119 = vst.msk [vmem:[#allocation3 + $0x34] sm:$0xf] %vm3105, %v3036
      %3120 = vst.msk [vmem:[#allocation3 + $0x38] sm:$0xf] %vm3105, %v3038
      %3121 = vst.msk [vmem:[#allocation3 + $0x3c] sm:$0xf] %vm3105, %v3040
      %3122 = vst.msk [vmem:[#allocation3 + $0x40] sm:$0xf] %vm3105, %v3042
      %3123 = vst.msk [vmem:[#allocation3 + $0x44] sm:$0xf] %vm3105, %v3044
      %3124 = vst.msk [vmem:[#allocation3 + $0x48] sm:$0xf] %vm3105, %v3046
      %3125 = vst.msk [vmem:[#allocation3 + $0x4c] sm:$0xf] %vm3105, %v3048
      %3126 = vst.msk [vmem:[#allocation3 + $0x50] sm:$0xf] %vm3105, %v3050
      %3127 = vst.msk [vmem:[#allocation3 + $0x54] sm:$0xf] %vm3105, %v3052
      %3128 = vst.msk [vmem:[#allocation3 + $0x58] sm:$0xf] %vm3105, %v3054
      %3129 = vst.msk [vmem:[#allocation3 + $0x5c] sm:$0xf] %vm3105, %v3056
      %3130 = vst.msk [vmem:[#allocation3 + $0x60] sm:$0xf] %vm3105, %v3058
      %3131 = vst.msk [vmem:[#allocation3 + $0x64] sm:$0xf] %vm3105, %v3060
      %3132 = vst.msk [vmem:[#allocation3 + $0x68] sm:$0xf] %vm3105, %v3062
      %3133 = vst.msk [vmem:[#allocation3 + $0x6c] sm:$0xf] %vm3105, %v3064
      %3134 = vst.msk [vmem:[#allocation3 + $0x70] sm:$0xf] %vm3105, %v3066
      %3135 = vst.msk [vmem:[#allocation3 + $0x74] sm:$0xf] %vm3105, %v3068
      %3136 = vst.msk [vmem:[#allocation3 + $0x78] sm:$0xf] %vm3105, %v3070
      %3137 = vst.msk [vmem:[#allocation3 + $0x7c] sm:$0xf] %vm3105, %v3072
      %v3138 = vld [vmem:[#allocation2 + $0x22] sm:$0xff]
      %v3139 = vld [vmem:[#allocation2 + $0x2a] sm:$0xff]
      %v3140 = vld [vmem:[#allocation2 + $0x32] sm:$0xff]
      %v3141 = vld [vmem:[#allocation2 + $0x3a] sm:$0xff]
      %v3142 = vld [vmem:[#allocation2 + $0x42] sm:$0xff]
      %v3143 = vld [vmem:[#allocation2 + $0x4a] sm:$0xff]
      %v3144 = vld [vmem:[#allocation2 + $0x52] sm:$0xff]
      %v3145 = vld [vmem:[#allocation2 + $0x5a] sm:$0xff]
      %v3146 = vld [vmem:[#allocation2 + $0x62] sm:$0xff]
      %v3147 = vld [vmem:[#allocation2 + $0x6a] sm:$0xff]
      %v3148 = vld [vmem:[#allocation2 + $0x72] sm:$0xff]
      %v3149 = vld [vmem:[#allocation2 + $0x7a] sm:$0xff]
      %v3150 = vld [vmem:[#allocation2 + $0x82] sm:$0xff]
      %v3151 = vld [vmem:[#allocation2 + $0x8a] sm:$0xff]
      %v3152 = vld [vmem:[#allocation2 + $0x92] sm:$0xff]
      %v3153 = vld [vmem:[#allocation2 + $0x9a] sm:$0xff]
      %v3154 = vld [vmem:[#allocation2 + $0xa2] sm:$0xff]
      %v3155 = vld [vmem:[#allocation2 + $0xaa] sm:$0xff]
      %v3156 = vld [vmem:[#allocation2 + $0xb2] sm:$0xff]
      %v3157 = vld [vmem:[#allocation2 + $0xba] sm:$0xff]
      %v3158 = vld [vmem:[#allocation2 + $0xc2] sm:$0xff]
      %v3159 = vld [vmem:[#allocation2 + $0xca] sm:$0xff]
      %v3160 = vld [vmem:[#allocation2 + $0xd2] sm:$0xff]
      %v3161 = vld [vmem:[#allocation2 + $0xda] sm:$0xff]
      %v3162 = vld [vmem:[#allocation2 + $0xe2] sm:$0xff]
      %v3163 = vld [vmem:[#allocation2 + $0xea] sm:$0xff]
      %v3164 = vld [vmem:[#allocation2 + $0xf2] sm:$0xff]
      %v3165 = vld [vmem:[#allocation2 + $0xfa] sm:$0xff]
      %v3166 = vld [vmem:[#allocation2 + $0x102] sm:$0xff]
      %v3167 = vld [vmem:[#allocation2 + $0x10a] sm:$0xff]
      %v3168 = vld [vmem:[#allocation2 + $0x112] sm:$0xff]
      %v3169 = vld [vmem:[#allocation2 + $0x11a] sm:$0xff]
      %v3170 = vsel %vm1468, %v3138, 0.0
      %v3171 = vsel %vm1469, %v3139, 0.0
      %v3172 = vsel %vm1470, %v3140, 0.0
      %v3173 = vsel %vm1471, %v3141, 0.0
      %v3174 = vsel %vm1472, %v3142, 0.0
      %v3175 = vsel %vm1473, %v3143, 0.0
      %v3176 = vsel %vm1474, %v3144, 0.0
      %v3177 = vsel %vm1475, %v3145, 0.0
      %v3178 = vsel %vm1476, %v3146, 0.0
      %v3179 = vsel %vm1477, %v3147, 0.0
      %v3180 = vsel %vm1478, %v3148, 0.0
      %v3181 = vsel %vm1479, %v3149, 0.0
      %v3182 = vsel %vm1480, %v3150, 0.0
      %v3183 = vsel %vm1481, %v3151, 0.0
      %v3184 = vsel %vm1482, %v3152, 0.0
      %v3185 = vsel %vm1483, %v3153, 0.0
      %v3186 = vsel %vm1484, %v3154, 0.0
      %v3187 = vsel %vm1485, %v3155, 0.0
      %v3188 = vsel %vm1486, %v3156, 0.0
      %v3189 = vsel %vm1487, %v3157, 0.0
      %v3190 = vsel %vm1488, %v3158, 0.0
      %v3191 = vsel %vm1489, %v3159, 0.0
      %v3192 = vsel %vm1490, %v3160, 0.0
      %v3193 = vsel %vm1491, %v3161, 0.0
      %v3194 = vsel %vm1492, %v3162, 0.0
      %v3195 = vsel %vm1493, %v3163, 0.0
      %v3196 = vsel %vm1494, %v3164, 0.0
      %v3197 = vsel %vm1495, %v3165, 0.0
      %v3198 = vsel %vm1496, %v3166, 0.0
      %v3199 = vsel %vm1497, %v3167, 0.0
      %v3200 = vsel %vm1498, %v3168, 0.0
      %v3201 = vsel %vm1499, %v3169, 0.0
      %v3202 = vpack.c.bf16 %v3171, %v3170
      %v3203 = vpack.c.bf16 %v3173, %v3172
      %v3204 = vpack.c.bf16 %v3175, %v3174
      %v3205 = vpack.c.bf16 %v3177, %v3176
      %v3206 = vpack.c.bf16 %v3179, %v3178
      %v3207 = vpack.c.bf16 %v3181, %v3180
      %v3208 = vpack.c.bf16 %v3183, %v3182
      %v3209 = vpack.c.bf16 %v3185, %v3184
      %v3210 = vpack.c.bf16 %v3187, %v3186
      %v3211 = vpack.c.bf16 %v3189, %v3188
      %v3212 = vpack.c.bf16 %v3191, %v3190
      %v3213 = vpack.c.bf16 %v3193, %v3192
      %v3214 = vpack.c.bf16 %v3195, %v3194
      %v3215 = vpack.c.bf16 %v3197, %v3196
      %v3216 = vpack.c.bf16 %v3199, %v3198
      %v3217 = vpack.c.bf16 %v3201, %v3200
      %v3234 = vunpack.c.l.b16 %v3202
      %v3235 = vunpack.c.h.b16 %v3202
      %v3236 = vunpack.c.l.b16 %v3203
      %v3237 = vunpack.c.h.b16 %v3203
      %v3238 = vunpack.c.l.b16 %v3204
      %v3239 = vunpack.c.h.b16 %v3204
      %v3240 = vunpack.c.l.b16 %v3205
      %v3241 = vunpack.c.h.b16 %v3205
      %v3242 = vunpack.c.l.b16 %v3206
      %v3243 = vunpack.c.h.b16 %v3206
      %v3244 = vunpack.c.l.b16 %v3207
      %v3245 = vunpack.c.h.b16 %v3207
      %v3246 = vunpack.c.l.b16 %v3208
      %v3247 = vunpack.c.h.b16 %v3208
      %v3248 = vunpack.c.l.b16 %v3209
      %v3249 = vunpack.c.h.b16 %v3209
      %v3250 = vunpack.c.l.b16 %v3210
      %v3251 = vunpack.c.h.b16 %v3210
      %v3252 = vunpack.c.l.b16 %v3211
      %v3253 = vunpack.c.h.b16 %v3211
      %v3254 = vunpack.c.l.b16 %v3212
      %v3255 = vunpack.c.h.b16 %v3212
      %v3256 = vunpack.c.l.b16 %v3213
      %v3257 = vunpack.c.h.b16 %v3213
      %v3258 = vunpack.c.l.b16 %v3214
      %v3259 = vunpack.c.h.b16 %v3214
      %v3260 = vunpack.c.l.b16 %v3215
      %v3261 = vunpack.c.h.b16 %v3215
      %v3262 = vunpack.c.l.b16 %v3216
      %v3263 = vunpack.c.h.b16 %v3216
      %v3264 = vunpack.c.l.b16 %v3217
      %v3265 = vunpack.c.h.b16 %v3217
      %v3266 = vpack.c.b16 %v3234, %v3234
      %v3267 = vpack.c.b16 %v3235, %v3235
      %v3268 = vpack.c.b16 %v3236, %v3236
      %v3269 = vpack.c.b16 %v3237, %v3237
      %v3270 = vpack.c.b16 %v3238, %v3238
      %v3271 = vpack.c.b16 %v3239, %v3239
      %v3272 = vpack.c.b16 %v3240, %v3240
      %v3273 = vpack.c.b16 %v3241, %v3241
      %v3274 = vpack.c.b16 %v3242, %v3242
      %v3275 = vpack.c.b16 %v3243, %v3243
      %v3276 = vpack.c.b16 %v3244, %v3244
      %v3277 = vpack.c.b16 %v3245, %v3245
      %v3278 = vpack.c.b16 %v3246, %v3246
      %v3279 = vpack.c.b16 %v3247, %v3247
      %v3280 = vpack.c.b16 %v3248, %v3248
      %v3281 = vpack.c.b16 %v3249, %v3249
      %v3282 = vpack.c.b16 %v3250, %v3250
      %v3283 = vpack.c.b16 %v3251, %v3251
      %v3284 = vpack.c.b16 %v3252, %v3252
      %v3285 = vpack.c.b16 %v3253, %v3253
      %v3286 = vpack.c.b16 %v3254, %v3254
      %v3287 = vpack.c.b16 %v3255, %v3255
      %v3288 = vpack.c.b16 %v3256, %v3256
      %v3289 = vpack.c.b16 %v3257, %v3257
      %v3290 = vpack.c.b16 %v3258, %v3258
      %v3291 = vpack.c.b16 %v3259, %v3259
      %v3292 = vpack.c.b16 %v3260, %v3260
      %v3293 = vpack.c.b16 %v3261, %v3261
      %v3294 = vpack.c.b16 %v3262, %v3262
      %v3295 = vpack.c.b16 %v3263, %v3263
      %v3296 = vpack.c.b16 %v3264, %v3264
      %v3297 = vpack.c.b16 %v3265, %v3265
      %3298 = vrot.lane.b32.xlu0 %v3266, 64
      %v3299 = vpop.permute.xlu0 %3298
      %3300 = vrot.lane.b32.xlu0 %v3267, 64
      %v3301 = vpop.permute.xlu0 %3300
      %3302 = vrot.lane.b32.xlu0 %v3268, 64
      %v3303 = vpop.permute.xlu0 %3302
      %3304 = vrot.lane.b32.xlu0 %v3269, 64
      %v3305 = vpop.permute.xlu0 %3304
      %3306 = vrot.lane.b32.xlu0 %v3270, 64
      %v3307 = vpop.permute.xlu0 %3306
      %3308 = vrot.lane.b32.xlu0 %v3271, 64
      %v3309 = vpop.permute.xlu0 %3308
      %3310 = vrot.lane.b32.xlu0 %v3272, 64
      %v3311 = vpop.permute.xlu0 %3310
      %3312 = vrot.lane.b32.xlu0 %v3273, 64
      %v3313 = vpop.permute.xlu0 %3312
      %3314 = vrot.lane.b32.xlu0 %v3274, 64
      %v3315 = vpop.permute.xlu0 %3314
      %3316 = vrot.lane.b32.xlu0 %v3275, 64
      %v3317 = vpop.permute.xlu0 %3316
      %3318 = vrot.lane.b32.xlu0 %v3276, 64
      %v3319 = vpop.permute.xlu0 %3318
      %3320 = vrot.lane.b32.xlu0 %v3277, 64
      %v3321 = vpop.permute.xlu0 %3320
      %3322 = vrot.lane.b32.xlu0 %v3278, 64
      %v3323 = vpop.permute.xlu0 %3322
      %3324 = vrot.lane.b32.xlu0 %v3279, 64
      %v3325 = vpop.permute.xlu0 %3324
      %3326 = vrot.lane.b32.xlu0 %v3280, 64
      %v3327 = vpop.permute.xlu0 %3326
      %3328 = vrot.lane.b32.xlu0 %v3281, 64
      %v3329 = vpop.permute.xlu0 %3328
      %3330 = vrot.lane.b32.xlu0 %v3282, 64
      %v3331 = vpop.permute.xlu0 %3330
      %3332 = vrot.lane.b32.xlu0 %v3283, 64
      %v3333 = vpop.permute.xlu0 %3332
      %3334 = vrot.lane.b32.xlu0 %v3284, 64
      %v3335 = vpop.permute.xlu0 %3334
      %3336 = vrot.lane.b32.xlu0 %v3285, 64
      %v3337 = vpop.permute.xlu0 %3336
      %3338 = vrot.lane.b32.xlu0 %v3286, 64
      %v3339 = vpop.permute.xlu0 %3338
      %3340 = vrot.lane.b32.xlu0 %v3287, 64
      %v3341 = vpop.permute.xlu0 %3340
      %3342 = vrot.lane.b32.xlu0 %v3288, 64
      %v3343 = vpop.permute.xlu0 %3342
      %3344 = vrot.lane.b32.xlu0 %v3289, 64
      %v3345 = vpop.permute.xlu0 %3344
      %3346 = vrot.lane.b32.xlu0 %v3290, 64
      %v3347 = vpop.permute.xlu0 %3346
      %3348 = vrot.lane.b32.xlu0 %v3291, 64
      %v3349 = vpop.permute.xlu0 %3348
      %3350 = vrot.lane.b32.xlu0 %v3292, 64
      %v3351 = vpop.permute.xlu0 %3350
      %3352 = vrot.lane.b32.xlu0 %v3293, 64
      %v3353 = vpop.permute.xlu0 %3352
      %3354 = vrot.lane.b32.xlu0 %v3294, 64
      %v3355 = vpop.permute.xlu0 %3354
      %3356 = vrot.lane.b32.xlu0 %v3295, 64
      %v3357 = vpop.permute.xlu0 %3356
      %3358 = vrot.lane.b32.xlu0 %v3296, 64
      %v3359 = vpop.permute.xlu0 %3358
      %3360 = vrot.lane.b32.xlu0 %v3297, 64
      %v3361 = vpop.permute.xlu0 %3360
      %vm3394 = vcmask 585216
      %3395 = vst.msk [vmem:[#allocation3] sm:$0xf] %vm3394, %v3299
      %3396 = vst.msk [vmem:[#allocation3 + $0x4] sm:$0xf] %vm3394, %v3301
      %3397 = vst.msk [vmem:[#allocation3 + $0x8] sm:$0xf] %vm3394, %v3303
      %3398 = vst.msk [vmem:[#allocation3 + $0xc] sm:$0xf] %vm3394, %v3305
      %3399 = vst.msk [vmem:[#allocation3 + $0x10] sm:$0xf] %vm3394, %v3307
      %3400 = vst.msk [vmem:[#allocation3 + $0x14] sm:$0xf] %vm3394, %v3309
      %3401 = vst.msk [vmem:[#allocation3 + $0x18] sm:$0xf] %vm3394, %v3311
      %3402 = vst.msk [vmem:[#allocation3 + $0x1c] sm:$0xf] %vm3394, %v3313
      %3403 = vst.msk [vmem:[#allocation3 + $0x20] sm:$0xf] %vm3394, %v3315
      %3404 = vst.msk [vmem:[#allocation3 + $0x24] sm:$0xf] %vm3394, %v3317
      %3405 = vst.msk [vmem:[#allocation3 + $0x28] sm:$0xf] %vm3394, %v3319
      %3406 = vst.msk [vmem:[#allocation3 + $0x2c] sm:$0xf] %vm3394, %v3321
      %3407 = vst.msk [vmem:[#allocation3 + $0x30] sm:$0xf] %vm3394, %v3323
      %3408 = vst.msk [vmem:[#allocation3 + $0x34] sm:$0xf] %vm3394, %v3325
      %3409 = vst.msk [vmem:[#allocation3 + $0x38] sm:$0xf] %vm3394, %v3327
      %3410 = vst.msk [vmem:[#allocation3 + $0x3c] sm:$0xf] %vm3394, %v3329
      %3411 = vst.msk [vmem:[#allocation3 + $0x40] sm:$0xf] %vm3394, %v3331
      %3412 = vst.msk [vmem:[#allocation3 + $0x44] sm:$0xf] %vm3394, %v3333
      %3413 = vst.msk [vmem:[#allocation3 + $0x48] sm:$0xf] %vm3394, %v3335
      %3414 = vst.msk [vmem:[#allocation3 + $0x4c] sm:$0xf] %vm3394, %v3337
      %3415 = vst.msk [vmem:[#allocation3 + $0x50] sm:$0xf] %vm3394, %v3339
      %3416 = vst.msk [vmem:[#allocation3 + $0x54] sm:$0xf] %vm3394, %v3341
      %3417 = vst.msk [vmem:[#allocation3 + $0x58] sm:$0xf] %vm3394, %v3343
      %3418 = vst.msk [vmem:[#allocation3 + $0x5c] sm:$0xf] %vm3394, %v3345
      %3419 = vst.msk [vmem:[#allocation3 + $0x60] sm:$0xf] %vm3394, %v3347
      %3420 = vst.msk [vmem:[#allocation3 + $0x64] sm:$0xf] %vm3394, %v3349
      %3421 = vst.msk [vmem:[#allocation3 + $0x68] sm:$0xf] %vm3394, %v3351
      %3422 = vst.msk [vmem:[#allocation3 + $0x6c] sm:$0xf] %vm3394, %v3353
      %3423 = vst.msk [vmem:[#allocation3 + $0x70] sm:$0xf] %vm3394, %v3355
      %3424 = vst.msk [vmem:[#allocation3 + $0x74] sm:$0xf] %vm3394, %v3357
      %3425 = vst.msk [vmem:[#allocation3 + $0x78] sm:$0xf] %vm3394, %v3359
      %3426 = vst.msk [vmem:[#allocation3 + $0x7c] sm:$0xf] %vm3394, %v3361
      %v3427 = vld [vmem:[#allocation3] sm:$0xf]
      %v3428 = vld [vmem:[#allocation3 + $0x4] sm:$0xf]
      %v3429 = vld [vmem:[#allocation3 + $0x8] sm:$0xf]
      %v3430 = vld [vmem:[#allocation3 + $0xc] sm:$0xf]
      %v3431 = vld [vmem:[#allocation3 + $0x10] sm:$0xf]
      %v3432 = vld [vmem:[#allocation3 + $0x14] sm:$0xf]
      %v3433 = vld [vmem:[#allocation3 + $0x18] sm:$0xf]
      %v3434 = vld [vmem:[#allocation3 + $0x1c] sm:$0xf]
      %v3435 = vld [vmem:[#allocation3 + $0x20] sm:$0xf]
      %v3436 = vld [vmem:[#allocation3 + $0x24] sm:$0xf]
      %v3437 = vld [vmem:[#allocation3 + $0x28] sm:$0xf]
      %v3438 = vld [vmem:[#allocation3 + $0x2c] sm:$0xf]
      %v3439 = vld [vmem:[#allocation3 + $0x30] sm:$0xf]
      %v3440 = vld [vmem:[#allocation3 + $0x34] sm:$0xf]
      %v3441 = vld [vmem:[#allocation3 + $0x38] sm:$0xf]
      %v3442 = vld [vmem:[#allocation3 + $0x3c] sm:$0xf]
      %v3443 = vld [vmem:[#allocation3 + $0x40] sm:$0xf]
      %v3444 = vld [vmem:[#allocation3 + $0x44] sm:$0xf]
      %v3445 = vld [vmem:[#allocation3 + $0x48] sm:$0xf]
      %v3446 = vld [vmem:[#allocation3 + $0x4c] sm:$0xf]
      %v3447 = vld [vmem:[#allocation3 + $0x50] sm:$0xf]
      %v3448 = vld [vmem:[#allocation3 + $0x54] sm:$0xf]
      %v3449 = vld [vmem:[#allocation3 + $0x58] sm:$0xf]
      %v3450 = vld [vmem:[#allocation3 + $0x5c] sm:$0xf]
      %v3451 = vld [vmem:[#allocation3 + $0x60] sm:$0xf]
      %v3452 = vld [vmem:[#allocation3 + $0x64] sm:$0xf]
      %v3453 = vld [vmem:[#allocation3 + $0x68] sm:$0xf]
      %v3454 = vld [vmem:[#allocation3 + $0x6c] sm:$0xf]
      %v3455 = vld [vmem:[#allocation3 + $0x70] sm:$0xf]
      %v3456 = vld [vmem:[#allocation3 + $0x74] sm:$0xf]
      %v3457 = vld [vmem:[#allocation3 + $0x78] sm:$0xf]
      %v3458 = vld [vmem:[#allocation3 + $0x7c] sm:$0xf]
      %v3459 = vld [vmem:[%s1] sm:$0xf]
      %v3460 = vld [vmem:[%s1 + $0x4] sm:$0xf]
      %v3461 = vld [vmem:[%s3] sm:$0xff]
      %v3462 = vld [vmem:[%s3 + $0x8] sm:$0xff]
      %3464 = vset.pattern.permute.xlu0 0
      %3465 = vperm.xlu0 %3464, %v3461
      %v3466 = vpop.permute.xlu0 %3465
      %3469 = vset.pattern.permute.xlu0 0
      %3470 = vperm.xlu0 %3469, %v3462
      %v3471 = vpop.permute.xlu0 %3470
      %v3475 = vunpack.c.l.b16 %v3459
      %v3476 = vunpack.c.l.b16 %v3460
      %v3477 = vpack.c.b16 %v3476, %v3475
      %v3510 = vunpack.c.l.b16 %v3427
      %v3511 = vunpack.c.l.b16 %v3428
      %v3512 = vunpack.c.l.b16 %v3429
      %v3513 = vunpack.c.l.b16 %v3430
      %v3514 = vunpack.c.l.b16 %v3431
      %v3515 = vunpack.c.l.b16 %v3432
      %v3516 = vunpack.c.l.b16 %v3433
      %v3517 = vunpack.c.l.b16 %v3434
      %v3518 = vunpack.c.l.b16 %v3435
      %v3519 = vunpack.c.l.b16 %v3436
      %v3520 = vunpack.c.l.b16 %v3437
      %v3521 = vunpack.c.l.b16 %v3438
      %v3522 = vunpack.c.l.b16 %v3439
      %v3523 = vunpack.c.l.b16 %v3440
      %v3524 = vunpack.c.l.b16 %v3441
      %v3525 = vunpack.c.l.b16 %v3442
      %v3526 = vunpack.c.l.b16 %v3443
      %v3527 = vunpack.c.l.b16 %v3444
      %v3528 = vunpack.c.l.b16 %v3445
      %v3529 = vunpack.c.l.b16 %v3446
      %v3530 = vunpack.c.l.b16 %v3447
      %v3531 = vunpack.c.l.b16 %v3448
      %v3532 = vunpack.c.l.b16 %v3449
      %v3533 = vunpack.c.l.b16 %v3450
      %v3534 = vunpack.c.l.b16 %v3451
      %v3535 = vunpack.c.l.b16 %v3452
      %v3536 = vunpack.c.l.b16 %v3453
      %v3537 = vunpack.c.l.b16 %v3454
      %v3538 = vunpack.c.l.b16 %v3455
      %v3539 = vunpack.c.l.b16 %v3456
      %v3540 = vunpack.c.l.b16 %v3457
      %v3541 = vunpack.c.l.b16 %v3458
      %v3542 = vpack.c.b16 %v3511, %v3510
      %v3543 = vpack.c.b16 %v3513, %v3512
      %v3544 = vpack.c.b16 %v3515, %v3514
      %v3545 = vpack.c.b16 %v3517, %v3516
      %v3546 = vpack.c.b16 %v3519, %v3518
      %v3547 = vpack.c.b16 %v3521, %v3520
      %v3548 = vpack.c.b16 %v3523, %v3522
      %v3549 = vpack.c.b16 %v3525, %v3524
      %v3550 = vpack.c.b16 %v3527, %v3526
      %v3551 = vpack.c.b16 %v3529, %v3528
      %v3552 = vpack.c.b16 %v3531, %v3530
      %v3553 = vpack.c.b16 %v3533, %v3532
      %v3554 = vpack.c.b16 %v3535, %v3534
      %v3555 = vpack.c.b16 %v3537, %v3536
      %v3556 = vpack.c.b16 %v3539, %v3538
      %v3557 = vpack.c.b16 %v3541, %v3540
      %vm3558 = vcmask 588800
      %v3560 = vsel %vm3558, %v3477, 0
      %v3563 = vsel %vm3558, %v3542, 0
      %v3566 = vsel %vm3558, %v3543, 0
      %v3569 = vsel %vm3558, %v3544, 0
      %v3572 = vsel %vm3558, %v3545, 0
      %v3575 = vsel %vm3558, %v3546, 0
      %v3578 = vsel %vm3558, %v3547, 0
      %v3581 = vsel %vm3558, %v3548, 0
      %v3584 = vsel %vm3558, %v3549, 0
      %v3587 = vsel %vm3558, %v3550, 0
      %v3590 = vsel %vm3558, %v3551, 0
      %v3593 = vsel %vm3558, %v3552, 0
      %v3596 = vsel %vm3558, %v3553, 0
      %v3599 = vsel %vm3558, %v3554, 0
      %v3602 = vsel %vm3558, %v3555, 0
      %v3605 = vsel %vm3558, %v3556, 0
      %v3608 = vsel %vm3558, %v3557, 0
      %3610 = vmatprep.subr.bf16.mxu0 0
      %3611 = vmatpush1.bf16.xpose.msra.mxu0 %v3584
      %3612 = vmatprep.subr.bf16.mxu0 0
      %3613 = vmatpush1.bf16.xpose.msra.mxu0 %v3581
      %3614 = vmatprep.subr.bf16.mxu0 0
      %3615 = vmatpush1.bf16.xpose.msra.mxu0 %v3578
      %3616 = vmatprep.subr.bf16.mxu0 0
      %3617 = vmatpush1.bf16.xpose.msra.mxu0 %v3575
      %3618 = vmatprep.subr.bf16.mxu0 0
      %3619 = vmatpush1.bf16.xpose.msra.mxu0 %v3572
      %3620 = vmatprep.subr.bf16.mxu0 0
      %3621 = vmatpush1.bf16.xpose.msra.mxu0 %v3569
      %3622 = vmatprep.subr.bf16.mxu0 0
      %3623 = vmatpush1.bf16.xpose.msra.mxu0 %v3566
      %3624 = vmatprep.subr.bf16.mxu0 0
      %3625 = vmatpush1.bf16.xpose.msra.mxu0 %v3563
      %3626 = vmatprep.subr.bf16.mxu0 0
      %3627 = vmatpush2.bf16.xpose.msra.mxu0 %v3608
      %3628 = vmatprep.subr.bf16.mxu0 0
      %3629 = vmatpush2.bf16.xpose.msra.mxu0 %v3605
      %3630 = vmatprep.subr.bf16.mxu0 0
      %3631 = vmatpush2.bf16.xpose.msra.mxu0 %v3602
      %3632 = vmatprep.subr.bf16.mxu0 0
      %3633 = vmatpush2.bf16.xpose.msra.mxu0 %v3599
      %3634 = vmatprep.subr.bf16.mxu0 0
      %3635 = vmatpush2.bf16.xpose.msra.mxu0 %v3596
      %3636 = vmatprep.subr.bf16.mxu0 0
      %3637 = vmatpush2.bf16.xpose.msra.mxu0 %v3593
      %3638 = vmatprep.subr.bf16.mxu0 0
      %3639 = vmatpush2.bf16.xpose.msra.mxu0 %v3590
      %3640 = vmatprep.subr.bf16.mxu0 0
      %3641 = vmatpush2.bf16.xpose.msra.mxu0 %v3587
      %3642 = vmatprep.mubr.bf16.mxu0 0
      %3643 = vmatmul.mubr.bf16.gmra.mxu0 %v3560
      %v3644 = vpop.f32.mrf.mxu0
      %v3645 = vadd.f32 %v3466, %v3644
      %v3646 = vpop.f32.mrf.mxu0
      %v3647 = vadd.f32 %v3466, %v3646
      %v3648 = vpop.f32.mrf.mxu0
      %v3649 = vadd.f32 %v3471, %v3648
      %v3650 = vpop.f32.mrf.mxu0
      %v3651 = vadd.f32 %v3471, %v3650
      %3652 = vdwg.mxu0
      %v3653 = vpack.c.bf16 %v3649, %v3645
      %v3654 = vpack.c.bf16 %v3651, %v3647
      %v3657 = vunpack.c.l.b16 %v3653
      %v3658 = vunpack.c.l.b16 %v3654
      %v3659 = vunpack.c.h.b16 %v3653
      %v3660 = vunpack.c.h.b16 %v3654
      %v3661 = vpack.c.b16 %v3658, %v3657
      %v3662 = vpack.c.b16 %v3660, %v3659
      %3665 = vst [vmem:[%s293] sm:$0xff] %v3661
      %3666 = vst [vmem:[%s293 + $0x8] sm:$0xff] %v3662
      %v3667 = vld [vmem:[%s2] sm:$0xf]
      %v3668 = vld [vmem:[%s2 + $0x4] sm:$0xf]
      %v3669 = vld [vmem:[%s2 + $0x8] sm:$0xf]
      %v3670 = vld [vmem:[%s2 + $0xc] sm:$0xf]
      %v3671 = vld [vmem:[%s2 + $0x10] sm:$0xf]
      %v3672 = vld [vmem:[%s2 + $0x14] sm:$0xf]
      %v3673 = vld [vmem:[%s2 + $0x18] sm:$0xf]
      %v3674 = vld [vmem:[%s2 + $0x1c] sm:$0xf]
      %v3675 = vld [vmem:[%s2 + $0x20] sm:$0xf]
      %v3676 = vld [vmem:[%s4] sm:$0x1]
      %v3678 = vlaneseq
      %v3679 = vshrl.u32 %v3678, 7
      %v3680 = vsub.s32 0, %v3679
      %v3681 = vrot.slane %v3676, %v3680
      %v3692 = vunpack.c.l.b16 %v3667
      %v3693 = vunpack.c.l.b16 %v3668
      %v3694 = vunpack.c.l.b16 %v3669
      %v3695 = vunpack.c.l.b16 %v3670
      %v3696 = vunpack.c.l.b16 %v3671
      %v3697 = vunpack.c.l.b16 %v3672
      %v3698 = vunpack.c.l.b16 %v3673
      %v3699 = vunpack.c.l.b16 %v3674
      %v3700 = vunpack.c.l.b16 %v3675
      %v3701 = vpack.c.b16 %v3693, %v3692
      %v3702 = vpack.c.b16 %v3695, %v3694
      %v3703 = vpack.c.b16 %v3697, %v3696
      %v3704 = vpack.c.b16 %v3699, %v3698
      %v3705 = vpack.c.b16 %v3700, %v3700
      %vm3710 = vcmask 1043456
      %v3712 = vsel %vm3710, %v3705, 0
      %3714 = vmatprep.subr.bf16.mxu0 0
      %3715 = vmatpush1.bf16.msra.mxu0 0
      %3716 = vmatprep.subr.bf16.mxu0 0
      %3717 = vmatpush1.bf16.msra.mxu0 0
      %3718 = vmatprep.subr.bf16.mxu0 0
      %3719 = vmatpush1.bf16.msra.mxu0 0
      %3720 = vmatprep.subr.bf16.mxu0 0
      %3721 = vmatpush1.bf16.msra.mxu0 %v3712
      %3722 = vmatprep.subr.bf16.mxu0 0
      %3723 = vmatpush1.bf16.msra.mxu0 %v3704
      %3724 = vmatprep.subr.bf16.mxu0 0
      %3725 = vmatpush1.bf16.msra.mxu0 %v3703
      %3726 = vmatprep.subr.bf16.mxu0 0
      %3727 = vmatpush1.bf16.msra.mxu0 %v3702
      %3728 = vmatprep.subr.bf16.mxu0 0
      %3729 = vmatpush1.bf16.msra.mxu0 %v3701
      %3730 = vmatprep.subr.bf16.mxu0 0
      %3731 = vmatpush2.bf16.msra.mxu0 0
      %3732 = vmatprep.subr.bf16.mxu0 0
      %3733 = vmatpush2.bf16.msra.mxu0 0
      %3734 = vmatprep.subr.bf16.mxu0 0
      %3735 = vmatpush2.bf16.msra.mxu0 0
      %3736 = vmatprep.subr.bf16.mxu0 0
      %3737 = vmatpush2.bf16.msra.mxu0 0
      %3738 = vmatprep.subr.bf16.mxu0 0
      %3739 = vmatpush2.bf16.msra.mxu0 0
      %3740 = vmatprep.subr.bf16.mxu0 0
      %3741 = vmatpush2.bf16.msra.mxu0 0
      %3742 = vmatprep.subr.bf16.mxu0 0
      %3743 = vmatpush2.bf16.msra.mxu0 0
      %3744 = vmatprep.subr.bf16.mxu0 0
      %3745 = vmatpush2.bf16.msra.mxu0 0
      %3746 = vmatprep.mubr.bf16.mxu0 0
      %3747 = vmatmul.mubr.bf16.gmra.mxu0 %v3563
      %v3748 = vpop.f32.mrf.mxu0
      %v3749 = vadd.f32 %v3681, %v3748
      %v3750 = vpop.f32.mrf.mxu0
      %v3751 = vpop.f32.mrf.mxu0
      %v3752 = vadd.f32 %v3681, %v3751
      %v3753 = vpop.f32.mrf.mxu0
      %3754 = vmatprep.mubr.bf16.mxu0 0
      %3755 = vmatmul.mubr.bf16.gmra.mxu0 %v3566
      %v3756 = vpop.f32.mrf.mxu0
      %v3757 = vadd.f32 %v3681, %v3756
      %v3758 = vpop.f32.mrf.mxu0
      %v3759 = vpop.f32.mrf.mxu0
      %v3760 = vadd.f32 %v3681, %v3759
      %v3761 = vpop.f32.mrf.mxu0
      %3762 = vmatprep.mubr.bf16.mxu0 0
      %3763 = vmatmul.mubr.bf16.gmra.mxu0 %v3569
      %v3764 = vpop.f32.mrf.mxu0
      %v3765 = vadd.f32 %v3681, %v3764
      %v3766 = vpop.f32.mrf.mxu0
      %v3767 = vpop.f32.mrf.mxu0
      %v3768 = vadd.f32 %v3681, %v3767
      %v3769 = vpop.f32.mrf.mxu0
      %3770 = vmatprep.mubr.bf16.mxu0 0
      %3771 = vmatmul.mubr.bf16.gmra.mxu0 %v3572
      %v3772 = vpop.f32.mrf.mxu0
      %v3773 = vadd.f32 %v3681, %v3772
      %v3774 = vpop.f32.mrf.mxu0
      %v3775 = vpop.f32.mrf.mxu0
      %v3776 = vadd.f32 %v3681, %v3775
      %v3777 = vpop.f32.mrf.mxu0
      %3778 = vmatprep.mubr.bf16.mxu0 0
      %3779 = vmatmul.mubr.bf16.gmra.mxu0 %v3575
      %v3780 = vpop.f32.mrf.mxu0
      %v3781 = vadd.f32 %v3681, %v3780
      %v3782 = vpop.f32.mrf.mxu0
      %v3783 = vpop.f32.mrf.mxu0
      %v3784 = vadd.f32 %v3681, %v3783
      %v3785 = vpop.f32.mrf.mxu0
      %3786 = vmatprep.mubr.bf16.mxu0 0
      %3787 = vmatmul.mubr.bf16.gmra.mxu0 %v3578
      %v3788 = vpop.f32.mrf.mxu0
      %v3789 = vadd.f32 %v3681, %v3788
      %v3790 = vpop.f32.mrf.mxu0
      %v3791 = vpop.f32.mrf.mxu0
      %v3792 = vadd.f32 %v3681, %v3791
      %v3793 = vpop.f32.mrf.mxu0
      %3794 = vmatprep.mubr.bf16.mxu0 0
      %3795 = vmatmul.mubr.bf16.gmra.mxu0 %v3581
      %v3796 = vpop.f32.mrf.mxu0
      %v3797 = vadd.f32 %v3681, %v3796
      %v3798 = vpop.f32.mrf.mxu0
      %v3799 = vpop.f32.mrf.mxu0
      %v3800 = vadd.f32 %v3681, %v3799
      %v3801 = vpop.f32.mrf.mxu0
      %3802 = vmatprep.mubr.bf16.mxu0 0
      %3803 = vmatmul.mubr.bf16.gmra.mxu0 %v3584
      %v3804 = vpop.f32.mrf.mxu0
      %v3805 = vadd.f32 %v3681, %v3804
      %v3806 = vpop.f32.mrf.mxu0
      %v3807 = vpop.f32.mrf.mxu0
      %v3808 = vadd.f32 %v3681, %v3807
      %v3809 = vpop.f32.mrf.mxu0
      %3810 = vmatprep.mubr.bf16.mxu0 0
      %3811 = vmatmul.mubr.bf16.gmra.mxu0 %v3587
      %v3812 = vpop.f32.mrf.mxu0
      %v3813 = vadd.f32 %v3681, %v3812
      %v3814 = vpop.f32.mrf.mxu0
      %v3815 = vpop.f32.mrf.mxu0
      %v3816 = vadd.f32 %v3681, %v3815
      %v3817 = vpop.f32.mrf.mxu0
      %3818 = vmatprep.mubr.bf16.mxu0 0
      %3819 = vmatmul.mubr.bf16.gmra.mxu0 %v3590
      %v3820 = vpop.f32.mrf.mxu0
      %v3821 = vadd.f32 %v3681, %v3820
      %v3822 = vpop.f32.mrf.mxu0
      %v3823 = vpop.f32.mrf.mxu0
      %v3824 = vadd.f32 %v3681, %v3823
      %v3825 = vpop.f32.mrf.mxu0
      %3826 = vmatprep.mubr.bf16.mxu0 0
      %3827 = vmatmul.mubr.bf16.gmra.mxu0 %v3593
      %v3828 = vpop.f32.mrf.mxu0
      %v3829 = vadd.f32 %v3681, %v3828
      %v3830 = vpop.f32.mrf.mxu0
      %v3831 = vpop.f32.mrf.mxu0
      %v3832 = vadd.f32 %v3681, %v3831
      %v3833 = vpop.f32.mrf.mxu0
      %3834 = vmatprep.mubr.bf16.mxu0 0
      %3835 = vmatmul.mubr.bf16.gmra.mxu0 %v3596
      %v3836 = vpop.f32.mrf.mxu0
      %v3837 = vadd.f32 %v3681, %v3836
      %v3838 = vpop.f32.mrf.mxu0
      %v3839 = vpop.f32.mrf.mxu0
      %v3840 = vadd.f32 %v3681, %v3839
      %v3841 = vpop.f32.mrf.mxu0
      %3842 = vmatprep.mubr.bf16.mxu0 0
      %3843 = vmatmul.mubr.bf16.gmra.mxu0 %v3599
      %v3844 = vpop.f32.mrf.mxu0
      %v3845 = vadd.f32 %v3681, %v3844
      %v3846 = vpop.f32.mrf.mxu0
      %v3847 = vpop.f32.mrf.mxu0
      %v3848 = vadd.f32 %v3681, %v3847
      %v3849 = vpop.f32.mrf.mxu0
      %3850 = vmatprep.mubr.bf16.mxu0 0
      %3851 = vmatmul.mubr.bf16.gmra.mxu0 %v3602
      %v3852 = vpop.f32.mrf.mxu0
      %v3853 = vadd.f32 %v3681, %v3852
      %v3854 = vpop.f32.mrf.mxu0
      %v3855 = vpop.f32.mrf.mxu0
      %v3856 = vadd.f32 %v3681, %v3855
      %v3857 = vpop.f32.mrf.mxu0
      %3858 = vmatprep.mubr.bf16.mxu0 0
      %3859 = vmatmul.mubr.bf16.gmra.mxu0 %v3605
      %v3860 = vpop.f32.mrf.mxu0
      %v3861 = vadd.f32 %v3681, %v3860
      %v3862 = vpop.f32.mrf.mxu0
      %v3863 = vpop.f32.mrf.mxu0
      %v3864 = vadd.f32 %v3681, %v3863
      %v3865 = vpop.f32.mrf.mxu0
      %3866 = vmatprep.mubr.bf16.mxu0 0
      %3867 = vmatmul.mubr.bf16.gmra.mxu0 %v3608
      %v3868 = vpop.f32.mrf.mxu0
      %v3869 = vadd.f32 %v3681, %v3868
      %v3870 = vpop.f32.mrf.mxu0
      %v3871 = vpop.f32.mrf.mxu0
      %v3872 = vadd.f32 %v3681, %v3871
      %v3873 = vpop.f32.mrf.mxu0
      %3874 = vdwg.mxu0
      %vm3875 = vcmask 261120
      %3876 = vst.msk [vmem:[#allocation4] sm:$0xff] %vm3875, %v3749
      %3877 = vst.msk [vmem:[#allocation4 + $0x8] sm:$0xff] %vm3875, %v3752
      %3878 = vst.msk [vmem:[#allocation4 + $0x10] sm:$0xff] %vm3875, %v3757
      %3879 = vst.msk [vmem:[#allocation4 + $0x18] sm:$0xff] %vm3875, %v3760
      %3880 = vst.msk [vmem:[#allocation4 + $0x20] sm:$0xff] %vm3875, %v3765
      %3881 = vst.msk [vmem:[#allocation4 + $0x28] sm:$0xff] %vm3875, %v3768
      %3882 = vst.msk [vmem:[#allocation4 + $0x30] sm:$0xff] %vm3875, %v3773
      %3883 = vst.msk [vmem:[#allocation4 + $0x38] sm:$0xff] %vm3875, %v3776
      %3884 = vst.msk [vmem:[#allocation4 + $0x40] sm:$0xff] %vm3875, %v3781
      %3885 = vst.msk [vmem:[#allocation4 + $0x48] sm:$0xff] %vm3875, %v3784
      %3886 = vst.msk [vmem:[#allocation4 + $0x50] sm:$0xff] %vm3875, %v3789
      %3887 = vst.msk [vmem:[#allocation4 + $0x58] sm:$0xff] %vm3875, %v3792
      %3888 = vst.msk [vmem:[#allocation4 + $0x60] sm:$0xff] %vm3875, %v3797
      %3889 = vst.msk [vmem:[#allocation4 + $0x68] sm:$0xff] %vm3875, %v3800
      %3890 = vst.msk [vmem:[#allocation4 + $0x70] sm:$0xff] %vm3875, %v3805
      %3891 = vst.msk [vmem:[#allocation4 + $0x78] sm:$0xff] %vm3875, %v3808
      %3892 = vst.msk [vmem:[#allocation4 + $0x80] sm:$0xff] %vm3875, %v3813
      %3893 = vst.msk [vmem:[#allocation4 + $0x88] sm:$0xff] %vm3875, %v3816
      %3894 = vst.msk [vmem:[#allocation4 + $0x90] sm:$0xff] %vm3875, %v3821
      %3895 = vst.msk [vmem:[#allocation4 + $0x98] sm:$0xff] %vm3875, %v3824
      %3896 = vst.msk [vmem:[#allocation4 + $0xa0] sm:$0xff] %vm3875, %v3829
      %3897 = vst.msk [vmem:[#allocation4 + $0xa8] sm:$0xff] %vm3875, %v3832
      %3898 = vst.msk [vmem:[#allocation4 + $0xb0] sm:$0xff] %vm3875, %v3837
      %3899 = vst.msk [vmem:[#allocation4 + $0xb8] sm:$0xff] %vm3875, %v3840
      %3900 = vst.msk [vmem:[#allocation4 + $0xc0] sm:$0xff] %vm3875, %v3845
      %3901 = vst.msk [vmem:[#allocation4 + $0xc8] sm:$0xff] %vm3875, %v3848
      %3902 = vst.msk [vmem:[#allocation4 + $0xd0] sm:$0xff] %vm3875, %v3853
      %3903 = vst.msk [vmem:[#allocation4 + $0xd8] sm:$0xff] %vm3875, %v3856
      %3904 = vst.msk [vmem:[#allocation4 + $0xe0] sm:$0xff] %vm3875, %v3861
      %3905 = vst.msk [vmem:[#allocation4 + $0xe8] sm:$0xff] %vm3875, %v3864
      %3906 = vst.msk [vmem:[#allocation4 + $0xf0] sm:$0xff] %vm3875, %v3869
      %3907 = vst.msk [vmem:[#allocation4 + $0xf8] sm:$0xff] %vm3875, %v3872
      %v3908 = vld [vmem:[#allocation4] ss:$2 sm:$0xff]
      %v3909 = vpack.c.bf16 %v3908, %v3908
      %vm3910 = vcmask 125952
      %3911 = vst.msk [vmem:[%s298] sm:$0xf] %vm3910, %v3909
      %v3913 = vunpack.c.l.b16 %v3909
      %v3914 = vpack.c.b16 %v3913, %v3913
      %3915 = vrot.lane.b32.xlu0 %v3914, 112
      %v3916 = vpop.permute.xlu0 %3915
      %3918 = vst.msk [vmem:[%s303] sm:$0xf] %vm3910, %v3916
      %s3919 = scalar_lea.vmem [#allocation4], 32
      %v3920 = vld [vmem:[%s3919] ss:$2 sm:$0xff]
      %v3921 = vpack.c.bf16 %v3920, %v3920
      %3922 = vst.msk [vmem:[%s298 + $0x4] sm:$0xf] %vm3910, %v3921
      %v3924 = vunpack.c.l.b16 %v3921
      %v3925 = vpack.c.b16 %v3924, %v3924
      %3926 = vrot.lane.b32.xlu0 %v3925, 112
      %v3927 = vpop.permute.xlu0 %3926
      %3929 = vst.msk [vmem:[%s303 + $0x4] sm:$0xf] %vm3910, %v3927
      %s3930 = scalar_lea.vmem [#allocation4], 64
      %v3931 = vld [vmem:[%s3930] ss:$2 sm:$0xff]
      %v3932 = vpack.c.bf16 %v3931, %v3931
      %3933 = vst.msk [vmem:[%s298 + $0x8] sm:$0xf] %vm3910, %v3932
      %v3935 = vunpack.c.l.b16 %v3932
      %v3936 = vpack.c.b16 %v3935, %v3935
      %3937 = vrot.lane.b32.xlu0 %v3936, 112
      %v3938 = vpop.permute.xlu0 %3937
      %3940 = vst.msk [vmem:[%s303 + $0x8] sm:$0xf] %vm3910, %v3938
      %s3941 = scalar_lea.vmem [#allocation4], 96
      %v3942 = vld [vmem:[%s3941] ss:$2 sm:$0xff]
      %v3943 = vpack.c.bf16 %v3942, %v3942
      %3944 = vst.msk [vmem:[%s298 + $0xc] sm:$0xf] %vm3910, %v3943
      %v3946 = vunpack.c.l.b16 %v3943
      %v3947 = vpack.c.b16 %v3946, %v3946
      %3948 = vrot.lane.b32.xlu0 %v3947, 112
      %v3949 = vpop.permute.xlu0 %3948
      %3951 = vst.msk [vmem:[%s303 + $0xc] sm:$0xf] %vm3910, %v3949
      %s3952 = scalar_lea.vmem [#allocation4], 128
      %v3953 = vld [vmem:[%s3952] ss:$2 sm:$0xff]
      %v3954 = vpack.c.bf16 %v3953, %v3953
      %3955 = vst.msk [vmem:[%s298 + $0x10] sm:$0xf] %vm3910, %v3954
      %v3957 = vunpack.c.l.b16 %v3954
      %v3958 = vpack.c.b16 %v3957, %v3957
      %3959 = vrot.lane.b32.xlu0 %v3958, 112
      %v3960 = vpop.permute.xlu0 %3959
      %3962 = vst.msk [vmem:[%s303 + $0x10] sm:$0xf] %vm3910, %v3960
      %s3963 = scalar_lea.vmem [#allocation4], 160
      %v3964 = vld [vmem:[%s3963] ss:$2 sm:$0xff]
      %v3965 = vpack.c.bf16 %v3964, %v3964
      %3966 = vst.msk [vmem:[%s298 + $0x14] sm:$0xf] %vm3910, %v3965
      %v3968 = vunpack.c.l.b16 %v3965
      %v3969 = vpack.c.b16 %v3968, %v3968
      %3970 = vrot.lane.b32.xlu0 %v3969, 112
      %v3971 = vpop.permute.xlu0 %3970
      %3973 = vst.msk [vmem:[%s303 + $0x14] sm:$0xf] %vm3910, %v3971
      %s3974 = scalar_lea.vmem [#allocation4], 192
      %v3975 = vld [vmem:[%s3974] ss:$2 sm:$0xff]
      %v3976 = vpack.c.bf16 %v3975, %v3975
      %3977 = vst.msk [vmem:[%s298 + $0x18] sm:$0xf] %vm3910, %v3976
      %v3979 = vunpack.c.l.b16 %v3976
      %v3980 = vpack.c.b16 %v3979, %v3979
      %3981 = vrot.lane.b32.xlu0 %v3980, 112
      %v3982 = vpop.permute.xlu0 %3981
      %3984 = vst.msk [vmem:[%s303 + $0x18] sm:$0xf] %vm3910, %v3982
      %s3985 = scalar_lea.vmem [#allocation4], 224
      %v3986 = vld [vmem:[%s3985] ss:$2 sm:$0xff]
      %v3987 = vpack.c.bf16 %v3986, %v3986
      %3988 = vst.msk [vmem:[%s298 + $0x1c] sm:$0xf] %vm3910, %v3987
      %v3990 = vunpack.c.l.b16 %v3987
      %v3991 = vpack.c.b16 %v3990, %v3990
      %3992 = vrot.lane.b32.xlu0 %v3991, 112
      %v3993 = vpop.permute.xlu0 %3992
      %3995 = vst.msk [vmem:[%s303 + $0x1c] sm:$0xf] %vm3910, %v3993
      %p3996 = scmp.lt.s32.totalorder %s19, 1
      %s3997 = scalar_select %p3996, %s19, 1
      %s3998 = smul.addr %s3997, 4
      %s3999 = smul.addr %s3998, 4
      %s4000 = scalar_lea.vmem %s5, %s3999
      %p4001 = scmp.lt.s32.totalorder %s19, 1
      %s4002 = scalar_select %p4001, %s19, 1
      %s4003 = smul.addr %s4002, 8
      %s4004 = smul.addr %s4003, 4
      %s4005 = scalar_lea.vmem %s6, %s4004
      %p4006 = scmp.lt.s32.totalorder %s19, 1
      %s4007 = scalar_select %p4006, %s19, 1
      %s4008 = smul.addr %s4007, 8
      %s4009 = smul.addr %s4008, 4
      %s4010 = scalar_lea.vmem %s7, %s4009
      // Predicated region
      $region41: #{attention_dw_forward.2} parent=39 // pred_check
        %p4011 = pneg %p147
      $region42: #{attention_dw_forward.2} parent=39 // pred_check_branch
        %4013 = sbr.rel (%p4011) target = $region44
      $region43: #{attention_dw_forward.2} parent=39 // pred_region
        _
      $region44: #{attention_dw_forward.2} parent=39 // pred_fallthru
        _
      // Predicated region
      $region45: #{attention_dw_forward.2} parent=39 // pred_check
        %p4014 = pneg %p173
      $region46: #{attention_dw_forward.2} parent=39 // pred_check_branch
        %4016 = sbr.rel (%p4014) target = $region48
      $region47: #{attention_dw_forward.2} parent=39 // pred_region
        _
      $region48: #{attention_dw_forward.2} parent=39 // pred_fallthru
        _
      // Predicated region
      $region49: #{attention_dw_forward.2} parent=39 // pred_check
        %p4017 = pneg %p199
      $region50: #{attention_dw_forward.2} parent=39 // pred_check_branch
        %4019 = sbr.rel (%p4017) target = $region52
      $region51: #{attention_dw_forward.2} parent=39 // pred_region
        _
      $region52: #{attention_dw_forward.2} parent=39 // pred_fallthru
        _
    $region40: #{attention_dw_forward.2} parent=5 // pred_fallthru
      _
    %p4020 = scmp.le.s32.totalorder 2, %s14
    // Predicated region
    $region53: #{attention_dw_forward.2} parent=5 // pred_check
      %p4021 = pneg %p4020
    $region54: #{attention_dw_forward.2} parent=5 // pred_check_branch
      %4023 = sbr.rel (%p4021) target = $region56
    $region55: #{attention_dw_forward.2} parent=5 // pred_region
      %s4024 = ssub.s32 %s14, 2
      // Predicated region
      $region57: #{attention_dw_forward.2} parent=55 // pred_check
        %p4025 = pneg %p153
      $region58: #{attention_dw_forward.2} parent=55 // pred_check_branch
        %4027 = sbr.rel (%p4025) target = $region60
      $region59: #{attention_dw_forward.2} parent=55 // pred_region
        %p4028 = scmp.lt.s32.totalorder %s20, 1
        %s4029 = scalar_select %p4028, %s20, 1
        %s4030 = smul.addr %s4029, 4
        %s4031 = smul.addr %s4030, 4
        %s4032 = scalar_lea.vmem %s5, %s4031
      $region60: #{attention_dw_forward.2} parent=55 // pred_fallthru
        _
      // Predicated region
      $region61: #{attention_dw_forward.2} parent=55 // pred_check
        %p4033 = pneg %p179
      $region62: #{attention_dw_forward.2} parent=55 // pred_check_branch
        %4035 = sbr.rel (%p4033) target = $region64
      $region63: #{attention_dw_forward.2} parent=55 // pred_region
        %p4036 = scmp.lt.s32.totalorder %s20, 1
        %s4037 = scalar_select %p4036, %s20, 1
        %s4038 = smul.addr %s4037, 8
        %s4039 = smul.addr %s4038, 4
        %s4040 = scalar_lea.vmem %s6, %s4039
      $region64: #{attention_dw_forward.2} parent=55 // pred_fallthru
        _
      // Predicated region
      $region65: #{attention_dw_forward.2} parent=55 // pred_check
        %p4041 = pneg %p205
      $region66: #{attention_dw_forward.2} parent=55 // pred_check_branch
        %4043 = sbr.rel (%p4041) target = $region68
      $region67: #{attention_dw_forward.2} parent=55 // pred_region
        %p4044 = scmp.lt.s32.totalorder %s20, 1
        %s4045 = scalar_select %p4044, %s20, 1
        %s4046 = smul.addr %s4045, 8
        %s4047 = smul.addr %s4046, 4
        %s4048 = scalar_lea.vmem %s7, %s4047
      $region68: #{attention_dw_forward.2} parent=55 // pred_fallthru
        _
    $region56: #{attention_dw_forward.2} parent=5 // pred_fallthru
      _
  $region6: #{attention_dw_forward.2} parent=0 // loop_footer
    %s18 = sadd.s32 1, %s14
  $region7: #{attention_dw_forward.2} parent=0 // loop_footer_branch
    %13 = sbr.rel target = $region3
  $region8: #{attention_dw_forward.2} parent=0 // loop_exit
    _

</llo_original>
